<compile_context>
chip_gen: v5e
topology: v5e:2x2
jax: 0.10.0
libtpu: 0.0.40
codegen_flags: <defaults>
</compile_context>

<pallas_src>
import jax
import jax.numpy as jnp
import numpy as np
from jax.experimental import pallas as pl
from jax.experimental.pallas import tpu as pltpu

HIDDEN = 512                          # fixed internal width of the module


def _tpu_caps():
    """Per-chip knobs: (#TensorCores/chip, vmem_limit_bytes, per-step VMEM budget)."""
    kind = ""
    try:
        kind = jax.devices()[0].device_kind.lower()
    except Exception:
        pass
    if ("v7" in kind) or ("tpu7" in kind):
        # 2 TensorCores, only 64 MiB VMEM per core -> stay well under the ceiling.
        return 2, 48 * 1024 * 1024, 20 * 1024 * 1024
    if ("v5e" in kind) or ("v5 lite" in kind) or ("v5lite" in kind) or ("v6" in kind):
        # single TensorCore, 128 MiB physical VMEM -> bigger blocks, fewer steps.
        return 1, 96 * 1024 * 1024, 48 * 1024 * 1024
    # unknown chip: conservative defaults.
    return 1, 32 * 1024 * 1024, 12 * 1024 * 1024


def _pick_frames_per_step(bt, hw, in_bytes_per_frame, n_tc, budget_bytes,
                          max_rows=2048):
    """Largest F that divides BT, keeps every TensorCore busy (only enforced on
    multi-TC chips), keeps matmul M = F*HW bounded, and whose per-step VMEM
    working set (double-buffered input + f32 intermediate + output) fits."""
    best = 1
    for f in range(1, bt + 1):
        if bt % f:
            continue
        if n_tc >= 2 and bt >= n_tc and (bt // f) < n_tc:
            continue                                   # keep both v7x TCs busy
        rows = f * hw
        if rows > max_rows:
            continue
        need = (2 * f * in_bytes_per_frame             # double-buffered input DMA
                + rows * HIDDEN * 4                    # f32 conv/ReLU intermediate
                + 2 * f * HIDDEN * 4)                  # double-buffered pooled out
        if need > budget_bytes:
            continue
        best = f
    return best


def representation_projection(x_nchw, params, b, temporal_downscale, type='s'):
    w2, b2, w3, b3, wfc, bfc = params
    BT, Cin, H, W = x_nchw.shape
    T = BT // b
    td = temporal_downscale
    out_dim = wfc.shape[1]
    HW = H * W
    OUT_PAD = ((out_dim + 127) // 128) * 128           # lane-dense fc output
    n_tc, vmem_limit, budget = _tpu_caps()

    # ---------- stage 1: spatial conv + ReLU + global avg pool ----------
    xh = jnp.transpose(x_nchw, (0, 2, 3, 1)).astype(jnp.float32)   # (BT,H,W,Cin)
    b2r = b2.reshape(1, HIDDEN).astype(jnp.float32)
    inv_hw = 1.0 / HW
    pack9 = (3 * Cin) < 128        # small Cin: pack all 9 taps into one big-K matmul

    if pack9:
        xp = jnp.pad(xh, ((0, 0), (1, 1), (1, 1), (0, 0)))          # pad H and W
        taps = [xp[:, kh:kh + H, kw:kw + W, :]
                for kh in range(3) for kw in range(3)]
        xw = jnp.concatenate(taps, axis=-1).astype(jnp.bfloat16)    # (BT,H,W,9Cin)
        xw = xw.reshape(BT, HW, 9 * Cin)
        w2k = w2.reshape(9 * Cin, HIDDEN).astype(jnp.bfloat16)      # (kh*kw*Cin, 512)
        bytes_per_frame = HW * 9 * Cin * 2
    else:
        # TODO(synk): for very large Cin, build the width taps in-kernel from a
        # 1x-HBM (F,H+2,W+2,Cin) block to cut HBM traffic 3x.
        xpw = jnp.pad(xh, ((0, 0), (0, 0), (1, 1), (0, 0)))         # pad W
        xw = jnp.concatenate([xpw[:, :, kw:kw + W, :] for kw in range(3)], axis=-1)
        xw = jnp.pad(xw, ((0, 0), (1, 1), (0, 0), (0, 0)))          # pad H
        xw = xw.astype(jnp.bfloat16)                                # (BT,H+2,W,3Cin)
        w2k = w2.reshape(3, 3 * Cin, HIDDEN).astype(jnp.bfloat16)   # (kh, kw*Cin, 512)
        bytes_per_frame = (H + 2) * W * 3 * Cin * 2

    F = _pick_frames_per_step(BT, HW, bytes_per_frame, n_tc, budget)
    n_steps = BT // F

    if pack9:
        def spatial_kernel(x_ref, w_ref, b_ref, o_ref):
            # one large-K matmul: all 9 conv taps packed along the lane axis
            y = jnp.dot(x_ref[...].reshape(F * HW, 9 * Cin), w_ref[...],
                        preferred_element_type=jnp.float32)
            y = jnp.maximum(y + b_ref[...], 0.0)                    # bias + ReLU
            o_ref[0, :, :] = jnp.sum(y.reshape(F, HW, HIDDEN), axis=1) * inv_hw

        in_specs = [
            pl.BlockSpec((F, HW, 9 * Cin), lambda i: (i, 0, 0)),
            pl.BlockSpec((9 * Cin, HIDDEN), lambda i: (0, 0)),
            pl.BlockSpec((1, HIDDEN), lambda i: (0, 0)),
        ]
    else:
        def spatial_kernel(x_ref, w_ref, b_ref, o_ref):
            # height taps = free major-axis slices of the H-padded block in VMEM;
            # three K=3*Cin bf16 matmuls accumulate into one f32 tile.
            y = jnp.dot(x_ref[:, 0:H, :, :].reshape(F * HW, 3 * Cin), w_ref[0],
                        preferred_element_type=jnp.float32)
            for kh in (1, 2):
                y = y + jnp.dot(x_ref[:, kh:kh + H, :, :].reshape(F * HW, 3 * Cin),
                                w_ref[kh], preferred_element_type=jnp.float32)
            y = jnp.maximum(y + b_ref[...], 0.0)                    # bias + ReLU
            o_ref[0, :, :] = jnp.sum(y.reshape(F, HW, HIDDEN), axis=1) * inv_hw

        in_specs = [
            pl.BlockSpec((F, H + 2, W, 3 * Cin), lambda i: (i, 0, 0, 0)),
            pl.BlockSpec((3, 3 * Cin, HIDDEN), lambda i: (0, 0, 0)),
            pl.BlockSpec((1, HIDDEN), lambda i: (0, 0)),
        ]

    feats = pl.pallas_call(
        spatial_kernel,
        out_shape=jax.ShapeDtypeStruct((n_steps, F, HIDDEN), jnp.float32),
        grid=(n_steps,),
        in_specs=in_specs,
        out_specs=pl.BlockSpec((1, F, HIDDEN), lambda i: (i, 0, 0)),
        compiler_params=pltpu.CompilerParams(
            dimension_semantics=("parallel",),
            vmem_limit_bytes=vmem_limit),
    )(xw, w2k, b2r)
    feats = feats.reshape(b, T, HIDDEN)                  # '(b t) c 1 1 -> b t c'

    # ---------- stage 2: temporal conv + temporal pool + fc (fused) ----------
    T_out = (T - 1) // td + 1
    fpad = jnp.pad(feats, ((0, 0), (1, 1), (0, 0)))
    gathers = [fpad[:, k: k + td * (T_out - 1) + 1: td, :] for k in range(3)]
    xg = jnp.stack(gathers, axis=2).reshape(b, T_out, 3 * HIDDEN).astype(jnp.bfloat16)
    w3r = w3.reshape(3 * HIDDEN, HIDDEN).astype(jnp.bfloat16)
    b3r = b3.reshape(1, HIDDEN).astype(jnp.float32)
    wfc_p = jnp.zeros((HIDDEN, OUT_PAD), jnp.bfloat16).at[:, :out_dim].set(
        wfc.astype(jnp.bfloat16))
    bfc_p = jnp.zeros((1, OUT_PAD), jnp.float32).at[:, :out_dim].set(
        bfc.reshape(1, out_dim).astype(jnp.float32))

    # tiny, launch/latency-bound kernel: 2 steps only when both v7x TCs can help.
    n_chunks = 2 if (n_tc >= 2 and b % 2 == 0) else 1
    chunk = b // n_chunks

    def temporal_kernel(xg_ref, w3_ref, b3_ref, wfc_ref, bfc_ref, o_ref):
        xg_flat = xg_ref[...].reshape(chunk * T_out, 3 * HIDDEN)
        y = jnp.dot(xg_flat, w3_ref[...],
                    preferred_element_type=jnp.float32) + b3_ref[...]      # temporal conv
        seq = jnp.dot(y.astype(jnp.bfloat16), wfc_ref[...],
                      preferred_element_type=jnp.float32) + bfc_ref[...]   # fc (lane-padded)
        seq3 = seq.reshape(chunk, T_out, OUT_PAD)
        # fc is affine => fc(mean_t(y)) == mean_t(fc(y)): reuse seq, no second fc matmul.
        o_ref[:, 0, :] = jnp.mean(seq3, axis=1)          # grs row
        o_ref[:, 1:, :] = seq3                           # per-step rows

    out_p = pl.pallas_call(
        temporal_kernel,
        out_shape=jax.ShapeDtypeStruct((b, 1 + T_out, OUT_PAD), jnp.float32),
        grid=(n_chunks,),
        in_specs=[
            pl.BlockSpec((chunk, T_out, 3 * HIDDEN), lambda i: (i, 0, 0)),
            pl.BlockSpec((3 * HIDDEN, HIDDEN), lambda i: (0, 0)),
            pl.BlockSpec((1, HIDDEN), lambda i: (0, 0)),
            pl.BlockSpec((HIDDEN, OUT_PAD), lambda i: (0, 0)),
            pl.BlockSpec((1, OUT_PAD), lambda i: (0, 0)),
        ],
        out_specs=pl.BlockSpec((chunk, 1 + T_out, OUT_PAD), lambda i: (i, 0, 0)),
        compiler_params=pltpu.CompilerParams(
            dimension_semantics=("parallel",),
            vmem_limit_bytes=vmem_limit),
    )(xg, w3r, b3r, wfc_p, bfc_p)

    out = out_p[..., :out_dim]                           # drop lane padding
    if type == 'g':
        return out[:, 0]                                 # grs only
    return out                                           # cat([grs[:,None], seq fc], 1)


# ---------------- pure-JAX f32 reference for verification ----------------

def reference_forward(x_nchw, params, b, T, td):
    w2, b2, w3, b3, wfc, bfc = params
    hp = jax.lax.Precision.HIGHEST
    xh = jnp.transpose(x_nchw, (0, 2, 3, 1))
    y = jax.lax.conv_general_dilated(
        xh, w2, window_strides=(1, 1), padding='SAME',
        dimension_numbers=('NHWC', 'HWIO', 'NHWC'), precision=hp)
    y = jnp.maximum(y + b2.reshape(1, 1, 1, -1), 0.0)
    feats = y.mean(axis=(1, 2)).reshape(b, T, HIDDEN)
    fpad = jnp.pad(feats, ((0, 0), (1, 1), (0, 0)))
    T_out = (T - 1) // td + 1
    yt = []
    for to in range(T_out):
        acc = jnp.broadcast_to(b3, (b, HIDDEN))
        for k in range(3):
            acc = acc + jnp.dot(fpad[:, to * td + k, :], w3[k], precision=hp)
        yt.append(acc)
    yt = jnp.stack(yt, axis=1)                           # (b, T_out, 512)
    grs = jnp.dot(yt.mean(axis=1), wfc, precision=hp) + bfc
    seq = jnp.einsum('btc,co->bto', yt, wfc, precision=hp) + bfc.reshape(1, 1, -1)
    return jnp.concatenate([grs[:, None, :], seq], axis=1)


# ---------------- demo ----------------

if __name__ == "__main__":
    B, T, Cin, H, W = 2, 4, 4, 16, 16
    out_dim, td = 64, 2

    key = jax.random.PRNGKey(0)
    ks = jax.random.split(key, 8)
    x = jax.random.normal(ks[0], (B * T, Cin, H, W), jnp.float32)
    # deterministic synthetic parameters (shapes follow the module's __init__)
    w2 = jax.random.normal(ks[1], (3, 3, Cin, HIDDEN), jnp.float32) * 0.10   # Conv2d (HWIO)
    b2 = jax.random.normal(ks[2], (1, HIDDEN), jnp.float32) * 0.10
    w3 = jax.random.normal(ks[3], (3, HIDDEN, HIDDEN), jnp.float32) * 0.05   # Conv3d (k, cin, cout)
    b3 = jax.random.normal(ks[4], (1, HIDDEN), jnp.float32) * 0.10
    wfc = jax.random.normal(ks[5], (HIDDEN, out_dim), jnp.float32) * 0.05    # Linear (in, out)
    bfc = jax.random.normal(ks[6], (1, out_dim), jnp.float32) * 0.10
    params = (w2, b2, w3, b3, wfc, bfc)

    fwd = jax.jit(representation_projection,
                  static_argnames=("b", "temporal_downscale", "type"))
    out = fwd(x, params, b=B, temporal_downscale=td, type='s')
    out = jax.block_until_ready(out)

    T_out = (T - 1) // td + 1
    assert out.shape == (B, 1 + T_out, out_dim), out.shape

    ref = reference_forward(x, params, B, T, td)
    # bf16 matmul operands (f32 accumulation) vs f32-HIGHEST reference.
    np.testing.assert_allclose(np.asarray(out), np.asarray(ref), atol=2e-2, rtol=2e-2)

    print("KERNEL_OK")
</pallas_src>

<mosaic_0001>
module attributes {stable_mosaic.version = 11 : i64} {
  func.func @spatial_kernel(%arg0: i32, %arg1: memref<8x256x36xbf16, #tpu.memory_space<vmem>>, %arg2: memref<36x512xbf16, #tpu.memory_space<vmem>>, %arg3: memref<1x512xf32, #tpu.memory_space<vmem>>, %arg4: memref<1x8x512xf32, #tpu.memory_space<vmem>>) attributes {dimension_semantics = [#tpu.dimension_semantics<parallel>], iteration_bounds = array<i64: 1>, scalar_prefetch = 0 : i64, scratch_operands = 0 : i64, tpu.core_type = #tpu.core_type<tc>, window_params = [{transform_indices = @transform_0, window_bounds = array<i64: 8, 256, 36>}, {pipeline_mode = #tpu.pipeline_mode<synchronous>, transform_indices = @transform_1, window_bounds = array<i64: 36, 512>}, {pipeline_mode = #tpu.pipeline_mode<synchronous>, transform_indices = @transform_2, window_bounds = array<i64: 1, 512>}, {transform_indices = @transform_3, window_bounds = array<i64: 1, 8, 512>}]} {
    %c0 = arith.constant 0 : index
    %c0_0 = arith.constant 0 : index
    %c0_1 = arith.constant 0 : index
    %0 = vector.load %arg1[%c0, %c0_0, %c0_1] : memref<8x256x36xbf16, #tpu.memory_space<vmem>>, vector<8x256x36xbf16>
    %1 = vector.shape_cast %0 : vector<8x256x36xbf16> to vector<2048x36xbf16>
    %c0_2 = arith.constant 0 : index
    %c0_3 = arith.constant 0 : index
    %2 = vector.load %arg2[%c0_2, %c0_3] : memref<36x512xbf16, #tpu.memory_space<vmem>>, vector<36x512xbf16>
    %cst = arith.constant dense<0.000000e+00> : vector<2048x512xf32>
    %3 = tpu.matmul %1, %2, %cst {dimension_numbers = #tpu.dot_dimension_numbers<[1], [0], [0], [1], [0, 0, 1, 1], [], []>} : vector<2048x36xbf16>, vector<36x512xbf16>, vector<2048x512xf32> -> vector<2048x512xf32>
    %c0_4 = arith.constant 0 : index
    %c0_5 = arith.constant 0 : index
    %4 = vector.load %arg3[%c0_4, %c0_5] : memref<1x512xf32, #tpu.memory_space<vmem>>, vector<1x512xf32>
    %5 = vector.broadcast %4 : vector<1x512xf32> to vector<2048x512xf32>
    %6 = arith.addf %3, %5 : vector<2048x512xf32>
    %cst_6 = arith.constant 0.000000e+00 : f32
    %7 = vector.broadcast %cst_6 : f32 to vector<2048x512xf32>
    %8 = arith.maximumf %6, %7 : vector<2048x512xf32>
    %9 = vector.shape_cast %8 : vector<2048x512xf32> to vector<8x256x512xf32>
    %cst_7 = arith.constant dense<0.000000e+00> : vector<8x512xf32>
    %10 = vector.multi_reduction <add>, %9, %cst_7 [1] : vector<8x256x512xf32> to vector<8x512xf32>
    %cst_8 = arith.constant 3.906250e-03 : f32
    %11 = vector.broadcast %cst_8 : f32 to vector<8x512xf32>
    %12 = arith.mulf %10, %11 : vector<8x512xf32>
    %c0_9 = arith.constant 0 : index
    %c0_10 = arith.constant 0 : index
    %c0_11 = arith.constant 0 : index
    %13 = vector.load %arg4[%c0_9, %c0_10, %c0_11] : memref<1x8x512xf32, #tpu.memory_space<vmem>>, vector<1x8x512xf32>
    %14 = vector.shape_cast %13 : vector<1x8x512xf32> to vector<8x512xf32>
    %15 = vector.shape_cast %12 : vector<8x512xf32> to vector<1x8x512xf32>
    tpu.vector_store %arg4[%c0_9, %c0_10, %c0_11], %15 {strides = array<i32>} : memref<1x8x512xf32, #tpu.memory_space<vmem>>, vector<1x8x512xf32>,
    return
  }
  func.func @transform_0(%arg0: i32) -> (i32, i32, i32) {
    %c0_i32 = arith.constant 0 : i32
    %c0_i32_0 = arith.constant 0 : i32
    %c0_i32_1 = arith.constant 0 : i32
    return %arg0, %c0_i32, %c0_i32_0 : i32, i32, i32
  }
  func.func @transform_1(%arg0: i32) -> (i32, i32) {
    %c0_i32 = arith.constant 0 : i32
    %c0_i32_0 = arith.constant 0 : i32
    %c0_i32_1 = arith.constant 0 : i32
    return %c0_i32, %c0_i32_0 : i32, i32
  }
  func.func @transform_2(%arg0: i32) -> (i32, i32) {
    %c0_i32 = arith.constant 0 : i32
    %c0_i32_0 = arith.constant 0 : i32
    %c0_i32_1 = arith.constant 0 : i32
    return %c0_i32, %c0_i32_0 : i32, i32
  }
  func.func @transform_3(%arg0: i32) -> (i32, i32, i32) {
    %c0_i32 = arith.constant 0 : i32
    %c0_i32_0 = arith.constant 0 : i32
    %c0_i32_1 = arith.constant 0 : i32
    return %arg0, %c0_i32, %c0_i32_0 : i32, i32, i32
  }
}

module attributes {stable_mosaic.version = 11 : i64} {
  func.func @temporal_kernel(%arg0: i32, %arg1: memref<2x2x1536xbf16, #tpu.memory_space<vmem>>, %arg2: memref<1536x512xbf16, #tpu.memory_space<vmem>>, %arg3: memref<1x512xf32, #tpu.memory_space<vmem>>, %arg4: memref<512x128xbf16, #tpu.memory_space<vmem>>, %arg5: memref<1x128xf32, #tpu.memory_space<vmem>>, %arg6: memref<2x3x128xf32, #tpu.memory_space<vmem>>) attributes {dimension_semantics = [#tpu.dimension_semantics<parallel>], iteration_bounds = array<i64: 1>, scalar_prefetch = 0 : i64, scratch_operands = 0 : i64, tpu.core_type = #tpu.core_type<tc>, window_params = [{transform_indices = @transform_0, window_bounds = array<i64: 2, 2, 1536>}, {pipeline_mode = #tpu.pipeline_mode<synchronous>, transform_indices = @transform_1, window_bounds = array<i64: 1536, 512>}, {pipeline_mode = #tpu.pipeline_mode<synchronous>, transform_indices = @transform_2, window_bounds = array<i64: 1, 512>}, {pipeline_mode = #tpu.pipeline_mode<synchronous>, transform_indices = @transform_3, window_bounds = array<i64: 512, 128>}, {pipeline_mode = #tpu.pipeline_mode<synchronous>, transform_indices = @transform_4, window_bounds = array<i64: 1, 128>}, {transform_indices = @transform_5, window_bounds = array<i64: 2, 3, 128>}]} {
    %c0 = arith.constant 0 : index
    %c0_0 = arith.constant 0 : index
    %c0_1 = arith.constant 0 : index
    %0 = vector.load %arg1[%c0, %c0_0, %c0_1] : memref<2x2x1536xbf16, #tpu.memory_space<vmem>>, vector<2x2x1536xbf16>
    %1 = vector.shape_cast %0 : vector<2x2x1536xbf16> to vector<4x1536xbf16>
    %c0_2 = arith.constant 0 : index
    %c0_3 = arith.constant 0 : index
    %2 = vector.load %arg2[%c0_2, %c0_3] : memref<1536x512xbf16, #tpu.memory_space<vmem>>, vector<1536x512xbf16>
    %cst = arith.constant dense<0.000000e+00> : vector<4x512xf32>
    %3 = tpu.matmul %1, %2, %cst {dimension_numbers = #tpu.dot_dimension_numbers<[1], [0], [0], [1], [0, 0, 1, 1], [], []>} : vector<4x1536xbf16>, vector<1536x512xbf16>, vector<4x512xf32> -> vector<4x512xf32>
    %c0_4 = arith.constant 0 : index
    %c0_5 = arith.constant 0 : index
    %4 = vector.load %arg3[%c0_4, %c0_5] : memref<1x512xf32, #tpu.memory_space<vmem>>, vector<1x512xf32>
    %5 = vector.broadcast %4 : vector<1x512xf32> to vector<4x512xf32>
    %6 = arith.addf %3, %5 : vector<4x512xf32>
    %7 = arith.truncf %6 : vector<4x512xf32> to vector<4x512xbf16>
    %c0_6 = arith.constant 0 : index
    %c0_7 = arith.constant 0 : index
    %8 = vector.load %arg4[%c0_6, %c0_7] : memref<512x128xbf16, #tpu.memory_space<vmem>>, vector<512x128xbf16>
    %cst_8 = arith.constant dense<0.000000e+00> : vector<4x128xf32>
    %9 = tpu.matmul %7, %8, %cst_8 {dimension_numbers = #tpu.dot_dimension_numbers<[1], [0], [0], [1], [0, 0, 1, 1], [], []>} : vector<4x512xbf16>, vector<512x128xbf16>, vector<4x128xf32> -> vector<4x128xf32>
    %c0_9 = arith.constant 0 : index
    %c0_10 = arith.constant 0 : index
    %10 = vector.load %arg5[%c0_9, %c0_10] : memref<1x128xf32, #tpu.memory_space<vmem>>, vector<1x128xf32>
    %11 = vector.broadcast %10 : vector<1x128xf32> to vector<4x128xf32>
    %12 = arith.addf %9, %11 : vector<4x128xf32>
    %13 = vector.shape_cast %12 : vector<4x128xf32> to vector<2x2x128xf32>
    %cst_11 = arith.constant dense<0.000000e+00> : vector<2x128xf32>
    %14 = vector.multi_reduction <add>, %13, %cst_11 [1] : vector<2x2x128xf32> to vector<2x128xf32>
    %cst_12 = arith.constant 2.000000e+00 : f32
    %15 = vector.broadcast %cst_12 : f32 to vector<2x128xf32>
    %16 = arith.divf %14, %15 : vector<2x128xf32>
    %c0_13 = arith.constant 0 : index
    %c0_14 = arith.constant 0 : index
    %c0_15 = arith.constant 0 : index
    %17 = vector.load %arg6[%c0_13, %c0_14, %c0_15] : memref<2x3x128xf32, #tpu.memory_space<vmem>>, vector<2x1x128xf32>
    %18 = vector.shape_cast %17 : vector<2x1x128xf32> to vector<2x128xf32>
    %19 = vector.shape_cast %16 : vector<2x128xf32> to vector<2x1x128xf32>
    tpu.vector_store %arg6[%c0_13, %c0_14, %c0_15], %19 {strides = array<i32>} : memref<2x3x128xf32, #tpu.memory_space<vmem>>, vector<2x1x128xf32>,
    %c0_16 = arith.constant 0 : index
    %c1 = arith.constant 1 : index
    %c0_17 = arith.constant 0 : index
    %20 = vector.load %arg6[%c0_16, %c1, %c0_17] : memref<2x3x128xf32, #tpu.memory_space<vmem>>, vector<2x2x128xf32>
    tpu.vector_store %arg6[%c0_16, %c1, %c0_17], %13 {strides = array<i32>} : memref<2x3x128xf32, #tpu.memory_space<vmem>>, vector<2x2x128xf32>,
    return
  }
  func.func @transform_0(%arg0: i32) -> (i32, i32, i32) {
    %c0_i32 = arith.constant 0 : i32
    %c0_i32_0 = arith.constant 0 : i32
    %c0_i32_1 = arith.constant 0 : i32
    return %arg0, %c0_i32, %c0_i32_0 : i32, i32, i32
  }
  func.func @transform_1(%arg0: i32) -> (i32, i32) {
    %c0_i32 = arith.constant 0 : i32
    %c0_i32_0 = arith.constant 0 : i32
    %c0_i32_1 = arith.constant 0 : i32
    return %c0_i32, %c0_i32_0 : i32, i32
  }
  func.func @transform_2(%arg0: i32) -> (i32, i32) {
    %c0_i32 = arith.constant 0 : i32
    %c0_i32_0 = arith.constant 0 : i32
    %c0_i32_1 = arith.constant 0 : i32
    return %c0_i32, %c0_i32_0 : i32, i32
  }
  func.func @transform_3(%arg0: i32) -> (i32, i32) {
    %c0_i32 = arith.constant 0 : i32
    %c0_i32_0 = arith.constant 0 : i32
    %c0_i32_1 = arith.constant 0 : i32
    return %c0_i32, %c0_i32_0 : i32, i32
  }
  func.func @transform_4(%arg0: i32) -> (i32, i32) {
    %c0_i32 = arith.constant 0 : i32
    %c0_i32_0 = arith.constant 0 : i32
    %c0_i32_1 = arith.constant 0 : i32
    return %c0_i32, %c0_i32_0 : i32, i32
  }
  func.func @transform_5(%arg0: i32) -> (i32, i32, i32) {
    %c0_i32 = arith.constant 0 : i32
    %c0_i32_0 = arith.constant 0 : i32
    %c0_i32_1 = arith.constant 0 : i32
    return %arg0, %c0_i32, %c0_i32_0 : i32, i32, i32
  }
}

</mosaic_0001>

<llo_original>
// kernel: representation_projection.3
$region0: #{representation_projection.3}
  #allocation0 [shape = 'u32[]', space=smem, size = 0x4, offset = 0x4, fixed_abs, tag = 'smem constant byte address 0x4 - core index']
  #allocation1 [shape = 'u32[72,128]{1,0:T(1,128)}', space=vmem, size = 0x9000, scoped, tag = 'internal scratch']
  %s0 = inlined_call_operand.vmem [shape: bf16[2,2,1536], index: 0, kind: input, shape index: {}]
  %s1 = inlined_call_operand.vmem [shape: bf16[1536,512], index: 1, kind: input, shape index: {}]
  %s2 = inlined_call_operand.vmem [shape: f32[1,512], index: 2, kind: input, shape index: {}]
  %s3 = inlined_call_operand.vmem [shape: bf16[512,128], index: 3, kind: input, shape index: {}]
  %s4 = inlined_call_operand.vmem [shape: f32[1,128], index: 4, kind: input, shape index: {}]
  %s5 = inlined_call_operand.vmem [shape: f32[2,3,128], index: 5, kind: output, shape index: {}]
  %s6 = sld [smem:[#allocation0]]
  $region30: #{representation_projection.3} parent=0
    _
  %s8 = ssub.s32 1, %s6
  %s9 = scalar_select 0, %s8, %s6
  // Predicated region
  $region2: #{representation_projection.3} parent=0 // pred_check
    _
  $region3: #{representation_projection.3} parent=0 // pred_check_branch
    %11 = sbr.rel (0) target = $region5
  $region4: #{representation_projection.3} parent=0 // pred_region
    _
  $region5: #{representation_projection.3} parent=0 // pred_fallthru
    _
  // Predicated region
  $region6: #{representation_projection.3} parent=0 // pred_check
    _
  $region7: #{representation_projection.3} parent=0 // pred_check_branch
    %13 = sbr.rel (0) target = $region9
  $region8: #{representation_projection.3} parent=0 // pred_region
    _
  $region9: #{representation_projection.3} parent=0 // pred_fallthru
    _
  // Predicated region
  $region10: #{representation_projection.3} parent=0 // pred_check
    _
  $region11: #{representation_projection.3} parent=0 // pred_check_branch
    %15 = sbr.rel (0) target = $region13
  $region12: #{representation_projection.3} parent=0 // pred_region
    _
  $region13: #{representation_projection.3} parent=0 // pred_fallthru
    _
  // Predicated region
  $region14: #{representation_projection.3} parent=0 // pred_check
    _
  $region15: #{representation_projection.3} parent=0 // pred_check_branch
    %17 = sbr.rel (0) target = $region17
  $region16: #{representation_projection.3} parent=0 // pred_region
    _
  $region17: #{representation_projection.3} parent=0 // pred_fallthru
    _
  // Predicated region
  $region18: #{representation_projection.3} parent=0 // pred_check
    _
  $region19: #{representation_projection.3} parent=0 // pred_check_branch
    %19 = sbr.rel (0) target = $region21
  $region20: #{representation_projection.3} parent=0 // pred_region
    _
  $region21: #{representation_projection.3} parent=0 // pred_fallthru
    _
  %v20 = vld [vmem:[%s0] sm:$0xff]
  %v21 = vld [vmem:[%s0 + $0x8] sm:$0xf]
  %v22 = vld [vmem:[%s0 + $0xc] sm:$0xff]
  %v23 = vld [vmem:[%s0 + $0x14] sm:$0xf]
  %v24 = vld [vmem:[%s1] sm:$0xff]
  %v25 = vld [vmem:[%s1 + $0x8] sm:$0xff]
  %v26 = vld [vmem:[%s1 + $0x10] sm:$0xff]
  %v27 = vld [vmem:[%s1 + $0x18] sm:$0xff]
  %v28 = vld [vmem:[%s1 + $0x20] sm:$0xff]
  %v29 = vld [vmem:[%s1 + $0x28] sm:$0xff]
  %v30 = vld [vmem:[%s1 + $0x30] sm:$0xff]
  %v31 = vld [vmem:[%s1 + $0x38] sm:$0xff]
  %v32 = vld [vmem:[%s1 + $0x40] sm:$0xff]
  %v33 = vld [vmem:[%s1 + $0x48] sm:$0xff]
  %v34 = vld [vmem:[%s1 + $0x50] sm:$0xff]
  %v35 = vld [vmem:[%s1 + $0x58] sm:$0xff]
  %v36 = vld [vmem:[%s1 + $0x60] sm:$0xff]
  %v37 = vld [vmem:[%s1 + $0x68] sm:$0xff]
  %v38 = vld [vmem:[%s1 + $0x70] sm:$0xff]
  %v39 = vld [vmem:[%s1 + $0x78] sm:$0xff]
  %v40 = vld [vmem:[%s1 + $0x80] sm:$0xff]
  %v41 = vld [vmem:[%s1 + $0x88] sm:$0xff]
  %v42 = vld [vmem:[%s1 + $0x90] sm:$0xff]
  %v43 = vld [vmem:[%s1 + $0x98] sm:$0xff]
  %v44 = vld [vmem:[%s1 + $0xa0] sm:$0xff]
  %v45 = vld [vmem:[%s1 + $0xa8] sm:$0xff]
  %v46 = vld [vmem:[%s1 + $0xb0] sm:$0xff]
  %v47 = vld [vmem:[%s1 + $0xb8] sm:$0xff]
  %v48 = vld [vmem:[%s1 + $0xc0] sm:$0xff]
  %v49 = vld [vmem:[%s1 + $0xc8] sm:$0xff]
  %v50 = vld [vmem:[%s1 + $0xd0] sm:$0xff]
  %v51 = vld [vmem:[%s1 + $0xd8] sm:$0xff]
  %v52 = vld [vmem:[%s1 + $0xe0] sm:$0xff]
  %v53 = vld [vmem:[%s1 + $0xe8] sm:$0xff]
  %v54 = vld [vmem:[%s1 + $0xf0] sm:$0xff]
  %v55 = vld [vmem:[%s1 + $0xf8] sm:$0xff]
  %v56 = vld [vmem:[%s1 + $0x100] sm:$0xff]
  %v57 = vld [vmem:[%s1 + $0x108] sm:$0xff]
  %v58 = vld [vmem:[%s1 + $0x110] sm:$0xff]
  %v59 = vld [vmem:[%s1 + $0x118] sm:$0xff]
  %v60 = vld [vmem:[%s1 + $0x120] sm:$0xff]
  %v61 = vld [vmem:[%s1 + $0x128] sm:$0xff]
  %v62 = vld [vmem:[%s1 + $0x130] sm:$0xff]
  %v63 = vld [vmem:[%s1 + $0x138] sm:$0xff]
  %v64 = vld [vmem:[%s1 + $0x140] sm:$0xff]
  %v65 = vld [vmem:[%s1 + $0x148] sm:$0xff]
  %v66 = vld [vmem:[%s1 + $0x150] sm:$0xff]
  %v67 = vld [vmem:[%s1 + $0x158] sm:$0xff]
  %v68 = vld [vmem:[%s1 + $0x160] sm:$0xff]
  %v69 = vld [vmem:[%s1 + $0x168] sm:$0xff]
  %v70 = vld [vmem:[%s1 + $0x170] sm:$0xff]
  %v71 = vld [vmem:[%s1 + $0x178] sm:$0xff]
  %v72 = vld [vmem:[%s1 + $0x180] sm:$0xff]
  %v73 = vld [vmem:[%s1 + $0x188] sm:$0xff]
  %v74 = vld [vmem:[%s1 + $0x190] sm:$0xff]
  %v75 = vld [vmem:[%s1 + $0x198] sm:$0xff]
  %v76 = vld [vmem:[%s1 + $0x1a0] sm:$0xff]
  %v77 = vld [vmem:[%s1 + $0x1a8] sm:$0xff]
  %v78 = vld [vmem:[%s1 + $0x1b0] sm:$0xff]
  %v79 = vld [vmem:[%s1 + $0x1b8] sm:$0xff]
  %v80 = vld [vmem:[%s1 + $0x1c0] sm:$0xff]
  %v81 = vld [vmem:[%s1 + $0x1c8] sm:$0xff]
  %v82 = vld [vmem:[%s1 + $0x1d0] sm:$0xff]
  %v83 = vld [vmem:[%s1 + $0x1d8] sm:$0xff]
  %v84 = vld [vmem:[%s1 + $0x1e0] sm:$0xff]
  %v85 = vld [vmem:[%s1 + $0x1e8] sm:$0xff]
  %v86 = vld [vmem:[%s1 + $0x1f0] sm:$0xff]
  %v87 = vld [vmem:[%s1 + $0x1f8] sm:$0xff]
  %v88 = vld [vmem:[%s1 + $0x200] sm:$0xff]
  %v89 = vld [vmem:[%s1 + $0x208] sm:$0xff]
  %v90 = vld [vmem:[%s1 + $0x210] sm:$0xff]
  %v91 = vld [vmem:[%s1 + $0x218] sm:$0xff]
  %v92 = vld [vmem:[%s1 + $0x220] sm:$0xff]
  %v93 = vld [vmem:[%s1 + $0x228] sm:$0xff]
  %v94 = vld [vmem:[%s1 + $0x230] sm:$0xff]
  %v95 = vld [vmem:[%s1 + $0x238] sm:$0xff]
  %v96 = vld [vmem:[%s1 + $0x240] sm:$0xff]
  %v97 = vld [vmem:[%s1 + $0x248] sm:$0xff]
  %v98 = vld [vmem:[%s1 + $0x250] sm:$0xff]
  %v99 = vld [vmem:[%s1 + $0x258] sm:$0xff]
  %v100 = vld [vmem:[%s1 + $0x260] sm:$0xff]
  %v101 = vld [vmem:[%s1 + $0x268] sm:$0xff]
  %v102 = vld [vmem:[%s1 + $0x270] sm:$0xff]
  %v103 = vld [vmem:[%s1 + $0x278] sm:$0xff]
  %v104 = vld [vmem:[%s1 + $0x280] sm:$0xff]
  %v105 = vld [vmem:[%s1 + $0x288] sm:$0xff]
  %v106 = vld [vmem:[%s1 + $0x290] sm:$0xff]
  %v107 = vld [vmem:[%s1 + $0x298] sm:$0xff]
  %v108 = vld [vmem:[%s1 + $0x2a0] sm:$0xff]
  %v109 = vld [vmem:[%s1 + $0x2a8] sm:$0xff]
  %v110 = vld [vmem:[%s1 + $0x2b0] sm:$0xff]
  %v111 = vld [vmem:[%s1 + $0x2b8] sm:$0xff]
  %v112 = vld [vmem:[%s1 + $0x2c0] sm:$0xff]
  %v113 = vld [vmem:[%s1 + $0x2c8] sm:$0xff]
  %v114 = vld [vmem:[%s1 + $0x2d0] sm:$0xff]
  %v115 = vld [vmem:[%s1 + $0x2d8] sm:$0xff]
  %v116 = vld [vmem:[%s1 + $0x2e0] sm:$0xff]
  %v117 = vld [vmem:[%s1 + $0x2e8] sm:$0xff]
  %v118 = vld [vmem:[%s1 + $0x2f0] sm:$0xff]
  %v119 = vld [vmem:[%s1 + $0x2f8] sm:$0xff]
  %v120 = vld [vmem:[%s1 + $0x300] sm:$0xff]
  %v121 = vld [vmem:[%s1 + $0x308] sm:$0xff]
  %v122 = vld [vmem:[%s1 + $0x310] sm:$0xff]
  %v123 = vld [vmem:[%s1 + $0x318] sm:$0xff]
  %v124 = vld [vmem:[%s1 + $0x320] sm:$0xff]
  %v125 = vld [vmem:[%s1 + $0x328] sm:$0xff]
  %v126 = vld [vmem:[%s1 + $0x330] sm:$0xff]
  %v127 = vld [vmem:[%s1 + $0x338] sm:$0xff]
  %v128 = vld [vmem:[%s1 + $0x340] sm:$0xff]
  %v129 = vld [vmem:[%s1 + $0x348] sm:$0xff]
  %v130 = vld [vmem:[%s1 + $0x350] sm:$0xff]
  %v131 = vld [vmem:[%s1 + $0x358] sm:$0xff]
  %v132 = vld [vmem:[%s1 + $0x360] sm:$0xff]
  %v133 = vld [vmem:[%s1 + $0x368] sm:$0xff]
  %v134 = vld [vmem:[%s1 + $0x370] sm:$0xff]
  %v135 = vld [vmem:[%s1 + $0x378] sm:$0xff]
  %v136 = vld [vmem:[%s1 + $0x380] sm:$0xff]
  %v137 = vld [vmem:[%s1 + $0x388] sm:$0xff]
  %v138 = vld [vmem:[%s1 + $0x390] sm:$0xff]
  %v139 = vld [vmem:[%s1 + $0x398] sm:$0xff]
  %v140 = vld [vmem:[%s1 + $0x3a0] sm:$0xff]
  %v141 = vld [vmem:[%s1 + $0x3a8] sm:$0xff]
  %v142 = vld [vmem:[%s1 + $0x3b0] sm:$0xff]
  %v143 = vld [vmem:[%s1 + $0x3b8] sm:$0xff]
  %v144 = vld [vmem:[%s1 + $0x3c0] sm:$0xff]
  %v145 = vld [vmem:[%s1 + $0x3c8] sm:$0xff]
  %v146 = vld [vmem:[%s1 + $0x3d0] sm:$0xff]
  %v147 = vld [vmem:[%s1 + $0x3d8] sm:$0xff]
  %v148 = vld [vmem:[%s1 + $0x3e0] sm:$0xff]
  %v149 = vld [vmem:[%s1 + $0x3e8] sm:$0xff]
  %v150 = vld [vmem:[%s1 + $0x3f0] sm:$0xff]
  %v151 = vld [vmem:[%s1 + $0x3f8] sm:$0xff]
  %v152 = vld [vmem:[%s1 + $0x400] sm:$0xff]
  %v153 = vld [vmem:[%s1 + $0x408] sm:$0xff]
  %v154 = vld [vmem:[%s1 + $0x410] sm:$0xff]
  %v155 = vld [vmem:[%s1 + $0x418] sm:$0xff]
  %v156 = vld [vmem:[%s1 + $0x420] sm:$0xff]
  %v157 = vld [vmem:[%s1 + $0x428] sm:$0xff]
  %v158 = vld [vmem:[%s1 + $0x430] sm:$0xff]
  %v159 = vld [vmem:[%s1 + $0x438] sm:$0xff]
  %v160 = vld [vmem:[%s1 + $0x440] sm:$0xff]
  %v161 = vld [vmem:[%s1 + $0x448] sm:$0xff]
  %v162 = vld [vmem:[%s1 + $0x450] sm:$0xff]
  %v163 = vld [vmem:[%s1 + $0x458] sm:$0xff]
  %v164 = vld [vmem:[%s1 + $0x460] sm:$0xff]
  %v165 = vld [vmem:[%s1 + $0x468] sm:$0xff]
  %v166 = vld [vmem:[%s1 + $0x470] sm:$0xff]
  %v167 = vld [vmem:[%s1 + $0x478] sm:$0xff]
  %v168 = vld [vmem:[%s1 + $0x480] sm:$0xff]
  %v169 = vld [vmem:[%s1 + $0x488] sm:$0xff]
  %v170 = vld [vmem:[%s1 + $0x490] sm:$0xff]
  %v171 = vld [vmem:[%s1 + $0x498] sm:$0xff]
  %v172 = vld [vmem:[%s1 + $0x4a0] sm:$0xff]
  %v173 = vld [vmem:[%s1 + $0x4a8] sm:$0xff]
  %v174 = vld [vmem:[%s1 + $0x4b0] sm:$0xff]
  %v175 = vld [vmem:[%s1 + $0x4b8] sm:$0xff]
  %v176 = vld [vmem:[%s1 + $0x4c0] sm:$0xff]
  %v177 = vld [vmem:[%s1 + $0x4c8] sm:$0xff]
  %v178 = vld [vmem:[%s1 + $0x4d0] sm:$0xff]
  %v179 = vld [vmem:[%s1 + $0x4d8] sm:$0xff]
  %v180 = vld [vmem:[%s1 + $0x4e0] sm:$0xff]
  %v181 = vld [vmem:[%s1 + $0x4e8] sm:$0xff]
  %v182 = vld [vmem:[%s1 + $0x4f0] sm:$0xff]
  %v183 = vld [vmem:[%s1 + $0x4f8] sm:$0xff]
  %v184 = vld [vmem:[%s1 + $0x500] sm:$0xff]
  %v185 = vld [vmem:[%s1 + $0x508] sm:$0xff]
  %v186 = vld [vmem:[%s1 + $0x510] sm:$0xff]
  %v187 = vld [vmem:[%s1 + $0x518] sm:$0xff]
  %v188 = vld [vmem:[%s1 + $0x520] sm:$0xff]
  %v189 = vld [vmem:[%s1 + $0x528] sm:$0xff]
  %v190 = vld [vmem:[%s1 + $0x530] sm:$0xff]
  %v191 = vld [vmem:[%s1 + $0x538] sm:$0xff]
  %v192 = vld [vmem:[%s1 + $0x540] sm:$0xff]
  %v193 = vld [vmem:[%s1 + $0x548] sm:$0xff]
  %v194 = vld [vmem:[%s1 + $0x550] sm:$0xff]
  %v195 = vld [vmem:[%s1 + $0x558] sm:$0xff]
  %v196 = vld [vmem:[%s1 + $0x560] sm:$0xff]
  %v197 = vld [vmem:[%s1 + $0x568] sm:$0xff]
  %v198 = vld [vmem:[%s1 + $0x570] sm:$0xff]
  %v199 = vld [vmem:[%s1 + $0x578] sm:$0xff]
  %v200 = vld [vmem:[%s1 + $0x580] sm:$0xff]
  %v201 = vld [vmem:[%s1 + $0x588] sm:$0xff]
  %v202 = vld [vmem:[%s1 + $0x590] sm:$0xff]
  %v203 = vld [vmem:[%s1 + $0x598] sm:$0xff]
  %v204 = vld [vmem:[%s1 + $0x5a0] sm:$0xff]
  %v205 = vld [vmem:[%s1 + $0x5a8] sm:$0xff]
  %v206 = vld [vmem:[%s1 + $0x5b0] sm:$0xff]
  %v207 = vld [vmem:[%s1 + $0x5b8] sm:$0xff]
  %v208 = vld [vmem:[%s1 + $0x5c0] sm:$0xff]
  %v209 = vld [vmem:[%s1 + $0x5c8] sm:$0xff]
  %v210 = vld [vmem:[%s1 + $0x5d0] sm:$0xff]
  %v211 = vld [vmem:[%s1 + $0x5d8] sm:$0xff]
  %v212 = vld [vmem:[%s1 + $0x5e0] sm:$0xff]
  %v213 = vld [vmem:[%s1 + $0x5e8] sm:$0xff]
  %v214 = vld [vmem:[%s1 + $0x5f0] sm:$0xff]
  %v215 = vld [vmem:[%s1 + $0x5f8] sm:$0xff]
  %v216 = vld [vmem:[%s1 + $0x600] sm:$0xff]
  %v217 = vld [vmem:[%s1 + $0x608] sm:$0xff]
  %v218 = vld [vmem:[%s1 + $0x610] sm:$0xff]
  %v219 = vld [vmem:[%s1 + $0x618] sm:$0xff]
  %v220 = vld [vmem:[%s1 + $0x620] sm:$0xff]
  %v221 = vld [vmem:[%s1 + $0x628] sm:$0xff]
  %v222 = vld [vmem:[%s1 + $0x630] sm:$0xff]
  %v223 = vld [vmem:[%s1 + $0x638] sm:$0xff]
  %v224 = vld [vmem:[%s1 + $0x640] sm:$0xff]
  %v225 = vld [vmem:[%s1 + $0x648] sm:$0xff]
  %v226 = vld [vmem:[%s1 + $0x650] sm:$0xff]
  %v227 = vld [vmem:[%s1 + $0x658] sm:$0xff]
  %v228 = vld [vmem:[%s1 + $0x660] sm:$0xff]
  %v229 = vld [vmem:[%s1 + $0x668] sm:$0xff]
  %v230 = vld [vmem:[%s1 + $0x670] sm:$0xff]
  %v231 = vld [vmem:[%s1 + $0x678] sm:$0xff]
  %v232 = vld [vmem:[%s1 + $0x680] sm:$0xff]
  %v233 = vld [vmem:[%s1 + $0x688] sm:$0xff]
  %v234 = vld [vmem:[%s1 + $0x690] sm:$0xff]
  %v235 = vld [vmem:[%s1 + $0x698] sm:$0xff]
  %v236 = vld [vmem:[%s1 + $0x6a0] sm:$0xff]
  %v237 = vld [vmem:[%s1 + $0x6a8] sm:$0xff]
  %v238 = vld [vmem:[%s1 + $0x6b0] sm:$0xff]
  %v239 = vld [vmem:[%s1 + $0x6b8] sm:$0xff]
  %v240 = vld [vmem:[%s1 + $0x6c0] sm:$0xff]
  %v241 = vld [vmem:[%s1 + $0x6c8] sm:$0xff]
  %v242 = vld [vmem:[%s1 + $0x6d0] sm:$0xff]
  %v243 = vld [vmem:[%s1 + $0x6d8] sm:$0xff]
  %v244 = vld [vmem:[%s1 + $0x6e0] sm:$0xff]
  %v245 = vld [vmem:[%s1 + $0x6e8] sm:$0xff]
  %v246 = vld [vmem:[%s1 + $0x6f0] sm:$0xff]
  %v247 = vld [vmem:[%s1 + $0x6f8] sm:$0xff]
  %v248 = vld [vmem:[%s1 + $0x700] sm:$0xff]
  %v249 = vld [vmem:[%s1 + $0x708] sm:$0xff]
  %v250 = vld [vmem:[%s1 + $0x710] sm:$0xff]
  %v251 = vld [vmem:[%s1 + $0x718] sm:$0xff]
  %v252 = vld [vmem:[%s1 + $0x720] sm:$0xff]
  %v253 = vld [vmem:[%s1 + $0x728] sm:$0xff]
  %v254 = vld [vmem:[%s1 + $0x730] sm:$0xff]
  %v255 = vld [vmem:[%s1 + $0x738] sm:$0xff]
  %v256 = vld [vmem:[%s1 + $0x740] sm:$0xff]
  %v257 = vld [vmem:[%s1 + $0x748] sm:$0xff]
  %v258 = vld [vmem:[%s1 + $0x750] sm:$0xff]
  %v259 = vld [vmem:[%s1 + $0x758] sm:$0xff]
  %v260 = vld [vmem:[%s1 + $0x760] sm:$0xff]
  %v261 = vld [vmem:[%s1 + $0x768] sm:$0xff]
  %v262 = vld [vmem:[%s1 + $0x770] sm:$0xff]
  %v263 = vld [vmem:[%s1 + $0x778] sm:$0xff]
  %v264 = vld [vmem:[%s1 + $0x780] sm:$0xff]
  %v265 = vld [vmem:[%s1 + $0x788] sm:$0xff]
  %v266 = vld [vmem:[%s1 + $0x790] sm:$0xff]
  %v267 = vld [vmem:[%s1 + $0x798] sm:$0xff]
  %v268 = vld [vmem:[%s1 + $0x7a0] sm:$0xff]
  %v269 = vld [vmem:[%s1 + $0x7a8] sm:$0xff]
  %v270 = vld [vmem:[%s1 + $0x7b0] sm:$0xff]
  %v271 = vld [vmem:[%s1 + $0x7b8] sm:$0xff]
  %v272 = vld [vmem:[%s1 + $0x7c0] sm:$0xff]
  %v273 = vld [vmem:[%s1 + $0x7c8] sm:$0xff]
  %v274 = vld [vmem:[%s1 + $0x7d0] sm:$0xff]
  %v275 = vld [vmem:[%s1 + $0x7d8] sm:$0xff]
  %v276 = vld [vmem:[%s1 + $0x7e0] sm:$0xff]
  %v277 = vld [vmem:[%s1 + $0x7e8] sm:$0xff]
  %v278 = vld [vmem:[%s1 + $0x7f0] sm:$0xff]
  %v279 = vld [vmem:[%s1 + $0x7f8] sm:$0xff]
  %v280 = vld [vmem:[%s1 + $0x800] sm:$0xff]
  %v281 = vld [vmem:[%s1 + $0x808] sm:$0xff]
  %v282 = vld [vmem:[%s1 + $0x810] sm:$0xff]
  %v283 = vld [vmem:[%s1 + $0x818] sm:$0xff]
  %v284 = vld [vmem:[%s1 + $0x820] sm:$0xff]
  %v285 = vld [vmem:[%s1 + $0x828] sm:$0xff]
  %v286 = vld [vmem:[%s1 + $0x830] sm:$0xff]
  %v287 = vld [vmem:[%s1 + $0x838] sm:$0xff]
  %v288 = vld [vmem:[%s1 + $0x840] sm:$0xff]
  %v289 = vld [vmem:[%s1 + $0x848] sm:$0xff]
  %v290 = vld [vmem:[%s1 + $0x850] sm:$0xff]
  %v291 = vld [vmem:[%s1 + $0x858] sm:$0xff]
  %v292 = vld [vmem:[%s1 + $0x860] sm:$0xff]
  %v293 = vld [vmem:[%s1 + $0x868] sm:$0xff]
  %v294 = vld [vmem:[%s1 + $0x870] sm:$0xff]
  %v295 = vld [vmem:[%s1 + $0x878] sm:$0xff]
  %v296 = vld [vmem:[%s1 + $0x880] sm:$0xff]
  %v297 = vld [vmem:[%s1 + $0x888] sm:$0xff]
  %v298 = vld [vmem:[%s1 + $0x890] sm:$0xff]
  %v299 = vld [vmem:[%s1 + $0x898] sm:$0xff]
  %v300 = vld [vmem:[%s1 + $0x8a0] sm:$0xff]
  %v301 = vld [vmem:[%s1 + $0x8a8] sm:$0xff]
  %v302 = vld [vmem:[%s1 + $0x8b0] sm:$0xff]
  %v303 = vld [vmem:[%s1 + $0x8b8] sm:$0xff]
  %v304 = vld [vmem:[%s1 + $0x8c0] sm:$0xff]
  %v305 = vld [vmem:[%s1 + $0x8c8] sm:$0xff]
  %v306 = vld [vmem:[%s1 + $0x8d0] sm:$0xff]
  %v307 = vld [vmem:[%s1 + $0x8d8] sm:$0xff]
  %v308 = vld [vmem:[%s1 + $0x8e0] sm:$0xff]
  %v309 = vld [vmem:[%s1 + $0x8e8] sm:$0xff]
  %v310 = vld [vmem:[%s1 + $0x8f0] sm:$0xff]
  %v311 = vld [vmem:[%s1 + $0x8f8] sm:$0xff]
  %v312 = vld [vmem:[%s1 + $0x900] sm:$0xff]
  %v313 = vld [vmem:[%s1 + $0x908] sm:$0xff]
  %v314 = vld [vmem:[%s1 + $0x910] sm:$0xff]
  %v315 = vld [vmem:[%s1 + $0x918] sm:$0xff]
  %v316 = vld [vmem:[%s1 + $0x920] sm:$0xff]
  %v317 = vld [vmem:[%s1 + $0x928] sm:$0xff]
  %v318 = vld [vmem:[%s1 + $0x930] sm:$0xff]
  %v319 = vld [vmem:[%s1 + $0x938] sm:$0xff]
  %v320 = vld [vmem:[%s1 + $0x940] sm:$0xff]
  %v321 = vld [vmem:[%s1 + $0x948] sm:$0xff]
  %v322 = vld [vmem:[%s1 + $0x950] sm:$0xff]
  %v323 = vld [vmem:[%s1 + $0x958] sm:$0xff]
  %v324 = vld [vmem:[%s1 + $0x960] sm:$0xff]
  %v325 = vld [vmem:[%s1 + $0x968] sm:$0xff]
  %v326 = vld [vmem:[%s1 + $0x970] sm:$0xff]
  %v327 = vld [vmem:[%s1 + $0x978] sm:$0xff]
  %v328 = vld [vmem:[%s1 + $0x980] sm:$0xff]
  %v329 = vld [vmem:[%s1 + $0x988] sm:$0xff]
  %v330 = vld [vmem:[%s1 + $0x990] sm:$0xff]
  %v331 = vld [vmem:[%s1 + $0x998] sm:$0xff]
  %v332 = vld [vmem:[%s1 + $0x9a0] sm:$0xff]
  %v333 = vld [vmem:[%s1 + $0x9a8] sm:$0xff]
  %v334 = vld [vmem:[%s1 + $0x9b0] sm:$0xff]
  %v335 = vld [vmem:[%s1 + $0x9b8] sm:$0xff]
  %v336 = vld [vmem:[%s1 + $0x9c0] sm:$0xff]
  %v337 = vld [vmem:[%s1 + $0x9c8] sm:$0xff]
  %v338 = vld [vmem:[%s1 + $0x9d0] sm:$0xff]
  %v339 = vld [vmem:[%s1 + $0x9d8] sm:$0xff]
  %v340 = vld [vmem:[%s1 + $0x9e0] sm:$0xff]
  %v341 = vld [vmem:[%s1 + $0x9e8] sm:$0xff]
  %v342 = vld [vmem:[%s1 + $0x9f0] sm:$0xff]
  %v343 = vld [vmem:[%s1 + $0x9f8] sm:$0xff]
  %v344 = vld [vmem:[%s1 + $0xa00] sm:$0xff]
  %v345 = vld [vmem:[%s1 + $0xa08] sm:$0xff]
  %v346 = vld [vmem:[%s1 + $0xa10] sm:$0xff]
  %v347 = vld [vmem:[%s1 + $0xa18] sm:$0xff]
  %v348 = vld [vmem:[%s1 + $0xa20] sm:$0xff]
  %v349 = vld [vmem:[%s1 + $0xa28] sm:$0xff]
  %v350 = vld [vmem:[%s1 + $0xa30] sm:$0xff]
  %v351 = vld [vmem:[%s1 + $0xa38] sm:$0xff]
  %v352 = vld [vmem:[%s1 + $0xa40] sm:$0xff]
  %v353 = vld [vmem:[%s1 + $0xa48] sm:$0xff]
  %v354 = vld [vmem:[%s1 + $0xa50] sm:$0xff]
  %v355 = vld [vmem:[%s1 + $0xa58] sm:$0xff]
  %v356 = vld [vmem:[%s1 + $0xa60] sm:$0xff]
  %v357 = vld [vmem:[%s1 + $0xa68] sm:$0xff]
  %v358 = vld [vmem:[%s1 + $0xa70] sm:$0xff]
  %v359 = vld [vmem:[%s1 + $0xa78] sm:$0xff]
  %v360 = vld [vmem:[%s1 + $0xa80] sm:$0xff]
  %v361 = vld [vmem:[%s1 + $0xa88] sm:$0xff]
  %v362 = vld [vmem:[%s1 + $0xa90] sm:$0xff]
  %v363 = vld [vmem:[%s1 + $0xa98] sm:$0xff]
  %v364 = vld [vmem:[%s1 + $0xaa0] sm:$0xff]
  %v365 = vld [vmem:[%s1 + $0xaa8] sm:$0xff]
  %v366 = vld [vmem:[%s1 + $0xab0] sm:$0xff]
  %v367 = vld [vmem:[%s1 + $0xab8] sm:$0xff]
  %v368 = vld [vmem:[%s1 + $0xac0] sm:$0xff]
  %v369 = vld [vmem:[%s1 + $0xac8] sm:$0xff]
  %v370 = vld [vmem:[%s1 + $0xad0] sm:$0xff]
  %v371 = vld [vmem:[%s1 + $0xad8] sm:$0xff]
  %v372 = vld [vmem:[%s1 + $0xae0] sm:$0xff]
  %v373 = vld [vmem:[%s1 + $0xae8] sm:$0xff]
  %v374 = vld [vmem:[%s1 + $0xaf0] sm:$0xff]
  %v375 = vld [vmem:[%s1 + $0xaf8] sm:$0xff]
  %v376 = vld [vmem:[%s1 + $0xb00] sm:$0xff]
  %v377 = vld [vmem:[%s1 + $0xb08] sm:$0xff]
  %v378 = vld [vmem:[%s1 + $0xb10] sm:$0xff]
  %v379 = vld [vmem:[%s1 + $0xb18] sm:$0xff]
  %v380 = vld [vmem:[%s1 + $0xb20] sm:$0xff]
  %v381 = vld [vmem:[%s1 + $0xb28] sm:$0xff]
  %v382 = vld [vmem:[%s1 + $0xb30] sm:$0xff]
  %v383 = vld [vmem:[%s1 + $0xb38] sm:$0xff]
  %v384 = vld [vmem:[%s1 + $0xb40] sm:$0xff]
  %v385 = vld [vmem:[%s1 + $0xb48] sm:$0xff]
  %v386 = vld [vmem:[%s1 + $0xb50] sm:$0xff]
  %v387 = vld [vmem:[%s1 + $0xb58] sm:$0xff]
  %v388 = vld [vmem:[%s1 + $0xb60] sm:$0xff]
  %v389 = vld [vmem:[%s1 + $0xb68] sm:$0xff]
  %v390 = vld [vmem:[%s1 + $0xb70] sm:$0xff]
  %v391 = vld [vmem:[%s1 + $0xb78] sm:$0xff]
  %v392 = vld [vmem:[%s1 + $0xb80] sm:$0xff]
  %v393 = vld [vmem:[%s1 + $0xb88] sm:$0xff]
  %v394 = vld [vmem:[%s1 + $0xb90] sm:$0xff]
  %v395 = vld [vmem:[%s1 + $0xb98] sm:$0xff]
  %v396 = vld [vmem:[%s1 + $0xba0] sm:$0xff]
  %v397 = vld [vmem:[%s1 + $0xba8] sm:$0xff]
  %v398 = vld [vmem:[%s1 + $0xbb0] sm:$0xff]
  %v399 = vld [vmem:[%s1 + $0xbb8] sm:$0xff]
  %v400 = vld [vmem:[%s1 + $0xbc0] sm:$0xff]
  %v401 = vld [vmem:[%s1 + $0xbc8] sm:$0xff]
  %v402 = vld [vmem:[%s1 + $0xbd0] sm:$0xff]
  %v403 = vld [vmem:[%s1 + $0xbd8] sm:$0xff]
  %v404 = vld [vmem:[%s1 + $0xbe0] sm:$0xff]
  %v405 = vld [vmem:[%s1 + $0xbe8] sm:$0xff]
  %v406 = vld [vmem:[%s1 + $0xbf0] sm:$0xff]
  %v407 = vld [vmem:[%s1 + $0xbf8] sm:$0xff]
  %v408 = vld [vmem:[%s2] sm:$0xf]
  %v410 = vperm.slane %v408, 0
  %v411 = vperm.slane %v408, 1
  %v412 = vperm.slane %v408, 2
  %v413 = vperm.slane %v408, 3
  %419 = vst [vmem:[#allocation1] ss:$9 sm:$0xff] %v20
  %s421 = scalar_lea.vmem [#allocation1], 1
  %422 = vst [vmem:[%s421] ss:$9 sm:$0xff] %v22
  %v423 = vld [vmem:[#allocation1] sm:$0xff]
  %v424 = vld [vmem:[#allocation1 + $0x9] sm:$0xff]
  %v425 = vld [vmem:[#allocation1 + $0x12] sm:$0xff]
  %v426 = vld [vmem:[#allocation1 + $0x1b] sm:$0xff]
  %v427 = vld [vmem:[#allocation1 + $0x24] sm:$0xff]
  %v428 = vld [vmem:[#allocation1 + $0x2d] sm:$0xff]
  %v429 = vld [vmem:[#allocation1 + $0x36] sm:$0xff]
  %v430 = vld [vmem:[#allocation1 + $0x3f] sm:$0xff]
  %432 = vst [vmem:[#allocation1] ss:$9 sm:$0xff] %v21
  %434 = vst [vmem:[%s421] ss:$9 sm:$0xff] %v23
  %v435 = vld [vmem:[#allocation1] sm:$0xff]
  %v436 = vld [vmem:[#allocation1 + $0x9] sm:$0xff]
  %v437 = vld [vmem:[#allocation1 + $0x12] sm:$0xff]
  %v438 = vld [vmem:[#allocation1 + $0x1b] sm:$0xff]
  %v835 = vunpack.c.l.b16 %v24
  %v836 = vunpack.c.h.b16 %v24
  %v837 = vunpack.c.l.b16 %v25
  %v838 = vunpack.c.h.b16 %v25
  %v839 = vunpack.c.l.b16 %v26
  %v840 = vunpack.c.h.b16 %v26
  %v841 = vunpack.c.l.b16 %v27
  %v842 = vunpack.c.h.b16 %v27
  %v843 = vunpack.c.l.b16 %v28
  %v844 = vunpack.c.h.b16 %v28
  %v845 = vunpack.c.l.b16 %v29
  %v846 = vunpack.c.h.b16 %v29
  %v847 = vunpack.c.l.b16 %v30
  %v848 = vunpack.c.h.b16 %v30
  %v849 = vunpack.c.l.b16 %v31
  %v850 = vunpack.c.h.b16 %v31
  %v851 = vunpack.c.l.b16 %v32
  %v852 = vunpack.c.h.b16 %v32
  %v853 = vunpack.c.l.b16 %v33
  %v854 = vunpack.c.h.b16 %v33
  %v855 = vunpack.c.l.b16 %v34
  %v856 = vunpack.c.h.b16 %v34
  %v857 = vunpack.c.l.b16 %v35
  %v858 = vunpack.c.h.b16 %v35
  %v859 = vunpack.c.l.b16 %v36
  %v860 = vunpack.c.h.b16 %v36
  %v861 = vunpack.c.l.b16 %v37
  %v862 = vunpack.c.h.b16 %v37
  %v863 = vunpack.c.l.b16 %v38
  %v864 = vunpack.c.h.b16 %v38
  %v865 = vunpack.c.l.b16 %v39
  %v866 = vunpack.c.h.b16 %v39
  %v867 = vunpack.c.l.b16 %v40
  %v868 = vunpack.c.h.b16 %v40
  %v869 = vunpack.c.l.b16 %v41
  %v870 = vunpack.c.h.b16 %v41
  %v871 = vunpack.c.l.b16 %v42
  %v872 = vunpack.c.h.b16 %v42
  %v873 = vunpack.c.l.b16 %v43
  %v874 = vunpack.c.h.b16 %v43
  %v875 = vunpack.c.l.b16 %v44
  %v876 = vunpack.c.h.b16 %v44
  %v877 = vunpack.c.l.b16 %v45
  %v878 = vunpack.c.h.b16 %v45
  %v879 = vunpack.c.l.b16 %v46
  %v880 = vunpack.c.h.b16 %v46
  %v881 = vunpack.c.l.b16 %v47
  %v882 = vunpack.c.h.b16 %v47
  %v883 = vunpack.c.l.b16 %v48
  %v884 = vunpack.c.h.b16 %v48
  %v885 = vunpack.c.l.b16 %v49
  %v886 = vunpack.c.h.b16 %v49
  %v887 = vunpack.c.l.b16 %v50
  %v888 = vunpack.c.h.b16 %v50
  %v889 = vunpack.c.l.b16 %v51
  %v890 = vunpack.c.h.b16 %v51
  %v891 = vunpack.c.l.b16 %v52
  %v892 = vunpack.c.h.b16 %v52
  %v893 = vunpack.c.l.b16 %v53
  %v894 = vunpack.c.h.b16 %v53
  %v895 = vunpack.c.l.b16 %v54
  %v896 = vunpack.c.h.b16 %v54
  %v897 = vunpack.c.l.b16 %v55
  %v898 = vunpack.c.h.b16 %v55
  %v899 = vunpack.c.l.b16 %v56
  %v900 = vunpack.c.h.b16 %v56
  %v901 = vunpack.c.l.b16 %v57
  %v902 = vunpack.c.h.b16 %v57
  %v903 = vunpack.c.l.b16 %v58
  %v904 = vunpack.c.h.b16 %v58
  %v905 = vunpack.c.l.b16 %v59
  %v906 = vunpack.c.h.b16 %v59
  %v907 = vunpack.c.l.b16 %v60
  %v908 = vunpack.c.h.b16 %v60
  %v909 = vunpack.c.l.b16 %v61
  %v910 = vunpack.c.h.b16 %v61
  %v911 = vunpack.c.l.b16 %v62
  %v912 = vunpack.c.h.b16 %v62
  %v913 = vunpack.c.l.b16 %v63
  %v914 = vunpack.c.h.b16 %v63
  %v915 = vunpack.c.l.b16 %v64
  %v916 = vunpack.c.h.b16 %v64
  %v917 = vunpack.c.l.b16 %v65
  %v918 = vunpack.c.h.b16 %v65
  %v919 = vunpack.c.l.b16 %v66
  %v920 = vunpack.c.h.b16 %v66
  %v921 = vunpack.c.l.b16 %v67
  %v922 = vunpack.c.h.b16 %v67
  %v923 = vunpack.c.l.b16 %v68
  %v924 = vunpack.c.h.b16 %v68
  %v925 = vunpack.c.l.b16 %v69
  %v926 = vunpack.c.h.b16 %v69
  %v927 = vunpack.c.l.b16 %v70
  %v928 = vunpack.c.h.b16 %v70
  %v929 = vunpack.c.l.b16 %v71
  %v930 = vunpack.c.h.b16 %v71
  %v931 = vunpack.c.l.b16 %v72
  %v932 = vunpack.c.h.b16 %v72
  %v933 = vunpack.c.l.b16 %v73
  %v934 = vunpack.c.h.b16 %v73
  %v935 = vunpack.c.l.b16 %v74
  %v936 = vunpack.c.h.b16 %v74
  %v937 = vunpack.c.l.b16 %v75
  %v938 = vunpack.c.h.b16 %v75
  %v939 = vunpack.c.l.b16 %v76
  %v940 = vunpack.c.h.b16 %v76
  %v941 = vunpack.c.l.b16 %v77
  %v942 = vunpack.c.h.b16 %v77
  %v943 = vunpack.c.l.b16 %v78
  %v944 = vunpack.c.h.b16 %v78
  %v945 = vunpack.c.l.b16 %v79
  %v946 = vunpack.c.h.b16 %v79
  %v947 = vunpack.c.l.b16 %v80
  %v948 = vunpack.c.h.b16 %v80
  %v949 = vunpack.c.l.b16 %v81
  %v950 = vunpack.c.h.b16 %v81
  %v951 = vunpack.c.l.b16 %v82
  %v952 = vunpack.c.h.b16 %v82
  %v953 = vunpack.c.l.b16 %v83
  %v954 = vunpack.c.h.b16 %v83
  %v955 = vunpack.c.l.b16 %v84
  %v956 = vunpack.c.h.b16 %v84
  %v957 = vunpack.c.l.b16 %v85
  %v958 = vunpack.c.h.b16 %v85
  %v959 = vunpack.c.l.b16 %v86
  %v960 = vunpack.c.h.b16 %v86
  %v961 = vunpack.c.l.b16 %v87
  %v962 = vunpack.c.h.b16 %v87
  %v963 = vunpack.c.l.b16 %v88
  %v964 = vunpack.c.h.b16 %v88
  %v965 = vunpack.c.l.b16 %v89
  %v966 = vunpack.c.h.b16 %v89
  %v967 = vunpack.c.l.b16 %v90
  %v968 = vunpack.c.h.b16 %v90
  %v969 = vunpack.c.l.b16 %v91
  %v970 = vunpack.c.h.b16 %v91
  %v971 = vunpack.c.l.b16 %v92
  %v972 = vunpack.c.h.b16 %v92
  %v973 = vunpack.c.l.b16 %v93
  %v974 = vunpack.c.h.b16 %v93
  %v975 = vunpack.c.l.b16 %v94
  %v976 = vunpack.c.h.b16 %v94
  %v977 = vunpack.c.l.b16 %v95
  %v978 = vunpack.c.h.b16 %v95
  %v979 = vunpack.c.l.b16 %v96
  %v980 = vunpack.c.h.b16 %v96
  %v981 = vunpack.c.l.b16 %v97
  %v982 = vunpack.c.h.b16 %v97
  %v983 = vunpack.c.l.b16 %v98
  %v984 = vunpack.c.h.b16 %v98
  %v985 = vunpack.c.l.b16 %v99
  %v986 = vunpack.c.h.b16 %v99
  %v987 = vunpack.c.l.b16 %v100
  %v988 = vunpack.c.h.b16 %v100
  %v989 = vunpack.c.l.b16 %v101
  %v990 = vunpack.c.h.b16 %v101
  %v991 = vunpack.c.l.b16 %v102
  %v992 = vunpack.c.h.b16 %v102
  %v993 = vunpack.c.l.b16 %v103
  %v994 = vunpack.c.h.b16 %v103
  %v995 = vunpack.c.l.b16 %v104
  %v996 = vunpack.c.h.b16 %v104
  %v997 = vunpack.c.l.b16 %v105
  %v998 = vunpack.c.h.b16 %v105
  %v999 = vunpack.c.l.b16 %v106
  %v1000 = vunpack.c.h.b16 %v106
  %v1001 = vunpack.c.l.b16 %v107
  %v1002 = vunpack.c.h.b16 %v107
  %v1003 = vunpack.c.l.b16 %v108
  %v1004 = vunpack.c.h.b16 %v108
  %v1005 = vunpack.c.l.b16 %v109
  %v1006 = vunpack.c.h.b16 %v109
  %v1007 = vunpack.c.l.b16 %v110
  %v1008 = vunpack.c.h.b16 %v110
  %v1009 = vunpack.c.l.b16 %v111
  %v1010 = vunpack.c.h.b16 %v111
  %v1011 = vunpack.c.l.b16 %v112
  %v1012 = vunpack.c.h.b16 %v112
  %v1013 = vunpack.c.l.b16 %v113
  %v1014 = vunpack.c.h.b16 %v113
  %v1015 = vunpack.c.l.b16 %v114
  %v1016 = vunpack.c.h.b16 %v114
  %v1017 = vunpack.c.l.b16 %v115
  %v1018 = vunpack.c.h.b16 %v115
  %v1019 = vunpack.c.l.b16 %v116
  %v1020 = vunpack.c.h.b16 %v116
  %v1021 = vunpack.c.l.b16 %v117
  %v1022 = vunpack.c.h.b16 %v117
  %v1023 = vunpack.c.l.b16 %v118
  %v1024 = vunpack.c.h.b16 %v118
  %v1025 = vunpack.c.l.b16 %v119
  %v1026 = vunpack.c.h.b16 %v119
  %v1027 = vunpack.c.l.b16 %v120
  %v1028 = vunpack.c.h.b16 %v120
  %v1029 = vunpack.c.l.b16 %v121
  %v1030 = vunpack.c.h.b16 %v121
  %v1031 = vunpack.c.l.b16 %v122
  %v1032 = vunpack.c.h.b16 %v122
  %v1033 = vunpack.c.l.b16 %v123
  %v1034 = vunpack.c.h.b16 %v123
  %v1035 = vunpack.c.l.b16 %v124
  %v1036 = vunpack.c.h.b16 %v124
  %v1037 = vunpack.c.l.b16 %v125
  %v1038 = vunpack.c.h.b16 %v125
  %v1039 = vunpack.c.l.b16 %v126
  %v1040 = vunpack.c.h.b16 %v126
  %v1041 = vunpack.c.l.b16 %v127
  %v1042 = vunpack.c.h.b16 %v127
  %v1043 = vunpack.c.l.b16 %v128
  %v1044 = vunpack.c.h.b16 %v128
  %v1045 = vunpack.c.l.b16 %v129
  %v1046 = vunpack.c.h.b16 %v129
  %v1047 = vunpack.c.l.b16 %v130
  %v1048 = vunpack.c.h.b16 %v130
  %v1049 = vunpack.c.l.b16 %v131
  %v1050 = vunpack.c.h.b16 %v131
  %v1051 = vunpack.c.l.b16 %v132
  %v1052 = vunpack.c.h.b16 %v132
  %v1053 = vunpack.c.l.b16 %v133
  %v1054 = vunpack.c.h.b16 %v133
  %v1055 = vunpack.c.l.b16 %v134
  %v1056 = vunpack.c.h.b16 %v134
  %v1057 = vunpack.c.l.b16 %v135
  %v1058 = vunpack.c.h.b16 %v135
  %v1059 = vunpack.c.l.b16 %v136
  %v1060 = vunpack.c.h.b16 %v136
  %v1061 = vunpack.c.l.b16 %v137
  %v1062 = vunpack.c.h.b16 %v137
  %v1063 = vunpack.c.l.b16 %v138
  %v1064 = vunpack.c.h.b16 %v138
  %v1065 = vunpack.c.l.b16 %v139
  %v1066 = vunpack.c.h.b16 %v139
  %v1067 = vunpack.c.l.b16 %v140
  %v1068 = vunpack.c.h.b16 %v140
  %v1069 = vunpack.c.l.b16 %v141
  %v1070 = vunpack.c.h.b16 %v141
  %v1071 = vunpack.c.l.b16 %v142
  %v1072 = vunpack.c.h.b16 %v142
  %v1073 = vunpack.c.l.b16 %v143
  %v1074 = vunpack.c.h.b16 %v143
  %v1075 = vunpack.c.l.b16 %v144
  %v1076 = vunpack.c.h.b16 %v144
  %v1077 = vunpack.c.l.b16 %v145
  %v1078 = vunpack.c.h.b16 %v145
  %v1079 = vunpack.c.l.b16 %v146
  %v1080 = vunpack.c.h.b16 %v146
  %v1081 = vunpack.c.l.b16 %v147
  %v1082 = vunpack.c.h.b16 %v147
  %v1083 = vunpack.c.l.b16 %v148
  %v1084 = vunpack.c.h.b16 %v148
  %v1085 = vunpack.c.l.b16 %v149
  %v1086 = vunpack.c.h.b16 %v149
  %v1087 = vunpack.c.l.b16 %v150
  %v1088 = vunpack.c.h.b16 %v150
  %v1089 = vunpack.c.l.b16 %v151
  %v1090 = vunpack.c.h.b16 %v151
  %v1091 = vunpack.c.l.b16 %v152
  %v1092 = vunpack.c.h.b16 %v152
  %v1093 = vunpack.c.l.b16 %v153
  %v1094 = vunpack.c.h.b16 %v153
  %v1095 = vunpack.c.l.b16 %v154
  %v1096 = vunpack.c.h.b16 %v154
  %v1097 = vunpack.c.l.b16 %v155
  %v1098 = vunpack.c.h.b16 %v155
  %v1099 = vunpack.c.l.b16 %v156
  %v1100 = vunpack.c.h.b16 %v156
  %v1101 = vunpack.c.l.b16 %v157
  %v1102 = vunpack.c.h.b16 %v157
  %v1103 = vunpack.c.l.b16 %v158
  %v1104 = vunpack.c.h.b16 %v158
  %v1105 = vunpack.c.l.b16 %v159
  %v1106 = vunpack.c.h.b16 %v159
  %v1107 = vunpack.c.l.b16 %v160
  %v1108 = vunpack.c.h.b16 %v160
  %v1109 = vunpack.c.l.b16 %v161
  %v1110 = vunpack.c.h.b16 %v161
  %v1111 = vunpack.c.l.b16 %v162
  %v1112 = vunpack.c.h.b16 %v162
  %v1113 = vunpack.c.l.b16 %v163
  %v1114 = vunpack.c.h.b16 %v163
  %v1115 = vunpack.c.l.b16 %v164
  %v1116 = vunpack.c.h.b16 %v164
  %v1117 = vunpack.c.l.b16 %v165
  %v1118 = vunpack.c.h.b16 %v165
  %v1119 = vunpack.c.l.b16 %v166
  %v1120 = vunpack.c.h.b16 %v166
  %v1121 = vunpack.c.l.b16 %v167
  %v1122 = vunpack.c.h.b16 %v167
  %v1123 = vunpack.c.l.b16 %v168
  %v1124 = vunpack.c.h.b16 %v168
  %v1125 = vunpack.c.l.b16 %v169
  %v1126 = vunpack.c.h.b16 %v169
  %v1127 = vunpack.c.l.b16 %v170
  %v1128 = vunpack.c.h.b16 %v170
  %v1129 = vunpack.c.l.b16 %v171
  %v1130 = vunpack.c.h.b16 %v171
  %v1131 = vunpack.c.l.b16 %v172
  %v1132 = vunpack.c.h.b16 %v172
  %v1133 = vunpack.c.l.b16 %v173
  %v1134 = vunpack.c.h.b16 %v173
  %v1135 = vunpack.c.l.b16 %v174
  %v1136 = vunpack.c.h.b16 %v174
  %v1137 = vunpack.c.l.b16 %v175
  %v1138 = vunpack.c.h.b16 %v175
  %v1139 = vunpack.c.l.b16 %v176
  %v1140 = vunpack.c.h.b16 %v176
  %v1141 = vunpack.c.l.b16 %v177
  %v1142 = vunpack.c.h.b16 %v177
  %v1143 = vunpack.c.l.b16 %v178
  %v1144 = vunpack.c.h.b16 %v178
  %v1145 = vunpack.c.l.b16 %v179
  %v1146 = vunpack.c.h.b16 %v179
  %v1147 = vunpack.c.l.b16 %v180
  %v1148 = vunpack.c.h.b16 %v180
  %v1149 = vunpack.c.l.b16 %v181
  %v1150 = vunpack.c.h.b16 %v181
  %v1151 = vunpack.c.l.b16 %v182
  %v1152 = vunpack.c.h.b16 %v182
  %v1153 = vunpack.c.l.b16 %v183
  %v1154 = vunpack.c.h.b16 %v183
  %v1155 = vunpack.c.l.b16 %v184
  %v1156 = vunpack.c.h.b16 %v184
  %v1157 = vunpack.c.l.b16 %v185
  %v1158 = vunpack.c.h.b16 %v185
  %v1159 = vunpack.c.l.b16 %v186
  %v1160 = vunpack.c.h.b16 %v186
  %v1161 = vunpack.c.l.b16 %v187
  %v1162 = vunpack.c.h.b16 %v187
  %v1163 = vunpack.c.l.b16 %v188
  %v1164 = vunpack.c.h.b16 %v188
  %v1165 = vunpack.c.l.b16 %v189
  %v1166 = vunpack.c.h.b16 %v189
  %v1167 = vunpack.c.l.b16 %v190
  %v1168 = vunpack.c.h.b16 %v190
  %v1169 = vunpack.c.l.b16 %v191
  %v1170 = vunpack.c.h.b16 %v191
  %v1171 = vunpack.c.l.b16 %v192
  %v1172 = vunpack.c.h.b16 %v192
  %v1173 = vunpack.c.l.b16 %v193
  %v1174 = vunpack.c.h.b16 %v193
  %v1175 = vunpack.c.l.b16 %v194
  %v1176 = vunpack.c.h.b16 %v194
  %v1177 = vunpack.c.l.b16 %v195
  %v1178 = vunpack.c.h.b16 %v195
  %v1179 = vunpack.c.l.b16 %v196
  %v1180 = vunpack.c.h.b16 %v196
  %v1181 = vunpack.c.l.b16 %v197
  %v1182 = vunpack.c.h.b16 %v197
  %v1183 = vunpack.c.l.b16 %v198
  %v1184 = vunpack.c.h.b16 %v198
  %v1185 = vunpack.c.l.b16 %v199
  %v1186 = vunpack.c.h.b16 %v199
  %v1187 = vunpack.c.l.b16 %v200
  %v1188 = vunpack.c.h.b16 %v200
  %v1189 = vunpack.c.l.b16 %v201
  %v1190 = vunpack.c.h.b16 %v201
  %v1191 = vunpack.c.l.b16 %v202
  %v1192 = vunpack.c.h.b16 %v202
  %v1193 = vunpack.c.l.b16 %v203
  %v1194 = vunpack.c.h.b16 %v203
  %v1195 = vunpack.c.l.b16 %v204
  %v1196 = vunpack.c.h.b16 %v204
  %v1197 = vunpack.c.l.b16 %v205
  %v1198 = vunpack.c.h.b16 %v205
  %v1199 = vunpack.c.l.b16 %v206
  %v1200 = vunpack.c.h.b16 %v206
  %v1201 = vunpack.c.l.b16 %v207
  %v1202 = vunpack.c.h.b16 %v207
  %v1203 = vunpack.c.l.b16 %v208
  %v1204 = vunpack.c.h.b16 %v208
  %v1205 = vunpack.c.l.b16 %v209
  %v1206 = vunpack.c.h.b16 %v209
  %v1207 = vunpack.c.l.b16 %v210
  %v1208 = vunpack.c.h.b16 %v210
  %v1209 = vunpack.c.l.b16 %v211
  %v1210 = vunpack.c.h.b16 %v211
  %v1211 = vunpack.c.l.b16 %v212
  %v1212 = vunpack.c.h.b16 %v212
  %v1213 = vunpack.c.l.b16 %v213
  %v1214 = vunpack.c.h.b16 %v213
  %v1215 = vunpack.c.l.b16 %v214
  %v1216 = vunpack.c.h.b16 %v214
  %v1217 = vunpack.c.l.b16 %v215
  %v1218 = vunpack.c.h.b16 %v215
  %v1219 = vunpack.c.l.b16 %v216
  %v1220 = vunpack.c.h.b16 %v216
  %v1221 = vunpack.c.l.b16 %v217
  %v1222 = vunpack.c.h.b16 %v217
  %v1223 = vunpack.c.l.b16 %v218
  %v1224 = vunpack.c.h.b16 %v218
  %v1225 = vunpack.c.l.b16 %v219
  %v1226 = vunpack.c.h.b16 %v219
  %v1227 = vunpack.c.l.b16 %v220
  %v1228 = vunpack.c.h.b16 %v220
  %v1229 = vunpack.c.l.b16 %v221
  %v1230 = vunpack.c.h.b16 %v221
  %v1231 = vunpack.c.l.b16 %v222
  %v1232 = vunpack.c.h.b16 %v222
  %v1233 = vunpack.c.l.b16 %v223
  %v1234 = vunpack.c.h.b16 %v223
  %v1235 = vunpack.c.l.b16 %v224
  %v1236 = vunpack.c.h.b16 %v224
  %v1237 = vunpack.c.l.b16 %v225
  %v1238 = vunpack.c.h.b16 %v225
  %v1239 = vunpack.c.l.b16 %v226
  %v1240 = vunpack.c.h.b16 %v226
  %v1241 = vunpack.c.l.b16 %v227
  %v1242 = vunpack.c.h.b16 %v227
  %v1243 = vunpack.c.l.b16 %v228
  %v1244 = vunpack.c.h.b16 %v228
  %v1245 = vunpack.c.l.b16 %v229
  %v1246 = vunpack.c.h.b16 %v229
  %v1247 = vunpack.c.l.b16 %v230
  %v1248 = vunpack.c.h.b16 %v230
  %v1249 = vunpack.c.l.b16 %v231
  %v1250 = vunpack.c.h.b16 %v231
  %v1251 = vunpack.c.l.b16 %v232
  %v1252 = vunpack.c.h.b16 %v232
  %v1253 = vunpack.c.l.b16 %v233
  %v1254 = vunpack.c.h.b16 %v233
  %v1255 = vunpack.c.l.b16 %v234
  %v1256 = vunpack.c.h.b16 %v234
  %v1257 = vunpack.c.l.b16 %v235
  %v1258 = vunpack.c.h.b16 %v235
  %v1259 = vunpack.c.l.b16 %v236
  %v1260 = vunpack.c.h.b16 %v236
  %v1261 = vunpack.c.l.b16 %v237
  %v1262 = vunpack.c.h.b16 %v237
  %v1263 = vunpack.c.l.b16 %v238
  %v1264 = vunpack.c.h.b16 %v238
  %v1265 = vunpack.c.l.b16 %v239
  %v1266 = vunpack.c.h.b16 %v239
  %v1267 = vunpack.c.l.b16 %v240
  %v1268 = vunpack.c.h.b16 %v240
  %v1269 = vunpack.c.l.b16 %v241
  %v1270 = vunpack.c.h.b16 %v241
  %v1271 = vunpack.c.l.b16 %v242
  %v1272 = vunpack.c.h.b16 %v242
  %v1273 = vunpack.c.l.b16 %v243
  %v1274 = vunpack.c.h.b16 %v243
  %v1275 = vunpack.c.l.b16 %v244
  %v1276 = vunpack.c.h.b16 %v244
  %v1277 = vunpack.c.l.b16 %v245
  %v1278 = vunpack.c.h.b16 %v245
  %v1279 = vunpack.c.l.b16 %v246
  %v1280 = vunpack.c.h.b16 %v246
  %v1281 = vunpack.c.l.b16 %v247
  %v1282 = vunpack.c.h.b16 %v247
  %v1283 = vunpack.c.l.b16 %v248
  %v1284 = vunpack.c.h.b16 %v248
  %v1285 = vunpack.c.l.b16 %v249
  %v1286 = vunpack.c.h.b16 %v249
  %v1287 = vunpack.c.l.b16 %v250
  %v1288 = vunpack.c.h.b16 %v250
  %v1289 = vunpack.c.l.b16 %v251
  %v1290 = vunpack.c.h.b16 %v251
  %v1291 = vunpack.c.l.b16 %v252
  %v1292 = vunpack.c.h.b16 %v252
  %v1293 = vunpack.c.l.b16 %v253
  %v1294 = vunpack.c.h.b16 %v253
  %v1295 = vunpack.c.l.b16 %v254
  %v1296 = vunpack.c.h.b16 %v254
  %v1297 = vunpack.c.l.b16 %v255
  %v1298 = vunpack.c.h.b16 %v255
  %v1299 = vunpack.c.l.b16 %v256
  %v1300 = vunpack.c.h.b16 %v256
  %v1301 = vunpack.c.l.b16 %v257
  %v1302 = vunpack.c.h.b16 %v257
  %v1303 = vunpack.c.l.b16 %v258
  %v1304 = vunpack.c.h.b16 %v258
  %v1305 = vunpack.c.l.b16 %v259
  %v1306 = vunpack.c.h.b16 %v259
  %v1307 = vunpack.c.l.b16 %v260
  %v1308 = vunpack.c.h.b16 %v260
  %v1309 = vunpack.c.l.b16 %v261
  %v1310 = vunpack.c.h.b16 %v261
  %v1311 = vunpack.c.l.b16 %v262
  %v1312 = vunpack.c.h.b16 %v262
  %v1313 = vunpack.c.l.b16 %v263
  %v1314 = vunpack.c.h.b16 %v263
  %v1315 = vunpack.c.l.b16 %v264
  %v1316 = vunpack.c.h.b16 %v264
  %v1317 = vunpack.c.l.b16 %v265
  %v1318 = vunpack.c.h.b16 %v265
  %v1319 = vunpack.c.l.b16 %v266
  %v1320 = vunpack.c.h.b16 %v266
  %v1321 = vunpack.c.l.b16 %v267
  %v1322 = vunpack.c.h.b16 %v267
  %v1323 = vunpack.c.l.b16 %v268
  %v1324 = vunpack.c.h.b16 %v268
  %v1325 = vunpack.c.l.b16 %v269
  %v1326 = vunpack.c.h.b16 %v269
  %v1327 = vunpack.c.l.b16 %v270
  %v1328 = vunpack.c.h.b16 %v270
  %v1329 = vunpack.c.l.b16 %v271
  %v1330 = vunpack.c.h.b16 %v271
  %v1331 = vunpack.c.l.b16 %v272
  %v1332 = vunpack.c.h.b16 %v272
  %v1333 = vunpack.c.l.b16 %v273
  %v1334 = vunpack.c.h.b16 %v273
  %v1335 = vunpack.c.l.b16 %v274
  %v1336 = vunpack.c.h.b16 %v274
  %v1337 = vunpack.c.l.b16 %v275
  %v1338 = vunpack.c.h.b16 %v275
  %v1339 = vunpack.c.l.b16 %v276
  %v1340 = vunpack.c.h.b16 %v276
  %v1341 = vunpack.c.l.b16 %v277
  %v1342 = vunpack.c.h.b16 %v277
  %v1343 = vunpack.c.l.b16 %v278
  %v1344 = vunpack.c.h.b16 %v278
  %v1345 = vunpack.c.l.b16 %v279
  %v1346 = vunpack.c.h.b16 %v279
  %v1347 = vunpack.c.l.b16 %v280
  %v1348 = vunpack.c.h.b16 %v280
  %v1349 = vunpack.c.l.b16 %v281
  %v1350 = vunpack.c.h.b16 %v281
  %v1351 = vunpack.c.l.b16 %v282
  %v1352 = vunpack.c.h.b16 %v282
  %v1353 = vunpack.c.l.b16 %v283
  %v1354 = vunpack.c.h.b16 %v283
  %v1355 = vunpack.c.l.b16 %v284
  %v1356 = vunpack.c.h.b16 %v284
  %v1357 = vunpack.c.l.b16 %v285
  %v1358 = vunpack.c.h.b16 %v285
  %v1359 = vunpack.c.l.b16 %v286
  %v1360 = vunpack.c.h.b16 %v286
  %v1361 = vunpack.c.l.b16 %v287
  %v1362 = vunpack.c.h.b16 %v287
  %v1363 = vunpack.c.l.b16 %v288
  %v1364 = vunpack.c.h.b16 %v288
  %v1365 = vunpack.c.l.b16 %v289
  %v1366 = vunpack.c.h.b16 %v289
  %v1367 = vunpack.c.l.b16 %v290
  %v1368 = vunpack.c.h.b16 %v290
  %v1369 = vunpack.c.l.b16 %v291
  %v1370 = vunpack.c.h.b16 %v291
  %v1371 = vunpack.c.l.b16 %v292
  %v1372 = vunpack.c.h.b16 %v292
  %v1373 = vunpack.c.l.b16 %v293
  %v1374 = vunpack.c.h.b16 %v293
  %v1375 = vunpack.c.l.b16 %v294
  %v1376 = vunpack.c.h.b16 %v294
  %v1377 = vunpack.c.l.b16 %v295
  %v1378 = vunpack.c.h.b16 %v295
  %v1379 = vunpack.c.l.b16 %v296
  %v1380 = vunpack.c.h.b16 %v296
  %v1381 = vunpack.c.l.b16 %v297
  %v1382 = vunpack.c.h.b16 %v297
  %v1383 = vunpack.c.l.b16 %v298
  %v1384 = vunpack.c.h.b16 %v298
  %v1385 = vunpack.c.l.b16 %v299
  %v1386 = vunpack.c.h.b16 %v299
  %v1387 = vunpack.c.l.b16 %v300
  %v1388 = vunpack.c.h.b16 %v300
  %v1389 = vunpack.c.l.b16 %v301
  %v1390 = vunpack.c.h.b16 %v301
  %v1391 = vunpack.c.l.b16 %v302
  %v1392 = vunpack.c.h.b16 %v302
  %v1393 = vunpack.c.l.b16 %v303
  %v1394 = vunpack.c.h.b16 %v303
  %v1395 = vunpack.c.l.b16 %v304
  %v1396 = vunpack.c.h.b16 %v304
  %v1397 = vunpack.c.l.b16 %v305
  %v1398 = vunpack.c.h.b16 %v305
  %v1399 = vunpack.c.l.b16 %v306
  %v1400 = vunpack.c.h.b16 %v306
  %v1401 = vunpack.c.l.b16 %v307
  %v1402 = vunpack.c.h.b16 %v307
  %v1403 = vunpack.c.l.b16 %v308
  %v1404 = vunpack.c.h.b16 %v308
  %v1405 = vunpack.c.l.b16 %v309
  %v1406 = vunpack.c.h.b16 %v309
  %v1407 = vunpack.c.l.b16 %v310
  %v1408 = vunpack.c.h.b16 %v310
  %v1409 = vunpack.c.l.b16 %v311
  %v1410 = vunpack.c.h.b16 %v311
  %v1411 = vunpack.c.l.b16 %v312
  %v1412 = vunpack.c.h.b16 %v312
  %v1413 = vunpack.c.l.b16 %v313
  %v1414 = vunpack.c.h.b16 %v313
  %v1415 = vunpack.c.l.b16 %v314
  %v1416 = vunpack.c.h.b16 %v314
  %v1417 = vunpack.c.l.b16 %v315
  %v1418 = vunpack.c.h.b16 %v315
  %v1419 = vunpack.c.l.b16 %v316
  %v1420 = vunpack.c.h.b16 %v316
  %v1421 = vunpack.c.l.b16 %v317
  %v1422 = vunpack.c.h.b16 %v317
  %v1423 = vunpack.c.l.b16 %v318
  %v1424 = vunpack.c.h.b16 %v318
  %v1425 = vunpack.c.l.b16 %v319
  %v1426 = vunpack.c.h.b16 %v319
  %v1427 = vunpack.c.l.b16 %v320
  %v1428 = vunpack.c.h.b16 %v320
  %v1429 = vunpack.c.l.b16 %v321
  %v1430 = vunpack.c.h.b16 %v321
  %v1431 = vunpack.c.l.b16 %v322
  %v1432 = vunpack.c.h.b16 %v322
  %v1433 = vunpack.c.l.b16 %v323
  %v1434 = vunpack.c.h.b16 %v323
  %v1435 = vunpack.c.l.b16 %v324
  %v1436 = vunpack.c.h.b16 %v324
  %v1437 = vunpack.c.l.b16 %v325
  %v1438 = vunpack.c.h.b16 %v325
  %v1439 = vunpack.c.l.b16 %v326
  %v1440 = vunpack.c.h.b16 %v326
  %v1441 = vunpack.c.l.b16 %v327
  %v1442 = vunpack.c.h.b16 %v327
  %v1443 = vunpack.c.l.b16 %v328
  %v1444 = vunpack.c.h.b16 %v328
  %v1445 = vunpack.c.l.b16 %v329
  %v1446 = vunpack.c.h.b16 %v329
  %v1447 = vunpack.c.l.b16 %v330
  %v1448 = vunpack.c.h.b16 %v330
  %v1449 = vunpack.c.l.b16 %v331
  %v1450 = vunpack.c.h.b16 %v331
  %v1451 = vunpack.c.l.b16 %v332
  %v1452 = vunpack.c.h.b16 %v332
  %v1453 = vunpack.c.l.b16 %v333
  %v1454 = vunpack.c.h.b16 %v333
  %v1455 = vunpack.c.l.b16 %v334
  %v1456 = vunpack.c.h.b16 %v334
  %v1457 = vunpack.c.l.b16 %v335
  %v1458 = vunpack.c.h.b16 %v335
  %v1459 = vunpack.c.l.b16 %v336
  %v1460 = vunpack.c.h.b16 %v336
  %v1461 = vunpack.c.l.b16 %v337
  %v1462 = vunpack.c.h.b16 %v337
  %v1463 = vunpack.c.l.b16 %v338
  %v1464 = vunpack.c.h.b16 %v338
  %v1465 = vunpack.c.l.b16 %v339
  %v1466 = vunpack.c.h.b16 %v339
  %v1467 = vunpack.c.l.b16 %v340
  %v1468 = vunpack.c.h.b16 %v340
  %v1469 = vunpack.c.l.b16 %v341
  %v1470 = vunpack.c.h.b16 %v341
  %v1471 = vunpack.c.l.b16 %v342
  %v1472 = vunpack.c.h.b16 %v342
  %v1473 = vunpack.c.l.b16 %v343
  %v1474 = vunpack.c.h.b16 %v343
  %v1475 = vunpack.c.l.b16 %v344
  %v1476 = vunpack.c.h.b16 %v344
  %v1477 = vunpack.c.l.b16 %v345
  %v1478 = vunpack.c.h.b16 %v345
  %v1479 = vunpack.c.l.b16 %v346
  %v1480 = vunpack.c.h.b16 %v346
  %v1481 = vunpack.c.l.b16 %v347
  %v1482 = vunpack.c.h.b16 %v347
  %v1483 = vunpack.c.l.b16 %v348
  %v1484 = vunpack.c.h.b16 %v348
  %v1485 = vunpack.c.l.b16 %v349
  %v1486 = vunpack.c.h.b16 %v349
  %v1487 = vunpack.c.l.b16 %v350
  %v1488 = vunpack.c.h.b16 %v350
  %v1489 = vunpack.c.l.b16 %v351
  %v1490 = vunpack.c.h.b16 %v351
  %v1491 = vunpack.c.l.b16 %v352
  %v1492 = vunpack.c.h.b16 %v352
  %v1493 = vunpack.c.l.b16 %v353
  %v1494 = vunpack.c.h.b16 %v353
  %v1495 = vunpack.c.l.b16 %v354
  %v1496 = vunpack.c.h.b16 %v354
  %v1497 = vunpack.c.l.b16 %v355
  %v1498 = vunpack.c.h.b16 %v355
  %v1499 = vunpack.c.l.b16 %v356
  %v1500 = vunpack.c.h.b16 %v356
  %v1501 = vunpack.c.l.b16 %v357
  %v1502 = vunpack.c.h.b16 %v357
  %v1503 = vunpack.c.l.b16 %v358
  %v1504 = vunpack.c.h.b16 %v358
  %v1505 = vunpack.c.l.b16 %v359
  %v1506 = vunpack.c.h.b16 %v359
  %v1507 = vunpack.c.l.b16 %v360
  %v1508 = vunpack.c.h.b16 %v360
  %v1509 = vunpack.c.l.b16 %v361
  %v1510 = vunpack.c.h.b16 %v361
  %v1511 = vunpack.c.l.b16 %v362
  %v1512 = vunpack.c.h.b16 %v362
  %v1513 = vunpack.c.l.b16 %v363
  %v1514 = vunpack.c.h.b16 %v363
  %v1515 = vunpack.c.l.b16 %v364
  %v1516 = vunpack.c.h.b16 %v364
  %v1517 = vunpack.c.l.b16 %v365
  %v1518 = vunpack.c.h.b16 %v365
  %v1519 = vunpack.c.l.b16 %v366
  %v1520 = vunpack.c.h.b16 %v366
  %v1521 = vunpack.c.l.b16 %v367
  %v1522 = vunpack.c.h.b16 %v367
  %v1523 = vunpack.c.l.b16 %v368
  %v1524 = vunpack.c.h.b16 %v368
  %v1525 = vunpack.c.l.b16 %v369
  %v1526 = vunpack.c.h.b16 %v369
  %v1527 = vunpack.c.l.b16 %v370
  %v1528 = vunpack.c.h.b16 %v370
  %v1529 = vunpack.c.l.b16 %v371
  %v1530 = vunpack.c.h.b16 %v371
  %v1531 = vunpack.c.l.b16 %v372
  %v1532 = vunpack.c.h.b16 %v372
  %v1533 = vunpack.c.l.b16 %v373
  %v1534 = vunpack.c.h.b16 %v373
  %v1535 = vunpack.c.l.b16 %v374
  %v1536 = vunpack.c.h.b16 %v374
  %v1537 = vunpack.c.l.b16 %v375
  %v1538 = vunpack.c.h.b16 %v375
  %v1539 = vunpack.c.l.b16 %v376
  %v1540 = vunpack.c.h.b16 %v376
  %v1541 = vunpack.c.l.b16 %v377
  %v1542 = vunpack.c.h.b16 %v377
  %v1543 = vunpack.c.l.b16 %v378
  %v1544 = vunpack.c.h.b16 %v378
  %v1545 = vunpack.c.l.b16 %v379
  %v1546 = vunpack.c.h.b16 %v379
  %v1547 = vunpack.c.l.b16 %v380
  %v1548 = vunpack.c.h.b16 %v380
  %v1549 = vunpack.c.l.b16 %v381
  %v1550 = vunpack.c.h.b16 %v381
  %v1551 = vunpack.c.l.b16 %v382
  %v1552 = vunpack.c.h.b16 %v382
  %v1553 = vunpack.c.l.b16 %v383
  %v1554 = vunpack.c.h.b16 %v383
  %v1555 = vunpack.c.l.b16 %v384
  %v1556 = vunpack.c.h.b16 %v384
  %v1557 = vunpack.c.l.b16 %v385
  %v1558 = vunpack.c.h.b16 %v385
  %v1559 = vunpack.c.l.b16 %v386
  %v1560 = vunpack.c.h.b16 %v386
  %v1561 = vunpack.c.l.b16 %v387
  %v1562 = vunpack.c.h.b16 %v387
  %v1563 = vunpack.c.l.b16 %v388
  %v1564 = vunpack.c.h.b16 %v388
  %v1565 = vunpack.c.l.b16 %v389
  %v1566 = vunpack.c.h.b16 %v389
  %v1567 = vunpack.c.l.b16 %v390
  %v1568 = vunpack.c.h.b16 %v390
  %v1569 = vunpack.c.l.b16 %v391
  %v1570 = vunpack.c.h.b16 %v391
  %v1571 = vunpack.c.l.b16 %v392
  %v1572 = vunpack.c.h.b16 %v392
  %v1573 = vunpack.c.l.b16 %v393
  %v1574 = vunpack.c.h.b16 %v393
  %v1575 = vunpack.c.l.b16 %v394
  %v1576 = vunpack.c.h.b16 %v394
  %v1577 = vunpack.c.l.b16 %v395
  %v1578 = vunpack.c.h.b16 %v395
  %v1579 = vunpack.c.l.b16 %v396
  %v1580 = vunpack.c.h.b16 %v396
  %v1581 = vunpack.c.l.b16 %v397
  %v1582 = vunpack.c.h.b16 %v397
  %v1583 = vunpack.c.l.b16 %v398
  %v1584 = vunpack.c.h.b16 %v398
  %v1585 = vunpack.c.l.b16 %v399
  %v1586 = vunpack.c.h.b16 %v399
  %v1587 = vunpack.c.l.b16 %v400
  %v1588 = vunpack.c.h.b16 %v400
  %v1589 = vunpack.c.l.b16 %v401
  %v1590 = vunpack.c.h.b16 %v401
  %v1591 = vunpack.c.l.b16 %v402
  %v1592 = vunpack.c.h.b16 %v402
  %v1593 = vunpack.c.l.b16 %v403
  %v1594 = vunpack.c.h.b16 %v403
  %v1595 = vunpack.c.l.b16 %v404
  %v1596 = vunpack.c.h.b16 %v404
  %v1597 = vunpack.c.l.b16 %v405
  %v1598 = vunpack.c.h.b16 %v405
  %v1599 = vunpack.c.l.b16 %v406
  %v1600 = vunpack.c.h.b16 %v406
  %v1601 = vunpack.c.l.b16 %v407
  %v1602 = vunpack.c.h.b16 %v407
  %v1603 = vpack.c.b16 %v839, %v835
  %v1604 = vpack.c.b16 %v840, %v836
  %v1605 = vpack.c.b16 %v841, %v837
  %v1606 = vpack.c.b16 %v842, %v838
  %v1607 = vpack.c.b16 %v847, %v843
  %v1608 = vpack.c.b16 %v848, %v844
  %v1609 = vpack.c.b16 %v849, %v845
  %v1610 = vpack.c.b16 %v850, %v846
  %v1611 = vpack.c.b16 %v855, %v851
  %v1612 = vpack.c.b16 %v856, %v852
  %v1613 = vpack.c.b16 %v857, %v853
  %v1614 = vpack.c.b16 %v858, %v854
  %v1615 = vpack.c.b16 %v863, %v859
  %v1616 = vpack.c.b16 %v864, %v860
  %v1617 = vpack.c.b16 %v865, %v861
  %v1618 = vpack.c.b16 %v866, %v862
  %v1619 = vpack.c.b16 %v871, %v867
  %v1620 = vpack.c.b16 %v872, %v868
  %v1621 = vpack.c.b16 %v873, %v869
  %v1622 = vpack.c.b16 %v874, %v870
  %v1623 = vpack.c.b16 %v879, %v875
  %v1624 = vpack.c.b16 %v880, %v876
  %v1625 = vpack.c.b16 %v881, %v877
  %v1626 = vpack.c.b16 %v882, %v878
  %v1627 = vpack.c.b16 %v887, %v883
  %v1628 = vpack.c.b16 %v888, %v884
  %v1629 = vpack.c.b16 %v889, %v885
  %v1630 = vpack.c.b16 %v890, %v886
  %v1631 = vpack.c.b16 %v895, %v891
  %v1632 = vpack.c.b16 %v896, %v892
  %v1633 = vpack.c.b16 %v897, %v893
  %v1634 = vpack.c.b16 %v898, %v894
  %v1635 = vpack.c.b16 %v903, %v899
  %v1636 = vpack.c.b16 %v904, %v900
  %v1637 = vpack.c.b16 %v905, %v901
  %v1638 = vpack.c.b16 %v906, %v902
  %v1639 = vpack.c.b16 %v911, %v907
  %v1640 = vpack.c.b16 %v912, %v908
  %v1641 = vpack.c.b16 %v913, %v909
  %v1642 = vpack.c.b16 %v914, %v910
  %v1643 = vpack.c.b16 %v919, %v915
  %v1644 = vpack.c.b16 %v920, %v916
  %v1645 = vpack.c.b16 %v921, %v917
  %v1646 = vpack.c.b16 %v922, %v918
  %v1647 = vpack.c.b16 %v927, %v923
  %v1648 = vpack.c.b16 %v928, %v924
  %v1649 = vpack.c.b16 %v929, %v925
  %v1650 = vpack.c.b16 %v930, %v926
  %v1651 = vpack.c.b16 %v935, %v931
  %v1652 = vpack.c.b16 %v936, %v932
  %v1653 = vpack.c.b16 %v937, %v933
  %v1654 = vpack.c.b16 %v938, %v934
  %v1655 = vpack.c.b16 %v943, %v939
  %v1656 = vpack.c.b16 %v944, %v940
  %v1657 = vpack.c.b16 %v945, %v941
  %v1658 = vpack.c.b16 %v946, %v942
  %v1659 = vpack.c.b16 %v951, %v947
  %v1660 = vpack.c.b16 %v952, %v948
  %v1661 = vpack.c.b16 %v953, %v949
  %v1662 = vpack.c.b16 %v954, %v950
  %v1663 = vpack.c.b16 %v959, %v955
  %v1664 = vpack.c.b16 %v960, %v956
  %v1665 = vpack.c.b16 %v961, %v957
  %v1666 = vpack.c.b16 %v962, %v958
  %v1667 = vpack.c.b16 %v967, %v963
  %v1668 = vpack.c.b16 %v968, %v964
  %v1669 = vpack.c.b16 %v969, %v965
  %v1670 = vpack.c.b16 %v970, %v966
  %v1671 = vpack.c.b16 %v975, %v971
  %v1672 = vpack.c.b16 %v976, %v972
  %v1673 = vpack.c.b16 %v977, %v973
  %v1674 = vpack.c.b16 %v978, %v974
  %v1675 = vpack.c.b16 %v983, %v979
  %v1676 = vpack.c.b16 %v984, %v980
  %v1677 = vpack.c.b16 %v985, %v981
  %v1678 = vpack.c.b16 %v986, %v982
  %v1679 = vpack.c.b16 %v991, %v987
  %v1680 = vpack.c.b16 %v992, %v988
  %v1681 = vpack.c.b16 %v993, %v989
  %v1682 = vpack.c.b16 %v994, %v990
  %v1683 = vpack.c.b16 %v999, %v995
  %v1684 = vpack.c.b16 %v1000, %v996
  %v1685 = vpack.c.b16 %v1001, %v997
  %v1686 = vpack.c.b16 %v1002, %v998
  %v1687 = vpack.c.b16 %v1007, %v1003
  %v1688 = vpack.c.b16 %v1008, %v1004
  %v1689 = vpack.c.b16 %v1009, %v1005
  %v1690 = vpack.c.b16 %v1010, %v1006
  %v1691 = vpack.c.b16 %v1015, %v1011
  %v1692 = vpack.c.b16 %v1016, %v1012
  %v1693 = vpack.c.b16 %v1017, %v1013
  %v1694 = vpack.c.b16 %v1018, %v1014
  %v1695 = vpack.c.b16 %v1023, %v1019
  %v1696 = vpack.c.b16 %v1024, %v1020
  %v1697 = vpack.c.b16 %v1025, %v1021
  %v1698 = vpack.c.b16 %v1026, %v1022
  %v1699 = vpack.c.b16 %v1031, %v1027
  %v1700 = vpack.c.b16 %v1032, %v1028
  %v1701 = vpack.c.b16 %v1033, %v1029
  %v1702 = vpack.c.b16 %v1034, %v1030
  %v1703 = vpack.c.b16 %v1039, %v1035
  %v1704 = vpack.c.b16 %v1040, %v1036
  %v1705 = vpack.c.b16 %v1041, %v1037
  %v1706 = vpack.c.b16 %v1042, %v1038
  %v1707 = vpack.c.b16 %v1047, %v1043
  %v1708 = vpack.c.b16 %v1048, %v1044
  %v1709 = vpack.c.b16 %v1049, %v1045
  %v1710 = vpack.c.b16 %v1050, %v1046
  %v1711 = vpack.c.b16 %v1055, %v1051
  %v1712 = vpack.c.b16 %v1056, %v1052
  %v1713 = vpack.c.b16 %v1057, %v1053
  %v1714 = vpack.c.b16 %v1058, %v1054
  %v1715 = vpack.c.b16 %v1063, %v1059
  %v1716 = vpack.c.b16 %v1064, %v1060
  %v1717 = vpack.c.b16 %v1065, %v1061
  %v1718 = vpack.c.b16 %v1066, %v1062
  %v1719 = vpack.c.b16 %v1071, %v1067
  %v1720 = vpack.c.b16 %v1072, %v1068
  %v1721 = vpack.c.b16 %v1073, %v1069
  %v1722 = vpack.c.b16 %v1074, %v1070
  %v1723 = vpack.c.b16 %v1079, %v1075
  %v1724 = vpack.c.b16 %v1080, %v1076
  %v1725 = vpack.c.b16 %v1081, %v1077
  %v1726 = vpack.c.b16 %v1082, %v1078
  %v1727 = vpack.c.b16 %v1087, %v1083
  %v1728 = vpack.c.b16 %v1088, %v1084
  %v1729 = vpack.c.b16 %v1089, %v1085
  %v1730 = vpack.c.b16 %v1090, %v1086
  %v1731 = vpack.c.b16 %v1095, %v1091
  %v1732 = vpack.c.b16 %v1096, %v1092
  %v1733 = vpack.c.b16 %v1097, %v1093
  %v1734 = vpack.c.b16 %v1098, %v1094
  %v1735 = vpack.c.b16 %v1103, %v1099
  %v1736 = vpack.c.b16 %v1104, %v1100
  %v1737 = vpack.c.b16 %v1105, %v1101
  %v1738 = vpack.c.b16 %v1106, %v1102
  %v1739 = vpack.c.b16 %v1111, %v1107
  %v1740 = vpack.c.b16 %v1112, %v1108
  %v1741 = vpack.c.b16 %v1113, %v1109
  %v1742 = vpack.c.b16 %v1114, %v1110
  %v1743 = vpack.c.b16 %v1119, %v1115
  %v1744 = vpack.c.b16 %v1120, %v1116
  %v1745 = vpack.c.b16 %v1121, %v1117
  %v1746 = vpack.c.b16 %v1122, %v1118
  %v1747 = vpack.c.b16 %v1127, %v1123
  %v1748 = vpack.c.b16 %v1128, %v1124
  %v1749 = vpack.c.b16 %v1129, %v1125
  %v1750 = vpack.c.b16 %v1130, %v1126
  %v1751 = vpack.c.b16 %v1135, %v1131
  %v1752 = vpack.c.b16 %v1136, %v1132
  %v1753 = vpack.c.b16 %v1137, %v1133
  %v1754 = vpack.c.b16 %v1138, %v1134
  %v1755 = vpack.c.b16 %v1143, %v1139
  %v1756 = vpack.c.b16 %v1144, %v1140
  %v1757 = vpack.c.b16 %v1145, %v1141
  %v1758 = vpack.c.b16 %v1146, %v1142
  %v1759 = vpack.c.b16 %v1151, %v1147
  %v1760 = vpack.c.b16 %v1152, %v1148
  %v1761 = vpack.c.b16 %v1153, %v1149
  %v1762 = vpack.c.b16 %v1154, %v1150
  %v1763 = vpack.c.b16 %v1159, %v1155
  %v1764 = vpack.c.b16 %v1160, %v1156
  %v1765 = vpack.c.b16 %v1161, %v1157
  %v1766 = vpack.c.b16 %v1162, %v1158
  %v1767 = vpack.c.b16 %v1167, %v1163
  %v1768 = vpack.c.b16 %v1168, %v1164
  %v1769 = vpack.c.b16 %v1169, %v1165
  %v1770 = vpack.c.b16 %v1170, %v1166
  %v1771 = vpack.c.b16 %v1175, %v1171
  %v1772 = vpack.c.b16 %v1176, %v1172
  %v1773 = vpack.c.b16 %v1177, %v1173
  %v1774 = vpack.c.b16 %v1178, %v1174
  %v1775 = vpack.c.b16 %v1183, %v1179
  %v1776 = vpack.c.b16 %v1184, %v1180
  %v1777 = vpack.c.b16 %v1185, %v1181
  %v1778 = vpack.c.b16 %v1186, %v1182
  %v1779 = vpack.c.b16 %v1191, %v1187
  %v1780 = vpack.c.b16 %v1192, %v1188
  %v1781 = vpack.c.b16 %v1193, %v1189
  %v1782 = vpack.c.b16 %v1194, %v1190
  %v1783 = vpack.c.b16 %v1199, %v1195
  %v1784 = vpack.c.b16 %v1200, %v1196
  %v1785 = vpack.c.b16 %v1201, %v1197
  %v1786 = vpack.c.b16 %v1202, %v1198
  %v1787 = vpack.c.b16 %v1207, %v1203
  %v1788 = vpack.c.b16 %v1208, %v1204
  %v1789 = vpack.c.b16 %v1209, %v1205
  %v1790 = vpack.c.b16 %v1210, %v1206
  %v1791 = vpack.c.b16 %v1215, %v1211
  %v1792 = vpack.c.b16 %v1216, %v1212
  %v1793 = vpack.c.b16 %v1217, %v1213
  %v1794 = vpack.c.b16 %v1218, %v1214
  %v1795 = vpack.c.b16 %v1223, %v1219
  %v1796 = vpack.c.b16 %v1224, %v1220
  %v1797 = vpack.c.b16 %v1225, %v1221
  %v1798 = vpack.c.b16 %v1226, %v1222
  %v1799 = vpack.c.b16 %v1231, %v1227
  %v1800 = vpack.c.b16 %v1232, %v1228
  %v1801 = vpack.c.b16 %v1233, %v1229
  %v1802 = vpack.c.b16 %v1234, %v1230
  %v1803 = vpack.c.b16 %v1239, %v1235
  %v1804 = vpack.c.b16 %v1240, %v1236
  %v1805 = vpack.c.b16 %v1241, %v1237
  %v1806 = vpack.c.b16 %v1242, %v1238
  %v1807 = vpack.c.b16 %v1247, %v1243
  %v1808 = vpack.c.b16 %v1248, %v1244
  %v1809 = vpack.c.b16 %v1249, %v1245
  %v1810 = vpack.c.b16 %v1250, %v1246
  %v1811 = vpack.c.b16 %v1255, %v1251
  %v1812 = vpack.c.b16 %v1256, %v1252
  %v1813 = vpack.c.b16 %v1257, %v1253
  %v1814 = vpack.c.b16 %v1258, %v1254
  %v1815 = vpack.c.b16 %v1263, %v1259
  %v1816 = vpack.c.b16 %v1264, %v1260
  %v1817 = vpack.c.b16 %v1265, %v1261
  %v1818 = vpack.c.b16 %v1266, %v1262
  %v1819 = vpack.c.b16 %v1271, %v1267
  %v1820 = vpack.c.b16 %v1272, %v1268
  %v1821 = vpack.c.b16 %v1273, %v1269
  %v1822 = vpack.c.b16 %v1274, %v1270
  %v1823 = vpack.c.b16 %v1279, %v1275
  %v1824 = vpack.c.b16 %v1280, %v1276
  %v1825 = vpack.c.b16 %v1281, %v1277
  %v1826 = vpack.c.b16 %v1282, %v1278
  %v1827 = vpack.c.b16 %v1287, %v1283
  %v1828 = vpack.c.b16 %v1288, %v1284
  %v1829 = vpack.c.b16 %v1289, %v1285
  %v1830 = vpack.c.b16 %v1290, %v1286
  %v1831 = vpack.c.b16 %v1295, %v1291
  %v1832 = vpack.c.b16 %v1296, %v1292
  %v1833 = vpack.c.b16 %v1297, %v1293
  %v1834 = vpack.c.b16 %v1298, %v1294
  %v1835 = vpack.c.b16 %v1303, %v1299
  %v1836 = vpack.c.b16 %v1304, %v1300
  %v1837 = vpack.c.b16 %v1305, %v1301
  %v1838 = vpack.c.b16 %v1306, %v1302
  %v1839 = vpack.c.b16 %v1311, %v1307
  %v1840 = vpack.c.b16 %v1312, %v1308
  %v1841 = vpack.c.b16 %v1313, %v1309
  %v1842 = vpack.c.b16 %v1314, %v1310
  %v1843 = vpack.c.b16 %v1319, %v1315
  %v1844 = vpack.c.b16 %v1320, %v1316
  %v1845 = vpack.c.b16 %v1321, %v1317
  %v1846 = vpack.c.b16 %v1322, %v1318
  %v1847 = vpack.c.b16 %v1327, %v1323
  %v1848 = vpack.c.b16 %v1328, %v1324
  %v1849 = vpack.c.b16 %v1329, %v1325
  %v1850 = vpack.c.b16 %v1330, %v1326
  %v1851 = vpack.c.b16 %v1335, %v1331
  %v1852 = vpack.c.b16 %v1336, %v1332
  %v1853 = vpack.c.b16 %v1337, %v1333
  %v1854 = vpack.c.b16 %v1338, %v1334
  %v1855 = vpack.c.b16 %v1343, %v1339
  %v1856 = vpack.c.b16 %v1344, %v1340
  %v1857 = vpack.c.b16 %v1345, %v1341
  %v1858 = vpack.c.b16 %v1346, %v1342
  %v1859 = vpack.c.b16 %v1351, %v1347
  %v1860 = vpack.c.b16 %v1352, %v1348
  %v1861 = vpack.c.b16 %v1353, %v1349
  %v1862 = vpack.c.b16 %v1354, %v1350
  %v1863 = vpack.c.b16 %v1359, %v1355
  %v1864 = vpack.c.b16 %v1360, %v1356
  %v1865 = vpack.c.b16 %v1361, %v1357
  %v1866 = vpack.c.b16 %v1362, %v1358
  %v1867 = vpack.c.b16 %v1367, %v1363
  %v1868 = vpack.c.b16 %v1368, %v1364
  %v1869 = vpack.c.b16 %v1369, %v1365
  %v1870 = vpack.c.b16 %v1370, %v1366
  %v1871 = vpack.c.b16 %v1375, %v1371
  %v1872 = vpack.c.b16 %v1376, %v1372
  %v1873 = vpack.c.b16 %v1377, %v1373
  %v1874 = vpack.c.b16 %v1378, %v1374
  %v1875 = vpack.c.b16 %v1383, %v1379
  %v1876 = vpack.c.b16 %v1384, %v1380
  %v1877 = vpack.c.b16 %v1385, %v1381
  %v1878 = vpack.c.b16 %v1386, %v1382
  %v1879 = vpack.c.b16 %v1391, %v1387
  %v1880 = vpack.c.b16 %v1392, %v1388
  %v1881 = vpack.c.b16 %v1393, %v1389
  %v1882 = vpack.c.b16 %v1394, %v1390
  %v1883 = vpack.c.b16 %v1399, %v1395
  %v1884 = vpack.c.b16 %v1400, %v1396
  %v1885 = vpack.c.b16 %v1401, %v1397
  %v1886 = vpack.c.b16 %v1402, %v1398
  %v1887 = vpack.c.b16 %v1407, %v1403
  %v1888 = vpack.c.b16 %v1408, %v1404
  %v1889 = vpack.c.b16 %v1409, %v1405
  %v1890 = vpack.c.b16 %v1410, %v1406
  %v1891 = vpack.c.b16 %v1415, %v1411
  %v1892 = vpack.c.b16 %v1416, %v1412
  %v1893 = vpack.c.b16 %v1417, %v1413
  %v1894 = vpack.c.b16 %v1418, %v1414
  %v1895 = vpack.c.b16 %v1423, %v1419
  %v1896 = vpack.c.b16 %v1424, %v1420
  %v1897 = vpack.c.b16 %v1425, %v1421
  %v1898 = vpack.c.b16 %v1426, %v1422
  %v1899 = vpack.c.b16 %v1431, %v1427
  %v1900 = vpack.c.b16 %v1432, %v1428
  %v1901 = vpack.c.b16 %v1433, %v1429
  %v1902 = vpack.c.b16 %v1434, %v1430
  %v1903 = vpack.c.b16 %v1439, %v1435
  %v1904 = vpack.c.b16 %v1440, %v1436
  %v1905 = vpack.c.b16 %v1441, %v1437
  %v1906 = vpack.c.b16 %v1442, %v1438
  %v1907 = vpack.c.b16 %v1447, %v1443
  %v1908 = vpack.c.b16 %v1448, %v1444
  %v1909 = vpack.c.b16 %v1449, %v1445
  %v1910 = vpack.c.b16 %v1450, %v1446
  %v1911 = vpack.c.b16 %v1455, %v1451
  %v1912 = vpack.c.b16 %v1456, %v1452
  %v1913 = vpack.c.b16 %v1457, %v1453
  %v1914 = vpack.c.b16 %v1458, %v1454
  %v1915 = vpack.c.b16 %v1463, %v1459
  %v1916 = vpack.c.b16 %v1464, %v1460
  %v1917 = vpack.c.b16 %v1465, %v1461
  %v1918 = vpack.c.b16 %v1466, %v1462
  %v1919 = vpack.c.b16 %v1471, %v1467
  %v1920 = vpack.c.b16 %v1472, %v1468
  %v1921 = vpack.c.b16 %v1473, %v1469
  %v1922 = vpack.c.b16 %v1474, %v1470
  %v1923 = vpack.c.b16 %v1479, %v1475
  %v1924 = vpack.c.b16 %v1480, %v1476
  %v1925 = vpack.c.b16 %v1481, %v1477
  %v1926 = vpack.c.b16 %v1482, %v1478
  %v1927 = vpack.c.b16 %v1487, %v1483
  %v1928 = vpack.c.b16 %v1488, %v1484
  %v1929 = vpack.c.b16 %v1489, %v1485
  %v1930 = vpack.c.b16 %v1490, %v1486
  %v1931 = vpack.c.b16 %v1495, %v1491
  %v1932 = vpack.c.b16 %v1496, %v1492
  %v1933 = vpack.c.b16 %v1497, %v1493
  %v1934 = vpack.c.b16 %v1498, %v1494
  %v1935 = vpack.c.b16 %v1503, %v1499
  %v1936 = vpack.c.b16 %v1504, %v1500
  %v1937 = vpack.c.b16 %v1505, %v1501
  %v1938 = vpack.c.b16 %v1506, %v1502
  %v1939 = vpack.c.b16 %v1511, %v1507
  %v1940 = vpack.c.b16 %v1512, %v1508
  %v1941 = vpack.c.b16 %v1513, %v1509
  %v1942 = vpack.c.b16 %v1514, %v1510
  %v1943 = vpack.c.b16 %v1519, %v1515
  %v1944 = vpack.c.b16 %v1520, %v1516
  %v1945 = vpack.c.b16 %v1521, %v1517
  %v1946 = vpack.c.b16 %v1522, %v1518
  %v1947 = vpack.c.b16 %v1527, %v1523
  %v1948 = vpack.c.b16 %v1528, %v1524
  %v1949 = vpack.c.b16 %v1529, %v1525
  %v1950 = vpack.c.b16 %v1530, %v1526
  %v1951 = vpack.c.b16 %v1535, %v1531
  %v1952 = vpack.c.b16 %v1536, %v1532
  %v1953 = vpack.c.b16 %v1537, %v1533
  %v1954 = vpack.c.b16 %v1538, %v1534
  %v1955 = vpack.c.b16 %v1543, %v1539
  %v1956 = vpack.c.b16 %v1544, %v1540
  %v1957 = vpack.c.b16 %v1545, %v1541
  %v1958 = vpack.c.b16 %v1546, %v1542
  %v1959 = vpack.c.b16 %v1551, %v1547
  %v1960 = vpack.c.b16 %v1552, %v1548
  %v1961 = vpack.c.b16 %v1553, %v1549
  %v1962 = vpack.c.b16 %v1554, %v1550
  %v1963 = vpack.c.b16 %v1559, %v1555
  %v1964 = vpack.c.b16 %v1560, %v1556
  %v1965 = vpack.c.b16 %v1561, %v1557
  %v1966 = vpack.c.b16 %v1562, %v1558
  %v1967 = vpack.c.b16 %v1567, %v1563
  %v1968 = vpack.c.b16 %v1568, %v1564
  %v1969 = vpack.c.b16 %v1569, %v1565
  %v1970 = vpack.c.b16 %v1570, %v1566
  %v1971 = vpack.c.b16 %v1575, %v1571
  %v1972 = vpack.c.b16 %v1576, %v1572
  %v1973 = vpack.c.b16 %v1577, %v1573
  %v1974 = vpack.c.b16 %v1578, %v1574
  %v1975 = vpack.c.b16 %v1583, %v1579
  %v1976 = vpack.c.b16 %v1584, %v1580
  %v1977 = vpack.c.b16 %v1585, %v1581
  %v1978 = vpack.c.b16 %v1586, %v1582
  %v1979 = vpack.c.b16 %v1591, %v1587
  %v1980 = vpack.c.b16 %v1592, %v1588
  %v1981 = vpack.c.b16 %v1593, %v1589
  %v1982 = vpack.c.b16 %v1594, %v1590
  %v1983 = vpack.c.b16 %v1599, %v1595
  %v1984 = vpack.c.b16 %v1600, %v1596
  %v1985 = vpack.c.b16 %v1601, %v1597
  %v1986 = vpack.c.b16 %v1602, %v1598
  %2371 = vmatpush.bf16.msra.mxu0 %v1631
  %2372 = vmatpush.bf16.msra.mxu0 %v1627
  %2373 = vmatpush.bf16.msra.mxu0 %v1623
  %2374 = vmatpush.bf16.msra.mxu0 %v1619
  %2375 = vmatpush.bf16.msra.mxu0 %v1615
  %2376 = vmatpush.bf16.msra.mxu0 %v1611
  %2377 = vmatpush.bf16.msra.mxu0 %v1607
  %2378 = vmatpush.bf16.msra.mxu0 %v1603
  %2379 = vmatmul.bf16.gmra.mxu0 %v423
  %v2380 = vpop.f32.mrf.mxu0
  %v2381 = vadd.f32 %v410, %v2380
  %v2382 = vpop.f32.mrf.mxu0
  %2383 = vdwg.mxu0
  %2384 = vmatpush.bf16.msra.mxu0 %v1663
  %2385 = vmatpush.bf16.msra.mxu0 %v1659
  %2386 = vmatpush.bf16.msra.mxu0 %v1655
  %2387 = vmatpush.bf16.msra.mxu0 %v1651
  %2388 = vmatpush.bf16.msra.mxu0 %v1647
  %2389 = vmatpush.bf16.msra.mxu0 %v1643
  %2390 = vmatpush.bf16.msra.mxu0 %v1639
  %2391 = vmatpush.bf16.msra.mxu0 %v1635
  %2392 = vmatmul.bf16.gmra.mxu0 %v424
  %v2393 = vpop.f32.mrf.mxu0
  %v2394 = vadd.f32 %v2381, %v2393
  %v2395 = vpop.f32.mrf.mxu0
  %2396 = vdwg.mxu0
  %2397 = vmatpush.bf16.msra.mxu0 %v1695
  %2398 = vmatpush.bf16.msra.mxu0 %v1691
  %2399 = vmatpush.bf16.msra.mxu0 %v1687
  %2400 = vmatpush.bf16.msra.mxu0 %v1683
  %2401 = vmatpush.bf16.msra.mxu0 %v1679
  %2402 = vmatpush.bf16.msra.mxu0 %v1675
  %2403 = vmatpush.bf16.msra.mxu0 %v1671
  %2404 = vmatpush.bf16.msra.mxu0 %v1667
  %2405 = vmatmul.bf16.gmra.mxu0 %v425
  %v2406 = vpop.f32.mrf.mxu0
  %v2407 = vadd.f32 %v2394, %v2406
  %v2408 = vpop.f32.mrf.mxu0
  %2409 = vdwg.mxu0
  %2410 = vmatpush.bf16.msra.mxu0 %v1727
  %2411 = vmatpush.bf16.msra.mxu0 %v1723
  %2412 = vmatpush.bf16.msra.mxu0 %v1719
  %2413 = vmatpush.bf16.msra.mxu0 %v1715
  %2414 = vmatpush.bf16.msra.mxu0 %v1711
  %2415 = vmatpush.bf16.msra.mxu0 %v1707
  %2416 = vmatpush.bf16.msra.mxu0 %v1703
  %2417 = vmatpush.bf16.msra.mxu0 %v1699
  %2418 = vmatmul.bf16.gmra.mxu0 %v426
  %v2419 = vpop.f32.mrf.mxu0
  %v2420 = vadd.f32 %v2407, %v2419
  %v2421 = vpop.f32.mrf.mxu0
  %2422 = vdwg.mxu0
  %2423 = vmatpush.bf16.msra.mxu0 %v1759
  %2424 = vmatpush.bf16.msra.mxu0 %v1755
  %2425 = vmatpush.bf16.msra.mxu0 %v1751
  %2426 = vmatpush.bf16.msra.mxu0 %v1747
  %2427 = vmatpush.bf16.msra.mxu0 %v1743
  %2428 = vmatpush.bf16.msra.mxu0 %v1739
  %2429 = vmatpush.bf16.msra.mxu0 %v1735
  %2430 = vmatpush.bf16.msra.mxu0 %v1731
  %2431 = vmatmul.bf16.gmra.mxu0 %v427
  %v2432 = vpop.f32.mrf.mxu0
  %v2433 = vadd.f32 %v2420, %v2432
  %v2434 = vpop.f32.mrf.mxu0
  %2435 = vdwg.mxu0
  %2436 = vmatpush.bf16.msra.mxu0 %v1791
  %2437 = vmatpush.bf16.msra.mxu0 %v1787
  %2438 = vmatpush.bf16.msra.mxu0 %v1783
  %2439 = vmatpush.bf16.msra.mxu0 %v1779
  %2440 = vmatpush.bf16.msra.mxu0 %v1775
  %2441 = vmatpush.bf16.msra.mxu0 %v1771
  %2442 = vmatpush.bf16.msra.mxu0 %v1767
  %2443 = vmatpush.bf16.msra.mxu0 %v1763
  %2444 = vmatmul.bf16.gmra.mxu0 %v428
  %v2445 = vpop.f32.mrf.mxu0
  %v2446 = vadd.f32 %v2433, %v2445
  %v2447 = vpop.f32.mrf.mxu0
  %2448 = vdwg.mxu0
  %2449 = vmatpush.bf16.msra.mxu0 %v1823
  %2450 = vmatpush.bf16.msra.mxu0 %v1819
  %2451 = vmatpush.bf16.msra.mxu0 %v1815
  %2452 = vmatpush.bf16.msra.mxu0 %v1811
  %2453 = vmatpush.bf16.msra.mxu0 %v1807
  %2454 = vmatpush.bf16.msra.mxu0 %v1803
  %2455 = vmatpush.bf16.msra.mxu0 %v1799
  %2456 = vmatpush.bf16.msra.mxu0 %v1795
  %2457 = vmatmul.bf16.gmra.mxu0 %v429
  %v2458 = vpop.f32.mrf.mxu0
  %v2459 = vadd.f32 %v2446, %v2458
  %v2460 = vpop.f32.mrf.mxu0
  %2461 = vdwg.mxu0
  %2462 = vmatpush.bf16.msra.mxu0 %v1855
  %2463 = vmatpush.bf16.msra.mxu0 %v1851
  %2464 = vmatpush.bf16.msra.mxu0 %v1847
  %2465 = vmatpush.bf16.msra.mxu0 %v1843
  %2466 = vmatpush.bf16.msra.mxu0 %v1839
  %2467 = vmatpush.bf16.msra.mxu0 %v1835
  %2468 = vmatpush.bf16.msra.mxu0 %v1831
  %2469 = vmatpush.bf16.msra.mxu0 %v1827
  %2470 = vmatmul.bf16.gmra.mxu0 %v430
  %v2471 = vpop.f32.mrf.mxu0
  %v2472 = vadd.f32 %v2459, %v2471
  %v2473 = vpop.f32.mrf.mxu0
  %2474 = vdwg.mxu0
  %2475 = vmatpush.bf16.msra.mxu0 %v1887
  %2476 = vmatpush.bf16.msra.mxu0 %v1883
  %2477 = vmatpush.bf16.msra.mxu0 %v1879
  %2478 = vmatpush.bf16.msra.mxu0 %v1875
  %2479 = vmatpush.bf16.msra.mxu0 %v1871
  %2480 = vmatpush.bf16.msra.mxu0 %v1867
  %2481 = vmatpush.bf16.msra.mxu0 %v1863
  %2482 = vmatpush.bf16.msra.mxu0 %v1859
  %2483 = vmatmul.bf16.gmra.mxu0 %v435
  %v2484 = vpop.f32.mrf.mxu0
  %v2485 = vadd.f32 %v2472, %v2484
  %v2486 = vpop.f32.mrf.mxu0
  %2487 = vdwg.mxu0
  %2488 = vmatpush.bf16.msra.mxu0 %v1919
  %2489 = vmatpush.bf16.msra.mxu0 %v1915
  %2490 = vmatpush.bf16.msra.mxu0 %v1911
  %2491 = vmatpush.bf16.msra.mxu0 %v1907
  %2492 = vmatpush.bf16.msra.mxu0 %v1903
  %2493 = vmatpush.bf16.msra.mxu0 %v1899
  %2494 = vmatpush.bf16.msra.mxu0 %v1895
  %2495 = vmatpush.bf16.msra.mxu0 %v1891
  %2496 = vmatmul.bf16.gmra.mxu0 %v436
  %v2497 = vpop.f32.mrf.mxu0
  %v2498 = vadd.f32 %v2485, %v2497
  %v2499 = vpop.f32.mrf.mxu0
  %2500 = vdwg.mxu0
  %2501 = vmatpush.bf16.msra.mxu0 %v1951
  %2502 = vmatpush.bf16.msra.mxu0 %v1947
  %2503 = vmatpush.bf16.msra.mxu0 %v1943
  %2504 = vmatpush.bf16.msra.mxu0 %v1939
  %2505 = vmatpush.bf16.msra.mxu0 %v1935
  %2506 = vmatpush.bf16.msra.mxu0 %v1931
  %2507 = vmatpush.bf16.msra.mxu0 %v1927
  %2508 = vmatpush.bf16.msra.mxu0 %v1923
  %2509 = vmatmul.bf16.gmra.mxu0 %v437
  %v2510 = vpop.f32.mrf.mxu0
  %v2511 = vadd.f32 %v2498, %v2510
  %v2512 = vpop.f32.mrf.mxu0
  %2513 = vdwg.mxu0
  %2514 = vmatpush.bf16.msra.mxu0 %v1983
  %2515 = vmatpush.bf16.msra.mxu0 %v1979
  %2516 = vmatpush.bf16.msra.mxu0 %v1975
  %2517 = vmatpush.bf16.msra.mxu0 %v1971
  %2518 = vmatpush.bf16.msra.mxu0 %v1967
  %2519 = vmatpush.bf16.msra.mxu0 %v1963
  %2520 = vmatpush.bf16.msra.mxu0 %v1959
  %2521 = vmatpush.bf16.msra.mxu0 %v1955
  %2522 = vmatmul.bf16.gmra.mxu0 %v438
  %v2523 = vpop.f32.mrf.mxu0
  %v2524 = vadd.f32 %v2511, %v2523
  %v2525 = vpop.f32.mrf.mxu0
  %2526 = vdwg.mxu0
  %2527 = vmatpush.bf16.msra.mxu0 %v1632
  %2528 = vmatpush.bf16.msra.mxu0 %v1628
  %2529 = vmatpush.bf16.msra.mxu0 %v1624
  %2530 = vmatpush.bf16.msra.mxu0 %v1620
  %2531 = vmatpush.bf16.msra.mxu0 %v1616
  %2532 = vmatpush.bf16.msra.mxu0 %v1612
  %2533 = vmatpush.bf16.msra.mxu0 %v1608
  %2534 = vmatpush.bf16.msra.mxu0 %v1604
  %2535 = vmatmul.bf16.gmra.mxu0 %v423
  %v2536 = vpop.f32.mrf.mxu0
  %v2537 = vadd.f32 %v411, %v2536
  %v2538 = vpop.f32.mrf.mxu0
  %2539 = vdwg.mxu0
  %2540 = vmatpush.bf16.msra.mxu0 %v1664
  %2541 = vmatpush.bf16.msra.mxu0 %v1660
  %2542 = vmatpush.bf16.msra.mxu0 %v1656
  %2543 = vmatpush.bf16.msra.mxu0 %v1652
  %2544 = vmatpush.bf16.msra.mxu0 %v1648
  %2545 = vmatpush.bf16.msra.mxu0 %v1644
  %2546 = vmatpush.bf16.msra.mxu0 %v1640
  %2547 = vmatpush.bf16.msra.mxu0 %v1636
  %2548 = vmatmul.bf16.gmra.mxu0 %v424
  %v2549 = vpop.f32.mrf.mxu0
  %v2550 = vadd.f32 %v2537, %v2549
  %v2551 = vpop.f32.mrf.mxu0
  %2552 = vdwg.mxu0
  %2553 = vmatpush.bf16.msra.mxu0 %v1696
  %2554 = vmatpush.bf16.msra.mxu0 %v1692
  %2555 = vmatpush.bf16.msra.mxu0 %v1688
  %2556 = vmatpush.bf16.msra.mxu0 %v1684
  %2557 = vmatpush.bf16.msra.mxu0 %v1680
  %2558 = vmatpush.bf16.msra.mxu0 %v1676
  %2559 = vmatpush.bf16.msra.mxu0 %v1672
  %2560 = vmatpush.bf16.msra.mxu0 %v1668
  %2561 = vmatmul.bf16.gmra.mxu0 %v425
  %v2562 = vpop.f32.mrf.mxu0
  %v2563 = vadd.f32 %v2550, %v2562
  %v2564 = vpop.f32.mrf.mxu0
  %2565 = vdwg.mxu0
  %2566 = vmatpush.bf16.msra.mxu0 %v1728
  %2567 = vmatpush.bf16.msra.mxu0 %v1724
  %2568 = vmatpush.bf16.msra.mxu0 %v1720
  %2569 = vmatpush.bf16.msra.mxu0 %v1716
  %2570 = vmatpush.bf16.msra.mxu0 %v1712
  %2571 = vmatpush.bf16.msra.mxu0 %v1708
  %2572 = vmatpush.bf16.msra.mxu0 %v1704
  %2573 = vmatpush.bf16.msra.mxu0 %v1700
  %2574 = vmatmul.bf16.gmra.mxu0 %v426
  %v2575 = vpop.f32.mrf.mxu0
  %v2576 = vadd.f32 %v2563, %v2575
  %v2577 = vpop.f32.mrf.mxu0
  %2578 = vdwg.mxu0
  %2579 = vmatpush.bf16.msra.mxu0 %v1760
  %2580 = vmatpush.bf16.msra.mxu0 %v1756
  %2581 = vmatpush.bf16.msra.mxu0 %v1752
  %2582 = vmatpush.bf16.msra.mxu0 %v1748
  %2583 = vmatpush.bf16.msra.mxu0 %v1744
  %2584 = vmatpush.bf16.msra.mxu0 %v1740
  %2585 = vmatpush.bf16.msra.mxu0 %v1736
  %2586 = vmatpush.bf16.msra.mxu0 %v1732
  %2587 = vmatmul.bf16.gmra.mxu0 %v427
  %v2588 = vpop.f32.mrf.mxu0
  %v2589 = vadd.f32 %v2576, %v2588
  %v2590 = vpop.f32.mrf.mxu0
  %2591 = vdwg.mxu0
  %2592 = vmatpush.bf16.msra.mxu0 %v1792
  %2593 = vmatpush.bf16.msra.mxu0 %v1788
  %2594 = vmatpush.bf16.msra.mxu0 %v1784
  %2595 = vmatpush.bf16.msra.mxu0 %v1780
  %2596 = vmatpush.bf16.msra.mxu0 %v1776
  %2597 = vmatpush.bf16.msra.mxu0 %v1772
  %2598 = vmatpush.bf16.msra.mxu0 %v1768
  %2599 = vmatpush.bf16.msra.mxu0 %v1764
  %2600 = vmatmul.bf16.gmra.mxu0 %v428
  %v2601 = vpop.f32.mrf.mxu0
  %v2602 = vadd.f32 %v2589, %v2601
  %v2603 = vpop.f32.mrf.mxu0
  %2604 = vdwg.mxu0
  %2605 = vmatpush.bf16.msra.mxu0 %v1824
  %2606 = vmatpush.bf16.msra.mxu0 %v1820
  %2607 = vmatpush.bf16.msra.mxu0 %v1816
  %2608 = vmatpush.bf16.msra.mxu0 %v1812
  %2609 = vmatpush.bf16.msra.mxu0 %v1808
  %2610 = vmatpush.bf16.msra.mxu0 %v1804
  %2611 = vmatpush.bf16.msra.mxu0 %v1800
  %2612 = vmatpush.bf16.msra.mxu0 %v1796
  %2613 = vmatmul.bf16.gmra.mxu0 %v429
  %v2614 = vpop.f32.mrf.mxu0
  %v2615 = vadd.f32 %v2602, %v2614
  %v2616 = vpop.f32.mrf.mxu0
  %2617 = vdwg.mxu0
  %2618 = vmatpush.bf16.msra.mxu0 %v1856
  %2619 = vmatpush.bf16.msra.mxu0 %v1852
  %2620 = vmatpush.bf16.msra.mxu0 %v1848
  %2621 = vmatpush.bf16.msra.mxu0 %v1844
  %2622 = vmatpush.bf16.msra.mxu0 %v1840
  %2623 = vmatpush.bf16.msra.mxu0 %v1836
  %2624 = vmatpush.bf16.msra.mxu0 %v1832
  %2625 = vmatpush.bf16.msra.mxu0 %v1828
  %2626 = vmatmul.bf16.gmra.mxu0 %v430
  %v2627 = vpop.f32.mrf.mxu0
  %v2628 = vadd.f32 %v2615, %v2627
  %v2629 = vpop.f32.mrf.mxu0
  %2630 = vdwg.mxu0
  %2631 = vmatpush.bf16.msra.mxu0 %v1888
  %2632 = vmatpush.bf16.msra.mxu0 %v1884
  %2633 = vmatpush.bf16.msra.mxu0 %v1880
  %2634 = vmatpush.bf16.msra.mxu0 %v1876
  %2635 = vmatpush.bf16.msra.mxu0 %v1872
  %2636 = vmatpush.bf16.msra.mxu0 %v1868
  %2637 = vmatpush.bf16.msra.mxu0 %v1864
  %2638 = vmatpush.bf16.msra.mxu0 %v1860
  %2639 = vmatmul.bf16.gmra.mxu0 %v435
  %v2640 = vpop.f32.mrf.mxu0
  %v2641 = vadd.f32 %v2628, %v2640
  %v2642 = vpop.f32.mrf.mxu0
  %2643 = vdwg.mxu0
  %2644 = vmatpush.bf16.msra.mxu0 %v1920
  %2645 = vmatpush.bf16.msra.mxu0 %v1916
  %2646 = vmatpush.bf16.msra.mxu0 %v1912
  %2647 = vmatpush.bf16.msra.mxu0 %v1908
  %2648 = vmatpush.bf16.msra.mxu0 %v1904
  %2649 = vmatpush.bf16.msra.mxu0 %v1900
  %2650 = vmatpush.bf16.msra.mxu0 %v1896
  %2651 = vmatpush.bf16.msra.mxu0 %v1892
  %2652 = vmatmul.bf16.gmra.mxu0 %v436
  %v2653 = vpop.f32.mrf.mxu0
  %v2654 = vadd.f32 %v2641, %v2653
  %v2655 = vpop.f32.mrf.mxu0
  %2656 = vdwg.mxu0
  %2657 = vmatpush.bf16.msra.mxu0 %v1952
  %2658 = vmatpush.bf16.msra.mxu0 %v1948
  %2659 = vmatpush.bf16.msra.mxu0 %v1944
  %2660 = vmatpush.bf16.msra.mxu0 %v1940
  %2661 = vmatpush.bf16.msra.mxu0 %v1936
  %2662 = vmatpush.bf16.msra.mxu0 %v1932
  %2663 = vmatpush.bf16.msra.mxu0 %v1928
  %2664 = vmatpush.bf16.msra.mxu0 %v1924
  %2665 = vmatmul.bf16.gmra.mxu0 %v437
  %v2666 = vpop.f32.mrf.mxu0
  %v2667 = vadd.f32 %v2654, %v2666
  %v2668 = vpop.f32.mrf.mxu0
  %2669 = vdwg.mxu0
  %2670 = vmatpush.bf16.msra.mxu0 %v1984
  %2671 = vmatpush.bf16.msra.mxu0 %v1980
  %2672 = vmatpush.bf16.msra.mxu0 %v1976
  %2673 = vmatpush.bf16.msra.mxu0 %v1972
  %2674 = vmatpush.bf16.msra.mxu0 %v1968
  %2675 = vmatpush.bf16.msra.mxu0 %v1964
  %2676 = vmatpush.bf16.msra.mxu0 %v1960
  %2677 = vmatpush.bf16.msra.mxu0 %v1956
  %2678 = vmatmul.bf16.gmra.mxu0 %v438
  %v2679 = vpop.f32.mrf.mxu0
  %v2680 = vadd.f32 %v2667, %v2679
  %v2681 = vpop.f32.mrf.mxu0
  %2682 = vdwg.mxu0
  %2683 = vmatpush.bf16.msra.mxu0 %v1633
  %2684 = vmatpush.bf16.msra.mxu0 %v1629
  %2685 = vmatpush.bf16.msra.mxu0 %v1625
  %2686 = vmatpush.bf16.msra.mxu0 %v1621
  %2687 = vmatpush.bf16.msra.mxu0 %v1617
  %2688 = vmatpush.bf16.msra.mxu0 %v1613
  %2689 = vmatpush.bf16.msra.mxu0 %v1609
  %2690 = vmatpush.bf16.msra.mxu0 %v1605
  %2691 = vmatmul.bf16.gmra.mxu0 %v423
  %v2692 = vpop.f32.mrf.mxu0
  %v2693 = vadd.f32 %v412, %v2692
  %v2694 = vpop.f32.mrf.mxu0
  %2695 = vdwg.mxu0
  %2696 = vmatpush.bf16.msra.mxu0 %v1665
  %2697 = vmatpush.bf16.msra.mxu0 %v1661
  %2698 = vmatpush.bf16.msra.mxu0 %v1657
  %2699 = vmatpush.bf16.msra.mxu0 %v1653
  %2700 = vmatpush.bf16.msra.mxu0 %v1649
  %2701 = vmatpush.bf16.msra.mxu0 %v1645
  %2702 = vmatpush.bf16.msra.mxu0 %v1641
  %2703 = vmatpush.bf16.msra.mxu0 %v1637
  %2704 = vmatmul.bf16.gmra.mxu0 %v424
  %v2705 = vpop.f32.mrf.mxu0
  %v2706 = vadd.f32 %v2693, %v2705
  %v2707 = vpop.f32.mrf.mxu0
  %2708 = vdwg.mxu0
  %2709 = vmatpush.bf16.msra.mxu0 %v1697
  %2710 = vmatpush.bf16.msra.mxu0 %v1693
  %2711 = vmatpush.bf16.msra.mxu0 %v1689
  %2712 = vmatpush.bf16.msra.mxu0 %v1685
  %2713 = vmatpush.bf16.msra.mxu0 %v1681
  %2714 = vmatpush.bf16.msra.mxu0 %v1677
  %2715 = vmatpush.bf16.msra.mxu0 %v1673
  %2716 = vmatpush.bf16.msra.mxu0 %v1669
  %2717 = vmatmul.bf16.gmra.mxu0 %v425
  %v2718 = vpop.f32.mrf.mxu0
  %v2719 = vadd.f32 %v2706, %v2718
  %v2720 = vpop.f32.mrf.mxu0
  %2721 = vdwg.mxu0
  %2722 = vmatpush.bf16.msra.mxu0 %v1729
  %2723 = vmatpush.bf16.msra.mxu0 %v1725
  %2724 = vmatpush.bf16.msra.mxu0 %v1721
  %2725 = vmatpush.bf16.msra.mxu0 %v1717
  %2726 = vmatpush.bf16.msra.mxu0 %v1713
  %2727 = vmatpush.bf16.msra.mxu0 %v1709
  %2728 = vmatpush.bf16.msra.mxu0 %v1705
  %2729 = vmatpush.bf16.msra.mxu0 %v1701
  %2730 = vmatmul.bf16.gmra.mxu0 %v426
  %v2731 = vpop.f32.mrf.mxu0
  %v2732 = vadd.f32 %v2719, %v2731
  %v2733 = vpop.f32.mrf.mxu0
  %2734 = vdwg.mxu0
  %2735 = vmatpush.bf16.msra.mxu0 %v1761
  %2736 = vmatpush.bf16.msra.mxu0 %v1757
  %2737 = vmatpush.bf16.msra.mxu0 %v1753
  %2738 = vmatpush.bf16.msra.mxu0 %v1749
  %2739 = vmatpush.bf16.msra.mxu0 %v1745
  %2740 = vmatpush.bf16.msra.mxu0 %v1741
  %2741 = vmatpush.bf16.msra.mxu0 %v1737
  %2742 = vmatpush.bf16.msra.mxu0 %v1733
  %2743 = vmatmul.bf16.gmra.mxu0 %v427
  %v2744 = vpop.f32.mrf.mxu0
  %v2745 = vadd.f32 %v2732, %v2744
  %v2746 = vpop.f32.mrf.mxu0
  %2747 = vdwg.mxu0
  %2748 = vmatpush.bf16.msra.mxu0 %v1793
  %2749 = vmatpush.bf16.msra.mxu0 %v1789
  %2750 = vmatpush.bf16.msra.mxu0 %v1785
  %2751 = vmatpush.bf16.msra.mxu0 %v1781
  %2752 = vmatpush.bf16.msra.mxu0 %v1777
  %2753 = vmatpush.bf16.msra.mxu0 %v1773
  %2754 = vmatpush.bf16.msra.mxu0 %v1769
  %2755 = vmatpush.bf16.msra.mxu0 %v1765
  %2756 = vmatmul.bf16.gmra.mxu0 %v428
  %v2757 = vpop.f32.mrf.mxu0
  %v2758 = vadd.f32 %v2745, %v2757
  %v2759 = vpop.f32.mrf.mxu0
  %2760 = vdwg.mxu0
  %2761 = vmatpush.bf16.msra.mxu0 %v1825
  %2762 = vmatpush.bf16.msra.mxu0 %v1821
  %2763 = vmatpush.bf16.msra.mxu0 %v1817
  %2764 = vmatpush.bf16.msra.mxu0 %v1813
  %2765 = vmatpush.bf16.msra.mxu0 %v1809
  %2766 = vmatpush.bf16.msra.mxu0 %v1805
  %2767 = vmatpush.bf16.msra.mxu0 %v1801
  %2768 = vmatpush.bf16.msra.mxu0 %v1797
  %2769 = vmatmul.bf16.gmra.mxu0 %v429
  %v2770 = vpop.f32.mrf.mxu0
  %v2771 = vadd.f32 %v2758, %v2770
  %v2772 = vpop.f32.mrf.mxu0
  %2773 = vdwg.mxu0
  %2774 = vmatpush.bf16.msra.mxu0 %v1857
  %2775 = vmatpush.bf16.msra.mxu0 %v1853
  %2776 = vmatpush.bf16.msra.mxu0 %v1849
  %2777 = vmatpush.bf16.msra.mxu0 %v1845
  %2778 = vmatpush.bf16.msra.mxu0 %v1841
  %2779 = vmatpush.bf16.msra.mxu0 %v1837
  %2780 = vmatpush.bf16.msra.mxu0 %v1833
  %2781 = vmatpush.bf16.msra.mxu0 %v1829
  %2782 = vmatmul.bf16.gmra.mxu0 %v430
  %v2783 = vpop.f32.mrf.mxu0
  %v2784 = vadd.f32 %v2771, %v2783
  %v2785 = vpop.f32.mrf.mxu0
  %2786 = vdwg.mxu0
  %2787 = vmatpush.bf16.msra.mxu0 %v1889
  %2788 = vmatpush.bf16.msra.mxu0 %v1885
  %2789 = vmatpush.bf16.msra.mxu0 %v1881
  %2790 = vmatpush.bf16.msra.mxu0 %v1877
  %2791 = vmatpush.bf16.msra.mxu0 %v1873
  %2792 = vmatpush.bf16.msra.mxu0 %v1869
  %2793 = vmatpush.bf16.msra.mxu0 %v1865
  %2794 = vmatpush.bf16.msra.mxu0 %v1861
  %2795 = vmatmul.bf16.gmra.mxu0 %v435
  %v2796 = vpop.f32.mrf.mxu0
  %v2797 = vadd.f32 %v2784, %v2796
  %v2798 = vpop.f32.mrf.mxu0
  %2799 = vdwg.mxu0
  %2800 = vmatpush.bf16.msra.mxu0 %v1921
  %2801 = vmatpush.bf16.msra.mxu0 %v1917
  %2802 = vmatpush.bf16.msra.mxu0 %v1913
  %2803 = vmatpush.bf16.msra.mxu0 %v1909
  %2804 = vmatpush.bf16.msra.mxu0 %v1905
  %2805 = vmatpush.bf16.msra.mxu0 %v1901
  %2806 = vmatpush.bf16.msra.mxu0 %v1897
  %2807 = vmatpush.bf16.msra.mxu0 %v1893
  %2808 = vmatmul.bf16.gmra.mxu0 %v436
  %v2809 = vpop.f32.mrf.mxu0
  %v2810 = vadd.f32 %v2797, %v2809
  %v2811 = vpop.f32.mrf.mxu0
  %2812 = vdwg.mxu0
  %2813 = vmatpush.bf16.msra.mxu0 %v1953
  %2814 = vmatpush.bf16.msra.mxu0 %v1949
  %2815 = vmatpush.bf16.msra.mxu0 %v1945
  %2816 = vmatpush.bf16.msra.mxu0 %v1941
  %2817 = vmatpush.bf16.msra.mxu0 %v1937
  %2818 = vmatpush.bf16.msra.mxu0 %v1933
  %2819 = vmatpush.bf16.msra.mxu0 %v1929
  %2820 = vmatpush.bf16.msra.mxu0 %v1925
  %2821 = vmatmul.bf16.gmra.mxu0 %v437
  %v2822 = vpop.f32.mrf.mxu0
  %v2823 = vadd.f32 %v2810, %v2822
  %v2824 = vpop.f32.mrf.mxu0
  %2825 = vdwg.mxu0
  %2826 = vmatpush.bf16.msra.mxu0 %v1985
  %2827 = vmatpush.bf16.msra.mxu0 %v1981
  %2828 = vmatpush.bf16.msra.mxu0 %v1977
  %2829 = vmatpush.bf16.msra.mxu0 %v1973
  %2830 = vmatpush.bf16.msra.mxu0 %v1969
  %2831 = vmatpush.bf16.msra.mxu0 %v1965
  %2832 = vmatpush.bf16.msra.mxu0 %v1961
  %2833 = vmatpush.bf16.msra.mxu0 %v1957
  %2834 = vmatmul.bf16.gmra.mxu0 %v438
  %v2835 = vpop.f32.mrf.mxu0
  %v2836 = vadd.f32 %v2823, %v2835
  %v2837 = vpop.f32.mrf.mxu0
  %2838 = vdwg.mxu0
  %2839 = vmatpush.bf16.msra.mxu0 %v1634
  %2840 = vmatpush.bf16.msra.mxu0 %v1630
  %2841 = vmatpush.bf16.msra.mxu0 %v1626
  %2842 = vmatpush.bf16.msra.mxu0 %v1622
  %2843 = vmatpush.bf16.msra.mxu0 %v1618
  %2844 = vmatpush.bf16.msra.mxu0 %v1614
  %2845 = vmatpush.bf16.msra.mxu0 %v1610
  %2846 = vmatpush.bf16.msra.mxu0 %v1606
  %2847 = vmatmul.bf16.gmra.mxu0 %v423
  %v2848 = vpop.f32.mrf.mxu0
  %v2849 = vadd.f32 %v413, %v2848
  %v2850 = vpop.f32.mrf.mxu0
  %2851 = vdwg.mxu0
  %2852 = vmatpush.bf16.msra.mxu0 %v1666
  %2853 = vmatpush.bf16.msra.mxu0 %v1662
  %2854 = vmatpush.bf16.msra.mxu0 %v1658
  %2855 = vmatpush.bf16.msra.mxu0 %v1654
  %2856 = vmatpush.bf16.msra.mxu0 %v1650
  %2857 = vmatpush.bf16.msra.mxu0 %v1646
  %2858 = vmatpush.bf16.msra.mxu0 %v1642
  %2859 = vmatpush.bf16.msra.mxu0 %v1638
  %2860 = vmatmul.bf16.gmra.mxu0 %v424
  %v2861 = vpop.f32.mrf.mxu0
  %v2862 = vadd.f32 %v2849, %v2861
  %v2863 = vpop.f32.mrf.mxu0
  %2864 = vdwg.mxu0
  %2865 = vmatpush.bf16.msra.mxu0 %v1698
  %2866 = vmatpush.bf16.msra.mxu0 %v1694
  %2867 = vmatpush.bf16.msra.mxu0 %v1690
  %2868 = vmatpush.bf16.msra.mxu0 %v1686
  %2869 = vmatpush.bf16.msra.mxu0 %v1682
  %2870 = vmatpush.bf16.msra.mxu0 %v1678
  %2871 = vmatpush.bf16.msra.mxu0 %v1674
  %2872 = vmatpush.bf16.msra.mxu0 %v1670
  %2873 = vmatmul.bf16.gmra.mxu0 %v425
  %v2874 = vpop.f32.mrf.mxu0
  %v2875 = vadd.f32 %v2862, %v2874
  %v2876 = vpop.f32.mrf.mxu0
  %2877 = vdwg.mxu0
  %2878 = vmatpush.bf16.msra.mxu0 %v1730
  %2879 = vmatpush.bf16.msra.mxu0 %v1726
  %2880 = vmatpush.bf16.msra.mxu0 %v1722
  %2881 = vmatpush.bf16.msra.mxu0 %v1718
  %2882 = vmatpush.bf16.msra.mxu0 %v1714
  %2883 = vmatpush.bf16.msra.mxu0 %v1710
  %2884 = vmatpush.bf16.msra.mxu0 %v1706
  %2885 = vmatpush.bf16.msra.mxu0 %v1702
  %2886 = vmatmul.bf16.gmra.mxu0 %v426
  %v2887 = vpop.f32.mrf.mxu0
  %v2888 = vadd.f32 %v2875, %v2887
  %v2889 = vpop.f32.mrf.mxu0
  %2890 = vdwg.mxu0
  %2891 = vmatpush.bf16.msra.mxu0 %v1762
  %2892 = vmatpush.bf16.msra.mxu0 %v1758
  %2893 = vmatpush.bf16.msra.mxu0 %v1754
  %2894 = vmatpush.bf16.msra.mxu0 %v1750
  %2895 = vmatpush.bf16.msra.mxu0 %v1746
  %2896 = vmatpush.bf16.msra.mxu0 %v1742
  %2897 = vmatpush.bf16.msra.mxu0 %v1738
  %2898 = vmatpush.bf16.msra.mxu0 %v1734
  %2899 = vmatmul.bf16.gmra.mxu0 %v427
  %v2900 = vpop.f32.mrf.mxu0
  %v2901 = vadd.f32 %v2888, %v2900
  %v2902 = vpop.f32.mrf.mxu0
  %2903 = vdwg.mxu0
  %2904 = vmatpush.bf16.msra.mxu0 %v1794
  %2905 = vmatpush.bf16.msra.mxu0 %v1790
  %2906 = vmatpush.bf16.msra.mxu0 %v1786
  %2907 = vmatpush.bf16.msra.mxu0 %v1782
  %2908 = vmatpush.bf16.msra.mxu0 %v1778
  %2909 = vmatpush.bf16.msra.mxu0 %v1774
  %2910 = vmatpush.bf16.msra.mxu0 %v1770
  %2911 = vmatpush.bf16.msra.mxu0 %v1766
  %2912 = vmatmul.bf16.gmra.mxu0 %v428
  %v2913 = vpop.f32.mrf.mxu0
  %v2914 = vadd.f32 %v2901, %v2913
  %v2915 = vpop.f32.mrf.mxu0
  %2916 = vdwg.mxu0
  %2917 = vmatpush.bf16.msra.mxu0 %v1826
  %2918 = vmatpush.bf16.msra.mxu0 %v1822
  %2919 = vmatpush.bf16.msra.mxu0 %v1818
  %2920 = vmatpush.bf16.msra.mxu0 %v1814
  %2921 = vmatpush.bf16.msra.mxu0 %v1810
  %2922 = vmatpush.bf16.msra.mxu0 %v1806
  %2923 = vmatpush.bf16.msra.mxu0 %v1802
  %2924 = vmatpush.bf16.msra.mxu0 %v1798
  %2925 = vmatmul.bf16.gmra.mxu0 %v429
  %v2926 = vpop.f32.mrf.mxu0
  %v2927 = vadd.f32 %v2914, %v2926
  %v2928 = vpop.f32.mrf.mxu0
  %2929 = vdwg.mxu0
  %2930 = vmatpush.bf16.msra.mxu0 %v1858
  %2931 = vmatpush.bf16.msra.mxu0 %v1854
  %2932 = vmatpush.bf16.msra.mxu0 %v1850
  %2933 = vmatpush.bf16.msra.mxu0 %v1846
  %2934 = vmatpush.bf16.msra.mxu0 %v1842
  %2935 = vmatpush.bf16.msra.mxu0 %v1838
  %2936 = vmatpush.bf16.msra.mxu0 %v1834
  %2937 = vmatpush.bf16.msra.mxu0 %v1830
  %2938 = vmatmul.bf16.gmra.mxu0 %v430
  %v2939 = vpop.f32.mrf.mxu0
  %v2940 = vadd.f32 %v2927, %v2939
  %v2941 = vpop.f32.mrf.mxu0
  %2942 = vdwg.mxu0
  %2943 = vmatpush.bf16.msra.mxu0 %v1890
  %2944 = vmatpush.bf16.msra.mxu0 %v1886
  %2945 = vmatpush.bf16.msra.mxu0 %v1882
  %2946 = vmatpush.bf16.msra.mxu0 %v1878
  %2947 = vmatpush.bf16.msra.mxu0 %v1874
  %2948 = vmatpush.bf16.msra.mxu0 %v1870
  %2949 = vmatpush.bf16.msra.mxu0 %v1866
  %2950 = vmatpush.bf16.msra.mxu0 %v1862
  %2951 = vmatmul.bf16.gmra.mxu0 %v435
  %v2952 = vpop.f32.mrf.mxu0
  %v2953 = vadd.f32 %v2940, %v2952
  %v2954 = vpop.f32.mrf.mxu0
  %2955 = vdwg.mxu0
  %2956 = vmatpush.bf16.msra.mxu0 %v1922
  %2957 = vmatpush.bf16.msra.mxu0 %v1918
  %2958 = vmatpush.bf16.msra.mxu0 %v1914
  %2959 = vmatpush.bf16.msra.mxu0 %v1910
  %2960 = vmatpush.bf16.msra.mxu0 %v1906
  %2961 = vmatpush.bf16.msra.mxu0 %v1902
  %2962 = vmatpush.bf16.msra.mxu0 %v1898
  %2963 = vmatpush.bf16.msra.mxu0 %v1894
  %2964 = vmatmul.bf16.gmra.mxu0 %v436
  %v2965 = vpop.f32.mrf.mxu0
  %v2966 = vadd.f32 %v2953, %v2965
  %v2967 = vpop.f32.mrf.mxu0
  %2968 = vdwg.mxu0
  %2969 = vmatpush.bf16.msra.mxu0 %v1954
  %2970 = vmatpush.bf16.msra.mxu0 %v1950
  %2971 = vmatpush.bf16.msra.mxu0 %v1946
  %2972 = vmatpush.bf16.msra.mxu0 %v1942
  %2973 = vmatpush.bf16.msra.mxu0 %v1938
  %2974 = vmatpush.bf16.msra.mxu0 %v1934
  %2975 = vmatpush.bf16.msra.mxu0 %v1930
  %2976 = vmatpush.bf16.msra.mxu0 %v1926
  %2977 = vmatmul.bf16.gmra.mxu0 %v437
  %v2978 = vpop.f32.mrf.mxu0
  %v2979 = vadd.f32 %v2966, %v2978
  %v2980 = vpop.f32.mrf.mxu0
  %2981 = vdwg.mxu0
  %2982 = vmatpush.bf16.msra.mxu0 %v1986
  %2983 = vmatpush.bf16.msra.mxu0 %v1982
  %2984 = vmatpush.bf16.msra.mxu0 %v1978
  %2985 = vmatpush.bf16.msra.mxu0 %v1974
  %2986 = vmatpush.bf16.msra.mxu0 %v1970
  %2987 = vmatpush.bf16.msra.mxu0 %v1966
  %2988 = vmatpush.bf16.msra.mxu0 %v1962
  %2989 = vmatpush.bf16.msra.mxu0 %v1958
  %2990 = vmatmul.bf16.gmra.mxu0 %v438
  %v2991 = vpop.f32.mrf.mxu0
  %v2992 = vadd.f32 %v2979, %v2991
  %v2993 = vpop.f32.mrf.mxu0
  %2994 = vdwg.mxu0
  %v2995 = vpack.c.bf16 %v2524, %v2524
  %v2996 = vpack.c.bf16 %v2680, %v2680
  %v2997 = vpack.c.bf16 %v2836, %v2836
  %v2998 = vpack.c.bf16 %v2992, %v2992
  %v2999 = vld [vmem:[%s3] sm:$0xf]
  %v3000 = vld [vmem:[%s3 + $0x4] sm:$0xf]
  %v3001 = vld [vmem:[%s3 + $0x8] sm:$0xf]
  %v3002 = vld [vmem:[%s3 + $0xc] sm:$0xf]
  %v3003 = vld [vmem:[%s3 + $0x10] sm:$0xf]
  %v3004 = vld [vmem:[%s3 + $0x14] sm:$0xf]
  %v3005 = vld [vmem:[%s3 + $0x18] sm:$0xf]
  %v3006 = vld [vmem:[%s3 + $0x1c] sm:$0xf]
  %v3007 = vld [vmem:[%s3 + $0x20] sm:$0xf]
  %v3008 = vld [vmem:[%s3 + $0x24] sm:$0xf]
  %v3009 = vld [vmem:[%s3 + $0x28] sm:$0xf]
  %v3010 = vld [vmem:[%s3 + $0x2c] sm:$0xf]
  %v3011 = vld [vmem:[%s3 + $0x30] sm:$0xf]
  %v3012 = vld [vmem:[%s3 + $0x34] sm:$0xf]
  %v3013 = vld [vmem:[%s3 + $0x38] sm:$0xf]
  %v3014 = vld [vmem:[%s3 + $0x3c] sm:$0xf]
  %v3015 = vld [vmem:[%s3 + $0x40] sm:$0xf]
  %v3016 = vld [vmem:[%s3 + $0x44] sm:$0xf]
  %v3017 = vld [vmem:[%s3 + $0x48] sm:$0xf]
  %v3018 = vld [vmem:[%s3 + $0x4c] sm:$0xf]
  %v3019 = vld [vmem:[%s3 + $0x50] sm:$0xf]
  %v3020 = vld [vmem:[%s3 + $0x54] sm:$0xf]
  %v3021 = vld [vmem:[%s3 + $0x58] sm:$0xf]
  %v3022 = vld [vmem:[%s3 + $0x5c] sm:$0xf]
  %v3023 = vld [vmem:[%s3 + $0x60] sm:$0xf]
  %v3024 = vld [vmem:[%s3 + $0x64] sm:$0xf]
  %v3025 = vld [vmem:[%s3 + $0x68] sm:$0xf]
  %v3026 = vld [vmem:[%s3 + $0x6c] sm:$0xf]
  %v3027 = vld [vmem:[%s3 + $0x70] sm:$0xf]
  %v3028 = vld [vmem:[%s3 + $0x74] sm:$0xf]
  %v3029 = vld [vmem:[%s3 + $0x78] sm:$0xf]
  %v3030 = vld [vmem:[%s3 + $0x7c] sm:$0xf]
  %v3031 = vld [vmem:[%s3 + $0x80] sm:$0xf]
  %v3032 = vld [vmem:[%s3 + $0x84] sm:$0xf]
  %v3033 = vld [vmem:[%s3 + $0x88] sm:$0xf]
  %v3034 = vld [vmem:[%s3 + $0x8c] sm:$0xf]
  %v3035 = vld [vmem:[%s3 + $0x90] sm:$0xf]
  %v3036 = vld [vmem:[%s3 + $0x94] sm:$0xf]
  %v3037 = vld [vmem:[%s3 + $0x98] sm:$0xf]
  %v3038 = vld [vmem:[%s3 + $0x9c] sm:$0xf]
  %v3039 = vld [vmem:[%s3 + $0xa0] sm:$0xf]
  %v3040 = vld [vmem:[%s3 + $0xa4] sm:$0xf]
  %v3041 = vld [vmem:[%s3 + $0xa8] sm:$0xf]
  %v3042 = vld [vmem:[%s3 + $0xac] sm:$0xf]
  %v3043 = vld [vmem:[%s3 + $0xb0] sm:$0xf]
  %v3044 = vld [vmem:[%s3 + $0xb4] sm:$0xf]
  %v3045 = vld [vmem:[%s3 + $0xb8] sm:$0xf]
  %v3046 = vld [vmem:[%s3 + $0xbc] sm:$0xf]
  %v3047 = vld [vmem:[%s3 + $0xc0] sm:$0xf]
  %v3048 = vld [vmem:[%s3 + $0xc4] sm:$0xf]
  %v3049 = vld [vmem:[%s3 + $0xc8] sm:$0xf]
  %v3050 = vld [vmem:[%s3 + $0xcc] sm:$0xf]
  %v3051 = vld [vmem:[%s3 + $0xd0] sm:$0xf]
  %v3052 = vld [vmem:[%s3 + $0xd4] sm:$0xf]
  %v3053 = vld [vmem:[%s3 + $0xd8] sm:$0xf]
  %v3054 = vld [vmem:[%s3 + $0xdc] sm:$0xf]
  %v3055 = vld [vmem:[%s3 + $0xe0] sm:$0xf]
  %v3056 = vld [vmem:[%s3 + $0xe4] sm:$0xf]
  %v3057 = vld [vmem:[%s3 + $0xe8] sm:$0xf]
  %v3058 = vld [vmem:[%s3 + $0xec] sm:$0xf]
  %v3059 = vld [vmem:[%s3 + $0xf0] sm:$0xf]
  %v3060 = vld [vmem:[%s3 + $0xf4] sm:$0xf]
  %v3061 = vld [vmem:[%s3 + $0xf8] sm:$0xf]
  %v3062 = vld [vmem:[%s3 + $0xfc] sm:$0xf]
  %v3063 = vld [vmem:[%s4] sm:$0x1]
  %v3065 = vperm.slane %v3063, 0
  %v3131 = vunpack.c.l.b16 %v2999
  %v3132 = vunpack.c.l.b16 %v3000
  %v3133 = vunpack.c.l.b16 %v3001
  %v3134 = vunpack.c.l.b16 %v3002
  %v3135 = vunpack.c.l.b16 %v3003
  %v3136 = vunpack.c.l.b16 %v3004
  %v3137 = vunpack.c.l.b16 %v3005
  %v3138 = vunpack.c.l.b16 %v3006
  %v3139 = vunpack.c.l.b16 %v3007
  %v3140 = vunpack.c.l.b16 %v3008
  %v3141 = vunpack.c.l.b16 %v3009
  %v3142 = vunpack.c.l.b16 %v3010
  %v3143 = vunpack.c.l.b16 %v3011
  %v3144 = vunpack.c.l.b16 %v3012
  %v3145 = vunpack.c.l.b16 %v3013
  %v3146 = vunpack.c.l.b16 %v3014
  %v3147 = vunpack.c.l.b16 %v3015
  %v3148 = vunpack.c.l.b16 %v3016
  %v3149 = vunpack.c.l.b16 %v3017
  %v3150 = vunpack.c.l.b16 %v3018
  %v3151 = vunpack.c.l.b16 %v3019
  %v3152 = vunpack.c.l.b16 %v3020
  %v3153 = vunpack.c.l.b16 %v3021
  %v3154 = vunpack.c.l.b16 %v3022
  %v3155 = vunpack.c.l.b16 %v3023
  %v3156 = vunpack.c.l.b16 %v3024
  %v3157 = vunpack.c.l.b16 %v3025
  %v3158 = vunpack.c.l.b16 %v3026
  %v3159 = vunpack.c.l.b16 %v3027
  %v3160 = vunpack.c.l.b16 %v3028
  %v3161 = vunpack.c.l.b16 %v3029
  %v3162 = vunpack.c.l.b16 %v3030
  %v3163 = vunpack.c.l.b16 %v3031
  %v3164 = vunpack.c.l.b16 %v3032
  %v3165 = vunpack.c.l.b16 %v3033
  %v3166 = vunpack.c.l.b16 %v3034
  %v3167 = vunpack.c.l.b16 %v3035
  %v3168 = vunpack.c.l.b16 %v3036
  %v3169 = vunpack.c.l.b16 %v3037
  %v3170 = vunpack.c.l.b16 %v3038
  %v3171 = vunpack.c.l.b16 %v3039
  %v3172 = vunpack.c.l.b16 %v3040
  %v3173 = vunpack.c.l.b16 %v3041
  %v3174 = vunpack.c.l.b16 %v3042
  %v3175 = vunpack.c.l.b16 %v3043
  %v3176 = vunpack.c.l.b16 %v3044
  %v3177 = vunpack.c.l.b16 %v3045
  %v3178 = vunpack.c.l.b16 %v3046
  %v3179 = vunpack.c.l.b16 %v3047
  %v3180 = vunpack.c.l.b16 %v3048
  %v3181 = vunpack.c.l.b16 %v3049
  %v3182 = vunpack.c.l.b16 %v3050
  %v3183 = vunpack.c.l.b16 %v3051
  %v3184 = vunpack.c.l.b16 %v3052
  %v3185 = vunpack.c.l.b16 %v3053
  %v3186 = vunpack.c.l.b16 %v3054
  %v3187 = vunpack.c.l.b16 %v3055
  %v3188 = vunpack.c.l.b16 %v3056
  %v3189 = vunpack.c.l.b16 %v3057
  %v3190 = vunpack.c.l.b16 %v3058
  %v3191 = vunpack.c.l.b16 %v3059
  %v3192 = vunpack.c.l.b16 %v3060
  %v3193 = vunpack.c.l.b16 %v3061
  %v3194 = vunpack.c.l.b16 %v3062
  %v3195 = vpack.c.b16 %v3132, %v3131
  %v3196 = vpack.c.b16 %v3134, %v3133
  %v3197 = vpack.c.b16 %v3136, %v3135
  %v3198 = vpack.c.b16 %v3138, %v3137
  %v3199 = vpack.c.b16 %v3140, %v3139
  %v3200 = vpack.c.b16 %v3142, %v3141
  %v3201 = vpack.c.b16 %v3144, %v3143
  %v3202 = vpack.c.b16 %v3146, %v3145
  %v3203 = vpack.c.b16 %v3148, %v3147
  %v3204 = vpack.c.b16 %v3150, %v3149
  %v3205 = vpack.c.b16 %v3152, %v3151
  %v3206 = vpack.c.b16 %v3154, %v3153
  %v3207 = vpack.c.b16 %v3156, %v3155
  %v3208 = vpack.c.b16 %v3158, %v3157
  %v3209 = vpack.c.b16 %v3160, %v3159
  %v3210 = vpack.c.b16 %v3162, %v3161
  %v3211 = vpack.c.b16 %v3164, %v3163
  %v3212 = vpack.c.b16 %v3166, %v3165
  %v3213 = vpack.c.b16 %v3168, %v3167
  %v3214 = vpack.c.b16 %v3170, %v3169
  %v3215 = vpack.c.b16 %v3172, %v3171
  %v3216 = vpack.c.b16 %v3174, %v3173
  %v3217 = vpack.c.b16 %v3176, %v3175
  %v3218 = vpack.c.b16 %v3178, %v3177
  %v3219 = vpack.c.b16 %v3180, %v3179
  %v3220 = vpack.c.b16 %v3182, %v3181
  %v3221 = vpack.c.b16 %v3184, %v3183
  %v3222 = vpack.c.b16 %v3186, %v3185
  %v3223 = vpack.c.b16 %v3188, %v3187
  %v3224 = vpack.c.b16 %v3190, %v3189
  %v3225 = vpack.c.b16 %v3192, %v3191
  %v3226 = vpack.c.b16 %v3194, %v3193
  %3259 = vmatpush.bf16.msra.mxu0 %v3202
  %3260 = vmatpush.bf16.msra.mxu0 %v3201
  %3261 = vmatpush.bf16.msra.mxu0 %v3200
  %3262 = vmatpush.bf16.msra.mxu0 %v3199
  %3263 = vmatpush.bf16.msra.mxu0 %v3198
  %3264 = vmatpush.bf16.msra.mxu0 %v3197
  %3265 = vmatpush.bf16.msra.mxu0 %v3196
  %3266 = vmatpush.bf16.msra.mxu0 %v3195
  %3267 = vmatmul.bf16.gmra.mxu0 %v2995
  %v3268 = vpop.f32.mrf.mxu0
  %v3269 = vadd.f32 %v3065, %v3268
  %v3270 = vpop.f32.mrf.mxu0
  %3271 = vdwg.mxu0
  %3272 = vmatpush.bf16.msra.mxu0 %v3210
  %3273 = vmatpush.bf16.msra.mxu0 %v3209
  %3274 = vmatpush.bf16.msra.mxu0 %v3208
  %3275 = vmatpush.bf16.msra.mxu0 %v3207
  %3276 = vmatpush.bf16.msra.mxu0 %v3206
  %3277 = vmatpush.bf16.msra.mxu0 %v3205
  %3278 = vmatpush.bf16.msra.mxu0 %v3204
  %3279 = vmatpush.bf16.msra.mxu0 %v3203
  %3280 = vmatmul.bf16.gmra.mxu0 %v2996
  %v3281 = vpop.f32.mrf.mxu0
  %v3282 = vadd.f32 %v3269, %v3281
  %v3283 = vpop.f32.mrf.mxu0
  %3284 = vdwg.mxu0
  %3285 = vmatpush.bf16.msra.mxu0 %v3218
  %3286 = vmatpush.bf16.msra.mxu0 %v3217
  %3287 = vmatpush.bf16.msra.mxu0 %v3216
  %3288 = vmatpush.bf16.msra.mxu0 %v3215
  %3289 = vmatpush.bf16.msra.mxu0 %v3214
  %3290 = vmatpush.bf16.msra.mxu0 %v3213
  %3291 = vmatpush.bf16.msra.mxu0 %v3212
  %3292 = vmatpush.bf16.msra.mxu0 %v3211
  %3293 = vmatmul.bf16.gmra.mxu0 %v2997
  %v3294 = vpop.f32.mrf.mxu0
  %v3295 = vadd.f32 %v3282, %v3294
  %v3296 = vpop.f32.mrf.mxu0
  %3297 = vdwg.mxu0
  %3298 = vmatpush.bf16.msra.mxu0 %v3226
  %3299 = vmatpush.bf16.msra.mxu0 %v3225
  %3300 = vmatpush.bf16.msra.mxu0 %v3224
  %3301 = vmatpush.bf16.msra.mxu0 %v3223
  %3302 = vmatpush.bf16.msra.mxu0 %v3222
  %3303 = vmatpush.bf16.msra.mxu0 %v3221
  %3304 = vmatpush.bf16.msra.mxu0 %v3220
  %3305 = vmatpush.bf16.msra.mxu0 %v3219
  %3306 = vmatmul.bf16.gmra.mxu0 %v2998
  %v3307 = vpop.f32.mrf.mxu0
  %v3308 = vadd.f32 %v3295, %v3307
  %v3309 = vpop.f32.mrf.mxu0
  %3310 = vdwg.mxu0
  %v3312 = vrot.slane %v3308, 2
  %vm3314 = vcmask 1041408
  %v3315 = vsel %vm3314, %v3308, 0.0
  %v3316 = vrot.slane %v3315, 4
  %v3317 = vadd.f32 %v3315, %v3316
  %v3318 = vrot.slane %v3317, 2
  %v3319 = vadd.f32 %v3317, %v3318
  %v3320 = vrot.slane %v3319, 1
  %v3321 = vadd.f32 %v3319, %v3320
  %v3322 = vsel %vm3314, %v3312, 0.0
  %v3323 = vrot.slane %v3322, 4
  %v3324 = vadd.f32 %v3322, %v3323
  %v3325 = vrot.slane %v3324, 2
  %v3326 = vadd.f32 %v3324, %v3325
  %v3327 = vrot.slane %v3326, 1
  %v3328 = vadd.f32 %v3326, %v3327
  %v3329 = vrcp.pop 2.0
  %v3330 = vmul.f32 2.0, %v3329
  %v3331 = vsub.f32 1.0, %v3330
  %v3332 = vmul.f32 %v3329, %v3331
  %v3333 = vadd.f32 %v3329, %v3332
  %vm3334 = vweird.f32 %v3329
  %v3335 = vsel %vm3334, %v3329, %v3333
  %v3336 = vmul.f32 %v3321, %v3335
  %v3337 = vmul.f32 %v3328, %v3335
  %3338 = vst [vmem:[%s5] sm:$0x1] %v3336
  %3339 = vst [vmem:[%s5 + $0x4] sm:$0x1] %v3337
  %3340 = vst [vmem:[%s5 + $0x1] sm:$0x3] %v3308
  %3341 = vst [vmem:[%s5 + $0x5] sm:$0x3] %v3312
  // Predicated region
  $region22: #{representation_projection.3} parent=0 // pred_check
    _
  $region23: #{representation_projection.3} parent=0 // pred_check_branch
    %3343 = sbr.rel (0) target = $region25
  $region24: #{representation_projection.3} parent=0 // pred_region
    _
  $region25: #{representation_projection.3} parent=0 // pred_fallthru
    _
  // Predicated region
  $region26: #{representation_projection.3} parent=0 // pred_check
    _
  $region27: #{representation_projection.3} parent=0 // pred_check_branch
    %3345 = sbr.rel (0) target = $region29
  $region28: #{representation_projection.3} parent=0 // pred_region
    _
  $region29: #{representation_projection.3} parent=0 // pred_fallthru
    _

// kernel: representation_projection.2
$region0: #{representation_projection.2}
  #allocation0 [shape = 'u32[]', space=smem, size = 0x4, offset = 0x4, fixed_abs, tag = 'smem constant byte address 0x4 - core index']
  #allocation1 [shape = 'u32[72,128]{1,0:T(1,128)}', space=vmem, size = 0x9000, scoped, tag = 'internal scratch']
  %s0 = inlined_call_operand.vmem [shape: bf16[8,256,36], index: 0, kind: input, shape index: {}]
  %s1 = inlined_call_operand.vmem [shape: bf16[36,512], index: 1, kind: input, shape index: {}]
  %s2 = inlined_call_operand.vmem [shape: f32[1,512], index: 2, kind: input, shape index: {}]
  %s3 = inlined_call_operand.vmem [shape: f32[1,8,512], index: 3, kind: output, shape index: {}]
  %s4 = sld [smem:[#allocation0]]
  $region22: #{representation_projection.2} parent=0
    _
  %s6 = ssub.s32 1, %s4
  %s7 = scalar_select 0, %s6, %s4
  // Predicated region
  $region2: #{representation_projection.2} parent=0 // pred_check
    _
  $region3: #{representation_projection.2} parent=0 // pred_check_branch
    %9 = sbr.rel (0) target = $region5
  $region4: #{representation_projection.2} parent=0 // pred_region
    _
  $region5: #{representation_projection.2} parent=0 // pred_fallthru
    _
  // Predicated region
  $region6: #{representation_projection.2} parent=0 // pred_check
    _
  $region7: #{representation_projection.2} parent=0 // pred_check_branch
    %11 = sbr.rel (0) target = $region9
  $region8: #{representation_projection.2} parent=0 // pred_region
    _
  $region9: #{representation_projection.2} parent=0 // pred_fallthru
    _
  // Predicated region
  $region10: #{representation_projection.2} parent=0 // pred_check
    _
  $region11: #{representation_projection.2} parent=0 // pred_check_branch
    %13 = sbr.rel (0) target = $region13
  $region12: #{representation_projection.2} parent=0 // pred_region
    _
  $region13: #{representation_projection.2} parent=0 // pred_fallthru
    _
  %v15 = vld [vmem:[%s0] sm:$0xf]
  %v16 = vld [vmem:[%s0 + $0x4] sm:$0xf]
  %v17 = vld [vmem:[%s0 + $0x8] sm:$0xf]
  %v18 = vld [vmem:[%s0 + $0xc] sm:$0xf]
  %v19 = vld [vmem:[%s0 + $0x10] sm:$0xf]
  %v20 = vld [vmem:[%s0 + $0x14] sm:$0xf]
  %v21 = vld [vmem:[%s0 + $0x18] sm:$0xf]
  %v22 = vld [vmem:[%s0 + $0x1c] sm:$0xf]
  %v23 = vld [vmem:[%s0 + $0x20] sm:$0xf]
  %v24 = vld [vmem:[%s0 + $0x24] sm:$0xf]
  %v25 = vld [vmem:[%s0 + $0x28] sm:$0xf]
  %v26 = vld [vmem:[%s0 + $0x2c] sm:$0xf]
  %v27 = vld [vmem:[%s0 + $0x30] sm:$0xf]
  %v28 = vld [vmem:[%s0 + $0x34] sm:$0xf]
  %v29 = vld [vmem:[%s0 + $0x38] sm:$0xf]
  %v30 = vld [vmem:[%s0 + $0x3c] sm:$0xf]
  %v31 = vld [vmem:[%s0 + $0x40] sm:$0xf]
  %v32 = vld [vmem:[%s0 + $0x44] sm:$0xf]
  %v33 = vld [vmem:[%s0 + $0x48] sm:$0xf]
  %v34 = vld [vmem:[%s0 + $0x4c] sm:$0xf]
  %v35 = vld [vmem:[%s0 + $0x50] sm:$0xf]
  %v36 = vld [vmem:[%s0 + $0x54] sm:$0xf]
  %v37 = vld [vmem:[%s0 + $0x58] sm:$0xf]
  %v38 = vld [vmem:[%s0 + $0x5c] sm:$0xf]
  %v39 = vld [vmem:[%s0 + $0x60] sm:$0xf]
  %v40 = vld [vmem:[%s0 + $0x64] sm:$0xf]
  %v41 = vld [vmem:[%s0 + $0x68] sm:$0xf]
  %v42 = vld [vmem:[%s0 + $0x6c] sm:$0xf]
  %v43 = vld [vmem:[%s0 + $0x70] sm:$0xf]
  %v44 = vld [vmem:[%s0 + $0x74] sm:$0xf]
  %v45 = vld [vmem:[%s0 + $0x78] sm:$0xf]
  %v46 = vld [vmem:[%s0 + $0x7c] sm:$0xf]
  %v47 = vld [vmem:[%s0 + $0x80] sm:$0xf]
  %v48 = vld [vmem:[%s0 + $0x84] sm:$0xf]
  %v49 = vld [vmem:[%s0 + $0x88] sm:$0xf]
  %v50 = vld [vmem:[%s0 + $0x8c] sm:$0xf]
  %v51 = vld [vmem:[%s0 + $0x90] sm:$0xf]
  %v52 = vld [vmem:[%s0 + $0x94] sm:$0xf]
  %v53 = vld [vmem:[%s0 + $0x98] sm:$0xf]
  %v54 = vld [vmem:[%s0 + $0x9c] sm:$0xf]
  %v55 = vld [vmem:[%s0 + $0xa0] sm:$0xf]
  %v56 = vld [vmem:[%s0 + $0xa4] sm:$0xf]
  %v57 = vld [vmem:[%s0 + $0xa8] sm:$0xf]
  %v58 = vld [vmem:[%s0 + $0xac] sm:$0xf]
  %v59 = vld [vmem:[%s0 + $0xb0] sm:$0xf]
  %v60 = vld [vmem:[%s0 + $0xb4] sm:$0xf]
  %v61 = vld [vmem:[%s0 + $0xb8] sm:$0xf]
  %v62 = vld [vmem:[%s0 + $0xbc] sm:$0xf]
  %v63 = vld [vmem:[%s0 + $0xc0] sm:$0xf]
  %v64 = vld [vmem:[%s0 + $0xc4] sm:$0xf]
  %v65 = vld [vmem:[%s0 + $0xc8] sm:$0xf]
  %v66 = vld [vmem:[%s0 + $0xcc] sm:$0xf]
  %v67 = vld [vmem:[%s0 + $0xd0] sm:$0xf]
  %v68 = vld [vmem:[%s0 + $0xd4] sm:$0xf]
  %v69 = vld [vmem:[%s0 + $0xd8] sm:$0xf]
  %v70 = vld [vmem:[%s0 + $0xdc] sm:$0xf]
  %v71 = vld [vmem:[%s0 + $0xe0] sm:$0xf]
  %v72 = vld [vmem:[%s0 + $0xe4] sm:$0xf]
  %v73 = vld [vmem:[%s0 + $0xe8] sm:$0xf]
  %v74 = vld [vmem:[%s0 + $0xec] sm:$0xf]
  %v75 = vld [vmem:[%s0 + $0xf0] sm:$0xf]
  %v76 = vld [vmem:[%s0 + $0xf4] sm:$0xf]
  %v77 = vld [vmem:[%s0 + $0xf8] sm:$0xf]
  %v78 = vld [vmem:[%s0 + $0xfc] sm:$0xf]
  %v79 = vld [vmem:[%s0 + $0x100] sm:$0xf]
  %v80 = vld [vmem:[%s0 + $0x104] sm:$0xf]
  %v81 = vld [vmem:[%s0 + $0x108] sm:$0xf]
  %v82 = vld [vmem:[%s0 + $0x10c] sm:$0xf]
  %v83 = vld [vmem:[%s0 + $0x110] sm:$0xf]
  %v84 = vld [vmem:[%s0 + $0x114] sm:$0xf]
  %v85 = vld [vmem:[%s0 + $0x118] sm:$0xf]
  %v86 = vld [vmem:[%s0 + $0x11c] sm:$0xf]
  %v87 = vld [vmem:[%s0 + $0x120] sm:$0xf]
  %v88 = vld [vmem:[%s0 + $0x124] sm:$0xf]
  %v89 = vld [vmem:[%s0 + $0x128] sm:$0xf]
  %v90 = vld [vmem:[%s0 + $0x12c] sm:$0xf]
  %v91 = vld [vmem:[%s0 + $0x130] sm:$0xf]
  %v92 = vld [vmem:[%s0 + $0x134] sm:$0xf]
  %v93 = vld [vmem:[%s0 + $0x138] sm:$0xf]
  %v94 = vld [vmem:[%s0 + $0x13c] sm:$0xf]
  %v95 = vld [vmem:[%s0 + $0x140] sm:$0xf]
  %v96 = vld [vmem:[%s0 + $0x144] sm:$0xf]
  %v97 = vld [vmem:[%s0 + $0x148] sm:$0xf]
  %v98 = vld [vmem:[%s0 + $0x14c] sm:$0xf]
  %v99 = vld [vmem:[%s0 + $0x150] sm:$0xf]
  %v100 = vld [vmem:[%s0 + $0x154] sm:$0xf]
  %v101 = vld [vmem:[%s0 + $0x158] sm:$0xf]
  %v102 = vld [vmem:[%s0 + $0x15c] sm:$0xf]
  %v103 = vld [vmem:[%s0 + $0x160] sm:$0xf]
  %v104 = vld [vmem:[%s0 + $0x164] sm:$0xf]
  %v105 = vld [vmem:[%s0 + $0x168] sm:$0xf]
  %v106 = vld [vmem:[%s0 + $0x16c] sm:$0xf]
  %v107 = vld [vmem:[%s0 + $0x170] sm:$0xf]
  %v108 = vld [vmem:[%s0 + $0x174] sm:$0xf]
  %v109 = vld [vmem:[%s0 + $0x178] sm:$0xf]
  %v110 = vld [vmem:[%s0 + $0x17c] sm:$0xf]
  %v111 = vld [vmem:[%s0 + $0x180] sm:$0xf]
  %v112 = vld [vmem:[%s0 + $0x184] sm:$0xf]
  %v113 = vld [vmem:[%s0 + $0x188] sm:$0xf]
  %v114 = vld [vmem:[%s0 + $0x18c] sm:$0xf]
  %v115 = vld [vmem:[%s0 + $0x190] sm:$0xf]
  %v116 = vld [vmem:[%s0 + $0x194] sm:$0xf]
  %v117 = vld [vmem:[%s0 + $0x198] sm:$0xf]
  %v118 = vld [vmem:[%s0 + $0x19c] sm:$0xf]
  %v119 = vld [vmem:[%s0 + $0x1a0] sm:$0xf]
  %v120 = vld [vmem:[%s0 + $0x1a4] sm:$0xf]
  %v121 = vld [vmem:[%s0 + $0x1a8] sm:$0xf]
  %v122 = vld [vmem:[%s0 + $0x1ac] sm:$0xf]
  %v123 = vld [vmem:[%s0 + $0x1b0] sm:$0xf]
  %v124 = vld [vmem:[%s0 + $0x1b4] sm:$0xf]
  %v125 = vld [vmem:[%s0 + $0x1b8] sm:$0xf]
  %v126 = vld [vmem:[%s0 + $0x1bc] sm:$0xf]
  %v127 = vld [vmem:[%s0 + $0x1c0] sm:$0xf]
  %v128 = vld [vmem:[%s0 + $0x1c4] sm:$0xf]
  %v129 = vld [vmem:[%s0 + $0x1c8] sm:$0xf]
  %v130 = vld [vmem:[%s0 + $0x1cc] sm:$0xf]
  %v131 = vld [vmem:[%s0 + $0x1d0] sm:$0xf]
  %v132 = vld [vmem:[%s0 + $0x1d4] sm:$0xf]
  %v133 = vld [vmem:[%s0 + $0x1d8] sm:$0xf]
  %v134 = vld [vmem:[%s0 + $0x1dc] sm:$0xf]
  %v135 = vld [vmem:[%s0 + $0x1e0] sm:$0xf]
  %v136 = vld [vmem:[%s0 + $0x1e4] sm:$0xf]
  %v137 = vld [vmem:[%s0 + $0x1e8] sm:$0xf]
  %v138 = vld [vmem:[%s0 + $0x1ec] sm:$0xf]
  %v139 = vld [vmem:[%s0 + $0x1f0] sm:$0xf]
  %v140 = vld [vmem:[%s0 + $0x1f4] sm:$0xf]
  %v141 = vld [vmem:[%s0 + $0x1f8] sm:$0xf]
  %v142 = vld [vmem:[%s0 + $0x1fc] sm:$0xf]
  %v143 = vld [vmem:[%s0 + $0x200] sm:$0xf]
  %v144 = vld [vmem:[%s0 + $0x204] sm:$0xf]
  %v145 = vld [vmem:[%s0 + $0x208] sm:$0xf]
  %v146 = vld [vmem:[%s0 + $0x20c] sm:$0xf]
  %v147 = vld [vmem:[%s0 + $0x210] sm:$0xf]
  %v148 = vld [vmem:[%s0 + $0x214] sm:$0xf]
  %v149 = vld [vmem:[%s0 + $0x218] sm:$0xf]
  %v150 = vld [vmem:[%s0 + $0x21c] sm:$0xf]
  %v151 = vld [vmem:[%s0 + $0x220] sm:$0xf]
  %v152 = vld [vmem:[%s0 + $0x224] sm:$0xf]
  %v153 = vld [vmem:[%s0 + $0x228] sm:$0xf]
  %v154 = vld [vmem:[%s0 + $0x22c] sm:$0xf]
  %v155 = vld [vmem:[%s0 + $0x230] sm:$0xf]
  %v156 = vld [vmem:[%s0 + $0x234] sm:$0xf]
  %v157 = vld [vmem:[%s0 + $0x238] sm:$0xf]
  %v158 = vld [vmem:[%s0 + $0x23c] sm:$0xf]
  %v159 = vld [vmem:[%s0 + $0x240] sm:$0xf]
  %v160 = vld [vmem:[%s0 + $0x244] sm:$0xf]
  %v161 = vld [vmem:[%s0 + $0x248] sm:$0xf]
  %v162 = vld [vmem:[%s0 + $0x24c] sm:$0xf]
  %v163 = vld [vmem:[%s0 + $0x250] sm:$0xf]
  %v164 = vld [vmem:[%s0 + $0x254] sm:$0xf]
  %v165 = vld [vmem:[%s0 + $0x258] sm:$0xf]
  %v166 = vld [vmem:[%s0 + $0x25c] sm:$0xf]
  %v167 = vld [vmem:[%s0 + $0x260] sm:$0xf]
  %v168 = vld [vmem:[%s0 + $0x264] sm:$0xf]
  %v169 = vld [vmem:[%s0 + $0x268] sm:$0xf]
  %v170 = vld [vmem:[%s0 + $0x26c] sm:$0xf]
  %v171 = vld [vmem:[%s0 + $0x270] sm:$0xf]
  %v172 = vld [vmem:[%s0 + $0x274] sm:$0xf]
  %v173 = vld [vmem:[%s0 + $0x278] sm:$0xf]
  %v174 = vld [vmem:[%s0 + $0x27c] sm:$0xf]
  %v175 = vld [vmem:[%s0 + $0x280] sm:$0xf]
  %v176 = vld [vmem:[%s0 + $0x284] sm:$0xf]
  %v177 = vld [vmem:[%s0 + $0x288] sm:$0xf]
  %v178 = vld [vmem:[%s0 + $0x28c] sm:$0xf]
  %v179 = vld [vmem:[%s0 + $0x290] sm:$0xf]
  %v180 = vld [vmem:[%s0 + $0x294] sm:$0xf]
  %v181 = vld [vmem:[%s0 + $0x298] sm:$0xf]
  %v182 = vld [vmem:[%s0 + $0x29c] sm:$0xf]
  %v183 = vld [vmem:[%s0 + $0x2a0] sm:$0xf]
  %v184 = vld [vmem:[%s0 + $0x2a4] sm:$0xf]
  %v185 = vld [vmem:[%s0 + $0x2a8] sm:$0xf]
  %v186 = vld [vmem:[%s0 + $0x2ac] sm:$0xf]
  %v187 = vld [vmem:[%s0 + $0x2b0] sm:$0xf]
  %v188 = vld [vmem:[%s0 + $0x2b4] sm:$0xf]
  %v189 = vld [vmem:[%s0 + $0x2b8] sm:$0xf]
  %v190 = vld [vmem:[%s0 + $0x2bc] sm:$0xf]
  %v191 = vld [vmem:[%s0 + $0x2c0] sm:$0xf]
  %v192 = vld [vmem:[%s0 + $0x2c4] sm:$0xf]
  %v193 = vld [vmem:[%s0 + $0x2c8] sm:$0xf]
  %v194 = vld [vmem:[%s0 + $0x2cc] sm:$0xf]
  %v195 = vld [vmem:[%s0 + $0x2d0] sm:$0xf]
  %v196 = vld [vmem:[%s0 + $0x2d4] sm:$0xf]
  %v197 = vld [vmem:[%s0 + $0x2d8] sm:$0xf]
  %v198 = vld [vmem:[%s0 + $0x2dc] sm:$0xf]
  %v199 = vld [vmem:[%s0 + $0x2e0] sm:$0xf]
  %v200 = vld [vmem:[%s0 + $0x2e4] sm:$0xf]
  %v201 = vld [vmem:[%s0 + $0x2e8] sm:$0xf]
  %v202 = vld [vmem:[%s0 + $0x2ec] sm:$0xf]
  %v203 = vld [vmem:[%s0 + $0x2f0] sm:$0xf]
  %v204 = vld [vmem:[%s0 + $0x2f4] sm:$0xf]
  %v205 = vld [vmem:[%s0 + $0x2f8] sm:$0xf]
  %v206 = vld [vmem:[%s0 + $0x2fc] sm:$0xf]
  %v207 = vld [vmem:[%s0 + $0x300] sm:$0xf]
  %v208 = vld [vmem:[%s0 + $0x304] sm:$0xf]
  %v209 = vld [vmem:[%s0 + $0x308] sm:$0xf]
  %v210 = vld [vmem:[%s0 + $0x30c] sm:$0xf]
  %v211 = vld [vmem:[%s0 + $0x310] sm:$0xf]
  %v212 = vld [vmem:[%s0 + $0x314] sm:$0xf]
  %v213 = vld [vmem:[%s0 + $0x318] sm:$0xf]
  %v214 = vld [vmem:[%s0 + $0x31c] sm:$0xf]
  %v215 = vld [vmem:[%s0 + $0x320] sm:$0xf]
  %v216 = vld [vmem:[%s0 + $0x324] sm:$0xf]
  %v217 = vld [vmem:[%s0 + $0x328] sm:$0xf]
  %v218 = vld [vmem:[%s0 + $0x32c] sm:$0xf]
  %v219 = vld [vmem:[%s0 + $0x330] sm:$0xf]
  %v220 = vld [vmem:[%s0 + $0x334] sm:$0xf]
  %v221 = vld [vmem:[%s0 + $0x338] sm:$0xf]
  %v222 = vld [vmem:[%s0 + $0x33c] sm:$0xf]
  %v223 = vld [vmem:[%s0 + $0x340] sm:$0xf]
  %v224 = vld [vmem:[%s0 + $0x344] sm:$0xf]
  %v225 = vld [vmem:[%s0 + $0x348] sm:$0xf]
  %v226 = vld [vmem:[%s0 + $0x34c] sm:$0xf]
  %v227 = vld [vmem:[%s0 + $0x350] sm:$0xf]
  %v228 = vld [vmem:[%s0 + $0x354] sm:$0xf]
  %v229 = vld [vmem:[%s0 + $0x358] sm:$0xf]
  %v230 = vld [vmem:[%s0 + $0x35c] sm:$0xf]
  %v231 = vld [vmem:[%s0 + $0x360] sm:$0xf]
  %v232 = vld [vmem:[%s0 + $0x364] sm:$0xf]
  %v233 = vld [vmem:[%s0 + $0x368] sm:$0xf]
  %v234 = vld [vmem:[%s0 + $0x36c] sm:$0xf]
  %v235 = vld [vmem:[%s0 + $0x370] sm:$0xf]
  %v236 = vld [vmem:[%s0 + $0x374] sm:$0xf]
  %v237 = vld [vmem:[%s0 + $0x378] sm:$0xf]
  %v238 = vld [vmem:[%s0 + $0x37c] sm:$0xf]
  %v239 = vld [vmem:[%s0 + $0x380] sm:$0xf]
  %v240 = vld [vmem:[%s0 + $0x384] sm:$0xf]
  %v241 = vld [vmem:[%s0 + $0x388] sm:$0xf]
  %v242 = vld [vmem:[%s0 + $0x38c] sm:$0xf]
  %v243 = vld [vmem:[%s0 + $0x390] sm:$0xf]
  %v244 = vld [vmem:[%s0 + $0x394] sm:$0xf]
  %v245 = vld [vmem:[%s0 + $0x398] sm:$0xf]
  %v246 = vld [vmem:[%s0 + $0x39c] sm:$0xf]
  %v247 = vld [vmem:[%s0 + $0x3a0] sm:$0xf]
  %v248 = vld [vmem:[%s0 + $0x3a4] sm:$0xf]
  %v249 = vld [vmem:[%s0 + $0x3a8] sm:$0xf]
  %v250 = vld [vmem:[%s0 + $0x3ac] sm:$0xf]
  %v251 = vld [vmem:[%s0 + $0x3b0] sm:$0xf]
  %v252 = vld [vmem:[%s0 + $0x3b4] sm:$0xf]
  %v253 = vld [vmem:[%s0 + $0x3b8] sm:$0xf]
  %v254 = vld [vmem:[%s0 + $0x3bc] sm:$0xf]
  %v255 = vld [vmem:[%s0 + $0x3c0] sm:$0xf]
  %v256 = vld [vmem:[%s0 + $0x3c4] sm:$0xf]
  %v257 = vld [vmem:[%s0 + $0x3c8] sm:$0xf]
  %v258 = vld [vmem:[%s0 + $0x3cc] sm:$0xf]
  %v259 = vld [vmem:[%s0 + $0x3d0] sm:$0xf]
  %v260 = vld [vmem:[%s0 + $0x3d4] sm:$0xf]
  %v261 = vld [vmem:[%s0 + $0x3d8] sm:$0xf]
  %v262 = vld [vmem:[%s0 + $0x3dc] sm:$0xf]
  %v263 = vld [vmem:[%s0 + $0x3e0] sm:$0xf]
  %v264 = vld [vmem:[%s0 + $0x3e4] sm:$0xf]
  %v265 = vld [vmem:[%s0 + $0x3e8] sm:$0xf]
  %v266 = vld [vmem:[%s0 + $0x3ec] sm:$0xf]
  %v267 = vld [vmem:[%s0 + $0x3f0] sm:$0xf]
  %v268 = vld [vmem:[%s0 + $0x3f4] sm:$0xf]
  %v269 = vld [vmem:[%s0 + $0x3f8] sm:$0xf]
  %v270 = vld [vmem:[%s0 + $0x3fc] sm:$0xf]
  %v271 = vld [vmem:[%s1] sm:$0xff]
  %v272 = vld [vmem:[%s1 + $0x8] sm:$0xff]
  %v273 = vld [vmem:[%s1 + $0x10] sm:$0xff]
  %v274 = vld [vmem:[%s1 + $0x18] sm:$0xff]
  %v275 = vld [vmem:[%s1 + $0x20] sm:$0xff]
  %v276 = vld [vmem:[%s1 + $0x28] sm:$0xff]
  %v277 = vld [vmem:[%s1 + $0x30] sm:$0xff]
  %v278 = vld [vmem:[%s1 + $0x38] sm:$0xff]
  %v279 = vld [vmem:[%s1 + $0x40] sm:$0x33]
  %v280 = vld [vmem:[%s1 + $0x48] sm:$0x33]
  %v281 = vld [vmem:[%s2] sm:$0xf]
  %v283 = vperm.slane %v281, 0
  %v284 = vperm.slane %v281, 1
  %v285 = vperm.slane %v281, 2
  %v286 = vperm.slane %v281, 3
  %v547 = vunpack.c.l.b16 %v15
  %v548 = vunpack.c.l.b16 %v16
  %v549 = vunpack.c.l.b16 %v17
  %v550 = vunpack.c.l.b16 %v18
  %v551 = vunpack.c.l.b16 %v19
  %v552 = vunpack.c.l.b16 %v20
  %v553 = vunpack.c.l.b16 %v21
  %v554 = vunpack.c.l.b16 %v22
  %v555 = vunpack.c.l.b16 %v23
  %v556 = vunpack.c.l.b16 %v24
  %v557 = vunpack.c.l.b16 %v25
  %v558 = vunpack.c.l.b16 %v26
  %v559 = vunpack.c.l.b16 %v27
  %v560 = vunpack.c.l.b16 %v28
  %v561 = vunpack.c.l.b16 %v29
  %v562 = vunpack.c.l.b16 %v30
  %v563 = vunpack.c.l.b16 %v31
  %v564 = vunpack.c.l.b16 %v32
  %v565 = vunpack.c.l.b16 %v33
  %v566 = vunpack.c.l.b16 %v34
  %v567 = vunpack.c.l.b16 %v35
  %v568 = vunpack.c.l.b16 %v36
  %v569 = vunpack.c.l.b16 %v37
  %v570 = vunpack.c.l.b16 %v38
  %v571 = vunpack.c.l.b16 %v39
  %v572 = vunpack.c.l.b16 %v40
  %v573 = vunpack.c.l.b16 %v41
  %v574 = vunpack.c.l.b16 %v42
  %v575 = vunpack.c.l.b16 %v43
  %v576 = vunpack.c.l.b16 %v44
  %v577 = vunpack.c.l.b16 %v45
  %v578 = vunpack.c.l.b16 %v46
  %v579 = vunpack.c.l.b16 %v47
  %v580 = vunpack.c.l.b16 %v48
  %v581 = vunpack.c.l.b16 %v49
  %v582 = vunpack.c.l.b16 %v50
  %v583 = vunpack.c.l.b16 %v51
  %v584 = vunpack.c.l.b16 %v52
  %v585 = vunpack.c.l.b16 %v53
  %v586 = vunpack.c.l.b16 %v54
  %v587 = vunpack.c.l.b16 %v55
  %v588 = vunpack.c.l.b16 %v56
  %v589 = vunpack.c.l.b16 %v57
  %v590 = vunpack.c.l.b16 %v58
  %v591 = vunpack.c.l.b16 %v59
  %v592 = vunpack.c.l.b16 %v60
  %v593 = vunpack.c.l.b16 %v61
  %v594 = vunpack.c.l.b16 %v62
  %v595 = vunpack.c.l.b16 %v63
  %v596 = vunpack.c.l.b16 %v64
  %v597 = vunpack.c.l.b16 %v65
  %v598 = vunpack.c.l.b16 %v66
  %v599 = vunpack.c.l.b16 %v67
  %v600 = vunpack.c.l.b16 %v68
  %v601 = vunpack.c.l.b16 %v69
  %v602 = vunpack.c.l.b16 %v70
  %v603 = vunpack.c.l.b16 %v71
  %v604 = vunpack.c.l.b16 %v72
  %v605 = vunpack.c.l.b16 %v73
  %v606 = vunpack.c.l.b16 %v74
  %v607 = vunpack.c.l.b16 %v75
  %v608 = vunpack.c.l.b16 %v76
  %v609 = vunpack.c.l.b16 %v77
  %v610 = vunpack.c.l.b16 %v78
  %v611 = vunpack.c.l.b16 %v79
  %v612 = vunpack.c.l.b16 %v80
  %v613 = vunpack.c.l.b16 %v81
  %v614 = vunpack.c.l.b16 %v82
  %v615 = vunpack.c.l.b16 %v83
  %v616 = vunpack.c.l.b16 %v84
  %v617 = vunpack.c.l.b16 %v85
  %v618 = vunpack.c.l.b16 %v86
  %v619 = vunpack.c.l.b16 %v87
  %v620 = vunpack.c.l.b16 %v88
  %v621 = vunpack.c.l.b16 %v89
  %v622 = vunpack.c.l.b16 %v90
  %v623 = vunpack.c.l.b16 %v91
  %v624 = vunpack.c.l.b16 %v92
  %v625 = vunpack.c.l.b16 %v93
  %v626 = vunpack.c.l.b16 %v94
  %v627 = vunpack.c.l.b16 %v95
  %v628 = vunpack.c.l.b16 %v96
  %v629 = vunpack.c.l.b16 %v97
  %v630 = vunpack.c.l.b16 %v98
  %v631 = vunpack.c.l.b16 %v99
  %v632 = vunpack.c.l.b16 %v100
  %v633 = vunpack.c.l.b16 %v101
  %v634 = vunpack.c.l.b16 %v102
  %v635 = vunpack.c.l.b16 %v103
  %v636 = vunpack.c.l.b16 %v104
  %v637 = vunpack.c.l.b16 %v105
  %v638 = vunpack.c.l.b16 %v106
  %v639 = vunpack.c.l.b16 %v107
  %v640 = vunpack.c.l.b16 %v108
  %v641 = vunpack.c.l.b16 %v109
  %v642 = vunpack.c.l.b16 %v110
  %v643 = vunpack.c.l.b16 %v111
  %v644 = vunpack.c.l.b16 %v112
  %v645 = vunpack.c.l.b16 %v113
  %v646 = vunpack.c.l.b16 %v114
  %v647 = vunpack.c.l.b16 %v115
  %v648 = vunpack.c.l.b16 %v116
  %v649 = vunpack.c.l.b16 %v117
  %v650 = vunpack.c.l.b16 %v118
  %v651 = vunpack.c.l.b16 %v119
  %v652 = vunpack.c.l.b16 %v120
  %v653 = vunpack.c.l.b16 %v121
  %v654 = vunpack.c.l.b16 %v122
  %v655 = vunpack.c.l.b16 %v123
  %v656 = vunpack.c.l.b16 %v124
  %v657 = vunpack.c.l.b16 %v125
  %v658 = vunpack.c.l.b16 %v126
  %v659 = vunpack.c.l.b16 %v127
  %v660 = vunpack.c.l.b16 %v128
  %v661 = vunpack.c.l.b16 %v129
  %v662 = vunpack.c.l.b16 %v130
  %v663 = vunpack.c.l.b16 %v131
  %v664 = vunpack.c.l.b16 %v132
  %v665 = vunpack.c.l.b16 %v133
  %v666 = vunpack.c.l.b16 %v134
  %v667 = vunpack.c.l.b16 %v135
  %v668 = vunpack.c.l.b16 %v136
  %v669 = vunpack.c.l.b16 %v137
  %v670 = vunpack.c.l.b16 %v138
  %v671 = vunpack.c.l.b16 %v139
  %v672 = vunpack.c.l.b16 %v140
  %v673 = vunpack.c.l.b16 %v141
  %v674 = vunpack.c.l.b16 %v142
  %v675 = vunpack.c.l.b16 %v143
  %v676 = vunpack.c.l.b16 %v144
  %v677 = vunpack.c.l.b16 %v145
  %v678 = vunpack.c.l.b16 %v146
  %v679 = vunpack.c.l.b16 %v147
  %v680 = vunpack.c.l.b16 %v148
  %v681 = vunpack.c.l.b16 %v149
  %v682 = vunpack.c.l.b16 %v150
  %v683 = vunpack.c.l.b16 %v151
  %v684 = vunpack.c.l.b16 %v152
  %v685 = vunpack.c.l.b16 %v153
  %v686 = vunpack.c.l.b16 %v154
  %v687 = vunpack.c.l.b16 %v155
  %v688 = vunpack.c.l.b16 %v156
  %v689 = vunpack.c.l.b16 %v157
  %v690 = vunpack.c.l.b16 %v158
  %v691 = vunpack.c.l.b16 %v159
  %v692 = vunpack.c.l.b16 %v160
  %v693 = vunpack.c.l.b16 %v161
  %v694 = vunpack.c.l.b16 %v162
  %v695 = vunpack.c.l.b16 %v163
  %v696 = vunpack.c.l.b16 %v164
  %v697 = vunpack.c.l.b16 %v165
  %v698 = vunpack.c.l.b16 %v166
  %v699 = vunpack.c.l.b16 %v167
  %v700 = vunpack.c.l.b16 %v168
  %v701 = vunpack.c.l.b16 %v169
  %v702 = vunpack.c.l.b16 %v170
  %v703 = vunpack.c.l.b16 %v171
  %v704 = vunpack.c.l.b16 %v172
  %v705 = vunpack.c.l.b16 %v173
  %v706 = vunpack.c.l.b16 %v174
  %v707 = vunpack.c.l.b16 %v175
  %v708 = vunpack.c.l.b16 %v176
  %v709 = vunpack.c.l.b16 %v177
  %v710 = vunpack.c.l.b16 %v178
  %v711 = vunpack.c.l.b16 %v179
  %v712 = vunpack.c.l.b16 %v180
  %v713 = vunpack.c.l.b16 %v181
  %v714 = vunpack.c.l.b16 %v182
  %v715 = vunpack.c.l.b16 %v183
  %v716 = vunpack.c.l.b16 %v184
  %v717 = vunpack.c.l.b16 %v185
  %v718 = vunpack.c.l.b16 %v186
  %v719 = vunpack.c.l.b16 %v187
  %v720 = vunpack.c.l.b16 %v188
  %v721 = vunpack.c.l.b16 %v189
  %v722 = vunpack.c.l.b16 %v190
  %v723 = vunpack.c.l.b16 %v191
  %v724 = vunpack.c.l.b16 %v192
  %v725 = vunpack.c.l.b16 %v193
  %v726 = vunpack.c.l.b16 %v194
  %v727 = vunpack.c.l.b16 %v195
  %v728 = vunpack.c.l.b16 %v196
  %v729 = vunpack.c.l.b16 %v197
  %v730 = vunpack.c.l.b16 %v198
  %v731 = vunpack.c.l.b16 %v199
  %v732 = vunpack.c.l.b16 %v200
  %v733 = vunpack.c.l.b16 %v201
  %v734 = vunpack.c.l.b16 %v202
  %v735 = vunpack.c.l.b16 %v203
  %v736 = vunpack.c.l.b16 %v204
  %v737 = vunpack.c.l.b16 %v205
  %v738 = vunpack.c.l.b16 %v206
  %v739 = vunpack.c.l.b16 %v207
  %v740 = vunpack.c.l.b16 %v208
  %v741 = vunpack.c.l.b16 %v209
  %v742 = vunpack.c.l.b16 %v210
  %v743 = vunpack.c.l.b16 %v211
  %v744 = vunpack.c.l.b16 %v212
  %v745 = vunpack.c.l.b16 %v213
  %v746 = vunpack.c.l.b16 %v214
  %v747 = vunpack.c.l.b16 %v215
  %v748 = vunpack.c.l.b16 %v216
  %v749 = vunpack.c.l.b16 %v217
  %v750 = vunpack.c.l.b16 %v218
  %v751 = vunpack.c.l.b16 %v219
  %v752 = vunpack.c.l.b16 %v220
  %v753 = vunpack.c.l.b16 %v221
  %v754 = vunpack.c.l.b16 %v222
  %v755 = vunpack.c.l.b16 %v223
  %v756 = vunpack.c.l.b16 %v224
  %v757 = vunpack.c.l.b16 %v225
  %v758 = vunpack.c.l.b16 %v226
  %v759 = vunpack.c.l.b16 %v227
  %v760 = vunpack.c.l.b16 %v228
  %v761 = vunpack.c.l.b16 %v229
  %v762 = vunpack.c.l.b16 %v230
  %v763 = vunpack.c.l.b16 %v231
  %v764 = vunpack.c.l.b16 %v232
  %v765 = vunpack.c.l.b16 %v233
  %v766 = vunpack.c.l.b16 %v234
  %v767 = vunpack.c.l.b16 %v235
  %v768 = vunpack.c.l.b16 %v236
  %v769 = vunpack.c.l.b16 %v237
  %v770 = vunpack.c.l.b16 %v238
  %v771 = vunpack.c.l.b16 %v239
  %v772 = vunpack.c.l.b16 %v240
  %v773 = vunpack.c.l.b16 %v241
  %v774 = vunpack.c.l.b16 %v242
  %v775 = vunpack.c.l.b16 %v243
  %v776 = vunpack.c.l.b16 %v244
  %v777 = vunpack.c.l.b16 %v245
  %v778 = vunpack.c.l.b16 %v246
  %v779 = vunpack.c.l.b16 %v247
  %v780 = vunpack.c.l.b16 %v248
  %v781 = vunpack.c.l.b16 %v249
  %v782 = vunpack.c.l.b16 %v250
  %v783 = vunpack.c.l.b16 %v251
  %v784 = vunpack.c.l.b16 %v252
  %v785 = vunpack.c.l.b16 %v253
  %v786 = vunpack.c.l.b16 %v254
  %v787 = vunpack.c.l.b16 %v255
  %v788 = vunpack.c.l.b16 %v256
  %v789 = vunpack.c.l.b16 %v257
  %v790 = vunpack.c.l.b16 %v258
  %v791 = vunpack.c.l.b16 %v259
  %v792 = vunpack.c.l.b16 %v260
  %v793 = vunpack.c.l.b16 %v261
  %v794 = vunpack.c.l.b16 %v262
  %v795 = vunpack.c.l.b16 %v263
  %v796 = vunpack.c.l.b16 %v264
  %v797 = vunpack.c.l.b16 %v265
  %v798 = vunpack.c.l.b16 %v266
  %v799 = vunpack.c.l.b16 %v267
  %v800 = vunpack.c.l.b16 %v268
  %v801 = vunpack.c.l.b16 %v269
  %v802 = vunpack.c.l.b16 %v270
  %v803 = vpack.c.b16 %v548, %v547
  %v804 = vpack.c.b16 %v550, %v549
  %v805 = vpack.c.b16 %v552, %v551
  %v806 = vpack.c.b16 %v554, %v553
  %v807 = vpack.c.b16 %v556, %v555
  %v808 = vpack.c.b16 %v558, %v557
  %v809 = vpack.c.b16 %v560, %v559
  %v810 = vpack.c.b16 %v562, %v561
  %v811 = vpack.c.b16 %v564, %v563
  %v812 = vpack.c.b16 %v566, %v565
  %v813 = vpack.c.b16 %v568, %v567
  %v814 = vpack.c.b16 %v570, %v569
  %v815 = vpack.c.b16 %v572, %v571
  %v816 = vpack.c.b16 %v574, %v573
  %v817 = vpack.c.b16 %v576, %v575
  %v818 = vpack.c.b16 %v578, %v577
  %v819 = vpack.c.b16 %v580, %v579
  %v820 = vpack.c.b16 %v582, %v581
  %v821 = vpack.c.b16 %v584, %v583
  %v822 = vpack.c.b16 %v586, %v585
  %v823 = vpack.c.b16 %v588, %v587
  %v824 = vpack.c.b16 %v590, %v589
  %v825 = vpack.c.b16 %v592, %v591
  %v826 = vpack.c.b16 %v594, %v593
  %v827 = vpack.c.b16 %v596, %v595
  %v828 = vpack.c.b16 %v598, %v597
  %v829 = vpack.c.b16 %v600, %v599
  %v830 = vpack.c.b16 %v602, %v601
  %v831 = vpack.c.b16 %v604, %v603
  %v832 = vpack.c.b16 %v606, %v605
  %v833 = vpack.c.b16 %v608, %v607
  %v834 = vpack.c.b16 %v610, %v609
  %v835 = vpack.c.b16 %v612, %v611
  %v836 = vpack.c.b16 %v614, %v613
  %v837 = vpack.c.b16 %v616, %v615
  %v838 = vpack.c.b16 %v618, %v617
  %v839 = vpack.c.b16 %v620, %v619
  %v840 = vpack.c.b16 %v622, %v621
  %v841 = vpack.c.b16 %v624, %v623
  %v842 = vpack.c.b16 %v626, %v625
  %v843 = vpack.c.b16 %v628, %v627
  %v844 = vpack.c.b16 %v630, %v629
  %v845 = vpack.c.b16 %v632, %v631
  %v846 = vpack.c.b16 %v634, %v633
  %v847 = vpack.c.b16 %v636, %v635
  %v848 = vpack.c.b16 %v638, %v637
  %v849 = vpack.c.b16 %v640, %v639
  %v850 = vpack.c.b16 %v642, %v641
  %v851 = vpack.c.b16 %v644, %v643
  %v852 = vpack.c.b16 %v646, %v645
  %v853 = vpack.c.b16 %v648, %v647
  %v854 = vpack.c.b16 %v650, %v649
  %v855 = vpack.c.b16 %v652, %v651
  %v856 = vpack.c.b16 %v654, %v653
  %v857 = vpack.c.b16 %v656, %v655
  %v858 = vpack.c.b16 %v658, %v657
  %v859 = vpack.c.b16 %v660, %v659
  %v860 = vpack.c.b16 %v662, %v661
  %v861 = vpack.c.b16 %v664, %v663
  %v862 = vpack.c.b16 %v666, %v665
  %v863 = vpack.c.b16 %v668, %v667
  %v864 = vpack.c.b16 %v670, %v669
  %v865 = vpack.c.b16 %v672, %v671
  %v866 = vpack.c.b16 %v674, %v673
  %v867 = vpack.c.b16 %v676, %v675
  %v868 = vpack.c.b16 %v678, %v677
  %v869 = vpack.c.b16 %v680, %v679
  %v870 = vpack.c.b16 %v682, %v681
  %v871 = vpack.c.b16 %v684, %v683
  %v872 = vpack.c.b16 %v686, %v685
  %v873 = vpack.c.b16 %v688, %v687
  %v874 = vpack.c.b16 %v690, %v689
  %v875 = vpack.c.b16 %v692, %v691
  %v876 = vpack.c.b16 %v694, %v693
  %v877 = vpack.c.b16 %v696, %v695
  %v878 = vpack.c.b16 %v698, %v697
  %v879 = vpack.c.b16 %v700, %v699
  %v880 = vpack.c.b16 %v702, %v701
  %v881 = vpack.c.b16 %v704, %v703
  %v882 = vpack.c.b16 %v706, %v705
  %v883 = vpack.c.b16 %v708, %v707
  %v884 = vpack.c.b16 %v710, %v709
  %v885 = vpack.c.b16 %v712, %v711
  %v886 = vpack.c.b16 %v714, %v713
  %v887 = vpack.c.b16 %v716, %v715
  %v888 = vpack.c.b16 %v718, %v717
  %v889 = vpack.c.b16 %v720, %v719
  %v890 = vpack.c.b16 %v722, %v721
  %v891 = vpack.c.b16 %v724, %v723
  %v892 = vpack.c.b16 %v726, %v725
  %v893 = vpack.c.b16 %v728, %v727
  %v894 = vpack.c.b16 %v730, %v729
  %v895 = vpack.c.b16 %v732, %v731
  %v896 = vpack.c.b16 %v734, %v733
  %v897 = vpack.c.b16 %v736, %v735
  %v898 = vpack.c.b16 %v738, %v737
  %v899 = vpack.c.b16 %v740, %v739
  %v900 = vpack.c.b16 %v742, %v741
  %v901 = vpack.c.b16 %v744, %v743
  %v902 = vpack.c.b16 %v746, %v745
  %v903 = vpack.c.b16 %v748, %v747
  %v904 = vpack.c.b16 %v750, %v749
  %v905 = vpack.c.b16 %v752, %v751
  %v906 = vpack.c.b16 %v754, %v753
  %v907 = vpack.c.b16 %v756, %v755
  %v908 = vpack.c.b16 %v758, %v757
  %v909 = vpack.c.b16 %v760, %v759
  %v910 = vpack.c.b16 %v762, %v761
  %v911 = vpack.c.b16 %v764, %v763
  %v912 = vpack.c.b16 %v766, %v765
  %v913 = vpack.c.b16 %v768, %v767
  %v914 = vpack.c.b16 %v770, %v769
  %v915 = vpack.c.b16 %v772, %v771
  %v916 = vpack.c.b16 %v774, %v773
  %v917 = vpack.c.b16 %v776, %v775
  %v918 = vpack.c.b16 %v778, %v777
  %v919 = vpack.c.b16 %v780, %v779
  %v920 = vpack.c.b16 %v782, %v781
  %v921 = vpack.c.b16 %v784, %v783
  %v922 = vpack.c.b16 %v786, %v785
  %v923 = vpack.c.b16 %v788, %v787
  %v924 = vpack.c.b16 %v790, %v789
  %v925 = vpack.c.b16 %v792, %v791
  %v926 = vpack.c.b16 %v794, %v793
  %v927 = vpack.c.b16 %v796, %v795
  %v928 = vpack.c.b16 %v798, %v797
  %v929 = vpack.c.b16 %v800, %v799
  %v930 = vpack.c.b16 %v802, %v801
  %v941 = vunpack.c.l.b16 %v271
  %v942 = vunpack.c.h.b16 %v271
  %v943 = vunpack.c.l.b16 %v272
  %v944 = vunpack.c.h.b16 %v272
  %v945 = vunpack.c.l.b16 %v273
  %v946 = vunpack.c.h.b16 %v273
  %v947 = vunpack.c.l.b16 %v274
  %v948 = vunpack.c.h.b16 %v274
  %v949 = vunpack.c.l.b16 %v275
  %v950 = vunpack.c.h.b16 %v275
  %v951 = vunpack.c.l.b16 %v276
  %v952 = vunpack.c.h.b16 %v276
  %v953 = vunpack.c.l.b16 %v277
  %v954 = vunpack.c.h.b16 %v277
  %v955 = vunpack.c.l.b16 %v278
  %v956 = vunpack.c.h.b16 %v278
  %v957 = vunpack.c.l.b16 %v279
  %v958 = vunpack.c.h.b16 %v279
  %v959 = vunpack.c.l.b16 %v280
  %v960 = vunpack.c.h.b16 %v280
  %v961 = vpack.c.b16 %v945, %v941
  %v962 = vpack.c.b16 %v946, %v942
  %v963 = vpack.c.b16 %v947, %v943
  %v964 = vpack.c.b16 %v948, %v944
  %v965 = vpack.c.b16 %v953, %v949
  %v966 = vpack.c.b16 %v954, %v950
  %v967 = vpack.c.b16 %v955, %v951
  %v968 = vpack.c.b16 %v956, %v952
  %v969 = vpack.c.b16 %v957, %v957
  %v970 = vpack.c.b16 %v958, %v958
  %v971 = vpack.c.b16 %v959, %v959
  %v972 = vpack.c.b16 %v960, %v960
  %vm981 = vcmask 293888
  %v983 = vsel %vm981, %v803, 0
  %v986 = vsel %vm981, %v804, 0
  %v989 = vsel %vm981, %v805, 0
  %v992 = vsel %vm981, %v806, 0
  %v995 = vsel %vm981, %v807, 0
  %v998 = vsel %vm981, %v808, 0
  %v1001 = vsel %vm981, %v809, 0
  %v1004 = vsel %vm981, %v810, 0
  %v1007 = vsel %vm981, %v811, 0
  %v1010 = vsel %vm981, %v812, 0
  %v1013 = vsel %vm981, %v813, 0
  %v1016 = vsel %vm981, %v814, 0
  %v1019 = vsel %vm981, %v815, 0
  %v1022 = vsel %vm981, %v816, 0
  %v1025 = vsel %vm981, %v817, 0
  %v1028 = vsel %vm981, %v818, 0
  %v1031 = vsel %vm981, %v819, 0
  %v1034 = vsel %vm981, %v820, 0
  %v1037 = vsel %vm981, %v821, 0
  %v1040 = vsel %vm981, %v822, 0
  %v1043 = vsel %vm981, %v823, 0
  %v1046 = vsel %vm981, %v824, 0
  %v1049 = vsel %vm981, %v825, 0
  %v1052 = vsel %vm981, %v826, 0
  %v1055 = vsel %vm981, %v827, 0
  %v1058 = vsel %vm981, %v828, 0
  %v1061 = vsel %vm981, %v829, 0
  %v1064 = vsel %vm981, %v830, 0
  %v1067 = vsel %vm981, %v831, 0
  %v1070 = vsel %vm981, %v832, 0
  %v1073 = vsel %vm981, %v833, 0
  %v1076 = vsel %vm981, %v834, 0
  %v1079 = vsel %vm981, %v835, 0
  %v1082 = vsel %vm981, %v836, 0
  %v1085 = vsel %vm981, %v837, 0
  %v1088 = vsel %vm981, %v838, 0
  %v1091 = vsel %vm981, %v839, 0
  %v1094 = vsel %vm981, %v840, 0
  %v1097 = vsel %vm981, %v841, 0
  %v1100 = vsel %vm981, %v842, 0
  %v1103 = vsel %vm981, %v843, 0
  %v1106 = vsel %vm981, %v844, 0
  %v1109 = vsel %vm981, %v845, 0
  %v1112 = vsel %vm981, %v846, 0
  %v1115 = vsel %vm981, %v847, 0
  %v1118 = vsel %vm981, %v848, 0
  %v1121 = vsel %vm981, %v849, 0
  %v1124 = vsel %vm981, %v850, 0
  %v1127 = vsel %vm981, %v851, 0
  %v1130 = vsel %vm981, %v852, 0
  %v1133 = vsel %vm981, %v853, 0
  %v1136 = vsel %vm981, %v854, 0
  %v1139 = vsel %vm981, %v855, 0
  %v1142 = vsel %vm981, %v856, 0
  %v1145 = vsel %vm981, %v857, 0
  %v1148 = vsel %vm981, %v858, 0
  %v1151 = vsel %vm981, %v859, 0
  %v1154 = vsel %vm981, %v860, 0
  %v1157 = vsel %vm981, %v861, 0
  %v1160 = vsel %vm981, %v862, 0
  %v1163 = vsel %vm981, %v863, 0
  %v1166 = vsel %vm981, %v864, 0
  %v1169 = vsel %vm981, %v865, 0
  %v1172 = vsel %vm981, %v866, 0
  %v1175 = vsel %vm981, %v867, 0
  %v1178 = vsel %vm981, %v868, 0
  %v1181 = vsel %vm981, %v869, 0
  %v1184 = vsel %vm981, %v870, 0
  %v1187 = vsel %vm981, %v871, 0
  %v1190 = vsel %vm981, %v872, 0
  %v1193 = vsel %vm981, %v873, 0
  %v1196 = vsel %vm981, %v874, 0
  %v1199 = vsel %vm981, %v875, 0
  %v1202 = vsel %vm981, %v876, 0
  %v1205 = vsel %vm981, %v877, 0
  %v1208 = vsel %vm981, %v878, 0
  %v1211 = vsel %vm981, %v879, 0
  %v1214 = vsel %vm981, %v880, 0
  %v1217 = vsel %vm981, %v881, 0
  %v1220 = vsel %vm981, %v882, 0
  %v1223 = vsel %vm981, %v883, 0
  %v1226 = vsel %vm981, %v884, 0
  %v1229 = vsel %vm981, %v885, 0
  %v1232 = vsel %vm981, %v886, 0
  %v1235 = vsel %vm981, %v887, 0
  %v1238 = vsel %vm981, %v888, 0
  %v1241 = vsel %vm981, %v889, 0
  %v1244 = vsel %vm981, %v890, 0
  %v1247 = vsel %vm981, %v891, 0
  %v1250 = vsel %vm981, %v892, 0
  %v1253 = vsel %vm981, %v893, 0
  %v1256 = vsel %vm981, %v894, 0
  %v1259 = vsel %vm981, %v895, 0
  %v1262 = vsel %vm981, %v896, 0
  %v1265 = vsel %vm981, %v897, 0
  %v1268 = vsel %vm981, %v898, 0
  %v1271 = vsel %vm981, %v899, 0
  %v1274 = vsel %vm981, %v900, 0
  %v1277 = vsel %vm981, %v901, 0
  %v1280 = vsel %vm981, %v902, 0
  %v1283 = vsel %vm981, %v903, 0
  %v1286 = vsel %vm981, %v904, 0
  %v1289 = vsel %vm981, %v905, 0
  %v1292 = vsel %vm981, %v906, 0
  %v1295 = vsel %vm981, %v907, 0
  %v1298 = vsel %vm981, %v908, 0
  %v1301 = vsel %vm981, %v909, 0
  %v1304 = vsel %vm981, %v910, 0
  %v1307 = vsel %vm981, %v911, 0
  %v1310 = vsel %vm981, %v912, 0
  %v1313 = vsel %vm981, %v913, 0
  %v1316 = vsel %vm981, %v914, 0
  %v1319 = vsel %vm981, %v915, 0
  %v1322 = vsel %vm981, %v916, 0
  %v1325 = vsel %vm981, %v917, 0
  %v1328 = vsel %vm981, %v918, 0
  %v1331 = vsel %vm981, %v919, 0
  %v1334 = vsel %vm981, %v920, 0
  %v1337 = vsel %vm981, %v921, 0
  %v1340 = vsel %vm981, %v922, 0
  %v1343 = vsel %vm981, %v923, 0
  %v1346 = vsel %vm981, %v924, 0
  %v1349 = vsel %vm981, %v925, 0
  %v1352 = vsel %vm981, %v926, 0
  %v1355 = vsel %vm981, %v927, 0
  %v1358 = vsel %vm981, %v928, 0
  %v1361 = vsel %vm981, %v929, 0
  %v1364 = vsel %vm981, %v930, 0
  %vm1366 = vcmask 1041408
  %v1368 = vsel %vm1366, %v969, 0
  %v1371 = vsel %vm1366, %v970, 0
  %v1374 = vsel %vm1366, %v971, 0
  %v1377 = vsel %vm1366, %v972, 0
  %1379 = vmatpush.bf16.msra.mxu0 0
  %1380 = vmatpush.bf16.msra.mxu0 0
  %1381 = vmatpush.bf16.msra.mxu0 0
  %1382 = vmatpush.bf16.msra.mxu0 0
  %1383 = vmatpush.bf16.msra.mxu0 0
  %1384 = vmatpush.bf16.msra.mxu0 %v1368
  %1385 = vmatpush.bf16.msra.mxu0 %v965
  %1386 = vmatpush.bf16.msra.mxu0 %v961
  %1387 = vmatmul.bf16.gmra.mxu0 %v983
  %v1388 = vpop.f32.mrf.mxu0
  %v1389 = vadd.f32 %v283, %v1388
  %v1390 = vpop.f32.mrf.mxu0
  %v1391 = vadd.f32 %v283, %v1390
  %1392 = vmatmul.bf16.gmra.mxu0 %v986
  %v1393 = vpop.f32.mrf.mxu0
  %v1394 = vadd.f32 %v283, %v1393
  %v1395 = vpop.f32.mrf.mxu0
  %v1396 = vadd.f32 %v283, %v1395
  %1397 = vmatmul.bf16.gmra.mxu0 %v989
  %v1398 = vpop.f32.mrf.mxu0
  %v1399 = vadd.f32 %v283, %v1398
  %v1400 = vpop.f32.mrf.mxu0
  %v1401 = vadd.f32 %v283, %v1400
  %1402 = vmatmul.bf16.gmra.mxu0 %v992
  %v1403 = vpop.f32.mrf.mxu0
  %v1404 = vadd.f32 %v283, %v1403
  %v1405 = vpop.f32.mrf.mxu0
  %v1406 = vadd.f32 %v283, %v1405
  %1407 = vmatmul.bf16.gmra.mxu0 %v995
  %v1408 = vpop.f32.mrf.mxu0
  %v1409 = vadd.f32 %v283, %v1408
  %v1410 = vpop.f32.mrf.mxu0
  %v1411 = vadd.f32 %v283, %v1410
  %1412 = vmatmul.bf16.gmra.mxu0 %v998
  %v1413 = vpop.f32.mrf.mxu0
  %v1414 = vadd.f32 %v283, %v1413
  %v1415 = vpop.f32.mrf.mxu0
  %v1416 = vadd.f32 %v283, %v1415
  %1417 = vmatmul.bf16.gmra.mxu0 %v1001
  %v1418 = vpop.f32.mrf.mxu0
  %v1419 = vadd.f32 %v283, %v1418
  %v1420 = vpop.f32.mrf.mxu0
  %v1421 = vadd.f32 %v283, %v1420
  %1422 = vmatmul.bf16.gmra.mxu0 %v1004
  %v1423 = vpop.f32.mrf.mxu0
  %v1424 = vadd.f32 %v283, %v1423
  %v1425 = vpop.f32.mrf.mxu0
  %v1426 = vadd.f32 %v283, %v1425
  %1427 = vmatmul.bf16.gmra.mxu0 %v1007
  %v1428 = vpop.f32.mrf.mxu0
  %v1429 = vadd.f32 %v283, %v1428
  %v1430 = vpop.f32.mrf.mxu0
  %v1431 = vadd.f32 %v283, %v1430
  %1432 = vmatmul.bf16.gmra.mxu0 %v1010
  %v1433 = vpop.f32.mrf.mxu0
  %v1434 = vadd.f32 %v283, %v1433
  %v1435 = vpop.f32.mrf.mxu0
  %v1436 = vadd.f32 %v283, %v1435
  %1437 = vmatmul.bf16.gmra.mxu0 %v1013
  %v1438 = vpop.f32.mrf.mxu0
  %v1439 = vadd.f32 %v283, %v1438
  %v1440 = vpop.f32.mrf.mxu0
  %v1441 = vadd.f32 %v283, %v1440
  %1442 = vmatmul.bf16.gmra.mxu0 %v1016
  %v1443 = vpop.f32.mrf.mxu0
  %v1444 = vadd.f32 %v283, %v1443
  %v1445 = vpop.f32.mrf.mxu0
  %v1446 = vadd.f32 %v283, %v1445
  %1447 = vmatmul.bf16.gmra.mxu0 %v1019
  %v1448 = vpop.f32.mrf.mxu0
  %v1449 = vadd.f32 %v283, %v1448
  %v1450 = vpop.f32.mrf.mxu0
  %v1451 = vadd.f32 %v283, %v1450
  %1452 = vmatmul.bf16.gmra.mxu0 %v1022
  %v1453 = vpop.f32.mrf.mxu0
  %v1454 = vadd.f32 %v283, %v1453
  %v1455 = vpop.f32.mrf.mxu0
  %v1456 = vadd.f32 %v283, %v1455
  %1457 = vmatmul.bf16.gmra.mxu0 %v1025
  %v1458 = vpop.f32.mrf.mxu0
  %v1459 = vadd.f32 %v283, %v1458
  %v1460 = vpop.f32.mrf.mxu0
  %v1461 = vadd.f32 %v283, %v1460
  %1462 = vmatmul.bf16.gmra.mxu0 %v1028
  %v1463 = vpop.f32.mrf.mxu0
  %v1464 = vadd.f32 %v283, %v1463
  %v1465 = vpop.f32.mrf.mxu0
  %v1466 = vadd.f32 %v283, %v1465
  %1467 = vmatmul.bf16.gmra.mxu0 %v1031
  %v1468 = vpop.f32.mrf.mxu0
  %v1469 = vadd.f32 %v283, %v1468
  %v1470 = vpop.f32.mrf.mxu0
  %v1471 = vadd.f32 %v283, %v1470
  %1472 = vmatmul.bf16.gmra.mxu0 %v1034
  %v1473 = vpop.f32.mrf.mxu0
  %v1474 = vadd.f32 %v283, %v1473
  %v1475 = vpop.f32.mrf.mxu0
  %v1476 = vadd.f32 %v283, %v1475
  %1477 = vmatmul.bf16.gmra.mxu0 %v1037
  %v1478 = vpop.f32.mrf.mxu0
  %v1479 = vadd.f32 %v283, %v1478
  %v1480 = vpop.f32.mrf.mxu0
  %v1481 = vadd.f32 %v283, %v1480
  %1482 = vmatmul.bf16.gmra.mxu0 %v1040
  %v1483 = vpop.f32.mrf.mxu0
  %v1484 = vadd.f32 %v283, %v1483
  %v1485 = vpop.f32.mrf.mxu0
  %v1486 = vadd.f32 %v283, %v1485
  %1487 = vmatmul.bf16.gmra.mxu0 %v1043
  %v1488 = vpop.f32.mrf.mxu0
  %v1489 = vadd.f32 %v283, %v1488
  %v1490 = vpop.f32.mrf.mxu0
  %v1491 = vadd.f32 %v283, %v1490
  %1492 = vmatmul.bf16.gmra.mxu0 %v1046
  %v1493 = vpop.f32.mrf.mxu0
  %v1494 = vadd.f32 %v283, %v1493
  %v1495 = vpop.f32.mrf.mxu0
  %v1496 = vadd.f32 %v283, %v1495
  %1497 = vmatmul.bf16.gmra.mxu0 %v1049
  %v1498 = vpop.f32.mrf.mxu0
  %v1499 = vadd.f32 %v283, %v1498
  %v1500 = vpop.f32.mrf.mxu0
  %v1501 = vadd.f32 %v283, %v1500
  %1502 = vmatmul.bf16.gmra.mxu0 %v1052
  %v1503 = vpop.f32.mrf.mxu0
  %v1504 = vadd.f32 %v283, %v1503
  %v1505 = vpop.f32.mrf.mxu0
  %v1506 = vadd.f32 %v283, %v1505
  %1507 = vmatmul.bf16.gmra.mxu0 %v1055
  %v1508 = vpop.f32.mrf.mxu0
  %v1509 = vadd.f32 %v283, %v1508
  %v1510 = vpop.f32.mrf.mxu0
  %v1511 = vadd.f32 %v283, %v1510
  %1512 = vmatmul.bf16.gmra.mxu0 %v1058
  %v1513 = vpop.f32.mrf.mxu0
  %v1514 = vadd.f32 %v283, %v1513
  %v1515 = vpop.f32.mrf.mxu0
  %v1516 = vadd.f32 %v283, %v1515
  %1517 = vmatmul.bf16.gmra.mxu0 %v1061
  %v1518 = vpop.f32.mrf.mxu0
  %v1519 = vadd.f32 %v283, %v1518
  %v1520 = vpop.f32.mrf.mxu0
  %v1521 = vadd.f32 %v283, %v1520
  %1522 = vmatmul.bf16.gmra.mxu0 %v1064
  %v1523 = vpop.f32.mrf.mxu0
  %v1524 = vadd.f32 %v283, %v1523
  %v1525 = vpop.f32.mrf.mxu0
  %v1526 = vadd.f32 %v283, %v1525
  %1527 = vmatmul.bf16.gmra.mxu0 %v1067
  %v1528 = vpop.f32.mrf.mxu0
  %v1529 = vadd.f32 %v283, %v1528
  %v1530 = vpop.f32.mrf.mxu0
  %v1531 = vadd.f32 %v283, %v1530
  %1532 = vmatmul.bf16.gmra.mxu0 %v1070
  %v1533 = vpop.f32.mrf.mxu0
  %v1534 = vadd.f32 %v283, %v1533
  %v1535 = vpop.f32.mrf.mxu0
  %v1536 = vadd.f32 %v283, %v1535
  %1537 = vmatmul.bf16.gmra.mxu0 %v1073
  %v1538 = vpop.f32.mrf.mxu0
  %v1539 = vadd.f32 %v283, %v1538
  %v1540 = vpop.f32.mrf.mxu0
  %v1541 = vadd.f32 %v283, %v1540
  %1542 = vmatmul.bf16.gmra.mxu0 %v1076
  %v1543 = vpop.f32.mrf.mxu0
  %v1544 = vadd.f32 %v283, %v1543
  %v1545 = vpop.f32.mrf.mxu0
  %v1546 = vadd.f32 %v283, %v1545
  %1547 = vmatmul.bf16.gmra.mxu0 %v1079
  %v1548 = vpop.f32.mrf.mxu0
  %v1549 = vadd.f32 %v283, %v1548
  %v1550 = vpop.f32.mrf.mxu0
  %v1551 = vadd.f32 %v283, %v1550
  %1552 = vmatmul.bf16.gmra.mxu0 %v1082
  %v1553 = vpop.f32.mrf.mxu0
  %v1554 = vadd.f32 %v283, %v1553
  %v1555 = vpop.f32.mrf.mxu0
  %v1556 = vadd.f32 %v283, %v1555
  %1557 = vmatmul.bf16.gmra.mxu0 %v1085
  %v1558 = vpop.f32.mrf.mxu0
  %v1559 = vadd.f32 %v283, %v1558
  %v1560 = vpop.f32.mrf.mxu0
  %v1561 = vadd.f32 %v283, %v1560
  %1562 = vmatmul.bf16.gmra.mxu0 %v1088
  %v1563 = vpop.f32.mrf.mxu0
  %v1564 = vadd.f32 %v283, %v1563
  %v1565 = vpop.f32.mrf.mxu0
  %v1566 = vadd.f32 %v283, %v1565
  %1567 = vmatmul.bf16.gmra.mxu0 %v1091
  %v1568 = vpop.f32.mrf.mxu0
  %v1569 = vadd.f32 %v283, %v1568
  %v1570 = vpop.f32.mrf.mxu0
  %v1571 = vadd.f32 %v283, %v1570
  %1572 = vmatmul.bf16.gmra.mxu0 %v1094
  %v1573 = vpop.f32.mrf.mxu0
  %v1574 = vadd.f32 %v283, %v1573
  %v1575 = vpop.f32.mrf.mxu0
  %v1576 = vadd.f32 %v283, %v1575
  %1577 = vmatmul.bf16.gmra.mxu0 %v1097
  %v1578 = vpop.f32.mrf.mxu0
  %v1579 = vadd.f32 %v283, %v1578
  %v1580 = vpop.f32.mrf.mxu0
  %v1581 = vadd.f32 %v283, %v1580
  %1582 = vmatmul.bf16.gmra.mxu0 %v1100
  %v1583 = vpop.f32.mrf.mxu0
  %v1584 = vadd.f32 %v283, %v1583
  %v1585 = vpop.f32.mrf.mxu0
  %v1586 = vadd.f32 %v283, %v1585
  %1587 = vmatmul.bf16.gmra.mxu0 %v1103
  %v1588 = vpop.f32.mrf.mxu0
  %v1589 = vadd.f32 %v283, %v1588
  %v1590 = vpop.f32.mrf.mxu0
  %v1591 = vadd.f32 %v283, %v1590
  %1592 = vmatmul.bf16.gmra.mxu0 %v1106
  %v1593 = vpop.f32.mrf.mxu0
  %v1594 = vadd.f32 %v283, %v1593
  %v1595 = vpop.f32.mrf.mxu0
  %v1596 = vadd.f32 %v283, %v1595
  %1597 = vmatmul.bf16.gmra.mxu0 %v1109
  %v1598 = vpop.f32.mrf.mxu0
  %v1599 = vadd.f32 %v283, %v1598
  %v1600 = vpop.f32.mrf.mxu0
  %v1601 = vadd.f32 %v283, %v1600
  %1602 = vmatmul.bf16.gmra.mxu0 %v1112
  %v1603 = vpop.f32.mrf.mxu0
  %v1604 = vadd.f32 %v283, %v1603
  %v1605 = vpop.f32.mrf.mxu0
  %v1606 = vadd.f32 %v283, %v1605
  %1607 = vmatmul.bf16.gmra.mxu0 %v1115
  %v1608 = vpop.f32.mrf.mxu0
  %v1609 = vadd.f32 %v283, %v1608
  %v1610 = vpop.f32.mrf.mxu0
  %v1611 = vadd.f32 %v283, %v1610
  %1612 = vmatmul.bf16.gmra.mxu0 %v1118
  %v1613 = vpop.f32.mrf.mxu0
  %v1614 = vadd.f32 %v283, %v1613
  %v1615 = vpop.f32.mrf.mxu0
  %v1616 = vadd.f32 %v283, %v1615
  %1617 = vmatmul.bf16.gmra.mxu0 %v1121
  %v1618 = vpop.f32.mrf.mxu0
  %v1619 = vadd.f32 %v283, %v1618
  %v1620 = vpop.f32.mrf.mxu0
  %v1621 = vadd.f32 %v283, %v1620
  %1622 = vmatmul.bf16.gmra.mxu0 %v1124
  %v1623 = vpop.f32.mrf.mxu0
  %v1624 = vadd.f32 %v283, %v1623
  %v1625 = vpop.f32.mrf.mxu0
  %v1626 = vadd.f32 %v283, %v1625
  %1627 = vmatmul.bf16.gmra.mxu0 %v1127
  %v1628 = vpop.f32.mrf.mxu0
  %v1629 = vadd.f32 %v283, %v1628
  %v1630 = vpop.f32.mrf.mxu0
  %v1631 = vadd.f32 %v283, %v1630
  %1632 = vmatmul.bf16.gmra.mxu0 %v1130
  %v1633 = vpop.f32.mrf.mxu0
  %v1634 = vadd.f32 %v283, %v1633
  %v1635 = vpop.f32.mrf.mxu0
  %v1636 = vadd.f32 %v283, %v1635
  %1637 = vmatmul.bf16.gmra.mxu0 %v1133
  %v1638 = vpop.f32.mrf.mxu0
  %v1639 = vadd.f32 %v283, %v1638
  %v1640 = vpop.f32.mrf.mxu0
  %v1641 = vadd.f32 %v283, %v1640
  %1642 = vmatmul.bf16.gmra.mxu0 %v1136
  %v1643 = vpop.f32.mrf.mxu0
  %v1644 = vadd.f32 %v283, %v1643
  %v1645 = vpop.f32.mrf.mxu0
  %v1646 = vadd.f32 %v283, %v1645
  %1647 = vmatmul.bf16.gmra.mxu0 %v1139
  %v1648 = vpop.f32.mrf.mxu0
  %v1649 = vadd.f32 %v283, %v1648
  %v1650 = vpop.f32.mrf.mxu0
  %v1651 = vadd.f32 %v283, %v1650
  %1652 = vmatmul.bf16.gmra.mxu0 %v1142
  %v1653 = vpop.f32.mrf.mxu0
  %v1654 = vadd.f32 %v283, %v1653
  %v1655 = vpop.f32.mrf.mxu0
  %v1656 = vadd.f32 %v283, %v1655
  %1657 = vmatmul.bf16.gmra.mxu0 %v1145
  %v1658 = vpop.f32.mrf.mxu0
  %v1659 = vadd.f32 %v283, %v1658
  %v1660 = vpop.f32.mrf.mxu0
  %v1661 = vadd.f32 %v283, %v1660
  %1662 = vmatmul.bf16.gmra.mxu0 %v1148
  %v1663 = vpop.f32.mrf.mxu0
  %v1664 = vadd.f32 %v283, %v1663
  %v1665 = vpop.f32.mrf.mxu0
  %v1666 = vadd.f32 %v283, %v1665
  %1667 = vmatmul.bf16.gmra.mxu0 %v1151
  %v1668 = vpop.f32.mrf.mxu0
  %v1669 = vadd.f32 %v283, %v1668
  %v1670 = vpop.f32.mrf.mxu0
  %v1671 = vadd.f32 %v283, %v1670
  %1672 = vmatmul.bf16.gmra.mxu0 %v1154
  %v1673 = vpop.f32.mrf.mxu0
  %v1674 = vadd.f32 %v283, %v1673
  %v1675 = vpop.f32.mrf.mxu0
  %v1676 = vadd.f32 %v283, %v1675
  %1677 = vmatmul.bf16.gmra.mxu0 %v1157
  %v1678 = vpop.f32.mrf.mxu0
  %v1679 = vadd.f32 %v283, %v1678
  %v1680 = vpop.f32.mrf.mxu0
  %v1681 = vadd.f32 %v283, %v1680
  %1682 = vmatmul.bf16.gmra.mxu0 %v1160
  %v1683 = vpop.f32.mrf.mxu0
  %v1684 = vadd.f32 %v283, %v1683
  %v1685 = vpop.f32.mrf.mxu0
  %v1686 = vadd.f32 %v283, %v1685
  %1687 = vmatmul.bf16.gmra.mxu0 %v1163
  %v1688 = vpop.f32.mrf.mxu0
  %v1689 = vadd.f32 %v283, %v1688
  %v1690 = vpop.f32.mrf.mxu0
  %v1691 = vadd.f32 %v283, %v1690
  %1692 = vmatmul.bf16.gmra.mxu0 %v1166
  %v1693 = vpop.f32.mrf.mxu0
  %v1694 = vadd.f32 %v283, %v1693
  %v1695 = vpop.f32.mrf.mxu0
  %v1696 = vadd.f32 %v283, %v1695
  %1697 = vmatmul.bf16.gmra.mxu0 %v1169
  %v1698 = vpop.f32.mrf.mxu0
  %v1699 = vadd.f32 %v283, %v1698
  %v1700 = vpop.f32.mrf.mxu0
  %v1701 = vadd.f32 %v283, %v1700
  %1702 = vmatmul.bf16.gmra.mxu0 %v1172
  %v1703 = vpop.f32.mrf.mxu0
  %v1704 = vadd.f32 %v283, %v1703
  %v1705 = vpop.f32.mrf.mxu0
  %v1706 = vadd.f32 %v283, %v1705
  %1707 = vmatmul.bf16.gmra.mxu0 %v1175
  %v1708 = vpop.f32.mrf.mxu0
  %v1709 = vadd.f32 %v283, %v1708
  %v1710 = vpop.f32.mrf.mxu0
  %v1711 = vadd.f32 %v283, %v1710
  %1712 = vmatmul.bf16.gmra.mxu0 %v1178
  %v1713 = vpop.f32.mrf.mxu0
  %v1714 = vadd.f32 %v283, %v1713
  %v1715 = vpop.f32.mrf.mxu0
  %v1716 = vadd.f32 %v283, %v1715
  %1717 = vmatmul.bf16.gmra.mxu0 %v1181
  %v1718 = vpop.f32.mrf.mxu0
  %v1719 = vadd.f32 %v283, %v1718
  %v1720 = vpop.f32.mrf.mxu0
  %v1721 = vadd.f32 %v283, %v1720
  %1722 = vmatmul.bf16.gmra.mxu0 %v1184
  %v1723 = vpop.f32.mrf.mxu0
  %v1724 = vadd.f32 %v283, %v1723
  %v1725 = vpop.f32.mrf.mxu0
  %v1726 = vadd.f32 %v283, %v1725
  %1727 = vmatmul.bf16.gmra.mxu0 %v1187
  %v1728 = vpop.f32.mrf.mxu0
  %v1729 = vadd.f32 %v283, %v1728
  %v1730 = vpop.f32.mrf.mxu0
  %v1731 = vadd.f32 %v283, %v1730
  %1732 = vmatmul.bf16.gmra.mxu0 %v1190
  %v1733 = vpop.f32.mrf.mxu0
  %v1734 = vadd.f32 %v283, %v1733
  %v1735 = vpop.f32.mrf.mxu0
  %v1736 = vadd.f32 %v283, %v1735
  %1737 = vmatmul.bf16.gmra.mxu0 %v1193
  %v1738 = vpop.f32.mrf.mxu0
  %v1739 = vadd.f32 %v283, %v1738
  %v1740 = vpop.f32.mrf.mxu0
  %v1741 = vadd.f32 %v283, %v1740
  %1742 = vmatmul.bf16.gmra.mxu0 %v1196
  %v1743 = vpop.f32.mrf.mxu0
  %v1744 = vadd.f32 %v283, %v1743
  %v1745 = vpop.f32.mrf.mxu0
  %v1746 = vadd.f32 %v283, %v1745
  %1747 = vmatmul.bf16.gmra.mxu0 %v1199
  %v1748 = vpop.f32.mrf.mxu0
  %v1749 = vadd.f32 %v283, %v1748
  %v1750 = vpop.f32.mrf.mxu0
  %v1751 = vadd.f32 %v283, %v1750
  %1752 = vmatmul.bf16.gmra.mxu0 %v1202
  %v1753 = vpop.f32.mrf.mxu0
  %v1754 = vadd.f32 %v283, %v1753
  %v1755 = vpop.f32.mrf.mxu0
  %v1756 = vadd.f32 %v283, %v1755
  %1757 = vmatmul.bf16.gmra.mxu0 %v1205
  %v1758 = vpop.f32.mrf.mxu0
  %v1759 = vadd.f32 %v283, %v1758
  %v1760 = vpop.f32.mrf.mxu0
  %v1761 = vadd.f32 %v283, %v1760
  %1762 = vmatmul.bf16.gmra.mxu0 %v1208
  %v1763 = vpop.f32.mrf.mxu0
  %v1764 = vadd.f32 %v283, %v1763
  %v1765 = vpop.f32.mrf.mxu0
  %v1766 = vadd.f32 %v283, %v1765
  %1767 = vmatmul.bf16.gmra.mxu0 %v1211
  %v1768 = vpop.f32.mrf.mxu0
  %v1769 = vadd.f32 %v283, %v1768
  %v1770 = vpop.f32.mrf.mxu0
  %v1771 = vadd.f32 %v283, %v1770
  %1772 = vmatmul.bf16.gmra.mxu0 %v1214
  %v1773 = vpop.f32.mrf.mxu0
  %v1774 = vadd.f32 %v283, %v1773
  %v1775 = vpop.f32.mrf.mxu0
  %v1776 = vadd.f32 %v283, %v1775
  %1777 = vmatmul.bf16.gmra.mxu0 %v1217
  %v1778 = vpop.f32.mrf.mxu0
  %v1779 = vadd.f32 %v283, %v1778
  %v1780 = vpop.f32.mrf.mxu0
  %v1781 = vadd.f32 %v283, %v1780
  %1782 = vmatmul.bf16.gmra.mxu0 %v1220
  %v1783 = vpop.f32.mrf.mxu0
  %v1784 = vadd.f32 %v283, %v1783
  %v1785 = vpop.f32.mrf.mxu0
  %v1786 = vadd.f32 %v283, %v1785
  %1787 = vmatmul.bf16.gmra.mxu0 %v1223
  %v1788 = vpop.f32.mrf.mxu0
  %v1789 = vadd.f32 %v283, %v1788
  %v1790 = vpop.f32.mrf.mxu0
  %v1791 = vadd.f32 %v283, %v1790
  %1792 = vmatmul.bf16.gmra.mxu0 %v1226
  %v1793 = vpop.f32.mrf.mxu0
  %v1794 = vadd.f32 %v283, %v1793
  %v1795 = vpop.f32.mrf.mxu0
  %v1796 = vadd.f32 %v283, %v1795
  %1797 = vmatmul.bf16.gmra.mxu0 %v1229
  %v1798 = vpop.f32.mrf.mxu0
  %v1799 = vadd.f32 %v283, %v1798
  %v1800 = vpop.f32.mrf.mxu0
  %v1801 = vadd.f32 %v283, %v1800
  %1802 = vmatmul.bf16.gmra.mxu0 %v1232
  %v1803 = vpop.f32.mrf.mxu0
  %v1804 = vadd.f32 %v283, %v1803
  %v1805 = vpop.f32.mrf.mxu0
  %v1806 = vadd.f32 %v283, %v1805
  %1807 = vmatmul.bf16.gmra.mxu0 %v1235
  %v1808 = vpop.f32.mrf.mxu0
  %v1809 = vadd.f32 %v283, %v1808
  %v1810 = vpop.f32.mrf.mxu0
  %v1811 = vadd.f32 %v283, %v1810
  %1812 = vmatmul.bf16.gmra.mxu0 %v1238
  %v1813 = vpop.f32.mrf.mxu0
  %v1814 = vadd.f32 %v283, %v1813
  %v1815 = vpop.f32.mrf.mxu0
  %v1816 = vadd.f32 %v283, %v1815
  %1817 = vmatmul.bf16.gmra.mxu0 %v1241
  %v1818 = vpop.f32.mrf.mxu0
  %v1819 = vadd.f32 %v283, %v1818
  %v1820 = vpop.f32.mrf.mxu0
  %v1821 = vadd.f32 %v283, %v1820
  %1822 = vmatmul.bf16.gmra.mxu0 %v1244
  %v1823 = vpop.f32.mrf.mxu0
  %v1824 = vadd.f32 %v283, %v1823
  %v1825 = vpop.f32.mrf.mxu0
  %v1826 = vadd.f32 %v283, %v1825
  %1827 = vmatmul.bf16.gmra.mxu0 %v1247
  %v1828 = vpop.f32.mrf.mxu0
  %v1829 = vadd.f32 %v283, %v1828
  %v1830 = vpop.f32.mrf.mxu0
  %v1831 = vadd.f32 %v283, %v1830
  %1832 = vmatmul.bf16.gmra.mxu0 %v1250
  %v1833 = vpop.f32.mrf.mxu0
  %v1834 = vadd.f32 %v283, %v1833
  %v1835 = vpop.f32.mrf.mxu0
  %v1836 = vadd.f32 %v283, %v1835
  %1837 = vmatmul.bf16.gmra.mxu0 %v1253
  %v1838 = vpop.f32.mrf.mxu0
  %v1839 = vadd.f32 %v283, %v1838
  %v1840 = vpop.f32.mrf.mxu0
  %v1841 = vadd.f32 %v283, %v1840
  %1842 = vmatmul.bf16.gmra.mxu0 %v1256
  %v1843 = vpop.f32.mrf.mxu0
  %v1844 = vadd.f32 %v283, %v1843
  %v1845 = vpop.f32.mrf.mxu0
  %v1846 = vadd.f32 %v283, %v1845
  %1847 = vmatmul.bf16.gmra.mxu0 %v1259
  %v1848 = vpop.f32.mrf.mxu0
  %v1849 = vadd.f32 %v283, %v1848
  %v1850 = vpop.f32.mrf.mxu0
  %v1851 = vadd.f32 %v283, %v1850
  %1852 = vmatmul.bf16.gmra.mxu0 %v1262
  %v1853 = vpop.f32.mrf.mxu0
  %v1854 = vadd.f32 %v283, %v1853
  %v1855 = vpop.f32.mrf.mxu0
  %v1856 = vadd.f32 %v283, %v1855
  %1857 = vmatmul.bf16.gmra.mxu0 %v1265
  %v1858 = vpop.f32.mrf.mxu0
  %v1859 = vadd.f32 %v283, %v1858
  %v1860 = vpop.f32.mrf.mxu0
  %v1861 = vadd.f32 %v283, %v1860
  %1862 = vmatmul.bf16.gmra.mxu0 %v1268
  %v1863 = vpop.f32.mrf.mxu0
  %v1864 = vadd.f32 %v283, %v1863
  %v1865 = vpop.f32.mrf.mxu0
  %v1866 = vadd.f32 %v283, %v1865
  %1867 = vmatmul.bf16.gmra.mxu0 %v1271
  %v1868 = vpop.f32.mrf.mxu0
  %v1869 = vadd.f32 %v283, %v1868
  %v1870 = vpop.f32.mrf.mxu0
  %v1871 = vadd.f32 %v283, %v1870
  %1872 = vmatmul.bf16.gmra.mxu0 %v1274
  %v1873 = vpop.f32.mrf.mxu0
  %v1874 = vadd.f32 %v283, %v1873
  %v1875 = vpop.f32.mrf.mxu0
  %v1876 = vadd.f32 %v283, %v1875
  %1877 = vmatmul.bf16.gmra.mxu0 %v1277
  %v1878 = vpop.f32.mrf.mxu0
  %v1879 = vadd.f32 %v283, %v1878
  %v1880 = vpop.f32.mrf.mxu0
  %v1881 = vadd.f32 %v283, %v1880
  %1882 = vmatmul.bf16.gmra.mxu0 %v1280
  %v1883 = vpop.f32.mrf.mxu0
  %v1884 = vadd.f32 %v283, %v1883
  %v1885 = vpop.f32.mrf.mxu0
  %v1886 = vadd.f32 %v283, %v1885
  %1887 = vmatmul.bf16.gmra.mxu0 %v1283
  %v1888 = vpop.f32.mrf.mxu0
  %v1889 = vadd.f32 %v283, %v1888
  %v1890 = vpop.f32.mrf.mxu0
  %v1891 = vadd.f32 %v283, %v1890
  %1892 = vmatmul.bf16.gmra.mxu0 %v1286
  %v1893 = vpop.f32.mrf.mxu0
  %v1894 = vadd.f32 %v283, %v1893
  %v1895 = vpop.f32.mrf.mxu0
  %v1896 = vadd.f32 %v283, %v1895
  %1897 = vmatmul.bf16.gmra.mxu0 %v1289
  %v1898 = vpop.f32.mrf.mxu0
  %v1899 = vadd.f32 %v283, %v1898
  %v1900 = vpop.f32.mrf.mxu0
  %v1901 = vadd.f32 %v283, %v1900
  %1902 = vmatmul.bf16.gmra.mxu0 %v1292
  %v1903 = vpop.f32.mrf.mxu0
  %v1904 = vadd.f32 %v283, %v1903
  %v1905 = vpop.f32.mrf.mxu0
  %v1906 = vadd.f32 %v283, %v1905
  %1907 = vmatmul.bf16.gmra.mxu0 %v1295
  %v1908 = vpop.f32.mrf.mxu0
  %v1909 = vadd.f32 %v283, %v1908
  %v1910 = vpop.f32.mrf.mxu0
  %v1911 = vadd.f32 %v283, %v1910
  %1912 = vmatmul.bf16.gmra.mxu0 %v1298
  %v1913 = vpop.f32.mrf.mxu0
  %v1914 = vadd.f32 %v283, %v1913
  %v1915 = vpop.f32.mrf.mxu0
  %v1916 = vadd.f32 %v283, %v1915
  %1917 = vmatmul.bf16.gmra.mxu0 %v1301
  %v1918 = vpop.f32.mrf.mxu0
  %v1919 = vadd.f32 %v283, %v1918
  %v1920 = vpop.f32.mrf.mxu0
  %v1921 = vadd.f32 %v283, %v1920
  %1922 = vmatmul.bf16.gmra.mxu0 %v1304
  %v1923 = vpop.f32.mrf.mxu0
  %v1924 = vadd.f32 %v283, %v1923
  %v1925 = vpop.f32.mrf.mxu0
  %v1926 = vadd.f32 %v283, %v1925
  %1927 = vmatmul.bf16.gmra.mxu0 %v1307
  %v1928 = vpop.f32.mrf.mxu0
  %v1929 = vadd.f32 %v283, %v1928
  %v1930 = vpop.f32.mrf.mxu0
  %v1931 = vadd.f32 %v283, %v1930
  %1932 = vmatmul.bf16.gmra.mxu0 %v1310
  %v1933 = vpop.f32.mrf.mxu0
  %v1934 = vadd.f32 %v283, %v1933
  %v1935 = vpop.f32.mrf.mxu0
  %v1936 = vadd.f32 %v283, %v1935
  %1937 = vmatmul.bf16.gmra.mxu0 %v1313
  %v1938 = vpop.f32.mrf.mxu0
  %v1939 = vadd.f32 %v283, %v1938
  %v1940 = vpop.f32.mrf.mxu0
  %v1941 = vadd.f32 %v283, %v1940
  %1942 = vmatmul.bf16.gmra.mxu0 %v1316
  %v1943 = vpop.f32.mrf.mxu0
  %v1944 = vadd.f32 %v283, %v1943
  %v1945 = vpop.f32.mrf.mxu0
  %v1946 = vadd.f32 %v283, %v1945
  %1947 = vmatmul.bf16.gmra.mxu0 %v1319
  %v1948 = vpop.f32.mrf.mxu0
  %v1949 = vadd.f32 %v283, %v1948
  %v1950 = vpop.f32.mrf.mxu0
  %v1951 = vadd.f32 %v283, %v1950
  %1952 = vmatmul.bf16.gmra.mxu0 %v1322
  %v1953 = vpop.f32.mrf.mxu0
  %v1954 = vadd.f32 %v283, %v1953
  %v1955 = vpop.f32.mrf.mxu0
  %v1956 = vadd.f32 %v283, %v1955
  %1957 = vmatmul.bf16.gmra.mxu0 %v1325
  %v1958 = vpop.f32.mrf.mxu0
  %v1959 = vadd.f32 %v283, %v1958
  %v1960 = vpop.f32.mrf.mxu0
  %v1961 = vadd.f32 %v283, %v1960
  %1962 = vmatmul.bf16.gmra.mxu0 %v1328
  %v1963 = vpop.f32.mrf.mxu0
  %v1964 = vadd.f32 %v283, %v1963
  %v1965 = vpop.f32.mrf.mxu0
  %v1966 = vadd.f32 %v283, %v1965
  %1967 = vmatmul.bf16.gmra.mxu0 %v1331
  %v1968 = vpop.f32.mrf.mxu0
  %v1969 = vadd.f32 %v283, %v1968
  %v1970 = vpop.f32.mrf.mxu0
  %v1971 = vadd.f32 %v283, %v1970
  %1972 = vmatmul.bf16.gmra.mxu0 %v1334
  %v1973 = vpop.f32.mrf.mxu0
  %v1974 = vadd.f32 %v283, %v1973
  %v1975 = vpop.f32.mrf.mxu0
  %v1976 = vadd.f32 %v283, %v1975
  %1977 = vmatmul.bf16.gmra.mxu0 %v1337
  %v1978 = vpop.f32.mrf.mxu0
  %v1979 = vadd.f32 %v283, %v1978
  %v1980 = vpop.f32.mrf.mxu0
  %v1981 = vadd.f32 %v283, %v1980
  %1982 = vmatmul.bf16.gmra.mxu0 %v1340
  %v1983 = vpop.f32.mrf.mxu0
  %v1984 = vadd.f32 %v283, %v1983
  %v1985 = vpop.f32.mrf.mxu0
  %v1986 = vadd.f32 %v283, %v1985
  %1987 = vmatmul.bf16.gmra.mxu0 %v1343
  %v1988 = vpop.f32.mrf.mxu0
  %v1989 = vadd.f32 %v283, %v1988
  %v1990 = vpop.f32.mrf.mxu0
  %v1991 = vadd.f32 %v283, %v1990
  %1992 = vmatmul.bf16.gmra.mxu0 %v1346
  %v1993 = vpop.f32.mrf.mxu0
  %v1994 = vadd.f32 %v283, %v1993
  %v1995 = vpop.f32.mrf.mxu0
  %v1996 = vadd.f32 %v283, %v1995
  %1997 = vmatmul.bf16.gmra.mxu0 %v1349
  %v1998 = vpop.f32.mrf.mxu0
  %v1999 = vadd.f32 %v283, %v1998
  %v2000 = vpop.f32.mrf.mxu0
  %v2001 = vadd.f32 %v283, %v2000
  %2002 = vmatmul.bf16.gmra.mxu0 %v1352
  %v2003 = vpop.f32.mrf.mxu0
  %v2004 = vadd.f32 %v283, %v2003
  %v2005 = vpop.f32.mrf.mxu0
  %v2006 = vadd.f32 %v283, %v2005
  %2007 = vmatmul.bf16.gmra.mxu0 %v1355
  %v2008 = vpop.f32.mrf.mxu0
  %v2009 = vadd.f32 %v283, %v2008
  %v2010 = vpop.f32.mrf.mxu0
  %v2011 = vadd.f32 %v283, %v2010
  %2012 = vmatmul.bf16.gmra.mxu0 %v1358
  %v2013 = vpop.f32.mrf.mxu0
  %v2014 = vadd.f32 %v283, %v2013
  %v2015 = vpop.f32.mrf.mxu0
  %v2016 = vadd.f32 %v283, %v2015
  %2017 = vmatmul.bf16.gmra.mxu0 %v1361
  %v2018 = vpop.f32.mrf.mxu0
  %v2019 = vadd.f32 %v283, %v2018
  %v2020 = vpop.f32.mrf.mxu0
  %v2021 = vadd.f32 %v283, %v2020
  %2022 = vmatmul.bf16.gmra.mxu0 %v1364
  %v2023 = vpop.f32.mrf.mxu0
  %v2024 = vadd.f32 %v283, %v2023
  %v2025 = vpop.f32.mrf.mxu0
  %v2026 = vadd.f32 %v283, %v2025
  %2027 = vdwg.mxu0
  %2028 = vmatpush.bf16.msra.mxu0 0
  %2029 = vmatpush.bf16.msra.mxu0 0
  %2030 = vmatpush.bf16.msra.mxu0 0
  %2031 = vmatpush.bf16.msra.mxu0 0
  %2032 = vmatpush.bf16.msra.mxu0 0
  %2033 = vmatpush.bf16.msra.mxu0 %v1371
  %2034 = vmatpush.bf16.msra.mxu0 %v966
  %2035 = vmatpush.bf16.msra.mxu0 %v962
  %2036 = vmatmul.bf16.gmra.mxu0 %v983
  %v2037 = vpop.f32.mrf.mxu0
  %v2038 = vadd.f32 %v284, %v2037
  %v2039 = vpop.f32.mrf.mxu0
  %v2040 = vadd.f32 %v284, %v2039
  %2041 = vmatmul.bf16.gmra.mxu0 %v986
  %v2042 = vpop.f32.mrf.mxu0
  %v2043 = vadd.f32 %v284, %v2042
  %v2044 = vpop.f32.mrf.mxu0
  %v2045 = vadd.f32 %v284, %v2044
  %2046 = vmatmul.bf16.gmra.mxu0 %v989
  %v2047 = vpop.f32.mrf.mxu0
  %v2048 = vadd.f32 %v284, %v2047
  %v2049 = vpop.f32.mrf.mxu0
  %v2050 = vadd.f32 %v284, %v2049
  %2051 = vmatmul.bf16.gmra.mxu0 %v992
  %v2052 = vpop.f32.mrf.mxu0
  %v2053 = vadd.f32 %v284, %v2052
  %v2054 = vpop.f32.mrf.mxu0
  %v2055 = vadd.f32 %v284, %v2054
  %2056 = vmatmul.bf16.gmra.mxu0 %v995
  %v2057 = vpop.f32.mrf.mxu0
  %v2058 = vadd.f32 %v284, %v2057
  %v2059 = vpop.f32.mrf.mxu0
  %v2060 = vadd.f32 %v284, %v2059
  %2061 = vmatmul.bf16.gmra.mxu0 %v998
  %v2062 = vpop.f32.mrf.mxu0
  %v2063 = vadd.f32 %v284, %v2062
  %v2064 = vpop.f32.mrf.mxu0
  %v2065 = vadd.f32 %v284, %v2064
  %2066 = vmatmul.bf16.gmra.mxu0 %v1001
  %v2067 = vpop.f32.mrf.mxu0
  %v2068 = vadd.f32 %v284, %v2067
  %v2069 = vpop.f32.mrf.mxu0
  %v2070 = vadd.f32 %v284, %v2069
  %2071 = vmatmul.bf16.gmra.mxu0 %v1004
  %v2072 = vpop.f32.mrf.mxu0
  %v2073 = vadd.f32 %v284, %v2072
  %v2074 = vpop.f32.mrf.mxu0
  %v2075 = vadd.f32 %v284, %v2074
  %2076 = vmatmul.bf16.gmra.mxu0 %v1007
  %v2077 = vpop.f32.mrf.mxu0
  %v2078 = vadd.f32 %v284, %v2077
  %v2079 = vpop.f32.mrf.mxu0
  %v2080 = vadd.f32 %v284, %v2079
  %2081 = vmatmul.bf16.gmra.mxu0 %v1010
  %v2082 = vpop.f32.mrf.mxu0
  %v2083 = vadd.f32 %v284, %v2082
  %v2084 = vpop.f32.mrf.mxu0
  %v2085 = vadd.f32 %v284, %v2084
  %2086 = vmatmul.bf16.gmra.mxu0 %v1013
  %v2087 = vpop.f32.mrf.mxu0
  %v2088 = vadd.f32 %v284, %v2087
  %v2089 = vpop.f32.mrf.mxu0
  %v2090 = vadd.f32 %v284, %v2089
  %2091 = vmatmul.bf16.gmra.mxu0 %v1016
  %v2092 = vpop.f32.mrf.mxu0
  %v2093 = vadd.f32 %v284, %v2092
  %v2094 = vpop.f32.mrf.mxu0
  %v2095 = vadd.f32 %v284, %v2094
  %2096 = vmatmul.bf16.gmra.mxu0 %v1019
  %v2097 = vpop.f32.mrf.mxu0
  %v2098 = vadd.f32 %v284, %v2097
  %v2099 = vpop.f32.mrf.mxu0
  %v2100 = vadd.f32 %v284, %v2099
  %2101 = vmatmul.bf16.gmra.mxu0 %v1022
  %v2102 = vpop.f32.mrf.mxu0
  %v2103 = vadd.f32 %v284, %v2102
  %v2104 = vpop.f32.mrf.mxu0
  %v2105 = vadd.f32 %v284, %v2104
  %2106 = vmatmul.bf16.gmra.mxu0 %v1025
  %v2107 = vpop.f32.mrf.mxu0
  %v2108 = vadd.f32 %v284, %v2107
  %v2109 = vpop.f32.mrf.mxu0
  %v2110 = vadd.f32 %v284, %v2109
  %2111 = vmatmul.bf16.gmra.mxu0 %v1028
  %v2112 = vpop.f32.mrf.mxu0
  %v2113 = vadd.f32 %v284, %v2112
  %v2114 = vpop.f32.mrf.mxu0
  %v2115 = vadd.f32 %v284, %v2114
  %2116 = vmatmul.bf16.gmra.mxu0 %v1031
  %v2117 = vpop.f32.mrf.mxu0
  %v2118 = vadd.f32 %v284, %v2117
  %v2119 = vpop.f32.mrf.mxu0
  %v2120 = vadd.f32 %v284, %v2119
  %2121 = vmatmul.bf16.gmra.mxu0 %v1034
  %v2122 = vpop.f32.mrf.mxu0
  %v2123 = vadd.f32 %v284, %v2122
  %v2124 = vpop.f32.mrf.mxu0
  %v2125 = vadd.f32 %v284, %v2124
  %2126 = vmatmul.bf16.gmra.mxu0 %v1037
  %v2127 = vpop.f32.mrf.mxu0
  %v2128 = vadd.f32 %v284, %v2127
  %v2129 = vpop.f32.mrf.mxu0
  %v2130 = vadd.f32 %v284, %v2129
  %2131 = vmatmul.bf16.gmra.mxu0 %v1040
  %v2132 = vpop.f32.mrf.mxu0
  %v2133 = vadd.f32 %v284, %v2132
  %v2134 = vpop.f32.mrf.mxu0
  %v2135 = vadd.f32 %v284, %v2134
  %2136 = vmatmul.bf16.gmra.mxu0 %v1043
  %v2137 = vpop.f32.mrf.mxu0
  %v2138 = vadd.f32 %v284, %v2137
  %v2139 = vpop.f32.mrf.mxu0
  %v2140 = vadd.f32 %v284, %v2139
  %2141 = vmatmul.bf16.gmra.mxu0 %v1046
  %v2142 = vpop.f32.mrf.mxu0
  %v2143 = vadd.f32 %v284, %v2142
  %v2144 = vpop.f32.mrf.mxu0
  %v2145 = vadd.f32 %v284, %v2144
  %2146 = vmatmul.bf16.gmra.mxu0 %v1049
  %v2147 = vpop.f32.mrf.mxu0
  %v2148 = vadd.f32 %v284, %v2147
  %v2149 = vpop.f32.mrf.mxu0
  %v2150 = vadd.f32 %v284, %v2149
  %2151 = vmatmul.bf16.gmra.mxu0 %v1052
  %v2152 = vpop.f32.mrf.mxu0
  %v2153 = vadd.f32 %v284, %v2152
  %v2154 = vpop.f32.mrf.mxu0
  %v2155 = vadd.f32 %v284, %v2154
  %2156 = vmatmul.bf16.gmra.mxu0 %v1055
  %v2157 = vpop.f32.mrf.mxu0
  %v2158 = vadd.f32 %v284, %v2157
  %v2159 = vpop.f32.mrf.mxu0
  %v2160 = vadd.f32 %v284, %v2159
  %2161 = vmatmul.bf16.gmra.mxu0 %v1058
  %v2162 = vpop.f32.mrf.mxu0
  %v2163 = vadd.f32 %v284, %v2162
  %v2164 = vpop.f32.mrf.mxu0
  %v2165 = vadd.f32 %v284, %v2164
  %2166 = vmatmul.bf16.gmra.mxu0 %v1061
  %v2167 = vpop.f32.mrf.mxu0
  %v2168 = vadd.f32 %v284, %v2167
  %v2169 = vpop.f32.mrf.mxu0
  %v2170 = vadd.f32 %v284, %v2169
  %2171 = vmatmul.bf16.gmra.mxu0 %v1064
  %v2172 = vpop.f32.mrf.mxu0
  %v2173 = vadd.f32 %v284, %v2172
  %v2174 = vpop.f32.mrf.mxu0
  %v2175 = vadd.f32 %v284, %v2174
  %2176 = vmatmul.bf16.gmra.mxu0 %v1067
  %v2177 = vpop.f32.mrf.mxu0
  %v2178 = vadd.f32 %v284, %v2177
  %v2179 = vpop.f32.mrf.mxu0
  %v2180 = vadd.f32 %v284, %v2179
  %2181 = vmatmul.bf16.gmra.mxu0 %v1070
  %v2182 = vpop.f32.mrf.mxu0
  %v2183 = vadd.f32 %v284, %v2182
  %v2184 = vpop.f32.mrf.mxu0
  %v2185 = vadd.f32 %v284, %v2184
  %2186 = vmatmul.bf16.gmra.mxu0 %v1073
  %v2187 = vpop.f32.mrf.mxu0
  %v2188 = vadd.f32 %v284, %v2187
  %v2189 = vpop.f32.mrf.mxu0
  %v2190 = vadd.f32 %v284, %v2189
  %2191 = vmatmul.bf16.gmra.mxu0 %v1076
  %v2192 = vpop.f32.mrf.mxu0
  %v2193 = vadd.f32 %v284, %v2192
  %v2194 = vpop.f32.mrf.mxu0
  %v2195 = vadd.f32 %v284, %v2194
  %2196 = vmatmul.bf16.gmra.mxu0 %v1079
  %v2197 = vpop.f32.mrf.mxu0
  %v2198 = vadd.f32 %v284, %v2197
  %v2199 = vpop.f32.mrf.mxu0
  %v2200 = vadd.f32 %v284, %v2199
  %2201 = vmatmul.bf16.gmra.mxu0 %v1082
  %v2202 = vpop.f32.mrf.mxu0
  %v2203 = vadd.f32 %v284, %v2202
  %v2204 = vpop.f32.mrf.mxu0
  %v2205 = vadd.f32 %v284, %v2204
  %2206 = vmatmul.bf16.gmra.mxu0 %v1085
  %v2207 = vpop.f32.mrf.mxu0
  %v2208 = vadd.f32 %v284, %v2207
  %v2209 = vpop.f32.mrf.mxu0
  %v2210 = vadd.f32 %v284, %v2209
  %2211 = vmatmul.bf16.gmra.mxu0 %v1088
  %v2212 = vpop.f32.mrf.mxu0
  %v2213 = vadd.f32 %v284, %v2212
  %v2214 = vpop.f32.mrf.mxu0
  %v2215 = vadd.f32 %v284, %v2214
  %2216 = vmatmul.bf16.gmra.mxu0 %v1091
  %v2217 = vpop.f32.mrf.mxu0
  %v2218 = vadd.f32 %v284, %v2217
  %v2219 = vpop.f32.mrf.mxu0
  %v2220 = vadd.f32 %v284, %v2219
  %2221 = vmatmul.bf16.gmra.mxu0 %v1094
  %v2222 = vpop.f32.mrf.mxu0
  %v2223 = vadd.f32 %v284, %v2222
  %v2224 = vpop.f32.mrf.mxu0
  %v2225 = vadd.f32 %v284, %v2224
  %2226 = vmatmul.bf16.gmra.mxu0 %v1097
  %v2227 = vpop.f32.mrf.mxu0
  %v2228 = vadd.f32 %v284, %v2227
  %v2229 = vpop.f32.mrf.mxu0
  %v2230 = vadd.f32 %v284, %v2229
  %2231 = vmatmul.bf16.gmra.mxu0 %v1100
  %v2232 = vpop.f32.mrf.mxu0
  %v2233 = vadd.f32 %v284, %v2232
  %v2234 = vpop.f32.mrf.mxu0
  %v2235 = vadd.f32 %v284, %v2234
  %2236 = vmatmul.bf16.gmra.mxu0 %v1103
  %v2237 = vpop.f32.mrf.mxu0
  %v2238 = vadd.f32 %v284, %v2237
  %v2239 = vpop.f32.mrf.mxu0
  %v2240 = vadd.f32 %v284, %v2239
  %2241 = vmatmul.bf16.gmra.mxu0 %v1106
  %v2242 = vpop.f32.mrf.mxu0
  %v2243 = vadd.f32 %v284, %v2242
  %v2244 = vpop.f32.mrf.mxu0
  %v2245 = vadd.f32 %v284, %v2244
  %2246 = vmatmul.bf16.gmra.mxu0 %v1109
  %v2247 = vpop.f32.mrf.mxu0
  %v2248 = vadd.f32 %v284, %v2247
  %v2249 = vpop.f32.mrf.mxu0
  %v2250 = vadd.f32 %v284, %v2249
  %2251 = vmatmul.bf16.gmra.mxu0 %v1112
  %v2252 = vpop.f32.mrf.mxu0
  %v2253 = vadd.f32 %v284, %v2252
  %v2254 = vpop.f32.mrf.mxu0
  %v2255 = vadd.f32 %v284, %v2254
  %2256 = vmatmul.bf16.gmra.mxu0 %v1115
  %v2257 = vpop.f32.mrf.mxu0
  %v2258 = vadd.f32 %v284, %v2257
  %v2259 = vpop.f32.mrf.mxu0
  %v2260 = vadd.f32 %v284, %v2259
  %2261 = vmatmul.bf16.gmra.mxu0 %v1118
  %v2262 = vpop.f32.mrf.mxu0
  %v2263 = vadd.f32 %v284, %v2262
  %v2264 = vpop.f32.mrf.mxu0
  %v2265 = vadd.f32 %v284, %v2264
  %2266 = vmatmul.bf16.gmra.mxu0 %v1121
  %v2267 = vpop.f32.mrf.mxu0
  %v2268 = vadd.f32 %v284, %v2267
  %v2269 = vpop.f32.mrf.mxu0
  %v2270 = vadd.f32 %v284, %v2269
  %2271 = vmatmul.bf16.gmra.mxu0 %v1124
  %v2272 = vpop.f32.mrf.mxu0
  %v2273 = vadd.f32 %v284, %v2272
  %v2274 = vpop.f32.mrf.mxu0
  %v2275 = vadd.f32 %v284, %v2274
  %2276 = vmatmul.bf16.gmra.mxu0 %v1127
  %v2277 = vpop.f32.mrf.mxu0
  %v2278 = vadd.f32 %v284, %v2277
  %v2279 = vpop.f32.mrf.mxu0
  %v2280 = vadd.f32 %v284, %v2279
  %2281 = vmatmul.bf16.gmra.mxu0 %v1130
  %v2282 = vpop.f32.mrf.mxu0
  %v2283 = vadd.f32 %v284, %v2282
  %v2284 = vpop.f32.mrf.mxu0
  %v2285 = vadd.f32 %v284, %v2284
  %2286 = vmatmul.bf16.gmra.mxu0 %v1133
  %v2287 = vpop.f32.mrf.mxu0
  %v2288 = vadd.f32 %v284, %v2287
  %v2289 = vpop.f32.mrf.mxu0
  %v2290 = vadd.f32 %v284, %v2289
  %2291 = vmatmul.bf16.gmra.mxu0 %v1136
  %v2292 = vpop.f32.mrf.mxu0
  %v2293 = vadd.f32 %v284, %v2292
  %v2294 = vpop.f32.mrf.mxu0
  %v2295 = vadd.f32 %v284, %v2294
  %2296 = vmatmul.bf16.gmra.mxu0 %v1139
  %v2297 = vpop.f32.mrf.mxu0
  %v2298 = vadd.f32 %v284, %v2297
  %v2299 = vpop.f32.mrf.mxu0
  %v2300 = vadd.f32 %v284, %v2299
  %2301 = vmatmul.bf16.gmra.mxu0 %v1142
  %v2302 = vpop.f32.mrf.mxu0
  %v2303 = vadd.f32 %v284, %v2302
  %v2304 = vpop.f32.mrf.mxu0
  %v2305 = vadd.f32 %v284, %v2304
  %2306 = vmatmul.bf16.gmra.mxu0 %v1145
  %v2307 = vpop.f32.mrf.mxu0
  %v2308 = vadd.f32 %v284, %v2307
  %v2309 = vpop.f32.mrf.mxu0
  %v2310 = vadd.f32 %v284, %v2309
  %2311 = vmatmul.bf16.gmra.mxu0 %v1148
  %v2312 = vpop.f32.mrf.mxu0
  %v2313 = vadd.f32 %v284, %v2312
  %v2314 = vpop.f32.mrf.mxu0
  %v2315 = vadd.f32 %v284, %v2314
  %2316 = vmatmul.bf16.gmra.mxu0 %v1151
  %v2317 = vpop.f32.mrf.mxu0
  %v2318 = vadd.f32 %v284, %v2317
  %v2319 = vpop.f32.mrf.mxu0
  %v2320 = vadd.f32 %v284, %v2319
  %2321 = vmatmul.bf16.gmra.mxu0 %v1154
  %v2322 = vpop.f32.mrf.mxu0
  %v2323 = vadd.f32 %v284, %v2322
  %v2324 = vpop.f32.mrf.mxu0
  %v2325 = vadd.f32 %v284, %v2324
  %2326 = vmatmul.bf16.gmra.mxu0 %v1157
  %v2327 = vpop.f32.mrf.mxu0
  %v2328 = vadd.f32 %v284, %v2327
  %v2329 = vpop.f32.mrf.mxu0
  %v2330 = vadd.f32 %v284, %v2329
  %2331 = vmatmul.bf16.gmra.mxu0 %v1160
  %v2332 = vpop.f32.mrf.mxu0
  %v2333 = vadd.f32 %v284, %v2332
  %v2334 = vpop.f32.mrf.mxu0
  %v2335 = vadd.f32 %v284, %v2334
  %2336 = vmatmul.bf16.gmra.mxu0 %v1163
  %v2337 = vpop.f32.mrf.mxu0
  %v2338 = vadd.f32 %v284, %v2337
  %v2339 = vpop.f32.mrf.mxu0
  %v2340 = vadd.f32 %v284, %v2339
  %2341 = vmatmul.bf16.gmra.mxu0 %v1166
  %v2342 = vpop.f32.mrf.mxu0
  %v2343 = vadd.f32 %v284, %v2342
  %v2344 = vpop.f32.mrf.mxu0
  %v2345 = vadd.f32 %v284, %v2344
  %2346 = vmatmul.bf16.gmra.mxu0 %v1169
  %v2347 = vpop.f32.mrf.mxu0
  %v2348 = vadd.f32 %v284, %v2347
  %v2349 = vpop.f32.mrf.mxu0
  %v2350 = vadd.f32 %v284, %v2349
  %2351 = vmatmul.bf16.gmra.mxu0 %v1172
  %v2352 = vpop.f32.mrf.mxu0
  %v2353 = vadd.f32 %v284, %v2352
  %v2354 = vpop.f32.mrf.mxu0
  %v2355 = vadd.f32 %v284, %v2354
  %2356 = vmatmul.bf16.gmra.mxu0 %v1175
  %v2357 = vpop.f32.mrf.mxu0
  %v2358 = vadd.f32 %v284, %v2357
  %v2359 = vpop.f32.mrf.mxu0
  %v2360 = vadd.f32 %v284, %v2359
  %2361 = vmatmul.bf16.gmra.mxu0 %v1178
  %v2362 = vpop.f32.mrf.mxu0
  %v2363 = vadd.f32 %v284, %v2362
  %v2364 = vpop.f32.mrf.mxu0
  %v2365 = vadd.f32 %v284, %v2364
  %2366 = vmatmul.bf16.gmra.mxu0 %v1181
  %v2367 = vpop.f32.mrf.mxu0
  %v2368 = vadd.f32 %v284, %v2367
  %v2369 = vpop.f32.mrf.mxu0
  %v2370 = vadd.f32 %v284, %v2369
  %2371 = vmatmul.bf16.gmra.mxu0 %v1184
  %v2372 = vpop.f32.mrf.mxu0
  %v2373 = vadd.f32 %v284, %v2372
  %v2374 = vpop.f32.mrf.mxu0
  %v2375 = vadd.f32 %v284, %v2374
  %2376 = vmatmul.bf16.gmra.mxu0 %v1187
  %v2377 = vpop.f32.mrf.mxu0
  %v2378 = vadd.f32 %v284, %v2377
  %v2379 = vpop.f32.mrf.mxu0
  %v2380 = vadd.f32 %v284, %v2379
  %2381 = vmatmul.bf16.gmra.mxu0 %v1190
  %v2382 = vpop.f32.mrf.mxu0
  %v2383 = vadd.f32 %v284, %v2382
  %v2384 = vpop.f32.mrf.mxu0
  %v2385 = vadd.f32 %v284, %v2384
  %2386 = vmatmul.bf16.gmra.mxu0 %v1193
  %v2387 = vpop.f32.mrf.mxu0
  %v2388 = vadd.f32 %v284, %v2387
  %v2389 = vpop.f32.mrf.mxu0
  %v2390 = vadd.f32 %v284, %v2389
  %2391 = vmatmul.bf16.gmra.mxu0 %v1196
  %v2392 = vpop.f32.mrf.mxu0
  %v2393 = vadd.f32 %v284, %v2392
  %v2394 = vpop.f32.mrf.mxu0
  %v2395 = vadd.f32 %v284, %v2394
  %2396 = vmatmul.bf16.gmra.mxu0 %v1199
  %v2397 = vpop.f32.mrf.mxu0
  %v2398 = vadd.f32 %v284, %v2397
  %v2399 = vpop.f32.mrf.mxu0
  %v2400 = vadd.f32 %v284, %v2399
  %2401 = vmatmul.bf16.gmra.mxu0 %v1202
  %v2402 = vpop.f32.mrf.mxu0
  %v2403 = vadd.f32 %v284, %v2402
  %v2404 = vpop.f32.mrf.mxu0
  %v2405 = vadd.f32 %v284, %v2404
  %2406 = vmatmul.bf16.gmra.mxu0 %v1205
  %v2407 = vpop.f32.mrf.mxu0
  %v2408 = vadd.f32 %v284, %v2407
  %v2409 = vpop.f32.mrf.mxu0
  %v2410 = vadd.f32 %v284, %v2409
  %2411 = vmatmul.bf16.gmra.mxu0 %v1208
  %v2412 = vpop.f32.mrf.mxu0
  %v2413 = vadd.f32 %v284, %v2412
  %v2414 = vpop.f32.mrf.mxu0
  %v2415 = vadd.f32 %v284, %v2414
  %2416 = vmatmul.bf16.gmra.mxu0 %v1211
  %v2417 = vpop.f32.mrf.mxu0
  %v2418 = vadd.f32 %v284, %v2417
  %v2419 = vpop.f32.mrf.mxu0
  %v2420 = vadd.f32 %v284, %v2419
  %2421 = vmatmul.bf16.gmra.mxu0 %v1214
  %v2422 = vpop.f32.mrf.mxu0
  %v2423 = vadd.f32 %v284, %v2422
  %v2424 = vpop.f32.mrf.mxu0
  %v2425 = vadd.f32 %v284, %v2424
  %2426 = vmatmul.bf16.gmra.mxu0 %v1217
  %v2427 = vpop.f32.mrf.mxu0
  %v2428 = vadd.f32 %v284, %v2427
  %v2429 = vpop.f32.mrf.mxu0
  %v2430 = vadd.f32 %v284, %v2429
  %2431 = vmatmul.bf16.gmra.mxu0 %v1220
  %v2432 = vpop.f32.mrf.mxu0
  %v2433 = vadd.f32 %v284, %v2432
  %v2434 = vpop.f32.mrf.mxu0
  %v2435 = vadd.f32 %v284, %v2434
  %2436 = vmatmul.bf16.gmra.mxu0 %v1223
  %v2437 = vpop.f32.mrf.mxu0
  %v2438 = vadd.f32 %v284, %v2437
  %v2439 = vpop.f32.mrf.mxu0
  %v2440 = vadd.f32 %v284, %v2439
  %2441 = vmatmul.bf16.gmra.mxu0 %v1226
  %v2442 = vpop.f32.mrf.mxu0
  %v2443 = vadd.f32 %v284, %v2442
  %v2444 = vpop.f32.mrf.mxu0
  %v2445 = vadd.f32 %v284, %v2444
  %2446 = vmatmul.bf16.gmra.mxu0 %v1229
  %v2447 = vpop.f32.mrf.mxu0
  %v2448 = vadd.f32 %v284, %v2447
  %v2449 = vpop.f32.mrf.mxu0
  %v2450 = vadd.f32 %v284, %v2449
  %2451 = vmatmul.bf16.gmra.mxu0 %v1232
  %v2452 = vpop.f32.mrf.mxu0
  %v2453 = vadd.f32 %v284, %v2452
  %v2454 = vpop.f32.mrf.mxu0
  %v2455 = vadd.f32 %v284, %v2454
  %2456 = vmatmul.bf16.gmra.mxu0 %v1235
  %v2457 = vpop.f32.mrf.mxu0
  %v2458 = vadd.f32 %v284, %v2457
  %v2459 = vpop.f32.mrf.mxu0
  %v2460 = vadd.f32 %v284, %v2459
  %2461 = vmatmul.bf16.gmra.mxu0 %v1238
  %v2462 = vpop.f32.mrf.mxu0
  %v2463 = vadd.f32 %v284, %v2462
  %v2464 = vpop.f32.mrf.mxu0
  %v2465 = vadd.f32 %v284, %v2464
  %2466 = vmatmul.bf16.gmra.mxu0 %v1241
  %v2467 = vpop.f32.mrf.mxu0
  %v2468 = vadd.f32 %v284, %v2467
  %v2469 = vpop.f32.mrf.mxu0
  %v2470 = vadd.f32 %v284, %v2469
  %2471 = vmatmul.bf16.gmra.mxu0 %v1244
  %v2472 = vpop.f32.mrf.mxu0
  %v2473 = vadd.f32 %v284, %v2472
  %v2474 = vpop.f32.mrf.mxu0
  %v2475 = vadd.f32 %v284, %v2474
  %2476 = vmatmul.bf16.gmra.mxu0 %v1247
  %v2477 = vpop.f32.mrf.mxu0
  %v2478 = vadd.f32 %v284, %v2477
  %v2479 = vpop.f32.mrf.mxu0
  %v2480 = vadd.f32 %v284, %v2479
  %2481 = vmatmul.bf16.gmra.mxu0 %v1250
  %v2482 = vpop.f32.mrf.mxu0
  %v2483 = vadd.f32 %v284, %v2482
  %v2484 = vpop.f32.mrf.mxu0
  %v2485 = vadd.f32 %v284, %v2484
  %2486 = vmatmul.bf16.gmra.mxu0 %v1253
  %v2487 = vpop.f32.mrf.mxu0
  %v2488 = vadd.f32 %v284, %v2487
  %v2489 = vpop.f32.mrf.mxu0
  %v2490 = vadd.f32 %v284, %v2489
  %2491 = vmatmul.bf16.gmra.mxu0 %v1256
  %v2492 = vpop.f32.mrf.mxu0
  %v2493 = vadd.f32 %v284, %v2492
  %v2494 = vpop.f32.mrf.mxu0
  %v2495 = vadd.f32 %v284, %v2494
  %2496 = vmatmul.bf16.gmra.mxu0 %v1259
  %v2497 = vpop.f32.mrf.mxu0
  %v2498 = vadd.f32 %v284, %v2497
  %v2499 = vpop.f32.mrf.mxu0
  %v2500 = vadd.f32 %v284, %v2499
  %2501 = vmatmul.bf16.gmra.mxu0 %v1262
  %v2502 = vpop.f32.mrf.mxu0
  %v2503 = vadd.f32 %v284, %v2502
  %v2504 = vpop.f32.mrf.mxu0
  %v2505 = vadd.f32 %v284, %v2504
  %2506 = vmatmul.bf16.gmra.mxu0 %v1265
  %v2507 = vpop.f32.mrf.mxu0
  %v2508 = vadd.f32 %v284, %v2507
  %v2509 = vpop.f32.mrf.mxu0
  %v2510 = vadd.f32 %v284, %v2509
  %2511 = vmatmul.bf16.gmra.mxu0 %v1268
  %v2512 = vpop.f32.mrf.mxu0
  %v2513 = vadd.f32 %v284, %v2512
  %v2514 = vpop.f32.mrf.mxu0
  %v2515 = vadd.f32 %v284, %v2514
  %2516 = vmatmul.bf16.gmra.mxu0 %v1271
  %v2517 = vpop.f32.mrf.mxu0
  %v2518 = vadd.f32 %v284, %v2517
  %v2519 = vpop.f32.mrf.mxu0
  %v2520 = vadd.f32 %v284, %v2519
  %2521 = vmatmul.bf16.gmra.mxu0 %v1274
  %v2522 = vpop.f32.mrf.mxu0
  %v2523 = vadd.f32 %v284, %v2522
  %v2524 = vpop.f32.mrf.mxu0
  %v2525 = vadd.f32 %v284, %v2524
  %2526 = vmatmul.bf16.gmra.mxu0 %v1277
  %v2527 = vpop.f32.mrf.mxu0
  %v2528 = vadd.f32 %v284, %v2527
  %v2529 = vpop.f32.mrf.mxu0
  %v2530 = vadd.f32 %v284, %v2529
  %2531 = vmatmul.bf16.gmra.mxu0 %v1280
  %v2532 = vpop.f32.mrf.mxu0
  %v2533 = vadd.f32 %v284, %v2532
  %v2534 = vpop.f32.mrf.mxu0
  %v2535 = vadd.f32 %v284, %v2534
  %2536 = vmatmul.bf16.gmra.mxu0 %v1283
  %v2537 = vpop.f32.mrf.mxu0
  %v2538 = vadd.f32 %v284, %v2537
  %v2539 = vpop.f32.mrf.mxu0
  %v2540 = vadd.f32 %v284, %v2539
  %2541 = vmatmul.bf16.gmra.mxu0 %v1286
  %v2542 = vpop.f32.mrf.mxu0
  %v2543 = vadd.f32 %v284, %v2542
  %v2544 = vpop.f32.mrf.mxu0
  %v2545 = vadd.f32 %v284, %v2544
  %2546 = vmatmul.bf16.gmra.mxu0 %v1289
  %v2547 = vpop.f32.mrf.mxu0
  %v2548 = vadd.f32 %v284, %v2547
  %v2549 = vpop.f32.mrf.mxu0
  %v2550 = vadd.f32 %v284, %v2549
  %2551 = vmatmul.bf16.gmra.mxu0 %v1292
  %v2552 = vpop.f32.mrf.mxu0
  %v2553 = vadd.f32 %v284, %v2552
  %v2554 = vpop.f32.mrf.mxu0
  %v2555 = vadd.f32 %v284, %v2554
  %2556 = vmatmul.bf16.gmra.mxu0 %v1295
  %v2557 = vpop.f32.mrf.mxu0
  %v2558 = vadd.f32 %v284, %v2557
  %v2559 = vpop.f32.mrf.mxu0
  %v2560 = vadd.f32 %v284, %v2559
  %2561 = vmatmul.bf16.gmra.mxu0 %v1298
  %v2562 = vpop.f32.mrf.mxu0
  %v2563 = vadd.f32 %v284, %v2562
  %v2564 = vpop.f32.mrf.mxu0
  %v2565 = vadd.f32 %v284, %v2564
  %2566 = vmatmul.bf16.gmra.mxu0 %v1301
  %v2567 = vpop.f32.mrf.mxu0
  %v2568 = vadd.f32 %v284, %v2567
  %v2569 = vpop.f32.mrf.mxu0
  %v2570 = vadd.f32 %v284, %v2569
  %2571 = vmatmul.bf16.gmra.mxu0 %v1304
  %v2572 = vpop.f32.mrf.mxu0
  %v2573 = vadd.f32 %v284, %v2572
  %v2574 = vpop.f32.mrf.mxu0
  %v2575 = vadd.f32 %v284, %v2574
  %2576 = vmatmul.bf16.gmra.mxu0 %v1307
  %v2577 = vpop.f32.mrf.mxu0
  %v2578 = vadd.f32 %v284, %v2577
  %v2579 = vpop.f32.mrf.mxu0
  %v2580 = vadd.f32 %v284, %v2579
  %2581 = vmatmul.bf16.gmra.mxu0 %v1310
  %v2582 = vpop.f32.mrf.mxu0
  %v2583 = vadd.f32 %v284, %v2582
  %v2584 = vpop.f32.mrf.mxu0
  %v2585 = vadd.f32 %v284, %v2584
  %2586 = vmatmul.bf16.gmra.mxu0 %v1313
  %v2587 = vpop.f32.mrf.mxu0
  %v2588 = vadd.f32 %v284, %v2587
  %v2589 = vpop.f32.mrf.mxu0
  %v2590 = vadd.f32 %v284, %v2589
  %2591 = vmatmul.bf16.gmra.mxu0 %v1316
  %v2592 = vpop.f32.mrf.mxu0
  %v2593 = vadd.f32 %v284, %v2592
  %v2594 = vpop.f32.mrf.mxu0
  %v2595 = vadd.f32 %v284, %v2594
  %2596 = vmatmul.bf16.gmra.mxu0 %v1319
  %v2597 = vpop.f32.mrf.mxu0
  %v2598 = vadd.f32 %v284, %v2597
  %v2599 = vpop.f32.mrf.mxu0
  %v2600 = vadd.f32 %v284, %v2599
  %2601 = vmatmul.bf16.gmra.mxu0 %v1322
  %v2602 = vpop.f32.mrf.mxu0
  %v2603 = vadd.f32 %v284, %v2602
  %v2604 = vpop.f32.mrf.mxu0
  %v2605 = vadd.f32 %v284, %v2604
  %2606 = vmatmul.bf16.gmra.mxu0 %v1325
  %v2607 = vpop.f32.mrf.mxu0
  %v2608 = vadd.f32 %v284, %v2607
  %v2609 = vpop.f32.mrf.mxu0
  %v2610 = vadd.f32 %v284, %v2609
  %2611 = vmatmul.bf16.gmra.mxu0 %v1328
  %v2612 = vpop.f32.mrf.mxu0
  %v2613 = vadd.f32 %v284, %v2612
  %v2614 = vpop.f32.mrf.mxu0
  %v2615 = vadd.f32 %v284, %v2614
  %2616 = vmatmul.bf16.gmra.mxu0 %v1331
  %v2617 = vpop.f32.mrf.mxu0
  %v2618 = vadd.f32 %v284, %v2617
  %v2619 = vpop.f32.mrf.mxu0
  %v2620 = vadd.f32 %v284, %v2619
  %2621 = vmatmul.bf16.gmra.mxu0 %v1334
  %v2622 = vpop.f32.mrf.mxu0
  %v2623 = vadd.f32 %v284, %v2622
  %v2624 = vpop.f32.mrf.mxu0
  %v2625 = vadd.f32 %v284, %v2624
  %2626 = vmatmul.bf16.gmra.mxu0 %v1337
  %v2627 = vpop.f32.mrf.mxu0
  %v2628 = vadd.f32 %v284, %v2627
  %v2629 = vpop.f32.mrf.mxu0
  %v2630 = vadd.f32 %v284, %v2629
  %2631 = vmatmul.bf16.gmra.mxu0 %v1340
  %v2632 = vpop.f32.mrf.mxu0
  %v2633 = vadd.f32 %v284, %v2632
  %v2634 = vpop.f32.mrf.mxu0
  %v2635 = vadd.f32 %v284, %v2634
  %2636 = vmatmul.bf16.gmra.mxu0 %v1343
  %v2637 = vpop.f32.mrf.mxu0
  %v2638 = vadd.f32 %v284, %v2637
  %v2639 = vpop.f32.mrf.mxu0
  %v2640 = vadd.f32 %v284, %v2639
  %2641 = vmatmul.bf16.gmra.mxu0 %v1346
  %v2642 = vpop.f32.mrf.mxu0
  %v2643 = vadd.f32 %v284, %v2642
  %v2644 = vpop.f32.mrf.mxu0
  %v2645 = vadd.f32 %v284, %v2644
  %2646 = vmatmul.bf16.gmra.mxu0 %v1349
  %v2647 = vpop.f32.mrf.mxu0
  %v2648 = vadd.f32 %v284, %v2647
  %v2649 = vpop.f32.mrf.mxu0
  %v2650 = vadd.f32 %v284, %v2649
  %2651 = vmatmul.bf16.gmra.mxu0 %v1352
  %v2652 = vpop.f32.mrf.mxu0
  %v2653 = vadd.f32 %v284, %v2652
  %v2654 = vpop.f32.mrf.mxu0
  %v2655 = vadd.f32 %v284, %v2654
  %2656 = vmatmul.bf16.gmra.mxu0 %v1355
  %v2657 = vpop.f32.mrf.mxu0
  %v2658 = vadd.f32 %v284, %v2657
  %v2659 = vpop.f32.mrf.mxu0
  %v2660 = vadd.f32 %v284, %v2659
  %2661 = vmatmul.bf16.gmra.mxu0 %v1358
  %v2662 = vpop.f32.mrf.mxu0
  %v2663 = vadd.f32 %v284, %v2662
  %v2664 = vpop.f32.mrf.mxu0
  %v2665 = vadd.f32 %v284, %v2664
  %2666 = vmatmul.bf16.gmra.mxu0 %v1361
  %v2667 = vpop.f32.mrf.mxu0
  %v2668 = vadd.f32 %v284, %v2667
  %v2669 = vpop.f32.mrf.mxu0
  %v2670 = vadd.f32 %v284, %v2669
  %2671 = vmatmul.bf16.gmra.mxu0 %v1364
  %v2672 = vpop.f32.mrf.mxu0
  %v2673 = vadd.f32 %v284, %v2672
  %v2674 = vpop.f32.mrf.mxu0
  %v2675 = vadd.f32 %v284, %v2674
  %2676 = vdwg.mxu0
  %2677 = vmatpush.bf16.msra.mxu0 0
  %2678 = vmatpush.bf16.msra.mxu0 0
  %2679 = vmatpush.bf16.msra.mxu0 0
  %2680 = vmatpush.bf16.msra.mxu0 0
  %2681 = vmatpush.bf16.msra.mxu0 0
  %2682 = vmatpush.bf16.msra.mxu0 %v1374
  %2683 = vmatpush.bf16.msra.mxu0 %v967
  %2684 = vmatpush.bf16.msra.mxu0 %v963
  %2685 = vmatmul.bf16.gmra.mxu0 %v983
  %v2686 = vpop.f32.mrf.mxu0
  %v2687 = vadd.f32 %v285, %v2686
  %v2688 = vpop.f32.mrf.mxu0
  %v2689 = vadd.f32 %v285, %v2688
  %2690 = vmatmul.bf16.gmra.mxu0 %v986
  %v2691 = vpop.f32.mrf.mxu0
  %v2692 = vadd.f32 %v285, %v2691
  %v2693 = vpop.f32.mrf.mxu0
  %v2694 = vadd.f32 %v285, %v2693
  %2695 = vmatmul.bf16.gmra.mxu0 %v989
  %v2696 = vpop.f32.mrf.mxu0
  %v2697 = vadd.f32 %v285, %v2696
  %v2698 = vpop.f32.mrf.mxu0
  %v2699 = vadd.f32 %v285, %v2698
  %2700 = vmatmul.bf16.gmra.mxu0 %v992
  %v2701 = vpop.f32.mrf.mxu0
  %v2702 = vadd.f32 %v285, %v2701
  %v2703 = vpop.f32.mrf.mxu0
  %v2704 = vadd.f32 %v285, %v2703
  %2705 = vmatmul.bf16.gmra.mxu0 %v995
  %v2706 = vpop.f32.mrf.mxu0
  %v2707 = vadd.f32 %v285, %v2706
  %v2708 = vpop.f32.mrf.mxu0
  %v2709 = vadd.f32 %v285, %v2708
  %2710 = vmatmul.bf16.gmra.mxu0 %v998
  %v2711 = vpop.f32.mrf.mxu0
  %v2712 = vadd.f32 %v285, %v2711
  %v2713 = vpop.f32.mrf.mxu0
  %v2714 = vadd.f32 %v285, %v2713
  %2715 = vmatmul.bf16.gmra.mxu0 %v1001
  %v2716 = vpop.f32.mrf.mxu0
  %v2717 = vadd.f32 %v285, %v2716
  %v2718 = vpop.f32.mrf.mxu0
  %v2719 = vadd.f32 %v285, %v2718
  %2720 = vmatmul.bf16.gmra.mxu0 %v1004
  %v2721 = vpop.f32.mrf.mxu0
  %v2722 = vadd.f32 %v285, %v2721
  %v2723 = vpop.f32.mrf.mxu0
  %v2724 = vadd.f32 %v285, %v2723
  %2725 = vmatmul.bf16.gmra.mxu0 %v1007
  %v2726 = vpop.f32.mrf.mxu0
  %v2727 = vadd.f32 %v285, %v2726
  %v2728 = vpop.f32.mrf.mxu0
  %v2729 = vadd.f32 %v285, %v2728
  %2730 = vmatmul.bf16.gmra.mxu0 %v1010
  %v2731 = vpop.f32.mrf.mxu0
  %v2732 = vadd.f32 %v285, %v2731
  %v2733 = vpop.f32.mrf.mxu0
  %v2734 = vadd.f32 %v285, %v2733
  %2735 = vmatmul.bf16.gmra.mxu0 %v1013
  %v2736 = vpop.f32.mrf.mxu0
  %v2737 = vadd.f32 %v285, %v2736
  %v2738 = vpop.f32.mrf.mxu0
  %v2739 = vadd.f32 %v285, %v2738
  %2740 = vmatmul.bf16.gmra.mxu0 %v1016
  %v2741 = vpop.f32.mrf.mxu0
  %v2742 = vadd.f32 %v285, %v2741
  %v2743 = vpop.f32.mrf.mxu0
  %v2744 = vadd.f32 %v285, %v2743
  %2745 = vmatmul.bf16.gmra.mxu0 %v1019
  %v2746 = vpop.f32.mrf.mxu0
  %v2747 = vadd.f32 %v285, %v2746
  %v2748 = vpop.f32.mrf.mxu0
  %v2749 = vadd.f32 %v285, %v2748
  %2750 = vmatmul.bf16.gmra.mxu0 %v1022
  %v2751 = vpop.f32.mrf.mxu0
  %v2752 = vadd.f32 %v285, %v2751
  %v2753 = vpop.f32.mrf.mxu0
  %v2754 = vadd.f32 %v285, %v2753
  %2755 = vmatmul.bf16.gmra.mxu0 %v1025
  %v2756 = vpop.f32.mrf.mxu0
  %v2757 = vadd.f32 %v285, %v2756
  %v2758 = vpop.f32.mrf.mxu0
  %v2759 = vadd.f32 %v285, %v2758
  %2760 = vmatmul.bf16.gmra.mxu0 %v1028
  %v2761 = vpop.f32.mrf.mxu0
  %v2762 = vadd.f32 %v285, %v2761
  %v2763 = vpop.f32.mrf.mxu0
  %v2764 = vadd.f32 %v285, %v2763
  %2765 = vmatmul.bf16.gmra.mxu0 %v1031
  %v2766 = vpop.f32.mrf.mxu0
  %v2767 = vadd.f32 %v285, %v2766
  %v2768 = vpop.f32.mrf.mxu0
  %v2769 = vadd.f32 %v285, %v2768
  %2770 = vmatmul.bf16.gmra.mxu0 %v1034
  %v2771 = vpop.f32.mrf.mxu0
  %v2772 = vadd.f32 %v285, %v2771
  %v2773 = vpop.f32.mrf.mxu0
  %v2774 = vadd.f32 %v285, %v2773
  %2775 = vmatmul.bf16.gmra.mxu0 %v1037
  %v2776 = vpop.f32.mrf.mxu0
  %v2777 = vadd.f32 %v285, %v2776
  %v2778 = vpop.f32.mrf.mxu0
  %v2779 = vadd.f32 %v285, %v2778
  %2780 = vmatmul.bf16.gmra.mxu0 %v1040
  %v2781 = vpop.f32.mrf.mxu0
  %v2782 = vadd.f32 %v285, %v2781
  %v2783 = vpop.f32.mrf.mxu0
  %v2784 = vadd.f32 %v285, %v2783
  %2785 = vmatmul.bf16.gmra.mxu0 %v1043
  %v2786 = vpop.f32.mrf.mxu0
  %v2787 = vadd.f32 %v285, %v2786
  %v2788 = vpop.f32.mrf.mxu0
  %v2789 = vadd.f32 %v285, %v2788
  %2790 = vmatmul.bf16.gmra.mxu0 %v1046
  %v2791 = vpop.f32.mrf.mxu0
  %v2792 = vadd.f32 %v285, %v2791
  %v2793 = vpop.f32.mrf.mxu0
  %v2794 = vadd.f32 %v285, %v2793
  %2795 = vmatmul.bf16.gmra.mxu0 %v1049
  %v2796 = vpop.f32.mrf.mxu0
  %v2797 = vadd.f32 %v285, %v2796
  %v2798 = vpop.f32.mrf.mxu0
  %v2799 = vadd.f32 %v285, %v2798
  %2800 = vmatmul.bf16.gmra.mxu0 %v1052
  %v2801 = vpop.f32.mrf.mxu0
  %v2802 = vadd.f32 %v285, %v2801
  %v2803 = vpop.f32.mrf.mxu0
  %v2804 = vadd.f32 %v285, %v2803
  %2805 = vmatmul.bf16.gmra.mxu0 %v1055
  %v2806 = vpop.f32.mrf.mxu0
  %v2807 = vadd.f32 %v285, %v2806
  %v2808 = vpop.f32.mrf.mxu0
  %v2809 = vadd.f32 %v285, %v2808
  %2810 = vmatmul.bf16.gmra.mxu0 %v1058
  %v2811 = vpop.f32.mrf.mxu0
  %v2812 = vadd.f32 %v285, %v2811
  %v2813 = vpop.f32.mrf.mxu0
  %v2814 = vadd.f32 %v285, %v2813
  %2815 = vmatmul.bf16.gmra.mxu0 %v1061
  %v2816 = vpop.f32.mrf.mxu0
  %v2817 = vadd.f32 %v285, %v2816
  %v2818 = vpop.f32.mrf.mxu0
  %v2819 = vadd.f32 %v285, %v2818
  %2820 = vmatmul.bf16.gmra.mxu0 %v1064
  %v2821 = vpop.f32.mrf.mxu0
  %v2822 = vadd.f32 %v285, %v2821
  %v2823 = vpop.f32.mrf.mxu0
  %v2824 = vadd.f32 %v285, %v2823
  %2825 = vmatmul.bf16.gmra.mxu0 %v1067
  %v2826 = vpop.f32.mrf.mxu0
  %v2827 = vadd.f32 %v285, %v2826
  %v2828 = vpop.f32.mrf.mxu0
  %v2829 = vadd.f32 %v285, %v2828
  %2830 = vmatmul.bf16.gmra.mxu0 %v1070
  %v2831 = vpop.f32.mrf.mxu0
  %v2832 = vadd.f32 %v285, %v2831
  %v2833 = vpop.f32.mrf.mxu0
  %v2834 = vadd.f32 %v285, %v2833
  %2835 = vmatmul.bf16.gmra.mxu0 %v1073
  %v2836 = vpop.f32.mrf.mxu0
  %v2837 = vadd.f32 %v285, %v2836
  %v2838 = vpop.f32.mrf.mxu0
  %v2839 = vadd.f32 %v285, %v2838
  %2840 = vmatmul.bf16.gmra.mxu0 %v1076
  %v2841 = vpop.f32.mrf.mxu0
  %v2842 = vadd.f32 %v285, %v2841
  %v2843 = vpop.f32.mrf.mxu0
  %v2844 = vadd.f32 %v285, %v2843
  %2845 = vmatmul.bf16.gmra.mxu0 %v1079
  %v2846 = vpop.f32.mrf.mxu0
  %v2847 = vadd.f32 %v285, %v2846
  %v2848 = vpop.f32.mrf.mxu0
  %v2849 = vadd.f32 %v285, %v2848
  %2850 = vmatmul.bf16.gmra.mxu0 %v1082
  %v2851 = vpop.f32.mrf.mxu0
  %v2852 = vadd.f32 %v285, %v2851
  %v2853 = vpop.f32.mrf.mxu0
  %v2854 = vadd.f32 %v285, %v2853
  %2855 = vmatmul.bf16.gmra.mxu0 %v1085
  %v2856 = vpop.f32.mrf.mxu0
  %v2857 = vadd.f32 %v285, %v2856
  %v2858 = vpop.f32.mrf.mxu0
  %v2859 = vadd.f32 %v285, %v2858
  %2860 = vmatmul.bf16.gmra.mxu0 %v1088
  %v2861 = vpop.f32.mrf.mxu0
  %v2862 = vadd.f32 %v285, %v2861
  %v2863 = vpop.f32.mrf.mxu0
  %v2864 = vadd.f32 %v285, %v2863
  %2865 = vmatmul.bf16.gmra.mxu0 %v1091
  %v2866 = vpop.f32.mrf.mxu0
  %v2867 = vadd.f32 %v285, %v2866
  %v2868 = vpop.f32.mrf.mxu0
  %v2869 = vadd.f32 %v285, %v2868
  %2870 = vmatmul.bf16.gmra.mxu0 %v1094
  %v2871 = vpop.f32.mrf.mxu0
  %v2872 = vadd.f32 %v285, %v2871
  %v2873 = vpop.f32.mrf.mxu0
  %v2874 = vadd.f32 %v285, %v2873
  %2875 = vmatmul.bf16.gmra.mxu0 %v1097
  %v2876 = vpop.f32.mrf.mxu0
  %v2877 = vadd.f32 %v285, %v2876
  %v2878 = vpop.f32.mrf.mxu0
  %v2879 = vadd.f32 %v285, %v2878
  %2880 = vmatmul.bf16.gmra.mxu0 %v1100
  %v2881 = vpop.f32.mrf.mxu0
  %v2882 = vadd.f32 %v285, %v2881
  %v2883 = vpop.f32.mrf.mxu0
  %v2884 = vadd.f32 %v285, %v2883
  %2885 = vmatmul.bf16.gmra.mxu0 %v1103
  %v2886 = vpop.f32.mrf.mxu0
  %v2887 = vadd.f32 %v285, %v2886
  %v2888 = vpop.f32.mrf.mxu0
  %v2889 = vadd.f32 %v285, %v2888
  %2890 = vmatmul.bf16.gmra.mxu0 %v1106
  %v2891 = vpop.f32.mrf.mxu0
  %v2892 = vadd.f32 %v285, %v2891
  %v2893 = vpop.f32.mrf.mxu0
  %v2894 = vadd.f32 %v285, %v2893
  %2895 = vmatmul.bf16.gmra.mxu0 %v1109
  %v2896 = vpop.f32.mrf.mxu0
  %v2897 = vadd.f32 %v285, %v2896
  %v2898 = vpop.f32.mrf.mxu0
  %v2899 = vadd.f32 %v285, %v2898
  %2900 = vmatmul.bf16.gmra.mxu0 %v1112
  %v2901 = vpop.f32.mrf.mxu0
  %v2902 = vadd.f32 %v285, %v2901
  %v2903 = vpop.f32.mrf.mxu0
  %v2904 = vadd.f32 %v285, %v2903
  %2905 = vmatmul.bf16.gmra.mxu0 %v1115
  %v2906 = vpop.f32.mrf.mxu0
  %v2907 = vadd.f32 %v285, %v2906
  %v2908 = vpop.f32.mrf.mxu0
  %v2909 = vadd.f32 %v285, %v2908
  %2910 = vmatmul.bf16.gmra.mxu0 %v1118
  %v2911 = vpop.f32.mrf.mxu0
  %v2912 = vadd.f32 %v285, %v2911
  %v2913 = vpop.f32.mrf.mxu0
  %v2914 = vadd.f32 %v285, %v2913
  %2915 = vmatmul.bf16.gmra.mxu0 %v1121
  %v2916 = vpop.f32.mrf.mxu0
  %v2917 = vadd.f32 %v285, %v2916
  %v2918 = vpop.f32.mrf.mxu0
  %v2919 = vadd.f32 %v285, %v2918
  %2920 = vmatmul.bf16.gmra.mxu0 %v1124
  %v2921 = vpop.f32.mrf.mxu0
  %v2922 = vadd.f32 %v285, %v2921
  %v2923 = vpop.f32.mrf.mxu0
  %v2924 = vadd.f32 %v285, %v2923
  %2925 = vmatmul.bf16.gmra.mxu0 %v1127
  %v2926 = vpop.f32.mrf.mxu0
  %v2927 = vadd.f32 %v285, %v2926
  %v2928 = vpop.f32.mrf.mxu0
  %v2929 = vadd.f32 %v285, %v2928
  %2930 = vmatmul.bf16.gmra.mxu0 %v1130
  %v2931 = vpop.f32.mrf.mxu0
  %v2932 = vadd.f32 %v285, %v2931
  %v2933 = vpop.f32.mrf.mxu0
  %v2934 = vadd.f32 %v285, %v2933
  %2935 = vmatmul.bf16.gmra.mxu0 %v1133
  %v2936 = vpop.f32.mrf.mxu0
  %v2937 = vadd.f32 %v285, %v2936
  %v2938 = vpop.f32.mrf.mxu0
  %v2939 = vadd.f32 %v285, %v2938
  %2940 = vmatmul.bf16.gmra.mxu0 %v1136
  %v2941 = vpop.f32.mrf.mxu0
  %v2942 = vadd.f32 %v285, %v2941
  %v2943 = vpop.f32.mrf.mxu0
  %v2944 = vadd.f32 %v285, %v2943
  %2945 = vmatmul.bf16.gmra.mxu0 %v1139
  %v2946 = vpop.f32.mrf.mxu0
  %v2947 = vadd.f32 %v285, %v2946
  %v2948 = vpop.f32.mrf.mxu0
  %v2949 = vadd.f32 %v285, %v2948
  %2950 = vmatmul.bf16.gmra.mxu0 %v1142
  %v2951 = vpop.f32.mrf.mxu0
  %v2952 = vadd.f32 %v285, %v2951
  %v2953 = vpop.f32.mrf.mxu0
  %v2954 = vadd.f32 %v285, %v2953
  %2955 = vmatmul.bf16.gmra.mxu0 %v1145
  %v2956 = vpop.f32.mrf.mxu0
  %v2957 = vadd.f32 %v285, %v2956
  %v2958 = vpop.f32.mrf.mxu0
  %v2959 = vadd.f32 %v285, %v2958
  %2960 = vmatmul.bf16.gmra.mxu0 %v1148
  %v2961 = vpop.f32.mrf.mxu0
  %v2962 = vadd.f32 %v285, %v2961
  %v2963 = vpop.f32.mrf.mxu0
  %v2964 = vadd.f32 %v285, %v2963
  %2965 = vmatmul.bf16.gmra.mxu0 %v1151
  %v2966 = vpop.f32.mrf.mxu0
  %v2967 = vadd.f32 %v285, %v2966
  %v2968 = vpop.f32.mrf.mxu0
  %v2969 = vadd.f32 %v285, %v2968
  %2970 = vmatmul.bf16.gmra.mxu0 %v1154
  %v2971 = vpop.f32.mrf.mxu0
  %v2972 = vadd.f32 %v285, %v2971
  %v2973 = vpop.f32.mrf.mxu0
  %v2974 = vadd.f32 %v285, %v2973
  %2975 = vmatmul.bf16.gmra.mxu0 %v1157
  %v2976 = vpop.f32.mrf.mxu0
  %v2977 = vadd.f32 %v285, %v2976
  %v2978 = vpop.f32.mrf.mxu0
  %v2979 = vadd.f32 %v285, %v2978
  %2980 = vmatmul.bf16.gmra.mxu0 %v1160
  %v2981 = vpop.f32.mrf.mxu0
  %v2982 = vadd.f32 %v285, %v2981
  %v2983 = vpop.f32.mrf.mxu0
  %v2984 = vadd.f32 %v285, %v2983
  %2985 = vmatmul.bf16.gmra.mxu0 %v1163
  %v2986 = vpop.f32.mrf.mxu0
  %v2987 = vadd.f32 %v285, %v2986
  %v2988 = vpop.f32.mrf.mxu0
  %v2989 = vadd.f32 %v285, %v2988
  %2990 = vmatmul.bf16.gmra.mxu0 %v1166
  %v2991 = vpop.f32.mrf.mxu0
  %v2992 = vadd.f32 %v285, %v2991
  %v2993 = vpop.f32.mrf.mxu0
  %v2994 = vadd.f32 %v285, %v2993
  %2995 = vmatmul.bf16.gmra.mxu0 %v1169
  %v2996 = vpop.f32.mrf.mxu0
  %v2997 = vadd.f32 %v285, %v2996
  %v2998 = vpop.f32.mrf.mxu0
  %v2999 = vadd.f32 %v285, %v2998
  %3000 = vmatmul.bf16.gmra.mxu0 %v1172
  %v3001 = vpop.f32.mrf.mxu0
  %v3002 = vadd.f32 %v285, %v3001
  %v3003 = vpop.f32.mrf.mxu0
  %v3004 = vadd.f32 %v285, %v3003
  %3005 = vmatmul.bf16.gmra.mxu0 %v1175
  %v3006 = vpop.f32.mrf.mxu0
  %v3007 = vadd.f32 %v285, %v3006
  %v3008 = vpop.f32.mrf.mxu0
  %v3009 = vadd.f32 %v285, %v3008
  %3010 = vmatmul.bf16.gmra.mxu0 %v1178
  %v3011 = vpop.f32.mrf.mxu0
  %v3012 = vadd.f32 %v285, %v3011
  %v3013 = vpop.f32.mrf.mxu0
  %v3014 = vadd.f32 %v285, %v3013
  %3015 = vmatmul.bf16.gmra.mxu0 %v1181
  %v3016 = vpop.f32.mrf.mxu0
  %v3017 = vadd.f32 %v285, %v3016
  %v3018 = vpop.f32.mrf.mxu0
  %v3019 = vadd.f32 %v285, %v3018
  %3020 = vmatmul.bf16.gmra.mxu0 %v1184
  %v3021 = vpop.f32.mrf.mxu0
  %v3022 = vadd.f32 %v285, %v3021
  %v3023 = vpop.f32.mrf.mxu0
  %v3024 = vadd.f32 %v285, %v3023
  %3025 = vmatmul.bf16.gmra.mxu0 %v1187
  %v3026 = vpop.f32.mrf.mxu0
  %v3027 = vadd.f32 %v285, %v3026
  %v3028 = vpop.f32.mrf.mxu0
  %v3029 = vadd.f32 %v285, %v3028
  %3030 = vmatmul.bf16.gmra.mxu0 %v1190
  %v3031 = vpop.f32.mrf.mxu0
  %v3032 = vadd.f32 %v285, %v3031
  %v3033 = vpop.f32.mrf.mxu0
  %v3034 = vadd.f32 %v285, %v3033
  %3035 = vmatmul.bf16.gmra.mxu0 %v1193
  %v3036 = vpop.f32.mrf.mxu0
  %v3037 = vadd.f32 %v285, %v3036
  %v3038 = vpop.f32.mrf.mxu0
  %v3039 = vadd.f32 %v285, %v3038
  %3040 = vmatmul.bf16.gmra.mxu0 %v1196
  %v3041 = vpop.f32.mrf.mxu0
  %v3042 = vadd.f32 %v285, %v3041
  %v3043 = vpop.f32.mrf.mxu0
  %v3044 = vadd.f32 %v285, %v3043
  %3045 = vmatmul.bf16.gmra.mxu0 %v1199
  %v3046 = vpop.f32.mrf.mxu0
  %v3047 = vadd.f32 %v285, %v3046
  %v3048 = vpop.f32.mrf.mxu0
  %v3049 = vadd.f32 %v285, %v3048
  %3050 = vmatmul.bf16.gmra.mxu0 %v1202
  %v3051 = vpop.f32.mrf.mxu0
  %v3052 = vadd.f32 %v285, %v3051
  %v3053 = vpop.f32.mrf.mxu0
  %v3054 = vadd.f32 %v285, %v3053
  %3055 = vmatmul.bf16.gmra.mxu0 %v1205
  %v3056 = vpop.f32.mrf.mxu0
  %v3057 = vadd.f32 %v285, %v3056
  %v3058 = vpop.f32.mrf.mxu0
  %v3059 = vadd.f32 %v285, %v3058
  %3060 = vmatmul.bf16.gmra.mxu0 %v1208
  %v3061 = vpop.f32.mrf.mxu0
  %v3062 = vadd.f32 %v285, %v3061
  %v3063 = vpop.f32.mrf.mxu0
  %v3064 = vadd.f32 %v285, %v3063
  %3065 = vmatmul.bf16.gmra.mxu0 %v1211
  %v3066 = vpop.f32.mrf.mxu0
  %v3067 = vadd.f32 %v285, %v3066
  %v3068 = vpop.f32.mrf.mxu0
  %v3069 = vadd.f32 %v285, %v3068
  %3070 = vmatmul.bf16.gmra.mxu0 %v1214
  %v3071 = vpop.f32.mrf.mxu0
  %v3072 = vadd.f32 %v285, %v3071
  %v3073 = vpop.f32.mrf.mxu0
  %v3074 = vadd.f32 %v285, %v3073
  %3075 = vmatmul.bf16.gmra.mxu0 %v1217
  %v3076 = vpop.f32.mrf.mxu0
  %v3077 = vadd.f32 %v285, %v3076
  %v3078 = vpop.f32.mrf.mxu0
  %v3079 = vadd.f32 %v285, %v3078
  %3080 = vmatmul.bf16.gmra.mxu0 %v1220
  %v3081 = vpop.f32.mrf.mxu0
  %v3082 = vadd.f32 %v285, %v3081
  %v3083 = vpop.f32.mrf.mxu0
  %v3084 = vadd.f32 %v285, %v3083
  %3085 = vmatmul.bf16.gmra.mxu0 %v1223
  %v3086 = vpop.f32.mrf.mxu0
  %v3087 = vadd.f32 %v285, %v3086
  %v3088 = vpop.f32.mrf.mxu0
  %v3089 = vadd.f32 %v285, %v3088
  %3090 = vmatmul.bf16.gmra.mxu0 %v1226
  %v3091 = vpop.f32.mrf.mxu0
  %v3092 = vadd.f32 %v285, %v3091
  %v3093 = vpop.f32.mrf.mxu0
  %v3094 = vadd.f32 %v285, %v3093
  %3095 = vmatmul.bf16.gmra.mxu0 %v1229
  %v3096 = vpop.f32.mrf.mxu0
  %v3097 = vadd.f32 %v285, %v3096
  %v3098 = vpop.f32.mrf.mxu0
  %v3099 = vadd.f32 %v285, %v3098
  %3100 = vmatmul.bf16.gmra.mxu0 %v1232
  %v3101 = vpop.f32.mrf.mxu0
  %v3102 = vadd.f32 %v285, %v3101
  %v3103 = vpop.f32.mrf.mxu0
  %v3104 = vadd.f32 %v285, %v3103
  %3105 = vmatmul.bf16.gmra.mxu0 %v1235
  %v3106 = vpop.f32.mrf.mxu0
  %v3107 = vadd.f32 %v285, %v3106
  %v3108 = vpop.f32.mrf.mxu0
  %v3109 = vadd.f32 %v285, %v3108
  %3110 = vmatmul.bf16.gmra.mxu0 %v1238
  %v3111 = vpop.f32.mrf.mxu0
  %v3112 = vadd.f32 %v285, %v3111
  %v3113 = vpop.f32.mrf.mxu0
  %v3114 = vadd.f32 %v285, %v3113
  %3115 = vmatmul.bf16.gmra.mxu0 %v1241
  %v3116 = vpop.f32.mrf.mxu0
  %v3117 = vadd.f32 %v285, %v3116
  %v3118 = vpop.f32.mrf.mxu0
  %v3119 = vadd.f32 %v285, %v3118
  %3120 = vmatmul.bf16.gmra.mxu0 %v1244
  %v3121 = vpop.f32.mrf.mxu0
  %v3122 = vadd.f32 %v285, %v3121
  %v3123 = vpop.f32.mrf.mxu0
  %v3124 = vadd.f32 %v285, %v3123
  %3125 = vmatmul.bf16.gmra.mxu0 %v1247
  %v3126 = vpop.f32.mrf.mxu0
  %v3127 = vadd.f32 %v285, %v3126
  %v3128 = vpop.f32.mrf.mxu0
  %v3129 = vadd.f32 %v285, %v3128
  %3130 = vmatmul.bf16.gmra.mxu0 %v1250
  %v3131 = vpop.f32.mrf.mxu0
  %v3132 = vadd.f32 %v285, %v3131
  %v3133 = vpop.f32.mrf.mxu0
  %v3134 = vadd.f32 %v285, %v3133
  %3135 = vmatmul.bf16.gmra.mxu0 %v1253
  %v3136 = vpop.f32.mrf.mxu0
  %v3137 = vadd.f32 %v285, %v3136
  %v3138 = vpop.f32.mrf.mxu0
  %v3139 = vadd.f32 %v285, %v3138
  %3140 = vmatmul.bf16.gmra.mxu0 %v1256
  %v3141 = vpop.f32.mrf.mxu0
  %v3142 = vadd.f32 %v285, %v3141
  %v3143 = vpop.f32.mrf.mxu0
  %v3144 = vadd.f32 %v285, %v3143
  %3145 = vmatmul.bf16.gmra.mxu0 %v1259
  %v3146 = vpop.f32.mrf.mxu0
  %v3147 = vadd.f32 %v285, %v3146
  %v3148 = vpop.f32.mrf.mxu0
  %v3149 = vadd.f32 %v285, %v3148
  %3150 = vmatmul.bf16.gmra.mxu0 %v1262
  %v3151 = vpop.f32.mrf.mxu0
  %v3152 = vadd.f32 %v285, %v3151
  %v3153 = vpop.f32.mrf.mxu0
  %v3154 = vadd.f32 %v285, %v3153
  %3155 = vmatmul.bf16.gmra.mxu0 %v1265
  %v3156 = vpop.f32.mrf.mxu0
  %v3157 = vadd.f32 %v285, %v3156
  %v3158 = vpop.f32.mrf.mxu0
  %v3159 = vadd.f32 %v285, %v3158
  %3160 = vmatmul.bf16.gmra.mxu0 %v1268
  %v3161 = vpop.f32.mrf.mxu0
  %v3162 = vadd.f32 %v285, %v3161
  %v3163 = vpop.f32.mrf.mxu0
  %v3164 = vadd.f32 %v285, %v3163
  %3165 = vmatmul.bf16.gmra.mxu0 %v1271
  %v3166 = vpop.f32.mrf.mxu0
  %v3167 = vadd.f32 %v285, %v3166
  %v3168 = vpop.f32.mrf.mxu0
  %v3169 = vadd.f32 %v285, %v3168
  %3170 = vmatmul.bf16.gmra.mxu0 %v1274
  %v3171 = vpop.f32.mrf.mxu0
  %v3172 = vadd.f32 %v285, %v3171
  %v3173 = vpop.f32.mrf.mxu0
  %v3174 = vadd.f32 %v285, %v3173
  %3175 = vmatmul.bf16.gmra.mxu0 %v1277
  %v3176 = vpop.f32.mrf.mxu0
  %v3177 = vadd.f32 %v285, %v3176
  %v3178 = vpop.f32.mrf.mxu0
  %v3179 = vadd.f32 %v285, %v3178
  %3180 = vmatmul.bf16.gmra.mxu0 %v1280
  %v3181 = vpop.f32.mrf.mxu0
  %v3182 = vadd.f32 %v285, %v3181
  %v3183 = vpop.f32.mrf.mxu0
  %v3184 = vadd.f32 %v285, %v3183
  %3185 = vmatmul.bf16.gmra.mxu0 %v1283
  %v3186 = vpop.f32.mrf.mxu0
  %v3187 = vadd.f32 %v285, %v3186
  %v3188 = vpop.f32.mrf.mxu0
  %v3189 = vadd.f32 %v285, %v3188
  %3190 = vmatmul.bf16.gmra.mxu0 %v1286
  %v3191 = vpop.f32.mrf.mxu0
  %v3192 = vadd.f32 %v285, %v3191
  %v3193 = vpop.f32.mrf.mxu0
  %v3194 = vadd.f32 %v285, %v3193
  %3195 = vmatmul.bf16.gmra.mxu0 %v1289
  %v3196 = vpop.f32.mrf.mxu0
  %v3197 = vadd.f32 %v285, %v3196
  %v3198 = vpop.f32.mrf.mxu0
  %v3199 = vadd.f32 %v285, %v3198
  %3200 = vmatmul.bf16.gmra.mxu0 %v1292
  %v3201 = vpop.f32.mrf.mxu0
  %v3202 = vadd.f32 %v285, %v3201
  %v3203 = vpop.f32.mrf.mxu0
  %v3204 = vadd.f32 %v285, %v3203
  %3205 = vmatmul.bf16.gmra.mxu0 %v1295
  %v3206 = vpop.f32.mrf.mxu0
  %v3207 = vadd.f32 %v285, %v3206
  %v3208 = vpop.f32.mrf.mxu0
  %v3209 = vadd.f32 %v285, %v3208
  %3210 = vmatmul.bf16.gmra.mxu0 %v1298
  %v3211 = vpop.f32.mrf.mxu0
  %v3212 = vadd.f32 %v285, %v3211
  %v3213 = vpop.f32.mrf.mxu0
  %v3214 = vadd.f32 %v285, %v3213
  %3215 = vmatmul.bf16.gmra.mxu0 %v1301
  %v3216 = vpop.f32.mrf.mxu0
  %v3217 = vadd.f32 %v285, %v3216
  %v3218 = vpop.f32.mrf.mxu0
  %v3219 = vadd.f32 %v285, %v3218
  %3220 = vmatmul.bf16.gmra.mxu0 %v1304
  %v3221 = vpop.f32.mrf.mxu0
  %v3222 = vadd.f32 %v285, %v3221
  %v3223 = vpop.f32.mrf.mxu0
  %v3224 = vadd.f32 %v285, %v3223
  %3225 = vmatmul.bf16.gmra.mxu0 %v1307
  %v3226 = vpop.f32.mrf.mxu0
  %v3227 = vadd.f32 %v285, %v3226
  %v3228 = vpop.f32.mrf.mxu0
  %v3229 = vadd.f32 %v285, %v3228
  %3230 = vmatmul.bf16.gmra.mxu0 %v1310
  %v3231 = vpop.f32.mrf.mxu0
  %v3232 = vadd.f32 %v285, %v3231
  %v3233 = vpop.f32.mrf.mxu0
  %v3234 = vadd.f32 %v285, %v3233
  %3235 = vmatmul.bf16.gmra.mxu0 %v1313
  %v3236 = vpop.f32.mrf.mxu0
  %v3237 = vadd.f32 %v285, %v3236
  %v3238 = vpop.f32.mrf.mxu0
  %v3239 = vadd.f32 %v285, %v3238
  %3240 = vmatmul.bf16.gmra.mxu0 %v1316
  %v3241 = vpop.f32.mrf.mxu0
  %v3242 = vadd.f32 %v285, %v3241
  %v3243 = vpop.f32.mrf.mxu0
  %v3244 = vadd.f32 %v285, %v3243
  %3245 = vmatmul.bf16.gmra.mxu0 %v1319
  %v3246 = vpop.f32.mrf.mxu0
  %v3247 = vadd.f32 %v285, %v3246
  %v3248 = vpop.f32.mrf.mxu0
  %v3249 = vadd.f32 %v285, %v3248
  %3250 = vmatmul.bf16.gmra.mxu0 %v1322
  %v3251 = vpop.f32.mrf.mxu0
  %v3252 = vadd.f32 %v285, %v3251
  %v3253 = vpop.f32.mrf.mxu0
  %v3254 = vadd.f32 %v285, %v3253
  %3255 = vmatmul.bf16.gmra.mxu0 %v1325
  %v3256 = vpop.f32.mrf.mxu0
  %v3257 = vadd.f32 %v285, %v3256
  %v3258 = vpop.f32.mrf.mxu0
  %v3259 = vadd.f32 %v285, %v3258
  %3260 = vmatmul.bf16.gmra.mxu0 %v1328
  %v3261 = vpop.f32.mrf.mxu0
  %v3262 = vadd.f32 %v285, %v3261
  %v3263 = vpop.f32.mrf.mxu0
  %v3264 = vadd.f32 %v285, %v3263
  %3265 = vmatmul.bf16.gmra.mxu0 %v1331
  %v3266 = vpop.f32.mrf.mxu0
  %v3267 = vadd.f32 %v285, %v3266
  %v3268 = vpop.f32.mrf.mxu0
  %v3269 = vadd.f32 %v285, %v3268
  %3270 = vmatmul.bf16.gmra.mxu0 %v1334
  %v3271 = vpop.f32.mrf.mxu0
  %v3272 = vadd.f32 %v285, %v3271
  %v3273 = vpop.f32.mrf.mxu0
  %v3274 = vadd.f32 %v285, %v3273
  %3275 = vmatmul.bf16.gmra.mxu0 %v1337
  %v3276 = vpop.f32.mrf.mxu0
  %v3277 = vadd.f32 %v285, %v3276
  %v3278 = vpop.f32.mrf.mxu0
  %v3279 = vadd.f32 %v285, %v3278
  %3280 = vmatmul.bf16.gmra.mxu0 %v1340
  %v3281 = vpop.f32.mrf.mxu0
  %v3282 = vadd.f32 %v285, %v3281
  %v3283 = vpop.f32.mrf.mxu0
  %v3284 = vadd.f32 %v285, %v3283
  %3285 = vmatmul.bf16.gmra.mxu0 %v1343
  %v3286 = vpop.f32.mrf.mxu0
  %v3287 = vadd.f32 %v285, %v3286
  %v3288 = vpop.f32.mrf.mxu0
  %v3289 = vadd.f32 %v285, %v3288
  %3290 = vmatmul.bf16.gmra.mxu0 %v1346
  %v3291 = vpop.f32.mrf.mxu0
  %v3292 = vadd.f32 %v285, %v3291
  %v3293 = vpop.f32.mrf.mxu0
  %v3294 = vadd.f32 %v285, %v3293
  %3295 = vmatmul.bf16.gmra.mxu0 %v1349
  %v3296 = vpop.f32.mrf.mxu0
  %v3297 = vadd.f32 %v285, %v3296
  %v3298 = vpop.f32.mrf.mxu0
  %v3299 = vadd.f32 %v285, %v3298
  %3300 = vmatmul.bf16.gmra.mxu0 %v1352
  %v3301 = vpop.f32.mrf.mxu0
  %v3302 = vadd.f32 %v285, %v3301
  %v3303 = vpop.f32.mrf.mxu0
  %v3304 = vadd.f32 %v285, %v3303
  %3305 = vmatmul.bf16.gmra.mxu0 %v1355
  %v3306 = vpop.f32.mrf.mxu0
  %v3307 = vadd.f32 %v285, %v3306
  %v3308 = vpop.f32.mrf.mxu0
  %v3309 = vadd.f32 %v285, %v3308
  %3310 = vmatmul.bf16.gmra.mxu0 %v1358
  %v3311 = vpop.f32.mrf.mxu0
  %v3312 = vadd.f32 %v285, %v3311
  %v3313 = vpop.f32.mrf.mxu0
  %v3314 = vadd.f32 %v285, %v3313
  %3315 = vmatmul.bf16.gmra.mxu0 %v1361
  %v3316 = vpop.f32.mrf.mxu0
  %v3317 = vadd.f32 %v285, %v3316
  %v3318 = vpop.f32.mrf.mxu0
  %v3319 = vadd.f32 %v285, %v3318
  %3320 = vmatmul.bf16.gmra.mxu0 %v1364
  %v3321 = vpop.f32.mrf.mxu0
  %v3322 = vadd.f32 %v285, %v3321
  %v3323 = vpop.f32.mrf.mxu0
  %v3324 = vadd.f32 %v285, %v3323
  %3325 = vdwg.mxu0
  %3326 = vmatpush.bf16.msra.mxu0 0
  %3327 = vmatpush.bf16.msra.mxu0 0
  %3328 = vmatpush.bf16.msra.mxu0 0
  %3329 = vmatpush.bf16.msra.mxu0 0
  %3330 = vmatpush.bf16.msra.mxu0 0
  %3331 = vmatpush.bf16.msra.mxu0 %v1377
  %3332 = vmatpush.bf16.msra.mxu0 %v968
  %3333 = vmatpush.bf16.msra.mxu0 %v964
  %3334 = vmatmul.bf16.gmra.mxu0 %v983
  %v3335 = vpop.f32.mrf.mxu0
  %v3336 = vadd.f32 %v286, %v3335
  %v3337 = vpop.f32.mrf.mxu0
  %v3338 = vadd.f32 %v286, %v3337
  %3339 = vmatmul.bf16.gmra.mxu0 %v986
  %v3340 = vpop.f32.mrf.mxu0
  %v3341 = vadd.f32 %v286, %v3340
  %v3342 = vpop.f32.mrf.mxu0
  %v3343 = vadd.f32 %v286, %v3342
  %3344 = vmatmul.bf16.gmra.mxu0 %v989
  %v3345 = vpop.f32.mrf.mxu0
  %v3346 = vadd.f32 %v286, %v3345
  %v3347 = vpop.f32.mrf.mxu0
  %v3348 = vadd.f32 %v286, %v3347
  %3349 = vmatmul.bf16.gmra.mxu0 %v992
  %v3350 = vpop.f32.mrf.mxu0
  %v3351 = vadd.f32 %v286, %v3350
  %v3352 = vpop.f32.mrf.mxu0
  %v3353 = vadd.f32 %v286, %v3352
  %3354 = vmatmul.bf16.gmra.mxu0 %v995
  %v3355 = vpop.f32.mrf.mxu0
  %v3356 = vadd.f32 %v286, %v3355
  %v3357 = vpop.f32.mrf.mxu0
  %v3358 = vadd.f32 %v286, %v3357
  %3359 = vmatmul.bf16.gmra.mxu0 %v998
  %v3360 = vpop.f32.mrf.mxu0
  %v3361 = vadd.f32 %v286, %v3360
  %v3362 = vpop.f32.mrf.mxu0
  %v3363 = vadd.f32 %v286, %v3362
  %3364 = vmatmul.bf16.gmra.mxu0 %v1001
  %v3365 = vpop.f32.mrf.mxu0
  %v3366 = vadd.f32 %v286, %v3365
  %v3367 = vpop.f32.mrf.mxu0
  %v3368 = vadd.f32 %v286, %v3367
  %3369 = vmatmul.bf16.gmra.mxu0 %v1004
  %v3370 = vpop.f32.mrf.mxu0
  %v3371 = vadd.f32 %v286, %v3370
  %v3372 = vpop.f32.mrf.mxu0
  %v3373 = vadd.f32 %v286, %v3372
  %3374 = vmatmul.bf16.gmra.mxu0 %v1007
  %v3375 = vpop.f32.mrf.mxu0
  %v3376 = vadd.f32 %v286, %v3375
  %v3377 = vpop.f32.mrf.mxu0
  %v3378 = vadd.f32 %v286, %v3377
  %3379 = vmatmul.bf16.gmra.mxu0 %v1010
  %v3380 = vpop.f32.mrf.mxu0
  %v3381 = vadd.f32 %v286, %v3380
  %v3382 = vpop.f32.mrf.mxu0
  %v3383 = vadd.f32 %v286, %v3382
  %3384 = vmatmul.bf16.gmra.mxu0 %v1013
  %v3385 = vpop.f32.mrf.mxu0
  %v3386 = vadd.f32 %v286, %v3385
  %v3387 = vpop.f32.mrf.mxu0
  %v3388 = vadd.f32 %v286, %v3387
  %3389 = vmatmul.bf16.gmra.mxu0 %v1016
  %v3390 = vpop.f32.mrf.mxu0
  %v3391 = vadd.f32 %v286, %v3390
  %v3392 = vpop.f32.mrf.mxu0
  %v3393 = vadd.f32 %v286, %v3392
  %3394 = vmatmul.bf16.gmra.mxu0 %v1019
  %v3395 = vpop.f32.mrf.mxu0
  %v3396 = vadd.f32 %v286, %v3395
  %v3397 = vpop.f32.mrf.mxu0
  %v3398 = vadd.f32 %v286, %v3397
  %3399 = vmatmul.bf16.gmra.mxu0 %v1022
  %v3400 = vpop.f32.mrf.mxu0
  %v3401 = vadd.f32 %v286, %v3400
  %v3402 = vpop.f32.mrf.mxu0
  %v3403 = vadd.f32 %v286, %v3402
  %3404 = vmatmul.bf16.gmra.mxu0 %v1025
  %v3405 = vpop.f32.mrf.mxu0
  %v3406 = vadd.f32 %v286, %v3405
  %v3407 = vpop.f32.mrf.mxu0
  %v3408 = vadd.f32 %v286, %v3407
  %3409 = vmatmul.bf16.gmra.mxu0 %v1028
  %v3410 = vpop.f32.mrf.mxu0
  %v3411 = vadd.f32 %v286, %v3410
  %v3412 = vpop.f32.mrf.mxu0
  %v3413 = vadd.f32 %v286, %v3412
  %3414 = vmatmul.bf16.gmra.mxu0 %v1031
  %v3415 = vpop.f32.mrf.mxu0
  %v3416 = vadd.f32 %v286, %v3415
  %v3417 = vpop.f32.mrf.mxu0
  %v3418 = vadd.f32 %v286, %v3417
  %3419 = vmatmul.bf16.gmra.mxu0 %v1034
  %v3420 = vpop.f32.mrf.mxu0
  %v3421 = vadd.f32 %v286, %v3420
  %v3422 = vpop.f32.mrf.mxu0
  %v3423 = vadd.f32 %v286, %v3422
  %3424 = vmatmul.bf16.gmra.mxu0 %v1037
  %v3425 = vpop.f32.mrf.mxu0
  %v3426 = vadd.f32 %v286, %v3425
  %v3427 = vpop.f32.mrf.mxu0
  %v3428 = vadd.f32 %v286, %v3427
  %3429 = vmatmul.bf16.gmra.mxu0 %v1040
  %v3430 = vpop.f32.mrf.mxu0
  %v3431 = vadd.f32 %v286, %v3430
  %v3432 = vpop.f32.mrf.mxu0
  %v3433 = vadd.f32 %v286, %v3432
  %3434 = vmatmul.bf16.gmra.mxu0 %v1043
  %v3435 = vpop.f32.mrf.mxu0
  %v3436 = vadd.f32 %v286, %v3435
  %v3437 = vpop.f32.mrf.mxu0
  %v3438 = vadd.f32 %v286, %v3437
  %3439 = vmatmul.bf16.gmra.mxu0 %v1046
  %v3440 = vpop.f32.mrf.mxu0
  %v3441 = vadd.f32 %v286, %v3440
  %v3442 = vpop.f32.mrf.mxu0
  %v3443 = vadd.f32 %v286, %v3442
  %3444 = vmatmul.bf16.gmra.mxu0 %v1049
  %v3445 = vpop.f32.mrf.mxu0
  %v3446 = vadd.f32 %v286, %v3445
  %v3447 = vpop.f32.mrf.mxu0
  %v3448 = vadd.f32 %v286, %v3447
  %3449 = vmatmul.bf16.gmra.mxu0 %v1052
  %v3450 = vpop.f32.mrf.mxu0
  %v3451 = vadd.f32 %v286, %v3450
  %v3452 = vpop.f32.mrf.mxu0
  %v3453 = vadd.f32 %v286, %v3452
  %3454 = vmatmul.bf16.gmra.mxu0 %v1055
  %v3455 = vpop.f32.mrf.mxu0
  %v3456 = vadd.f32 %v286, %v3455
  %v3457 = vpop.f32.mrf.mxu0
  %v3458 = vadd.f32 %v286, %v3457
  %3459 = vmatmul.bf16.gmra.mxu0 %v1058
  %v3460 = vpop.f32.mrf.mxu0
  %v3461 = vadd.f32 %v286, %v3460
  %v3462 = vpop.f32.mrf.mxu0
  %v3463 = vadd.f32 %v286, %v3462
  %3464 = vmatmul.bf16.gmra.mxu0 %v1061
  %v3465 = vpop.f32.mrf.mxu0
  %v3466 = vadd.f32 %v286, %v3465
  %v3467 = vpop.f32.mrf.mxu0
  %v3468 = vadd.f32 %v286, %v3467
  %3469 = vmatmul.bf16.gmra.mxu0 %v1064
  %v3470 = vpop.f32.mrf.mxu0
  %v3471 = vadd.f32 %v286, %v3470
  %v3472 = vpop.f32.mrf.mxu0
  %v3473 = vadd.f32 %v286, %v3472
  %3474 = vmatmul.bf16.gmra.mxu0 %v1067
  %v3475 = vpop.f32.mrf.mxu0
  %v3476 = vadd.f32 %v286, %v3475
  %v3477 = vpop.f32.mrf.mxu0
  %v3478 = vadd.f32 %v286, %v3477
  %3479 = vmatmul.bf16.gmra.mxu0 %v1070
  %v3480 = vpop.f32.mrf.mxu0
  %v3481 = vadd.f32 %v286, %v3480
  %v3482 = vpop.f32.mrf.mxu0
  %v3483 = vadd.f32 %v286, %v3482
  %3484 = vmatmul.bf16.gmra.mxu0 %v1073
  %v3485 = vpop.f32.mrf.mxu0
  %v3486 = vadd.f32 %v286, %v3485
  %v3487 = vpop.f32.mrf.mxu0
  %v3488 = vadd.f32 %v286, %v3487
  %3489 = vmatmul.bf16.gmra.mxu0 %v1076
  %v3490 = vpop.f32.mrf.mxu0
  %v3491 = vadd.f32 %v286, %v3490
  %v3492 = vpop.f32.mrf.mxu0
  %v3493 = vadd.f32 %v286, %v3492
  %3494 = vmatmul.bf16.gmra.mxu0 %v1079
  %v3495 = vpop.f32.mrf.mxu0
  %v3496 = vadd.f32 %v286, %v3495
  %v3497 = vpop.f32.mrf.mxu0
  %v3498 = vadd.f32 %v286, %v3497
  %3499 = vmatmul.bf16.gmra.mxu0 %v1082
  %v3500 = vpop.f32.mrf.mxu0
  %v3501 = vadd.f32 %v286, %v3500
  %v3502 = vpop.f32.mrf.mxu0
  %v3503 = vadd.f32 %v286, %v3502
  %3504 = vmatmul.bf16.gmra.mxu0 %v1085
  %v3505 = vpop.f32.mrf.mxu0
  %v3506 = vadd.f32 %v286, %v3505
  %v3507 = vpop.f32.mrf.mxu0
  %v3508 = vadd.f32 %v286, %v3507
  %3509 = vmatmul.bf16.gmra.mxu0 %v1088
  %v3510 = vpop.f32.mrf.mxu0
  %v3511 = vadd.f32 %v286, %v3510
  %v3512 = vpop.f32.mrf.mxu0
  %v3513 = vadd.f32 %v286, %v3512
  %3514 = vmatmul.bf16.gmra.mxu0 %v1091
  %v3515 = vpop.f32.mrf.mxu0
  %v3516 = vadd.f32 %v286, %v3515
  %v3517 = vpop.f32.mrf.mxu0
  %v3518 = vadd.f32 %v286, %v3517
  %3519 = vmatmul.bf16.gmra.mxu0 %v1094
  %v3520 = vpop.f32.mrf.mxu0
  %v3521 = vadd.f32 %v286, %v3520
  %v3522 = vpop.f32.mrf.mxu0
  %v3523 = vadd.f32 %v286, %v3522
  %3524 = vmatmul.bf16.gmra.mxu0 %v1097
  %v3525 = vpop.f32.mrf.mxu0
  %v3526 = vadd.f32 %v286, %v3525
  %v3527 = vpop.f32.mrf.mxu0
  %v3528 = vadd.f32 %v286, %v3527
  %3529 = vmatmul.bf16.gmra.mxu0 %v1100
  %v3530 = vpop.f32.mrf.mxu0
  %v3531 = vadd.f32 %v286, %v3530
  %v3532 = vpop.f32.mrf.mxu0
  %v3533 = vadd.f32 %v286, %v3532
  %3534 = vmatmul.bf16.gmra.mxu0 %v1103
  %v3535 = vpop.f32.mrf.mxu0
  %v3536 = vadd.f32 %v286, %v3535
  %v3537 = vpop.f32.mrf.mxu0
  %v3538 = vadd.f32 %v286, %v3537
  %3539 = vmatmul.bf16.gmra.mxu0 %v1106
  %v3540 = vpop.f32.mrf.mxu0
  %v3541 = vadd.f32 %v286, %v3540
  %v3542 = vpop.f32.mrf.mxu0
  %v3543 = vadd.f32 %v286, %v3542
  %3544 = vmatmul.bf16.gmra.mxu0 %v1109
  %v3545 = vpop.f32.mrf.mxu0
  %v3546 = vadd.f32 %v286, %v3545
  %v3547 = vpop.f32.mrf.mxu0
  %v3548 = vadd.f32 %v286, %v3547
  %3549 = vmatmul.bf16.gmra.mxu0 %v1112
  %v3550 = vpop.f32.mrf.mxu0
  %v3551 = vadd.f32 %v286, %v3550
  %v3552 = vpop.f32.mrf.mxu0
  %v3553 = vadd.f32 %v286, %v3552
  %3554 = vmatmul.bf16.gmra.mxu0 %v1115
  %v3555 = vpop.f32.mrf.mxu0
  %v3556 = vadd.f32 %v286, %v3555
  %v3557 = vpop.f32.mrf.mxu0
  %v3558 = vadd.f32 %v286, %v3557
  %3559 = vmatmul.bf16.gmra.mxu0 %v1118
  %v3560 = vpop.f32.mrf.mxu0
  %v3561 = vadd.f32 %v286, %v3560
  %v3562 = vpop.f32.mrf.mxu0
  %v3563 = vadd.f32 %v286, %v3562
  %3564 = vmatmul.bf16.gmra.mxu0 %v1121
  %v3565 = vpop.f32.mrf.mxu0
  %v3566 = vadd.f32 %v286, %v3565
  %v3567 = vpop.f32.mrf.mxu0
  %v3568 = vadd.f32 %v286, %v3567
  %3569 = vmatmul.bf16.gmra.mxu0 %v1124
  %v3570 = vpop.f32.mrf.mxu0
  %v3571 = vadd.f32 %v286, %v3570
  %v3572 = vpop.f32.mrf.mxu0
  %v3573 = vadd.f32 %v286, %v3572
  %3574 = vmatmul.bf16.gmra.mxu0 %v1127
  %v3575 = vpop.f32.mrf.mxu0
  %v3576 = vadd.f32 %v286, %v3575
  %v3577 = vpop.f32.mrf.mxu0
  %v3578 = vadd.f32 %v286, %v3577
  %3579 = vmatmul.bf16.gmra.mxu0 %v1130
  %v3580 = vpop.f32.mrf.mxu0
  %v3581 = vadd.f32 %v286, %v3580
  %v3582 = vpop.f32.mrf.mxu0
  %v3583 = vadd.f32 %v286, %v3582
  %3584 = vmatmul.bf16.gmra.mxu0 %v1133
  %v3585 = vpop.f32.mrf.mxu0
  %v3586 = vadd.f32 %v286, %v3585
  %v3587 = vpop.f32.mrf.mxu0
  %v3588 = vadd.f32 %v286, %v3587
  %3589 = vmatmul.bf16.gmra.mxu0 %v1136
  %v3590 = vpop.f32.mrf.mxu0
  %v3591 = vadd.f32 %v286, %v3590
  %v3592 = vpop.f32.mrf.mxu0
  %v3593 = vadd.f32 %v286, %v3592
  %3594 = vmatmul.bf16.gmra.mxu0 %v1139
  %v3595 = vpop.f32.mrf.mxu0
  %v3596 = vadd.f32 %v286, %v3595
  %v3597 = vpop.f32.mrf.mxu0
  %v3598 = vadd.f32 %v286, %v3597
  %3599 = vmatmul.bf16.gmra.mxu0 %v1142
  %v3600 = vpop.f32.mrf.mxu0
  %v3601 = vadd.f32 %v286, %v3600
  %v3602 = vpop.f32.mrf.mxu0
  %v3603 = vadd.f32 %v286, %v3602
  %3604 = vmatmul.bf16.gmra.mxu0 %v1145
  %v3605 = vpop.f32.mrf.mxu0
  %v3606 = vadd.f32 %v286, %v3605
  %v3607 = vpop.f32.mrf.mxu0
  %v3608 = vadd.f32 %v286, %v3607
  %3609 = vmatmul.bf16.gmra.mxu0 %v1148
  %v3610 = vpop.f32.mrf.mxu0
  %v3611 = vadd.f32 %v286, %v3610
  %v3612 = vpop.f32.mrf.mxu0
  %v3613 = vadd.f32 %v286, %v3612
  %3614 = vmatmul.bf16.gmra.mxu0 %v1151
  %v3615 = vpop.f32.mrf.mxu0
  %v3616 = vadd.f32 %v286, %v3615
  %v3617 = vpop.f32.mrf.mxu0
  %v3618 = vadd.f32 %v286, %v3617
  %3619 = vmatmul.bf16.gmra.mxu0 %v1154
  %v3620 = vpop.f32.mrf.mxu0
  %v3621 = vadd.f32 %v286, %v3620
  %v3622 = vpop.f32.mrf.mxu0
  %v3623 = vadd.f32 %v286, %v3622
  %3624 = vmatmul.bf16.gmra.mxu0 %v1157
  %v3625 = vpop.f32.mrf.mxu0
  %v3626 = vadd.f32 %v286, %v3625
  %v3627 = vpop.f32.mrf.mxu0
  %v3628 = vadd.f32 %v286, %v3627
  %3629 = vmatmul.bf16.gmra.mxu0 %v1160
  %v3630 = vpop.f32.mrf.mxu0
  %v3631 = vadd.f32 %v286, %v3630
  %v3632 = vpop.f32.mrf.mxu0
  %v3633 = vadd.f32 %v286, %v3632
  %3634 = vmatmul.bf16.gmra.mxu0 %v1163
  %v3635 = vpop.f32.mrf.mxu0
  %v3636 = vadd.f32 %v286, %v3635
  %v3637 = vpop.f32.mrf.mxu0
  %v3638 = vadd.f32 %v286, %v3637
  %3639 = vmatmul.bf16.gmra.mxu0 %v1166
  %v3640 = vpop.f32.mrf.mxu0
  %v3641 = vadd.f32 %v286, %v3640
  %v3642 = vpop.f32.mrf.mxu0
  %v3643 = vadd.f32 %v286, %v3642
  %3644 = vmatmul.bf16.gmra.mxu0 %v1169
  %v3645 = vpop.f32.mrf.mxu0
  %v3646 = vadd.f32 %v286, %v3645
  %v3647 = vpop.f32.mrf.mxu0
  %v3648 = vadd.f32 %v286, %v3647
  %3649 = vmatmul.bf16.gmra.mxu0 %v1172
  %v3650 = vpop.f32.mrf.mxu0
  %v3651 = vadd.f32 %v286, %v3650
  %v3652 = vpop.f32.mrf.mxu0
  %v3653 = vadd.f32 %v286, %v3652
  %3654 = vmatmul.bf16.gmra.mxu0 %v1175
  %v3655 = vpop.f32.mrf.mxu0
  %v3656 = vadd.f32 %v286, %v3655
  %v3657 = vpop.f32.mrf.mxu0
  %v3658 = vadd.f32 %v286, %v3657
  %3659 = vmatmul.bf16.gmra.mxu0 %v1178
  %v3660 = vpop.f32.mrf.mxu0
  %v3661 = vadd.f32 %v286, %v3660
  %v3662 = vpop.f32.mrf.mxu0
  %v3663 = vadd.f32 %v286, %v3662
  %3664 = vmatmul.bf16.gmra.mxu0 %v1181
  %v3665 = vpop.f32.mrf.mxu0
  %v3666 = vadd.f32 %v286, %v3665
  %v3667 = vpop.f32.mrf.mxu0
  %v3668 = vadd.f32 %v286, %v3667
  %3669 = vmatmul.bf16.gmra.mxu0 %v1184
  %v3670 = vpop.f32.mrf.mxu0
  %v3671 = vadd.f32 %v286, %v3670
  %v3672 = vpop.f32.mrf.mxu0
  %v3673 = vadd.f32 %v286, %v3672
  %3674 = vmatmul.bf16.gmra.mxu0 %v1187
  %v3675 = vpop.f32.mrf.mxu0
  %v3676 = vadd.f32 %v286, %v3675
  %v3677 = vpop.f32.mrf.mxu0
  %v3678 = vadd.f32 %v286, %v3677
  %3679 = vmatmul.bf16.gmra.mxu0 %v1190
  %v3680 = vpop.f32.mrf.mxu0
  %v3681 = vadd.f32 %v286, %v3680
  %v3682 = vpop.f32.mrf.mxu0
  %v3683 = vadd.f32 %v286, %v3682
  %3684 = vmatmul.bf16.gmra.mxu0 %v1193
  %v3685 = vpop.f32.mrf.mxu0
  %v3686 = vadd.f32 %v286, %v3685
  %v3687 = vpop.f32.mrf.mxu0
  %v3688 = vadd.f32 %v286, %v3687
  %3689 = vmatmul.bf16.gmra.mxu0 %v1196
  %v3690 = vpop.f32.mrf.mxu0
  %v3691 = vadd.f32 %v286, %v3690
  %v3692 = vpop.f32.mrf.mxu0
  %v3693 = vadd.f32 %v286, %v3692
  %3694 = vmatmul.bf16.gmra.mxu0 %v1199
  %v3695 = vpop.f32.mrf.mxu0
  %v3696 = vadd.f32 %v286, %v3695
  %v3697 = vpop.f32.mrf.mxu0
  %v3698 = vadd.f32 %v286, %v3697
  %3699 = vmatmul.bf16.gmra.mxu0 %v1202
  %v3700 = vpop.f32.mrf.mxu0
  %v3701 = vadd.f32 %v286, %v3700
  %v3702 = vpop.f32.mrf.mxu0
  %v3703 = vadd.f32 %v286, %v3702
  %3704 = vmatmul.bf16.gmra.mxu0 %v1205
  %v3705 = vpop.f32.mrf.mxu0
  %v3706 = vadd.f32 %v286, %v3705
  %v3707 = vpop.f32.mrf.mxu0
  %v3708 = vadd.f32 %v286, %v3707
  %3709 = vmatmul.bf16.gmra.mxu0 %v1208
  %v3710 = vpop.f32.mrf.mxu0
  %v3711 = vadd.f32 %v286, %v3710
  %v3712 = vpop.f32.mrf.mxu0
  %v3713 = vadd.f32 %v286, %v3712
  %3714 = vmatmul.bf16.gmra.mxu0 %v1211
  %v3715 = vpop.f32.mrf.mxu0
  %v3716 = vadd.f32 %v286, %v3715
  %v3717 = vpop.f32.mrf.mxu0
  %v3718 = vadd.f32 %v286, %v3717
  %3719 = vmatmul.bf16.gmra.mxu0 %v1214
  %v3720 = vpop.f32.mrf.mxu0
  %v3721 = vadd.f32 %v286, %v3720
  %v3722 = vpop.f32.mrf.mxu0
  %v3723 = vadd.f32 %v286, %v3722
  %3724 = vmatmul.bf16.gmra.mxu0 %v1217
  %v3725 = vpop.f32.mrf.mxu0
  %v3726 = vadd.f32 %v286, %v3725
  %v3727 = vpop.f32.mrf.mxu0
  %v3728 = vadd.f32 %v286, %v3727
  %3729 = vmatmul.bf16.gmra.mxu0 %v1220
  %v3730 = vpop.f32.mrf.mxu0
  %v3731 = vadd.f32 %v286, %v3730
  %v3732 = vpop.f32.mrf.mxu0
  %v3733 = vadd.f32 %v286, %v3732
  %3734 = vmatmul.bf16.gmra.mxu0 %v1223
  %v3735 = vpop.f32.mrf.mxu0
  %v3736 = vadd.f32 %v286, %v3735
  %v3737 = vpop.f32.mrf.mxu0
  %v3738 = vadd.f32 %v286, %v3737
  %3739 = vmatmul.bf16.gmra.mxu0 %v1226
  %v3740 = vpop.f32.mrf.mxu0
  %v3741 = vadd.f32 %v286, %v3740
  %v3742 = vpop.f32.mrf.mxu0
  %v3743 = vadd.f32 %v286, %v3742
  %3744 = vmatmul.bf16.gmra.mxu0 %v1229
  %v3745 = vpop.f32.mrf.mxu0
  %v3746 = vadd.f32 %v286, %v3745
  %v3747 = vpop.f32.mrf.mxu0
  %v3748 = vadd.f32 %v286, %v3747
  %3749 = vmatmul.bf16.gmra.mxu0 %v1232
  %v3750 = vpop.f32.mrf.mxu0
  %v3751 = vadd.f32 %v286, %v3750
  %v3752 = vpop.f32.mrf.mxu0
  %v3753 = vadd.f32 %v286, %v3752
  %3754 = vmatmul.bf16.gmra.mxu0 %v1235
  %v3755 = vpop.f32.mrf.mxu0
  %v3756 = vadd.f32 %v286, %v3755
  %v3757 = vpop.f32.mrf.mxu0
  %v3758 = vadd.f32 %v286, %v3757
  %3759 = vmatmul.bf16.gmra.mxu0 %v1238
  %v3760 = vpop.f32.mrf.mxu0
  %v3761 = vadd.f32 %v286, %v3760
  %v3762 = vpop.f32.mrf.mxu0
  %v3763 = vadd.f32 %v286, %v3762
  %3764 = vmatmul.bf16.gmra.mxu0 %v1241
  %v3765 = vpop.f32.mrf.mxu0
  %v3766 = vadd.f32 %v286, %v3765
  %v3767 = vpop.f32.mrf.mxu0
  %v3768 = vadd.f32 %v286, %v3767
  %3769 = vmatmul.bf16.gmra.mxu0 %v1244
  %v3770 = vpop.f32.mrf.mxu0
  %v3771 = vadd.f32 %v286, %v3770
  %v3772 = vpop.f32.mrf.mxu0
  %v3773 = vadd.f32 %v286, %v3772
  %3774 = vmatmul.bf16.gmra.mxu0 %v1247
  %v3775 = vpop.f32.mrf.mxu0
  %v3776 = vadd.f32 %v286, %v3775
  %v3777 = vpop.f32.mrf.mxu0
  %v3778 = vadd.f32 %v286, %v3777
  %3779 = vmatmul.bf16.gmra.mxu0 %v1250
  %v3780 = vpop.f32.mrf.mxu0
  %v3781 = vadd.f32 %v286, %v3780
  %v3782 = vpop.f32.mrf.mxu0
  %v3783 = vadd.f32 %v286, %v3782
  %3784 = vmatmul.bf16.gmra.mxu0 %v1253
  %v3785 = vpop.f32.mrf.mxu0
  %v3786 = vadd.f32 %v286, %v3785
  %v3787 = vpop.f32.mrf.mxu0
  %v3788 = vadd.f32 %v286, %v3787
  %3789 = vmatmul.bf16.gmra.mxu0 %v1256
  %v3790 = vpop.f32.mrf.mxu0
  %v3791 = vadd.f32 %v286, %v3790
  %v3792 = vpop.f32.mrf.mxu0
  %v3793 = vadd.f32 %v286, %v3792
  %3794 = vmatmul.bf16.gmra.mxu0 %v1259
  %v3795 = vpop.f32.mrf.mxu0
  %v3796 = vadd.f32 %v286, %v3795
  %v3797 = vpop.f32.mrf.mxu0
  %v3798 = vadd.f32 %v286, %v3797
  %3799 = vmatmul.bf16.gmra.mxu0 %v1262
  %v3800 = vpop.f32.mrf.mxu0
  %v3801 = vadd.f32 %v286, %v3800
  %v3802 = vpop.f32.mrf.mxu0
  %v3803 = vadd.f32 %v286, %v3802
  %3804 = vmatmul.bf16.gmra.mxu0 %v1265
  %v3805 = vpop.f32.mrf.mxu0
  %v3806 = vadd.f32 %v286, %v3805
  %v3807 = vpop.f32.mrf.mxu0
  %v3808 = vadd.f32 %v286, %v3807
  %3809 = vmatmul.bf16.gmra.mxu0 %v1268
  %v3810 = vpop.f32.mrf.mxu0
  %v3811 = vadd.f32 %v286, %v3810
  %v3812 = vpop.f32.mrf.mxu0
  %v3813 = vadd.f32 %v286, %v3812
  %3814 = vmatmul.bf16.gmra.mxu0 %v1271
  %v3815 = vpop.f32.mrf.mxu0
  %v3816 = vadd.f32 %v286, %v3815
  %v3817 = vpop.f32.mrf.mxu0
  %v3818 = vadd.f32 %v286, %v3817
  %3819 = vmatmul.bf16.gmra.mxu0 %v1274
  %v3820 = vpop.f32.mrf.mxu0
  %v3821 = vadd.f32 %v286, %v3820
  %v3822 = vpop.f32.mrf.mxu0
  %v3823 = vadd.f32 %v286, %v3822
  %3824 = vmatmul.bf16.gmra.mxu0 %v1277
  %v3825 = vpop.f32.mrf.mxu0
  %v3826 = vadd.f32 %v286, %v3825
  %v3827 = vpop.f32.mrf.mxu0
  %v3828 = vadd.f32 %v286, %v3827
  %3829 = vmatmul.bf16.gmra.mxu0 %v1280
  %v3830 = vpop.f32.mrf.mxu0
  %v3831 = vadd.f32 %v286, %v3830
  %v3832 = vpop.f32.mrf.mxu0
  %v3833 = vadd.f32 %v286, %v3832
  %3834 = vmatmul.bf16.gmra.mxu0 %v1283
  %v3835 = vpop.f32.mrf.mxu0
  %v3836 = vadd.f32 %v286, %v3835
  %v3837 = vpop.f32.mrf.mxu0
  %v3838 = vadd.f32 %v286, %v3837
  %3839 = vmatmul.bf16.gmra.mxu0 %v1286
  %v3840 = vpop.f32.mrf.mxu0
  %v3841 = vadd.f32 %v286, %v3840
  %v3842 = vpop.f32.mrf.mxu0
  %v3843 = vadd.f32 %v286, %v3842
  %3844 = vmatmul.bf16.gmra.mxu0 %v1289
  %v3845 = vpop.f32.mrf.mxu0
  %v3846 = vadd.f32 %v286, %v3845
  %v3847 = vpop.f32.mrf.mxu0
  %v3848 = vadd.f32 %v286, %v3847
  %3849 = vmatmul.bf16.gmra.mxu0 %v1292
  %v3850 = vpop.f32.mrf.mxu0
  %v3851 = vadd.f32 %v286, %v3850
  %v3852 = vpop.f32.mrf.mxu0
  %v3853 = vadd.f32 %v286, %v3852
  %3854 = vmatmul.bf16.gmra.mxu0 %v1295
  %v3855 = vpop.f32.mrf.mxu0
  %v3856 = vadd.f32 %v286, %v3855
  %v3857 = vpop.f32.mrf.mxu0
  %v3858 = vadd.f32 %v286, %v3857
  %3859 = vmatmul.bf16.gmra.mxu0 %v1298
  %v3860 = vpop.f32.mrf.mxu0
  %v3861 = vadd.f32 %v286, %v3860
  %v3862 = vpop.f32.mrf.mxu0
  %v3863 = vadd.f32 %v286, %v3862
  %3864 = vmatmul.bf16.gmra.mxu0 %v1301
  %v3865 = vpop.f32.mrf.mxu0
  %v3866 = vadd.f32 %v286, %v3865
  %v3867 = vpop.f32.mrf.mxu0
  %v3868 = vadd.f32 %v286, %v3867
  %3869 = vmatmul.bf16.gmra.mxu0 %v1304
  %v3870 = vpop.f32.mrf.mxu0
  %v3871 = vadd.f32 %v286, %v3870
  %v3872 = vpop.f32.mrf.mxu0
  %v3873 = vadd.f32 %v286, %v3872
  %3874 = vmatmul.bf16.gmra.mxu0 %v1307
  %v3875 = vpop.f32.mrf.mxu0
  %v3876 = vadd.f32 %v286, %v3875
  %v3877 = vpop.f32.mrf.mxu0
  %v3878 = vadd.f32 %v286, %v3877
  %3879 = vmatmul.bf16.gmra.mxu0 %v1310
  %v3880 = vpop.f32.mrf.mxu0
  %v3881 = vadd.f32 %v286, %v3880
  %v3882 = vpop.f32.mrf.mxu0
  %v3883 = vadd.f32 %v286, %v3882
  %3884 = vmatmul.bf16.gmra.mxu0 %v1313
  %v3885 = vpop.f32.mrf.mxu0
  %v3886 = vadd.f32 %v286, %v3885
  %v3887 = vpop.f32.mrf.mxu0
  %v3888 = vadd.f32 %v286, %v3887
  %3889 = vmatmul.bf16.gmra.mxu0 %v1316
  %v3890 = vpop.f32.mrf.mxu0
  %v3891 = vadd.f32 %v286, %v3890
  %v3892 = vpop.f32.mrf.mxu0
  %v3893 = vadd.f32 %v286, %v3892
  %3894 = vmatmul.bf16.gmra.mxu0 %v1319
  %v3895 = vpop.f32.mrf.mxu0
  %v3896 = vadd.f32 %v286, %v3895
  %v3897 = vpop.f32.mrf.mxu0
  %v3898 = vadd.f32 %v286, %v3897
  %3899 = vmatmul.bf16.gmra.mxu0 %v1322
  %v3900 = vpop.f32.mrf.mxu0
  %v3901 = vadd.f32 %v286, %v3900
  %v3902 = vpop.f32.mrf.mxu0
  %v3903 = vadd.f32 %v286, %v3902
  %3904 = vmatmul.bf16.gmra.mxu0 %v1325
  %v3905 = vpop.f32.mrf.mxu0
  %v3906 = vadd.f32 %v286, %v3905
  %v3907 = vpop.f32.mrf.mxu0
  %v3908 = vadd.f32 %v286, %v3907
  %3909 = vmatmul.bf16.gmra.mxu0 %v1328
  %v3910 = vpop.f32.mrf.mxu0
  %v3911 = vadd.f32 %v286, %v3910
  %v3912 = vpop.f32.mrf.mxu0
  %v3913 = vadd.f32 %v286, %v3912
  %3914 = vmatmul.bf16.gmra.mxu0 %v1331
  %v3915 = vpop.f32.mrf.mxu0
  %v3916 = vadd.f32 %v286, %v3915
  %v3917 = vpop.f32.mrf.mxu0
  %v3918 = vadd.f32 %v286, %v3917
  %3919 = vmatmul.bf16.gmra.mxu0 %v1334
  %v3920 = vpop.f32.mrf.mxu0
  %v3921 = vadd.f32 %v286, %v3920
  %v3922 = vpop.f32.mrf.mxu0
  %v3923 = vadd.f32 %v286, %v3922
  %3924 = vmatmul.bf16.gmra.mxu0 %v1337
  %v3925 = vpop.f32.mrf.mxu0
  %v3926 = vadd.f32 %v286, %v3925
  %v3927 = vpop.f32.mrf.mxu0
  %v3928 = vadd.f32 %v286, %v3927
  %3929 = vmatmul.bf16.gmra.mxu0 %v1340
  %v3930 = vpop.f32.mrf.mxu0
  %v3931 = vadd.f32 %v286, %v3930
  %v3932 = vpop.f32.mrf.mxu0
  %v3933 = vadd.f32 %v286, %v3932
  %3934 = vmatmul.bf16.gmra.mxu0 %v1343
  %v3935 = vpop.f32.mrf.mxu0
  %v3936 = vadd.f32 %v286, %v3935
  %v3937 = vpop.f32.mrf.mxu0
  %v3938 = vadd.f32 %v286, %v3937
  %3939 = vmatmul.bf16.gmra.mxu0 %v1346
  %v3940 = vpop.f32.mrf.mxu0
  %v3941 = vadd.f32 %v286, %v3940
  %v3942 = vpop.f32.mrf.mxu0
  %v3943 = vadd.f32 %v286, %v3942
  %3944 = vmatmul.bf16.gmra.mxu0 %v1349
  %v3945 = vpop.f32.mrf.mxu0
  %v3946 = vadd.f32 %v286, %v3945
  %v3947 = vpop.f32.mrf.mxu0
  %v3948 = vadd.f32 %v286, %v3947
  %3949 = vmatmul.bf16.gmra.mxu0 %v1352
  %v3950 = vpop.f32.mrf.mxu0
  %v3951 = vadd.f32 %v286, %v3950
  %v3952 = vpop.f32.mrf.mxu0
  %v3953 = vadd.f32 %v286, %v3952
  %3954 = vmatmul.bf16.gmra.mxu0 %v1355
  %v3955 = vpop.f32.mrf.mxu0
  %v3956 = vadd.f32 %v286, %v3955
  %v3957 = vpop.f32.mrf.mxu0
  %v3958 = vadd.f32 %v286, %v3957
  %3959 = vmatmul.bf16.gmra.mxu0 %v1358
  %v3960 = vpop.f32.mrf.mxu0
  %v3961 = vadd.f32 %v286, %v3960
  %v3962 = vpop.f32.mrf.mxu0
  %v3963 = vadd.f32 %v286, %v3962
  %3964 = vmatmul.bf16.gmra.mxu0 %v1361
  %v3965 = vpop.f32.mrf.mxu0
  %v3966 = vadd.f32 %v286, %v3965
  %v3967 = vpop.f32.mrf.mxu0
  %v3968 = vadd.f32 %v286, %v3967
  %3969 = vmatmul.bf16.gmra.mxu0 %v1364
  %v3970 = vpop.f32.mrf.mxu0
  %v3971 = vadd.f32 %v286, %v3970
  %v3972 = vpop.f32.mrf.mxu0
  %v3973 = vadd.f32 %v286, %v3972
  %3974 = vdwg.mxu0
  %v3975 = vmax.f32 %v1389, 0.0
  %v3976 = vmax.f32 %v2038, 0.0
  %v3977 = vmax.f32 %v2687, 0.0
  %v3978 = vmax.f32 %v3336, 0.0
  %v3979 = vmax.f32 %v1391, 0.0
  %v3980 = vmax.f32 %v2040, 0.0
  %v3981 = vmax.f32 %v2689, 0.0
  %v3982 = vmax.f32 %v3338, 0.0
  %v3983 = vmax.f32 %v1394, 0.0
  %v3984 = vmax.f32 %v2043, 0.0
  %v3985 = vmax.f32 %v2692, 0.0
  %v3986 = vmax.f32 %v3341, 0.0
  %v3987 = vmax.f32 %v1396, 0.0
  %v3988 = vmax.f32 %v2045, 0.0
  %v3989 = vmax.f32 %v2694, 0.0
  %v3990 = vmax.f32 %v3343, 0.0
  %v3991 = vmax.f32 %v1399, 0.0
  %v3992 = vmax.f32 %v2048, 0.0
  %v3993 = vmax.f32 %v2697, 0.0
  %v3994 = vmax.f32 %v3346, 0.0
  %v3995 = vmax.f32 %v1401, 0.0
  %v3996 = vmax.f32 %v2050, 0.0
  %v3997 = vmax.f32 %v2699, 0.0
  %v3998 = vmax.f32 %v3348, 0.0
  %v3999 = vmax.f32 %v1404, 0.0
  %v4000 = vmax.f32 %v2053, 0.0
  %v4001 = vmax.f32 %v2702, 0.0
  %v4002 = vmax.f32 %v3351, 0.0
  %v4003 = vmax.f32 %v1406, 0.0
  %v4004 = vmax.f32 %v2055, 0.0
  %v4005 = vmax.f32 %v2704, 0.0
  %v4006 = vmax.f32 %v3353, 0.0
  %v4007 = vmax.f32 %v1409, 0.0
  %v4008 = vmax.f32 %v2058, 0.0
  %v4009 = vmax.f32 %v2707, 0.0
  %v4010 = vmax.f32 %v3356, 0.0
  %v4011 = vmax.f32 %v1411, 0.0
  %v4012 = vmax.f32 %v2060, 0.0
  %v4013 = vmax.f32 %v2709, 0.0
  %v4014 = vmax.f32 %v3358, 0.0
  %v4015 = vmax.f32 %v1414, 0.0
  %v4016 = vmax.f32 %v2063, 0.0
  %v4017 = vmax.f32 %v2712, 0.0
  %v4018 = vmax.f32 %v3361, 0.0
  %v4019 = vmax.f32 %v1416, 0.0
  %v4020 = vmax.f32 %v2065, 0.0
  %v4021 = vmax.f32 %v2714, 0.0
  %v4022 = vmax.f32 %v3363, 0.0
  %v4023 = vmax.f32 %v1419, 0.0
  %v4024 = vmax.f32 %v2068, 0.0
  %v4025 = vmax.f32 %v2717, 0.0
  %v4026 = vmax.f32 %v3366, 0.0
  %v4027 = vmax.f32 %v1421, 0.0
  %v4028 = vmax.f32 %v2070, 0.0
  %v4029 = vmax.f32 %v2719, 0.0
  %v4030 = vmax.f32 %v3368, 0.0
  %v4031 = vmax.f32 %v1424, 0.0
  %v4032 = vmax.f32 %v2073, 0.0
  %v4033 = vmax.f32 %v2722, 0.0
  %v4034 = vmax.f32 %v3371, 0.0
  %v4035 = vmax.f32 %v1426, 0.0
  %v4036 = vmax.f32 %v2075, 0.0
  %v4037 = vmax.f32 %v2724, 0.0
  %v4038 = vmax.f32 %v3373, 0.0
  %v4039 = vmax.f32 %v1429, 0.0
  %v4040 = vmax.f32 %v2078, 0.0
  %v4041 = vmax.f32 %v2727, 0.0
  %v4042 = vmax.f32 %v3376, 0.0
  %v4043 = vmax.f32 %v1431, 0.0
  %v4044 = vmax.f32 %v2080, 0.0
  %v4045 = vmax.f32 %v2729, 0.0
  %v4046 = vmax.f32 %v3378, 0.0
  %v4047 = vmax.f32 %v1434, 0.0
  %v4048 = vmax.f32 %v2083, 0.0
  %v4049 = vmax.f32 %v2732, 0.0
  %v4050 = vmax.f32 %v3381, 0.0
  %v4051 = vmax.f32 %v1436, 0.0
  %v4052 = vmax.f32 %v2085, 0.0
  %v4053 = vmax.f32 %v2734, 0.0
  %v4054 = vmax.f32 %v3383, 0.0
  %v4055 = vmax.f32 %v1439, 0.0
  %v4056 = vmax.f32 %v2088, 0.0
  %v4057 = vmax.f32 %v2737, 0.0
  %v4058 = vmax.f32 %v3386, 0.0
  %v4059 = vmax.f32 %v1441, 0.0
  %v4060 = vmax.f32 %v2090, 0.0
  %v4061 = vmax.f32 %v2739, 0.0
  %v4062 = vmax.f32 %v3388, 0.0
  %v4063 = vmax.f32 %v1444, 0.0
  %v4064 = vmax.f32 %v2093, 0.0
  %v4065 = vmax.f32 %v2742, 0.0
  %v4066 = vmax.f32 %v3391, 0.0
  %v4067 = vmax.f32 %v1446, 0.0
  %v4068 = vmax.f32 %v2095, 0.0
  %v4069 = vmax.f32 %v2744, 0.0
  %v4070 = vmax.f32 %v3393, 0.0
  %v4071 = vmax.f32 %v1449, 0.0
  %v4072 = vmax.f32 %v2098, 0.0
  %v4073 = vmax.f32 %v2747, 0.0
  %v4074 = vmax.f32 %v3396, 0.0
  %v4075 = vmax.f32 %v1451, 0.0
  %v4076 = vmax.f32 %v2100, 0.0
  %v4077 = vmax.f32 %v2749, 0.0
  %v4078 = vmax.f32 %v3398, 0.0
  %v4079 = vmax.f32 %v1454, 0.0
  %v4080 = vmax.f32 %v2103, 0.0
  %v4081 = vmax.f32 %v2752, 0.0
  %v4082 = vmax.f32 %v3401, 0.0
  %v4083 = vmax.f32 %v1456, 0.0
  %v4084 = vmax.f32 %v2105, 0.0
  %v4085 = vmax.f32 %v2754, 0.0
  %v4086 = vmax.f32 %v3403, 0.0
  %v4087 = vmax.f32 %v1459, 0.0
  %v4088 = vmax.f32 %v2108, 0.0
  %v4089 = vmax.f32 %v2757, 0.0
  %v4090 = vmax.f32 %v3406, 0.0
  %v4091 = vmax.f32 %v1461, 0.0
  %v4092 = vmax.f32 %v2110, 0.0
  %v4093 = vmax.f32 %v2759, 0.0
  %v4094 = vmax.f32 %v3408, 0.0
  %v4095 = vmax.f32 %v1464, 0.0
  %v4096 = vmax.f32 %v2113, 0.0
  %v4097 = vmax.f32 %v2762, 0.0
  %v4098 = vmax.f32 %v3411, 0.0
  %v4099 = vmax.f32 %v1466, 0.0
  %v4100 = vmax.f32 %v2115, 0.0
  %v4101 = vmax.f32 %v2764, 0.0
  %v4102 = vmax.f32 %v3413, 0.0
  %v4103 = vmax.f32 %v1469, 0.0
  %v4104 = vmax.f32 %v2118, 0.0
  %v4105 = vmax.f32 %v2767, 0.0
  %v4106 = vmax.f32 %v3416, 0.0
  %v4107 = vmax.f32 %v1471, 0.0
  %v4108 = vmax.f32 %v2120, 0.0
  %v4109 = vmax.f32 %v2769, 0.0
  %v4110 = vmax.f32 %v3418, 0.0
  %v4111 = vmax.f32 %v1474, 0.0
  %v4112 = vmax.f32 %v2123, 0.0
  %v4113 = vmax.f32 %v2772, 0.0
  %v4114 = vmax.f32 %v3421, 0.0
  %v4115 = vmax.f32 %v1476, 0.0
  %v4116 = vmax.f32 %v2125, 0.0
  %v4117 = vmax.f32 %v2774, 0.0
  %v4118 = vmax.f32 %v3423, 0.0
  %v4119 = vmax.f32 %v1479, 0.0
  %v4120 = vmax.f32 %v2128, 0.0
  %v4121 = vmax.f32 %v2777, 0.0
  %v4122 = vmax.f32 %v3426, 0.0
  %v4123 = vmax.f32 %v1481, 0.0
  %v4124 = vmax.f32 %v2130, 0.0
  %v4125 = vmax.f32 %v2779, 0.0
  %v4126 = vmax.f32 %v3428, 0.0
  %v4127 = vmax.f32 %v1484, 0.0
  %v4128 = vmax.f32 %v2133, 0.0
  %v4129 = vmax.f32 %v2782, 0.0
  %v4130 = vmax.f32 %v3431, 0.0
  %v4131 = vmax.f32 %v1486, 0.0
  %v4132 = vmax.f32 %v2135, 0.0
  %v4133 = vmax.f32 %v2784, 0.0
  %v4134 = vmax.f32 %v3433, 0.0
  %v4135 = vmax.f32 %v1489, 0.0
  %v4136 = vmax.f32 %v2138, 0.0
  %v4137 = vmax.f32 %v2787, 0.0
  %v4138 = vmax.f32 %v3436, 0.0
  %v4139 = vmax.f32 %v1491, 0.0
  %v4140 = vmax.f32 %v2140, 0.0
  %v4141 = vmax.f32 %v2789, 0.0
  %v4142 = vmax.f32 %v3438, 0.0
  %v4143 = vmax.f32 %v1494, 0.0
  %v4144 = vmax.f32 %v2143, 0.0
  %v4145 = vmax.f32 %v2792, 0.0
  %v4146 = vmax.f32 %v3441, 0.0
  %v4147 = vmax.f32 %v1496, 0.0
  %v4148 = vmax.f32 %v2145, 0.0
  %v4149 = vmax.f32 %v2794, 0.0
  %v4150 = vmax.f32 %v3443, 0.0
  %v4151 = vmax.f32 %v1499, 0.0
  %v4152 = vmax.f32 %v2148, 0.0
  %v4153 = vmax.f32 %v2797, 0.0
  %v4154 = vmax.f32 %v3446, 0.0
  %v4155 = vmax.f32 %v1501, 0.0
  %v4156 = vmax.f32 %v2150, 0.0
  %v4157 = vmax.f32 %v2799, 0.0
  %v4158 = vmax.f32 %v3448, 0.0
  %v4159 = vmax.f32 %v1504, 0.0
  %v4160 = vmax.f32 %v2153, 0.0
  %v4161 = vmax.f32 %v2802, 0.0
  %v4162 = vmax.f32 %v3451, 0.0
  %v4163 = vmax.f32 %v1506, 0.0
  %v4164 = vmax.f32 %v2155, 0.0
  %v4165 = vmax.f32 %v2804, 0.0
  %v4166 = vmax.f32 %v3453, 0.0
  %v4167 = vmax.f32 %v1509, 0.0
  %v4168 = vmax.f32 %v2158, 0.0
  %v4169 = vmax.f32 %v2807, 0.0
  %v4170 = vmax.f32 %v3456, 0.0
  %v4171 = vmax.f32 %v1511, 0.0
  %v4172 = vmax.f32 %v2160, 0.0
  %v4173 = vmax.f32 %v2809, 0.0
  %v4174 = vmax.f32 %v3458, 0.0
  %v4175 = vmax.f32 %v1514, 0.0
  %v4176 = vmax.f32 %v2163, 0.0
  %v4177 = vmax.f32 %v2812, 0.0
  %v4178 = vmax.f32 %v3461, 0.0
  %v4179 = vmax.f32 %v1516, 0.0
  %v4180 = vmax.f32 %v2165, 0.0
  %v4181 = vmax.f32 %v2814, 0.0
  %v4182 = vmax.f32 %v3463, 0.0
  %v4183 = vmax.f32 %v1519, 0.0
  %v4184 = vmax.f32 %v2168, 0.0
  %v4185 = vmax.f32 %v2817, 0.0
  %v4186 = vmax.f32 %v3466, 0.0
  %v4187 = vmax.f32 %v1521, 0.0
  %v4188 = vmax.f32 %v2170, 0.0
  %v4189 = vmax.f32 %v2819, 0.0
  %v4190 = vmax.f32 %v3468, 0.0
  %v4191 = vmax.f32 %v1524, 0.0
  %v4192 = vmax.f32 %v2173, 0.0
  %v4193 = vmax.f32 %v2822, 0.0
  %v4194 = vmax.f32 %v3471, 0.0
  %v4195 = vmax.f32 %v1526, 0.0
  %v4196 = vmax.f32 %v2175, 0.0
  %v4197 = vmax.f32 %v2824, 0.0
  %v4198 = vmax.f32 %v3473, 0.0
  %v4199 = vmax.f32 %v1529, 0.0
  %v4200 = vmax.f32 %v2178, 0.0
  %v4201 = vmax.f32 %v2827, 0.0
  %v4202 = vmax.f32 %v3476, 0.0
  %v4203 = vmax.f32 %v1531, 0.0
  %v4204 = vmax.f32 %v2180, 0.0
  %v4205 = vmax.f32 %v2829, 0.0
  %v4206 = vmax.f32 %v3478, 0.0
  %v4207 = vmax.f32 %v1534, 0.0
  %v4208 = vmax.f32 %v2183, 0.0
  %v4209 = vmax.f32 %v2832, 0.0
  %v4210 = vmax.f32 %v3481, 0.0
  %v4211 = vmax.f32 %v1536, 0.0
  %v4212 = vmax.f32 %v2185, 0.0
  %v4213 = vmax.f32 %v2834, 0.0
  %v4214 = vmax.f32 %v3483, 0.0
  %v4215 = vmax.f32 %v1539, 0.0
  %v4216 = vmax.f32 %v2188, 0.0
  %v4217 = vmax.f32 %v2837, 0.0
  %v4218 = vmax.f32 %v3486, 0.0
  %v4219 = vmax.f32 %v1541, 0.0
  %v4220 = vmax.f32 %v2190, 0.0
  %v4221 = vmax.f32 %v2839, 0.0
  %v4222 = vmax.f32 %v3488, 0.0
  %v4223 = vmax.f32 %v1544, 0.0
  %v4224 = vmax.f32 %v2193, 0.0
  %v4225 = vmax.f32 %v2842, 0.0
  %v4226 = vmax.f32 %v3491, 0.0
  %v4227 = vmax.f32 %v1546, 0.0
  %v4228 = vmax.f32 %v2195, 0.0
  %v4229 = vmax.f32 %v2844, 0.0
  %v4230 = vmax.f32 %v3493, 0.0
  %v4231 = vmax.f32 %v1549, 0.0
  %v4232 = vmax.f32 %v2198, 0.0
  %v4233 = vmax.f32 %v2847, 0.0
  %v4234 = vmax.f32 %v3496, 0.0
  %v4235 = vmax.f32 %v1551, 0.0
  %v4236 = vmax.f32 %v2200, 0.0
  %v4237 = vmax.f32 %v2849, 0.0
  %v4238 = vmax.f32 %v3498, 0.0
  %v4239 = vmax.f32 %v1554, 0.0
  %v4240 = vmax.f32 %v2203, 0.0
  %v4241 = vmax.f32 %v2852, 0.0
  %v4242 = vmax.f32 %v3501, 0.0
  %v4243 = vmax.f32 %v1556, 0.0
  %v4244 = vmax.f32 %v2205, 0.0
  %v4245 = vmax.f32 %v2854, 0.0
  %v4246 = vmax.f32 %v3503, 0.0
  %v4247 = vmax.f32 %v1559, 0.0
  %v4248 = vmax.f32 %v2208, 0.0
  %v4249 = vmax.f32 %v2857, 0.0
  %v4250 = vmax.f32 %v3506, 0.0
  %v4251 = vmax.f32 %v1561, 0.0
  %v4252 = vmax.f32 %v2210, 0.0
  %v4253 = vmax.f32 %v2859, 0.0
  %v4254 = vmax.f32 %v3508, 0.0
  %v4255 = vmax.f32 %v1564, 0.0
  %v4256 = vmax.f32 %v2213, 0.0
  %v4257 = vmax.f32 %v2862, 0.0
  %v4258 = vmax.f32 %v3511, 0.0
  %v4259 = vmax.f32 %v1566, 0.0
  %v4260 = vmax.f32 %v2215, 0.0
  %v4261 = vmax.f32 %v2864, 0.0
  %v4262 = vmax.f32 %v3513, 0.0
  %v4263 = vmax.f32 %v1569, 0.0
  %v4264 = vmax.f32 %v2218, 0.0
  %v4265 = vmax.f32 %v2867, 0.0
  %v4266 = vmax.f32 %v3516, 0.0
  %v4267 = vmax.f32 %v1571, 0.0
  %v4268 = vmax.f32 %v2220, 0.0
  %v4269 = vmax.f32 %v2869, 0.0
  %v4270 = vmax.f32 %v3518, 0.0
  %v4271 = vmax.f32 %v1574, 0.0
  %v4272 = vmax.f32 %v2223, 0.0
  %v4273 = vmax.f32 %v2872, 0.0
  %v4274 = vmax.f32 %v3521, 0.0
  %v4275 = vmax.f32 %v1576, 0.0
  %v4276 = vmax.f32 %v2225, 0.0
  %v4277 = vmax.f32 %v2874, 0.0
  %v4278 = vmax.f32 %v3523, 0.0
  %v4279 = vmax.f32 %v1579, 0.0
  %v4280 = vmax.f32 %v2228, 0.0
  %v4281 = vmax.f32 %v2877, 0.0
  %v4282 = vmax.f32 %v3526, 0.0
  %v4283 = vmax.f32 %v1581, 0.0
  %v4284 = vmax.f32 %v2230, 0.0
  %v4285 = vmax.f32 %v2879, 0.0
  %v4286 = vmax.f32 %v3528, 0.0
  %v4287 = vmax.f32 %v1584, 0.0
  %v4288 = vmax.f32 %v2233, 0.0
  %v4289 = vmax.f32 %v2882, 0.0
  %v4290 = vmax.f32 %v3531, 0.0
  %v4291 = vmax.f32 %v1586, 0.0
  %v4292 = vmax.f32 %v2235, 0.0
  %v4293 = vmax.f32 %v2884, 0.0
  %v4294 = vmax.f32 %v3533, 0.0
  %v4295 = vmax.f32 %v1589, 0.0
  %v4296 = vmax.f32 %v2238, 0.0
  %v4297 = vmax.f32 %v2887, 0.0
  %v4298 = vmax.f32 %v3536, 0.0
  %v4299 = vmax.f32 %v1591, 0.0
  %v4300 = vmax.f32 %v2240, 0.0
  %v4301 = vmax.f32 %v2889, 0.0
  %v4302 = vmax.f32 %v3538, 0.0
  %v4303 = vmax.f32 %v1594, 0.0
  %v4304 = vmax.f32 %v2243, 0.0
  %v4305 = vmax.f32 %v2892, 0.0
  %v4306 = vmax.f32 %v3541, 0.0
  %v4307 = vmax.f32 %v1596, 0.0
  %v4308 = vmax.f32 %v2245, 0.0
  %v4309 = vmax.f32 %v2894, 0.0
  %v4310 = vmax.f32 %v3543, 0.0
  %v4311 = vmax.f32 %v1599, 0.0
  %v4312 = vmax.f32 %v2248, 0.0
  %v4313 = vmax.f32 %v2897, 0.0
  %v4314 = vmax.f32 %v3546, 0.0
  %v4315 = vmax.f32 %v1601, 0.0
  %v4316 = vmax.f32 %v2250, 0.0
  %v4317 = vmax.f32 %v2899, 0.0
  %v4318 = vmax.f32 %v3548, 0.0
  %v4319 = vmax.f32 %v1604, 0.0
  %v4320 = vmax.f32 %v2253, 0.0
  %v4321 = vmax.f32 %v2902, 0.0
  %v4322 = vmax.f32 %v3551, 0.0
  %v4323 = vmax.f32 %v1606, 0.0
  %v4324 = vmax.f32 %v2255, 0.0
  %v4325 = vmax.f32 %v2904, 0.0
  %v4326 = vmax.f32 %v3553, 0.0
  %v4327 = vmax.f32 %v1609, 0.0
  %v4328 = vmax.f32 %v2258, 0.0
  %v4329 = vmax.f32 %v2907, 0.0
  %v4330 = vmax.f32 %v3556, 0.0
  %v4331 = vmax.f32 %v1611, 0.0
  %v4332 = vmax.f32 %v2260, 0.0
  %v4333 = vmax.f32 %v2909, 0.0
  %v4334 = vmax.f32 %v3558, 0.0
  %v4335 = vmax.f32 %v1614, 0.0
  %v4336 = vmax.f32 %v2263, 0.0
  %v4337 = vmax.f32 %v2912, 0.0
  %v4338 = vmax.f32 %v3561, 0.0
  %v4339 = vmax.f32 %v1616, 0.0
  %v4340 = vmax.f32 %v2265, 0.0
  %v4341 = vmax.f32 %v2914, 0.0
  %v4342 = vmax.f32 %v3563, 0.0
  %v4343 = vmax.f32 %v1619, 0.0
  %v4344 = vmax.f32 %v2268, 0.0
  %v4345 = vmax.f32 %v2917, 0.0
  %v4346 = vmax.f32 %v3566, 0.0
  %v4347 = vmax.f32 %v1621, 0.0
  %v4348 = vmax.f32 %v2270, 0.0
  %v4349 = vmax.f32 %v2919, 0.0
  %v4350 = vmax.f32 %v3568, 0.0
  %v4351 = vmax.f32 %v1624, 0.0
  %v4352 = vmax.f32 %v2273, 0.0
  %v4353 = vmax.f32 %v2922, 0.0
  %v4354 = vmax.f32 %v3571, 0.0
  %v4355 = vmax.f32 %v1626, 0.0
  %v4356 = vmax.f32 %v2275, 0.0
  %v4357 = vmax.f32 %v2924, 0.0
  %v4358 = vmax.f32 %v3573, 0.0
  %v4359 = vmax.f32 %v1629, 0.0
  %v4360 = vmax.f32 %v2278, 0.0
  %v4361 = vmax.f32 %v2927, 0.0
  %v4362 = vmax.f32 %v3576, 0.0
  %v4363 = vmax.f32 %v1631, 0.0
  %v4364 = vmax.f32 %v2280, 0.0
  %v4365 = vmax.f32 %v2929, 0.0
  %v4366 = vmax.f32 %v3578, 0.0
  %v4367 = vmax.f32 %v1634, 0.0
  %v4368 = vmax.f32 %v2283, 0.0
  %v4369 = vmax.f32 %v2932, 0.0
  %v4370 = vmax.f32 %v3581, 0.0
  %v4371 = vmax.f32 %v1636, 0.0
  %v4372 = vmax.f32 %v2285, 0.0
  %v4373 = vmax.f32 %v2934, 0.0
  %v4374 = vmax.f32 %v3583, 0.0
  %v4375 = vmax.f32 %v1639, 0.0
  %v4376 = vmax.f32 %v2288, 0.0
  %v4377 = vmax.f32 %v2937, 0.0
  %v4378 = vmax.f32 %v3586, 0.0
  %v4379 = vmax.f32 %v1641, 0.0
  %v4380 = vmax.f32 %v2290, 0.0
  %v4381 = vmax.f32 %v2939, 0.0
  %v4382 = vmax.f32 %v3588, 0.0
  %v4383 = vmax.f32 %v1644, 0.0
  %v4384 = vmax.f32 %v2293, 0.0
  %v4385 = vmax.f32 %v2942, 0.0
  %v4386 = vmax.f32 %v3591, 0.0
  %v4387 = vmax.f32 %v1646, 0.0
  %v4388 = vmax.f32 %v2295, 0.0
  %v4389 = vmax.f32 %v2944, 0.0
  %v4390 = vmax.f32 %v3593, 0.0
  %v4391 = vmax.f32 %v1649, 0.0
  %v4392 = vmax.f32 %v2298, 0.0
  %v4393 = vmax.f32 %v2947, 0.0
  %v4394 = vmax.f32 %v3596, 0.0
  %v4395 = vmax.f32 %v1651, 0.0
  %v4396 = vmax.f32 %v2300, 0.0
  %v4397 = vmax.f32 %v2949, 0.0
  %v4398 = vmax.f32 %v3598, 0.0
  %v4399 = vmax.f32 %v1654, 0.0
  %v4400 = vmax.f32 %v2303, 0.0
  %v4401 = vmax.f32 %v2952, 0.0
  %v4402 = vmax.f32 %v3601, 0.0
  %v4403 = vmax.f32 %v1656, 0.0
  %v4404 = vmax.f32 %v2305, 0.0
  %v4405 = vmax.f32 %v2954, 0.0
  %v4406 = vmax.f32 %v3603, 0.0
  %v4407 = vmax.f32 %v1659, 0.0
  %v4408 = vmax.f32 %v2308, 0.0
  %v4409 = vmax.f32 %v2957, 0.0
  %v4410 = vmax.f32 %v3606, 0.0
  %v4411 = vmax.f32 %v1661, 0.0
  %v4412 = vmax.f32 %v2310, 0.0
  %v4413 = vmax.f32 %v2959, 0.0
  %v4414 = vmax.f32 %v3608, 0.0
  %v4415 = vmax.f32 %v1664, 0.0
  %v4416 = vmax.f32 %v2313, 0.0
  %v4417 = vmax.f32 %v2962, 0.0
  %v4418 = vmax.f32 %v3611, 0.0
  %v4419 = vmax.f32 %v1666, 0.0
  %v4420 = vmax.f32 %v2315, 0.0
  %v4421 = vmax.f32 %v2964, 0.0
  %v4422 = vmax.f32 %v3613, 0.0
  %v4423 = vmax.f32 %v1669, 0.0
  %v4424 = vmax.f32 %v2318, 0.0
  %v4425 = vmax.f32 %v2967, 0.0
  %v4426 = vmax.f32 %v3616, 0.0
  %v4427 = vmax.f32 %v1671, 0.0
  %v4428 = vmax.f32 %v2320, 0.0
  %v4429 = vmax.f32 %v2969, 0.0
  %v4430 = vmax.f32 %v3618, 0.0
  %v4431 = vmax.f32 %v1674, 0.0
  %v4432 = vmax.f32 %v2323, 0.0
  %v4433 = vmax.f32 %v2972, 0.0
  %v4434 = vmax.f32 %v3621, 0.0
  %v4435 = vmax.f32 %v1676, 0.0
  %v4436 = vmax.f32 %v2325, 0.0
  %v4437 = vmax.f32 %v2974, 0.0
  %v4438 = vmax.f32 %v3623, 0.0
  %v4439 = vmax.f32 %v1679, 0.0
  %v4440 = vmax.f32 %v2328, 0.0
  %v4441 = vmax.f32 %v2977, 0.0
  %v4442 = vmax.f32 %v3626, 0.0
  %v4443 = vmax.f32 %v1681, 0.0
  %v4444 = vmax.f32 %v2330, 0.0
  %v4445 = vmax.f32 %v2979, 0.0
  %v4446 = vmax.f32 %v3628, 0.0
  %v4447 = vmax.f32 %v1684, 0.0
  %v4448 = vmax.f32 %v2333, 0.0
  %v4449 = vmax.f32 %v2982, 0.0
  %v4450 = vmax.f32 %v3631, 0.0
  %v4451 = vmax.f32 %v1686, 0.0
  %v4452 = vmax.f32 %v2335, 0.0
  %v4453 = vmax.f32 %v2984, 0.0
  %v4454 = vmax.f32 %v3633, 0.0
  %v4455 = vmax.f32 %v1689, 0.0
  %v4456 = vmax.f32 %v2338, 0.0
  %v4457 = vmax.f32 %v2987, 0.0
  %v4458 = vmax.f32 %v3636, 0.0
  %v4459 = vmax.f32 %v1691, 0.0
  %v4460 = vmax.f32 %v2340, 0.0
  %v4461 = vmax.f32 %v2989, 0.0
  %v4462 = vmax.f32 %v3638, 0.0
  %v4463 = vmax.f32 %v1694, 0.0
  %v4464 = vmax.f32 %v2343, 0.0
  %v4465 = vmax.f32 %v2992, 0.0
  %v4466 = vmax.f32 %v3641, 0.0
  %v4467 = vmax.f32 %v1696, 0.0
  %v4468 = vmax.f32 %v2345, 0.0
  %v4469 = vmax.f32 %v2994, 0.0
  %v4470 = vmax.f32 %v3643, 0.0
  %v4471 = vmax.f32 %v1699, 0.0
  %v4472 = vmax.f32 %v2348, 0.0
  %v4473 = vmax.f32 %v2997, 0.0
  %v4474 = vmax.f32 %v3646, 0.0
  %v4475 = vmax.f32 %v1701, 0.0
  %v4476 = vmax.f32 %v2350, 0.0
  %v4477 = vmax.f32 %v2999, 0.0
  %v4478 = vmax.f32 %v3648, 0.0
  %v4479 = vmax.f32 %v1704, 0.0
  %v4480 = vmax.f32 %v2353, 0.0
  %v4481 = vmax.f32 %v3002, 0.0
  %v4482 = vmax.f32 %v3651, 0.0
  %v4483 = vmax.f32 %v1706, 0.0
  %v4484 = vmax.f32 %v2355, 0.0
  %v4485 = vmax.f32 %v3004, 0.0
  %v4486 = vmax.f32 %v3653, 0.0
  %v4487 = vmax.f32 %v1709, 0.0
  %v4488 = vmax.f32 %v2358, 0.0
  %v4489 = vmax.f32 %v3007, 0.0
  %v4490 = vmax.f32 %v3656, 0.0
  %v4491 = vmax.f32 %v1711, 0.0
  %v4492 = vmax.f32 %v2360, 0.0
  %v4493 = vmax.f32 %v3009, 0.0
  %v4494 = vmax.f32 %v3658, 0.0
  %v4495 = vmax.f32 %v1714, 0.0
  %v4496 = vmax.f32 %v2363, 0.0
  %v4497 = vmax.f32 %v3012, 0.0
  %v4498 = vmax.f32 %v3661, 0.0
  %v4499 = vmax.f32 %v1716, 0.0
  %v4500 = vmax.f32 %v2365, 0.0
  %v4501 = vmax.f32 %v3014, 0.0
  %v4502 = vmax.f32 %v3663, 0.0
  %v4503 = vmax.f32 %v1719, 0.0
  %v4504 = vmax.f32 %v2368, 0.0
  %v4505 = vmax.f32 %v3017, 0.0
  %v4506 = vmax.f32 %v3666, 0.0
  %v4507 = vmax.f32 %v1721, 0.0
  %v4508 = vmax.f32 %v2370, 0.0
  %v4509 = vmax.f32 %v3019, 0.0
  %v4510 = vmax.f32 %v3668, 0.0
  %v4511 = vmax.f32 %v1724, 0.0
  %v4512 = vmax.f32 %v2373, 0.0
  %v4513 = vmax.f32 %v3022, 0.0
  %v4514 = vmax.f32 %v3671, 0.0
  %v4515 = vmax.f32 %v1726, 0.0
  %v4516 = vmax.f32 %v2375, 0.0
  %v4517 = vmax.f32 %v3024, 0.0
  %v4518 = vmax.f32 %v3673, 0.0
  %v4519 = vmax.f32 %v1729, 0.0
  %v4520 = vmax.f32 %v2378, 0.0
  %v4521 = vmax.f32 %v3027, 0.0
  %v4522 = vmax.f32 %v3676, 0.0
  %v4523 = vmax.f32 %v1731, 0.0
  %v4524 = vmax.f32 %v2380, 0.0
  %v4525 = vmax.f32 %v3029, 0.0
  %v4526 = vmax.f32 %v3678, 0.0
  %v4527 = vmax.f32 %v1734, 0.0
  %v4528 = vmax.f32 %v2383, 0.0
  %v4529 = vmax.f32 %v3032, 0.0
  %v4530 = vmax.f32 %v3681, 0.0
  %v4531 = vmax.f32 %v1736, 0.0
  %v4532 = vmax.f32 %v2385, 0.0
  %v4533 = vmax.f32 %v3034, 0.0
  %v4534 = vmax.f32 %v3683, 0.0
  %v4535 = vmax.f32 %v1739, 0.0
  %v4536 = vmax.f32 %v2388, 0.0
  %v4537 = vmax.f32 %v3037, 0.0
  %v4538 = vmax.f32 %v3686, 0.0
  %v4539 = vmax.f32 %v1741, 0.0
  %v4540 = vmax.f32 %v2390, 0.0
  %v4541 = vmax.f32 %v3039, 0.0
  %v4542 = vmax.f32 %v3688, 0.0
  %v4543 = vmax.f32 %v1744, 0.0
  %v4544 = vmax.f32 %v2393, 0.0
  %v4545 = vmax.f32 %v3042, 0.0
  %v4546 = vmax.f32 %v3691, 0.0
  %v4547 = vmax.f32 %v1746, 0.0
  %v4548 = vmax.f32 %v2395, 0.0
  %v4549 = vmax.f32 %v3044, 0.0
  %v4550 = vmax.f32 %v3693, 0.0
  %v4551 = vmax.f32 %v1749, 0.0
  %v4552 = vmax.f32 %v2398, 0.0
  %v4553 = vmax.f32 %v3047, 0.0
  %v4554 = vmax.f32 %v3696, 0.0
  %v4555 = vmax.f32 %v1751, 0.0
  %v4556 = vmax.f32 %v2400, 0.0
  %v4557 = vmax.f32 %v3049, 0.0
  %v4558 = vmax.f32 %v3698, 0.0
  %v4559 = vmax.f32 %v1754, 0.0
  %v4560 = vmax.f32 %v2403, 0.0
  %v4561 = vmax.f32 %v3052, 0.0
  %v4562 = vmax.f32 %v3701, 0.0
  %v4563 = vmax.f32 %v1756, 0.0
  %v4564 = vmax.f32 %v2405, 0.0
  %v4565 = vmax.f32 %v3054, 0.0
  %v4566 = vmax.f32 %v3703, 0.0
  %v4567 = vmax.f32 %v1759, 0.0
  %v4568 = vmax.f32 %v2408, 0.0
  %v4569 = vmax.f32 %v3057, 0.0
  %v4570 = vmax.f32 %v3706, 0.0
  %v4571 = vmax.f32 %v1761, 0.0
  %v4572 = vmax.f32 %v2410, 0.0
  %v4573 = vmax.f32 %v3059, 0.0
  %v4574 = vmax.f32 %v3708, 0.0
  %v4575 = vmax.f32 %v1764, 0.0
  %v4576 = vmax.f32 %v2413, 0.0
  %v4577 = vmax.f32 %v3062, 0.0
  %v4578 = vmax.f32 %v3711, 0.0
  %v4579 = vmax.f32 %v1766, 0.0
  %v4580 = vmax.f32 %v2415, 0.0
  %v4581 = vmax.f32 %v3064, 0.0
  %v4582 = vmax.f32 %v3713, 0.0
  %v4583 = vmax.f32 %v1769, 0.0
  %v4584 = vmax.f32 %v2418, 0.0
  %v4585 = vmax.f32 %v3067, 0.0
  %v4586 = vmax.f32 %v3716, 0.0
  %v4587 = vmax.f32 %v1771, 0.0
  %v4588 = vmax.f32 %v2420, 0.0
  %v4589 = vmax.f32 %v3069, 0.0
  %v4590 = vmax.f32 %v3718, 0.0
  %v4591 = vmax.f32 %v1774, 0.0
  %v4592 = vmax.f32 %v2423, 0.0
  %v4593 = vmax.f32 %v3072, 0.0
  %v4594 = vmax.f32 %v3721, 0.0
  %v4595 = vmax.f32 %v1776, 0.0
  %v4596 = vmax.f32 %v2425, 0.0
  %v4597 = vmax.f32 %v3074, 0.0
  %v4598 = vmax.f32 %v3723, 0.0
  %v4599 = vmax.f32 %v1779, 0.0
  %v4600 = vmax.f32 %v2428, 0.0
  %v4601 = vmax.f32 %v3077, 0.0
  %v4602 = vmax.f32 %v3726, 0.0
  %v4603 = vmax.f32 %v1781, 0.0
  %v4604 = vmax.f32 %v2430, 0.0
  %v4605 = vmax.f32 %v3079, 0.0
  %v4606 = vmax.f32 %v3728, 0.0
  %v4607 = vmax.f32 %v1784, 0.0
  %v4608 = vmax.f32 %v2433, 0.0
  %v4609 = vmax.f32 %v3082, 0.0
  %v4610 = vmax.f32 %v3731, 0.0
  %v4611 = vmax.f32 %v1786, 0.0
  %v4612 = vmax.f32 %v2435, 0.0
  %v4613 = vmax.f32 %v3084, 0.0
  %v4614 = vmax.f32 %v3733, 0.0
  %v4615 = vmax.f32 %v1789, 0.0
  %v4616 = vmax.f32 %v2438, 0.0
  %v4617 = vmax.f32 %v3087, 0.0
  %v4618 = vmax.f32 %v3736, 0.0
  %v4619 = vmax.f32 %v1791, 0.0
  %v4620 = vmax.f32 %v2440, 0.0
  %v4621 = vmax.f32 %v3089, 0.0
  %v4622 = vmax.f32 %v3738, 0.0
  %v4623 = vmax.f32 %v1794, 0.0
  %v4624 = vmax.f32 %v2443, 0.0
  %v4625 = vmax.f32 %v3092, 0.0
  %v4626 = vmax.f32 %v3741, 0.0
  %v4627 = vmax.f32 %v1796, 0.0
  %v4628 = vmax.f32 %v2445, 0.0
  %v4629 = vmax.f32 %v3094, 0.0
  %v4630 = vmax.f32 %v3743, 0.0
  %v4631 = vmax.f32 %v1799, 0.0
  %v4632 = vmax.f32 %v2448, 0.0
  %v4633 = vmax.f32 %v3097, 0.0
  %v4634 = vmax.f32 %v3746, 0.0
  %v4635 = vmax.f32 %v1801, 0.0
  %v4636 = vmax.f32 %v2450, 0.0
  %v4637 = vmax.f32 %v3099, 0.0
  %v4638 = vmax.f32 %v3748, 0.0
  %v4639 = vmax.f32 %v1804, 0.0
  %v4640 = vmax.f32 %v2453, 0.0
  %v4641 = vmax.f32 %v3102, 0.0
  %v4642 = vmax.f32 %v3751, 0.0
  %v4643 = vmax.f32 %v1806, 0.0
  %v4644 = vmax.f32 %v2455, 0.0
  %v4645 = vmax.f32 %v3104, 0.0
  %v4646 = vmax.f32 %v3753, 0.0
  %v4647 = vmax.f32 %v1809, 0.0
  %v4648 = vmax.f32 %v2458, 0.0
  %v4649 = vmax.f32 %v3107, 0.0
  %v4650 = vmax.f32 %v3756, 0.0
  %v4651 = vmax.f32 %v1811, 0.0
  %v4652 = vmax.f32 %v2460, 0.0
  %v4653 = vmax.f32 %v3109, 0.0
  %v4654 = vmax.f32 %v3758, 0.0
  %v4655 = vmax.f32 %v1814, 0.0
  %v4656 = vmax.f32 %v2463, 0.0
  %v4657 = vmax.f32 %v3112, 0.0
  %v4658 = vmax.f32 %v3761, 0.0
  %v4659 = vmax.f32 %v1816, 0.0
  %v4660 = vmax.f32 %v2465, 0.0
  %v4661 = vmax.f32 %v3114, 0.0
  %v4662 = vmax.f32 %v3763, 0.0
  %v4663 = vmax.f32 %v1819, 0.0
  %v4664 = vmax.f32 %v2468, 0.0
  %v4665 = vmax.f32 %v3117, 0.0
  %v4666 = vmax.f32 %v3766, 0.0
  %v4667 = vmax.f32 %v1821, 0.0
  %v4668 = vmax.f32 %v2470, 0.0
  %v4669 = vmax.f32 %v3119, 0.0
  %v4670 = vmax.f32 %v3768, 0.0
  %v4671 = vmax.f32 %v1824, 0.0
  %v4672 = vmax.f32 %v2473, 0.0
  %v4673 = vmax.f32 %v3122, 0.0
  %v4674 = vmax.f32 %v3771, 0.0
  %v4675 = vmax.f32 %v1826, 0.0
  %v4676 = vmax.f32 %v2475, 0.0
  %v4677 = vmax.f32 %v3124, 0.0
  %v4678 = vmax.f32 %v3773, 0.0
  %v4679 = vmax.f32 %v1829, 0.0
  %v4680 = vmax.f32 %v2478, 0.0
  %v4681 = vmax.f32 %v3127, 0.0
  %v4682 = vmax.f32 %v3776, 0.0
  %v4683 = vmax.f32 %v1831, 0.0
  %v4684 = vmax.f32 %v2480, 0.0
  %v4685 = vmax.f32 %v3129, 0.0
  %v4686 = vmax.f32 %v3778, 0.0
  %v4687 = vmax.f32 %v1834, 0.0
  %v4688 = vmax.f32 %v2483, 0.0
  %v4689 = vmax.f32 %v3132, 0.0
  %v4690 = vmax.f32 %v3781, 0.0
  %v4691 = vmax.f32 %v1836, 0.0
  %v4692 = vmax.f32 %v2485, 0.0
  %v4693 = vmax.f32 %v3134, 0.0
  %v4694 = vmax.f32 %v3783, 0.0
  %v4695 = vmax.f32 %v1839, 0.0
  %v4696 = vmax.f32 %v2488, 0.0
  %v4697 = vmax.f32 %v3137, 0.0
  %v4698 = vmax.f32 %v3786, 0.0
  %v4699 = vmax.f32 %v1841, 0.0
  %v4700 = vmax.f32 %v2490, 0.0
  %v4701 = vmax.f32 %v3139, 0.0
  %v4702 = vmax.f32 %v3788, 0.0
  %v4703 = vmax.f32 %v1844, 0.0
  %v4704 = vmax.f32 %v2493, 0.0
  %v4705 = vmax.f32 %v3142, 0.0
  %v4706 = vmax.f32 %v3791, 0.0
  %v4707 = vmax.f32 %v1846, 0.0
  %v4708 = vmax.f32 %v2495, 0.0
  %v4709 = vmax.f32 %v3144, 0.0
  %v4710 = vmax.f32 %v3793, 0.0
  %v4711 = vmax.f32 %v1849, 0.0
  %v4712 = vmax.f32 %v2498, 0.0
  %v4713 = vmax.f32 %v3147, 0.0
  %v4714 = vmax.f32 %v3796, 0.0
  %v4715 = vmax.f32 %v1851, 0.0
  %v4716 = vmax.f32 %v2500, 0.0
  %v4717 = vmax.f32 %v3149, 0.0
  %v4718 = vmax.f32 %v3798, 0.0
  %v4719 = vmax.f32 %v1854, 0.0
  %v4720 = vmax.f32 %v2503, 0.0
  %v4721 = vmax.f32 %v3152, 0.0
  %v4722 = vmax.f32 %v3801, 0.0
  %v4723 = vmax.f32 %v1856, 0.0
  %v4724 = vmax.f32 %v2505, 0.0
  %v4725 = vmax.f32 %v3154, 0.0
  %v4726 = vmax.f32 %v3803, 0.0
  %v4727 = vmax.f32 %v1859, 0.0
  %v4728 = vmax.f32 %v2508, 0.0
  %v4729 = vmax.f32 %v3157, 0.0
  %v4730 = vmax.f32 %v3806, 0.0
  %v4731 = vmax.f32 %v1861, 0.0
  %v4732 = vmax.f32 %v2510, 0.0
  %v4733 = vmax.f32 %v3159, 0.0
  %v4734 = vmax.f32 %v3808, 0.0
  %v4735 = vmax.f32 %v1864, 0.0
  %v4736 = vmax.f32 %v2513, 0.0
  %v4737 = vmax.f32 %v3162, 0.0
  %v4738 = vmax.f32 %v3811, 0.0
  %v4739 = vmax.f32 %v1866, 0.0
  %v4740 = vmax.f32 %v2515, 0.0
  %v4741 = vmax.f32 %v3164, 0.0
  %v4742 = vmax.f32 %v3813, 0.0
  %v4743 = vmax.f32 %v1869, 0.0
  %v4744 = vmax.f32 %v2518, 0.0
  %v4745 = vmax.f32 %v3167, 0.0
  %v4746 = vmax.f32 %v3816, 0.0
  %v4747 = vmax.f32 %v1871, 0.0
  %v4748 = vmax.f32 %v2520, 0.0
  %v4749 = vmax.f32 %v3169, 0.0
  %v4750 = vmax.f32 %v3818, 0.0
  %v4751 = vmax.f32 %v1874, 0.0
  %v4752 = vmax.f32 %v2523, 0.0
  %v4753 = vmax.f32 %v3172, 0.0
  %v4754 = vmax.f32 %v3821, 0.0
  %v4755 = vmax.f32 %v1876, 0.0
  %v4756 = vmax.f32 %v2525, 0.0
  %v4757 = vmax.f32 %v3174, 0.0
  %v4758 = vmax.f32 %v3823, 0.0
  %v4759 = vmax.f32 %v1879, 0.0
  %v4760 = vmax.f32 %v2528, 0.0
  %v4761 = vmax.f32 %v3177, 0.0
  %v4762 = vmax.f32 %v3826, 0.0
  %v4763 = vmax.f32 %v1881, 0.0
  %v4764 = vmax.f32 %v2530, 0.0
  %v4765 = vmax.f32 %v3179, 0.0
  %v4766 = vmax.f32 %v3828, 0.0
  %v4767 = vmax.f32 %v1884, 0.0
  %v4768 = vmax.f32 %v2533, 0.0
  %v4769 = vmax.f32 %v3182, 0.0
  %v4770 = vmax.f32 %v3831, 0.0
  %v4771 = vmax.f32 %v1886, 0.0
  %v4772 = vmax.f32 %v2535, 0.0
  %v4773 = vmax.f32 %v3184, 0.0
  %v4774 = vmax.f32 %v3833, 0.0
  %v4775 = vmax.f32 %v1889, 0.0
  %v4776 = vmax.f32 %v2538, 0.0
  %v4777 = vmax.f32 %v3187, 0.0
  %v4778 = vmax.f32 %v3836, 0.0
  %v4779 = vmax.f32 %v1891, 0.0
  %v4780 = vmax.f32 %v2540, 0.0
  %v4781 = vmax.f32 %v3189, 0.0
  %v4782 = vmax.f32 %v3838, 0.0
  %v4783 = vmax.f32 %v1894, 0.0
  %v4784 = vmax.f32 %v2543, 0.0
  %v4785 = vmax.f32 %v3192, 0.0
  %v4786 = vmax.f32 %v3841, 0.0
  %v4787 = vmax.f32 %v1896, 0.0
  %v4788 = vmax.f32 %v2545, 0.0
  %v4789 = vmax.f32 %v3194, 0.0
  %v4790 = vmax.f32 %v3843, 0.0
  %v4791 = vmax.f32 %v1899, 0.0
  %v4792 = vmax.f32 %v2548, 0.0
  %v4793 = vmax.f32 %v3197, 0.0
  %v4794 = vmax.f32 %v3846, 0.0
  %v4795 = vmax.f32 %v1901, 0.0
  %v4796 = vmax.f32 %v2550, 0.0
  %v4797 = vmax.f32 %v3199, 0.0
  %v4798 = vmax.f32 %v3848, 0.0
  %v4799 = vmax.f32 %v1904, 0.0
  %v4800 = vmax.f32 %v2553, 0.0
  %v4801 = vmax.f32 %v3202, 0.0
  %v4802 = vmax.f32 %v3851, 0.0
  %v4803 = vmax.f32 %v1906, 0.0
  %v4804 = vmax.f32 %v2555, 0.0
  %v4805 = vmax.f32 %v3204, 0.0
  %v4806 = vmax.f32 %v3853, 0.0
  %v4807 = vmax.f32 %v1909, 0.0
  %v4808 = vmax.f32 %v2558, 0.0
  %v4809 = vmax.f32 %v3207, 0.0
  %v4810 = vmax.f32 %v3856, 0.0
  %v4811 = vmax.f32 %v1911, 0.0
  %v4812 = vmax.f32 %v2560, 0.0
  %v4813 = vmax.f32 %v3209, 0.0
  %v4814 = vmax.f32 %v3858, 0.0
  %v4815 = vmax.f32 %v1914, 0.0
  %v4816 = vmax.f32 %v2563, 0.0
  %v4817 = vmax.f32 %v3212, 0.0
  %v4818 = vmax.f32 %v3861, 0.0
  %v4819 = vmax.f32 %v1916, 0.0
  %v4820 = vmax.f32 %v2565, 0.0
  %v4821 = vmax.f32 %v3214, 0.0
  %v4822 = vmax.f32 %v3863, 0.0
  %v4823 = vmax.f32 %v1919, 0.0
  %v4824 = vmax.f32 %v2568, 0.0
  %v4825 = vmax.f32 %v3217, 0.0
  %v4826 = vmax.f32 %v3866, 0.0
  %v4827 = vmax.f32 %v1921, 0.0
  %v4828 = vmax.f32 %v2570, 0.0
  %v4829 = vmax.f32 %v3219, 0.0
  %v4830 = vmax.f32 %v3868, 0.0
  %v4831 = vmax.f32 %v1924, 0.0
  %v4832 = vmax.f32 %v2573, 0.0
  %v4833 = vmax.f32 %v3222, 0.0
  %v4834 = vmax.f32 %v3871, 0.0
  %v4835 = vmax.f32 %v1926, 0.0
  %v4836 = vmax.f32 %v2575, 0.0
  %v4837 = vmax.f32 %v3224, 0.0
  %v4838 = vmax.f32 %v3873, 0.0
  %v4839 = vmax.f32 %v1929, 0.0
  %v4840 = vmax.f32 %v2578, 0.0
  %v4841 = vmax.f32 %v3227, 0.0
  %v4842 = vmax.f32 %v3876, 0.0
  %v4843 = vmax.f32 %v1931, 0.0
  %v4844 = vmax.f32 %v2580, 0.0
  %v4845 = vmax.f32 %v3229, 0.0
  %v4846 = vmax.f32 %v3878, 0.0
  %v4847 = vmax.f32 %v1934, 0.0
  %v4848 = vmax.f32 %v2583, 0.0
  %v4849 = vmax.f32 %v3232, 0.0
  %v4850 = vmax.f32 %v3881, 0.0
  %v4851 = vmax.f32 %v1936, 0.0
  %v4852 = vmax.f32 %v2585, 0.0
  %v4853 = vmax.f32 %v3234, 0.0
  %v4854 = vmax.f32 %v3883, 0.0
  %v4855 = vmax.f32 %v1939, 0.0
  %v4856 = vmax.f32 %v2588, 0.0
  %v4857 = vmax.f32 %v3237, 0.0
  %v4858 = vmax.f32 %v3886, 0.0
  %v4859 = vmax.f32 %v1941, 0.0
  %v4860 = vmax.f32 %v2590, 0.0
  %v4861 = vmax.f32 %v3239, 0.0
  %v4862 = vmax.f32 %v3888, 0.0
  %v4863 = vmax.f32 %v1944, 0.0
  %v4864 = vmax.f32 %v2593, 0.0
  %v4865 = vmax.f32 %v3242, 0.0
  %v4866 = vmax.f32 %v3891, 0.0
  %v4867 = vmax.f32 %v1946, 0.0
  %v4868 = vmax.f32 %v2595, 0.0
  %v4869 = vmax.f32 %v3244, 0.0
  %v4870 = vmax.f32 %v3893, 0.0
  %v4871 = vmax.f32 %v1949, 0.0
  %v4872 = vmax.f32 %v2598, 0.0
  %v4873 = vmax.f32 %v3247, 0.0
  %v4874 = vmax.f32 %v3896, 0.0
  %v4875 = vmax.f32 %v1951, 0.0
  %v4876 = vmax.f32 %v2600, 0.0
  %v4877 = vmax.f32 %v3249, 0.0
  %v4878 = vmax.f32 %v3898, 0.0
  %v4879 = vmax.f32 %v1954, 0.0
  %v4880 = vmax.f32 %v2603, 0.0
  %v4881 = vmax.f32 %v3252, 0.0
  %v4882 = vmax.f32 %v3901, 0.0
  %v4883 = vmax.f32 %v1956, 0.0
  %v4884 = vmax.f32 %v2605, 0.0
  %v4885 = vmax.f32 %v3254, 0.0
  %v4886 = vmax.f32 %v3903, 0.0
  %v4887 = vmax.f32 %v1959, 0.0
  %v4888 = vmax.f32 %v2608, 0.0
  %v4889 = vmax.f32 %v3257, 0.0
  %v4890 = vmax.f32 %v3906, 0.0
  %v4891 = vmax.f32 %v1961, 0.0
  %v4892 = vmax.f32 %v2610, 0.0
  %v4893 = vmax.f32 %v3259, 0.0
  %v4894 = vmax.f32 %v3908, 0.0
  %v4895 = vmax.f32 %v1964, 0.0
  %v4896 = vmax.f32 %v2613, 0.0
  %v4897 = vmax.f32 %v3262, 0.0
  %v4898 = vmax.f32 %v3911, 0.0
  %v4899 = vmax.f32 %v1966, 0.0
  %v4900 = vmax.f32 %v2615, 0.0
  %v4901 = vmax.f32 %v3264, 0.0
  %v4902 = vmax.f32 %v3913, 0.0
  %v4903 = vmax.f32 %v1969, 0.0
  %v4904 = vmax.f32 %v2618, 0.0
  %v4905 = vmax.f32 %v3267, 0.0
  %v4906 = vmax.f32 %v3916, 0.0
  %v4907 = vmax.f32 %v1971, 0.0
  %v4908 = vmax.f32 %v2620, 0.0
  %v4909 = vmax.f32 %v3269, 0.0
  %v4910 = vmax.f32 %v3918, 0.0
  %v4911 = vmax.f32 %v1974, 0.0
  %v4912 = vmax.f32 %v2623, 0.0
  %v4913 = vmax.f32 %v3272, 0.0
  %v4914 = vmax.f32 %v3921, 0.0
  %v4915 = vmax.f32 %v1976, 0.0
  %v4916 = vmax.f32 %v2625, 0.0
  %v4917 = vmax.f32 %v3274, 0.0
  %v4918 = vmax.f32 %v3923, 0.0
  %v4919 = vmax.f32 %v1979, 0.0
  %v4920 = vmax.f32 %v2628, 0.0
  %v4921 = vmax.f32 %v3277, 0.0
  %v4922 = vmax.f32 %v3926, 0.0
  %v4923 = vmax.f32 %v1981, 0.0
  %v4924 = vmax.f32 %v2630, 0.0
  %v4925 = vmax.f32 %v3279, 0.0
  %v4926 = vmax.f32 %v3928, 0.0
  %v4927 = vmax.f32 %v1984, 0.0
  %v4928 = vmax.f32 %v2633, 0.0
  %v4929 = vmax.f32 %v3282, 0.0
  %v4930 = vmax.f32 %v3931, 0.0
  %v4931 = vmax.f32 %v1986, 0.0
  %v4932 = vmax.f32 %v2635, 0.0
  %v4933 = vmax.f32 %v3284, 0.0
  %v4934 = vmax.f32 %v3933, 0.0
  %v4935 = vmax.f32 %v1989, 0.0
  %v4936 = vmax.f32 %v2638, 0.0
  %v4937 = vmax.f32 %v3287, 0.0
  %v4938 = vmax.f32 %v3936, 0.0
  %v4939 = vmax.f32 %v1991, 0.0
  %v4940 = vmax.f32 %v2640, 0.0
  %v4941 = vmax.f32 %v3289, 0.0
  %v4942 = vmax.f32 %v3938, 0.0
  %v4943 = vmax.f32 %v1994, 0.0
  %v4944 = vmax.f32 %v2643, 0.0
  %v4945 = vmax.f32 %v3292, 0.0
  %v4946 = vmax.f32 %v3941, 0.0
  %v4947 = vmax.f32 %v1996, 0.0
  %v4948 = vmax.f32 %v2645, 0.0
  %v4949 = vmax.f32 %v3294, 0.0
  %v4950 = vmax.f32 %v3943, 0.0
  %v4951 = vmax.f32 %v1999, 0.0
  %v4952 = vmax.f32 %v2648, 0.0
  %v4953 = vmax.f32 %v3297, 0.0
  %v4954 = vmax.f32 %v3946, 0.0
  %v4955 = vmax.f32 %v2001, 0.0
  %v4956 = vmax.f32 %v2650, 0.0
  %v4957 = vmax.f32 %v3299, 0.0
  %v4958 = vmax.f32 %v3948, 0.0
  %v4959 = vmax.f32 %v2004, 0.0
  %v4960 = vmax.f32 %v2653, 0.0
  %v4961 = vmax.f32 %v3302, 0.0
  %v4962 = vmax.f32 %v3951, 0.0
  %v4963 = vmax.f32 %v2006, 0.0
  %v4964 = vmax.f32 %v2655, 0.0
  %v4965 = vmax.f32 %v3304, 0.0
  %v4966 = vmax.f32 %v3953, 0.0
  %v4967 = vmax.f32 %v2009, 0.0
  %v4968 = vmax.f32 %v2658, 0.0
  %v4969 = vmax.f32 %v3307, 0.0
  %v4970 = vmax.f32 %v3956, 0.0
  %v4971 = vmax.f32 %v2011, 0.0
  %v4972 = vmax.f32 %v2660, 0.0
  %v4973 = vmax.f32 %v3309, 0.0
  %v4974 = vmax.f32 %v3958, 0.0
  %v4975 = vmax.f32 %v2014, 0.0
  %v4976 = vmax.f32 %v2663, 0.0
  %v4977 = vmax.f32 %v3312, 0.0
  %v4978 = vmax.f32 %v3961, 0.0
  %v4979 = vmax.f32 %v2016, 0.0
  %v4980 = vmax.f32 %v2665, 0.0
  %v4981 = vmax.f32 %v3314, 0.0
  %v4982 = vmax.f32 %v3963, 0.0
  %v4983 = vmax.f32 %v2019, 0.0
  %v4984 = vmax.f32 %v2668, 0.0
  %v4985 = vmax.f32 %v3317, 0.0
  %v4986 = vmax.f32 %v3966, 0.0
  %v4987 = vmax.f32 %v2021, 0.0
  %v4988 = vmax.f32 %v2670, 0.0
  %v4989 = vmax.f32 %v3319, 0.0
  %v4990 = vmax.f32 %v3968, 0.0
  %v4991 = vmax.f32 %v2024, 0.0
  %v4992 = vmax.f32 %v2673, 0.0
  %v4993 = vmax.f32 %v3322, 0.0
  %v4994 = vmax.f32 %v3971, 0.0
  %v4995 = vmax.f32 %v2026, 0.0
  %v4996 = vmax.f32 %v2675, 0.0
  %v4997 = vmax.f32 %v3324, 0.0
  %v4998 = vmax.f32 %v3973, 0.0
  %v4999 = vadd.f32 %v3975, %v3979
  %v5000 = vadd.f32 %v4999, %v3983
  %v5001 = vadd.f32 %v5000, %v3987
  %v5002 = vadd.f32 %v5001, %v3991
  %v5003 = vadd.f32 %v5002, %v3995
  %v5004 = vadd.f32 %v5003, %v3999
  %v5005 = vadd.f32 %v5004, %v4003
  %v5006 = vadd.f32 %v5005, %v4007
  %v5007 = vadd.f32 %v5006, %v4011
  %v5008 = vadd.f32 %v5007, %v4015
  %v5009 = vadd.f32 %v5008, %v4019
  %v5010 = vadd.f32 %v5009, %v4023
  %v5011 = vadd.f32 %v5010, %v4027
  %v5012 = vadd.f32 %v5011, %v4031
  %v5013 = vadd.f32 %v5012, %v4035
  %v5014 = vadd.f32 %v5013, %v4039
  %v5015 = vadd.f32 %v5014, %v4043
  %v5016 = vadd.f32 %v5015, %v4047
  %v5017 = vadd.f32 %v5016, %v4051
  %v5018 = vadd.f32 %v5017, %v4055
  %v5019 = vadd.f32 %v5018, %v4059
  %v5020 = vadd.f32 %v5019, %v4063
  %v5021 = vadd.f32 %v5020, %v4067
  %v5022 = vadd.f32 %v5021, %v4071
  %v5023 = vadd.f32 %v5022, %v4075
  %v5024 = vadd.f32 %v5023, %v4079
  %v5025 = vadd.f32 %v5024, %v4083
  %v5026 = vadd.f32 %v5025, %v4087
  %v5027 = vadd.f32 %v5026, %v4091
  %v5028 = vadd.f32 %v5027, %v4095
  %v5029 = vadd.f32 %v5028, %v4099
  %v5030 = vrot.slane %v5029, 4
  %v5031 = vadd.f32 %v5029, %v5030
  %v5032 = vrot.slane %v5031, 2
  %v5033 = vadd.f32 %v5031, %v5032
  %v5034 = vrot.slane %v5033, 1
  %v5035 = vadd.f32 %v5033, %v5034
  %v5036 = vadd.f32 %v3976, %v3980
  %v5037 = vadd.f32 %v5036, %v3984
  %v5038 = vadd.f32 %v5037, %v3988
  %v5039 = vadd.f32 %v5038, %v3992
  %v5040 = vadd.f32 %v5039, %v3996
  %v5041 = vadd.f32 %v5040, %v4000
  %v5042 = vadd.f32 %v5041, %v4004
  %v5043 = vadd.f32 %v5042, %v4008
  %v5044 = vadd.f32 %v5043, %v4012
  %v5045 = vadd.f32 %v5044, %v4016
  %v5046 = vadd.f32 %v5045, %v4020
  %v5047 = vadd.f32 %v5046, %v4024
  %v5048 = vadd.f32 %v5047, %v4028
  %v5049 = vadd.f32 %v5048, %v4032
  %v5050 = vadd.f32 %v5049, %v4036
  %v5051 = vadd.f32 %v5050, %v4040
  %v5052 = vadd.f32 %v5051, %v4044
  %v5053 = vadd.f32 %v5052, %v4048
  %v5054 = vadd.f32 %v5053, %v4052
  %v5055 = vadd.f32 %v5054, %v4056
  %v5056 = vadd.f32 %v5055, %v4060
  %v5057 = vadd.f32 %v5056, %v4064
  %v5058 = vadd.f32 %v5057, %v4068
  %v5059 = vadd.f32 %v5058, %v4072
  %v5060 = vadd.f32 %v5059, %v4076
  %v5061 = vadd.f32 %v5060, %v4080
  %v5062 = vadd.f32 %v5061, %v4084
  %v5063 = vadd.f32 %v5062, %v4088
  %v5064 = vadd.f32 %v5063, %v4092
  %v5065 = vadd.f32 %v5064, %v4096
  %v5066 = vadd.f32 %v5065, %v4100
  %v5067 = vrot.slane %v5066, 4
  %v5068 = vadd.f32 %v5066, %v5067
  %v5069 = vrot.slane %v5068, 2
  %v5070 = vadd.f32 %v5068, %v5069
  %v5071 = vrot.slane %v5070, 1
  %v5072 = vadd.f32 %v5070, %v5071
  %v5073 = vadd.f32 %v3977, %v3981
  %v5074 = vadd.f32 %v5073, %v3985
  %v5075 = vadd.f32 %v5074, %v3989
  %v5076 = vadd.f32 %v5075, %v3993
  %v5077 = vadd.f32 %v5076, %v3997
  %v5078 = vadd.f32 %v5077, %v4001
  %v5079 = vadd.f32 %v5078, %v4005
  %v5080 = vadd.f32 %v5079, %v4009
  %v5081 = vadd.f32 %v5080, %v4013
  %v5082 = vadd.f32 %v5081, %v4017
  %v5083 = vadd.f32 %v5082, %v4021
  %v5084 = vadd.f32 %v5083, %v4025
  %v5085 = vadd.f32 %v5084, %v4029
  %v5086 = vadd.f32 %v5085, %v4033
  %v5087 = vadd.f32 %v5086, %v4037
  %v5088 = vadd.f32 %v5087, %v4041
  %v5089 = vadd.f32 %v5088, %v4045
  %v5090 = vadd.f32 %v5089, %v4049
  %v5091 = vadd.f32 %v5090, %v4053
  %v5092 = vadd.f32 %v5091, %v4057
  %v5093 = vadd.f32 %v5092, %v4061
  %v5094 = vadd.f32 %v5093, %v4065
  %v5095 = vadd.f32 %v5094, %v4069
  %v5096 = vadd.f32 %v5095, %v4073
  %v5097 = vadd.f32 %v5096, %v4077
  %v5098 = vadd.f32 %v5097, %v4081
  %v5099 = vadd.f32 %v5098, %v4085
  %v5100 = vadd.f32 %v5099, %v4089
  %v5101 = vadd.f32 %v5100, %v4093
  %v5102 = vadd.f32 %v5101, %v4097
  %v5103 = vadd.f32 %v5102, %v4101
  %v5104 = vrot.slane %v5103, 4
  %v5105 = vadd.f32 %v5103, %v5104
  %v5106 = vrot.slane %v5105, 2
  %v5107 = vadd.f32 %v5105, %v5106
  %v5108 = vrot.slane %v5107, 1
  %v5109 = vadd.f32 %v5107, %v5108
  %v5110 = vadd.f32 %v3978, %v3982
  %v5111 = vadd.f32 %v5110, %v3986
  %v5112 = vadd.f32 %v5111, %v3990
  %v5113 = vadd.f32 %v5112, %v3994
  %v5114 = vadd.f32 %v5113, %v3998
  %v5115 = vadd.f32 %v5114, %v4002
  %v5116 = vadd.f32 %v5115, %v4006
  %v5117 = vadd.f32 %v5116, %v4010
  %v5118 = vadd.f32 %v5117, %v4014
  %v5119 = vadd.f32 %v5118, %v4018
  %v5120 = vadd.f32 %v5119, %v4022
  %v5121 = vadd.f32 %v5120, %v4026
  %v5122 = vadd.f32 %v5121, %v4030
  %v5123 = vadd.f32 %v5122, %v4034
  %v5124 = vadd.f32 %v5123, %v4038
  %v5125 = vadd.f32 %v5124, %v4042
  %v5126 = vadd.f32 %v5125, %v4046
  %v5127 = vadd.f32 %v5126, %v4050
  %v5128 = vadd.f32 %v5127, %v4054
  %v5129 = vadd.f32 %v5128, %v4058
  %v5130 = vadd.f32 %v5129, %v4062
  %v5131 = vadd.f32 %v5130, %v4066
  %v5132 = vadd.f32 %v5131, %v4070
  %v5133 = vadd.f32 %v5132, %v4074
  %v5134 = vadd.f32 %v5133, %v4078
  %v5135 = vadd.f32 %v5134, %v4082
  %v5136 = vadd.f32 %v5135, %v4086
  %v5137 = vadd.f32 %v5136, %v4090
  %v5138 = vadd.f32 %v5137, %v4094
  %v5139 = vadd.f32 %v5138, %v4098
  %v5140 = vadd.f32 %v5139, %v4102
  %v5141 = vrot.slane %v5140, 4
  %v5142 = vadd.f32 %v5140, %v5141
  %v5143 = vrot.slane %v5142, 2
  %v5144 = vadd.f32 %v5142, %v5143
  %v5145 = vrot.slane %v5144, 1
  %v5146 = vadd.f32 %v5144, %v5145
  %v5147 = vadd.f32 %v4103, %v4107
  %v5148 = vadd.f32 %v5147, %v4111
  %v5149 = vadd.f32 %v5148, %v4115
  %v5150 = vadd.f32 %v5149, %v4119
  %v5151 = vadd.f32 %v5150, %v4123
  %v5152 = vadd.f32 %v5151, %v4127
  %v5153 = vadd.f32 %v5152, %v4131
  %v5154 = vadd.f32 %v5153, %v4135
  %v5155 = vadd.f32 %v5154, %v4139
  %v5156 = vadd.f32 %v5155, %v4143
  %v5157 = vadd.f32 %v5156, %v4147
  %v5158 = vadd.f32 %v5157, %v4151
  %v5159 = vadd.f32 %v5158, %v4155
  %v5160 = vadd.f32 %v5159, %v4159
  %v5161 = vadd.f32 %v5160, %v4163
  %v5162 = vadd.f32 %v5161, %v4167
  %v5163 = vadd.f32 %v5162, %v4171
  %v5164 = vadd.f32 %v5163, %v4175
  %v5165 = vadd.f32 %v5164, %v4179
  %v5166 = vadd.f32 %v5165, %v4183
  %v5167 = vadd.f32 %v5166, %v4187
  %v5168 = vadd.f32 %v5167, %v4191
  %v5169 = vadd.f32 %v5168, %v4195
  %v5170 = vadd.f32 %v5169, %v4199
  %v5171 = vadd.f32 %v5170, %v4203
  %v5172 = vadd.f32 %v5171, %v4207
  %v5173 = vadd.f32 %v5172, %v4211
  %v5174 = vadd.f32 %v5173, %v4215
  %v5175 = vadd.f32 %v5174, %v4219
  %v5176 = vadd.f32 %v5175, %v4223
  %v5177 = vadd.f32 %v5176, %v4227
  %v5178 = vrot.slane %v5177, 4
  %v5179 = vadd.f32 %v5177, %v5178
  %v5180 = vrot.slane %v5179, 2
  %v5181 = vadd.f32 %v5179, %v5180
  %v5182 = vrot.slane %v5181, 1
  %v5183 = vadd.f32 %v5181, %v5182
  %v5184 = vadd.f32 %v4104, %v4108
  %v5185 = vadd.f32 %v5184, %v4112
  %v5186 = vadd.f32 %v5185, %v4116
  %v5187 = vadd.f32 %v5186, %v4120
  %v5188 = vadd.f32 %v5187, %v4124
  %v5189 = vadd.f32 %v5188, %v4128
  %v5190 = vadd.f32 %v5189, %v4132
  %v5191 = vadd.f32 %v5190, %v4136
  %v5192 = vadd.f32 %v5191, %v4140
  %v5193 = vadd.f32 %v5192, %v4144
  %v5194 = vadd.f32 %v5193, %v4148
  %v5195 = vadd.f32 %v5194, %v4152
  %v5196 = vadd.f32 %v5195, %v4156
  %v5197 = vadd.f32 %v5196, %v4160
  %v5198 = vadd.f32 %v5197, %v4164
  %v5199 = vadd.f32 %v5198, %v4168
  %v5200 = vadd.f32 %v5199, %v4172
  %v5201 = vadd.f32 %v5200, %v4176
  %v5202 = vadd.f32 %v5201, %v4180
  %v5203 = vadd.f32 %v5202, %v4184
  %v5204 = vadd.f32 %v5203, %v4188
  %v5205 = vadd.f32 %v5204, %v4192
  %v5206 = vadd.f32 %v5205, %v4196
  %v5207 = vadd.f32 %v5206, %v4200
  %v5208 = vadd.f32 %v5207, %v4204
  %v5209 = vadd.f32 %v5208, %v4208
  %v5210 = vadd.f32 %v5209, %v4212
  %v5211 = vadd.f32 %v5210, %v4216
  %v5212 = vadd.f32 %v5211, %v4220
  %v5213 = vadd.f32 %v5212, %v4224
  %v5214 = vadd.f32 %v5213, %v4228
  %v5215 = vrot.slane %v5214, 4
  %v5216 = vadd.f32 %v5214, %v5215
  %v5217 = vrot.slane %v5216, 2
  %v5218 = vadd.f32 %v5216, %v5217
  %v5219 = vrot.slane %v5218, 1
  %v5220 = vadd.f32 %v5218, %v5219
  %v5221 = vadd.f32 %v4105, %v4109
  %v5222 = vadd.f32 %v5221, %v4113
  %v5223 = vadd.f32 %v5222, %v4117
  %v5224 = vadd.f32 %v5223, %v4121
  %v5225 = vadd.f32 %v5224, %v4125
  %v5226 = vadd.f32 %v5225, %v4129
  %v5227 = vadd.f32 %v5226, %v4133
  %v5228 = vadd.f32 %v5227, %v4137
  %v5229 = vadd.f32 %v5228, %v4141
  %v5230 = vadd.f32 %v5229, %v4145
  %v5231 = vadd.f32 %v5230, %v4149
  %v5232 = vadd.f32 %v5231, %v4153
  %v5233 = vadd.f32 %v5232, %v4157
  %v5234 = vadd.f32 %v5233, %v4161
  %v5235 = vadd.f32 %v5234, %v4165
  %v5236 = vadd.f32 %v5235, %v4169
  %v5237 = vadd.f32 %v5236, %v4173
  %v5238 = vadd.f32 %v5237, %v4177
  %v5239 = vadd.f32 %v5238, %v4181
  %v5240 = vadd.f32 %v5239, %v4185
  %v5241 = vadd.f32 %v5240, %v4189
  %v5242 = vadd.f32 %v5241, %v4193
  %v5243 = vadd.f32 %v5242, %v4197
  %v5244 = vadd.f32 %v5243, %v4201
  %v5245 = vadd.f32 %v5244, %v4205
  %v5246 = vadd.f32 %v5245, %v4209
  %v5247 = vadd.f32 %v5246, %v4213
  %v5248 = vadd.f32 %v5247, %v4217
  %v5249 = vadd.f32 %v5248, %v4221
  %v5250 = vadd.f32 %v5249, %v4225
  %v5251 = vadd.f32 %v5250, %v4229
  %v5252 = vrot.slane %v5251, 4
  %v5253 = vadd.f32 %v5251, %v5252
  %v5254 = vrot.slane %v5253, 2
  %v5255 = vadd.f32 %v5253, %v5254
  %v5256 = vrot.slane %v5255, 1
  %v5257 = vadd.f32 %v5255, %v5256
  %v5258 = vadd.f32 %v4106, %v4110
  %v5259 = vadd.f32 %v5258, %v4114
  %v5260 = vadd.f32 %v5259, %v4118
  %v5261 = vadd.f32 %v5260, %v4122
  %v5262 = vadd.f32 %v5261, %v4126
  %v5263 = vadd.f32 %v5262, %v4130
  %v5264 = vadd.f32 %v5263, %v4134
  %v5265 = vadd.f32 %v5264, %v4138
  %v5266 = vadd.f32 %v5265, %v4142
  %v5267 = vadd.f32 %v5266, %v4146
  %v5268 = vadd.f32 %v5267, %v4150
  %v5269 = vadd.f32 %v5268, %v4154
  %v5270 = vadd.f32 %v5269, %v4158
  %v5271 = vadd.f32 %v5270, %v4162
  %v5272 = vadd.f32 %v5271, %v4166
  %v5273 = vadd.f32 %v5272, %v4170
  %v5274 = vadd.f32 %v5273, %v4174
  %v5275 = vadd.f32 %v5274, %v4178
  %v5276 = vadd.f32 %v5275, %v4182
  %v5277 = vadd.f32 %v5276, %v4186
  %v5278 = vadd.f32 %v5277, %v4190
  %v5279 = vadd.f32 %v5278, %v4194
  %v5280 = vadd.f32 %v5279, %v4198
  %v5281 = vadd.f32 %v5280, %v4202
  %v5282 = vadd.f32 %v5281, %v4206
  %v5283 = vadd.f32 %v5282, %v4210
  %v5284 = vadd.f32 %v5283, %v4214
  %v5285 = vadd.f32 %v5284, %v4218
  %v5286 = vadd.f32 %v5285, %v4222
  %v5287 = vadd.f32 %v5286, %v4226
  %v5288 = vadd.f32 %v5287, %v4230
  %v5289 = vrot.slane %v5288, 4
  %v5290 = vadd.f32 %v5288, %v5289
  %v5291 = vrot.slane %v5290, 2
  %v5292 = vadd.f32 %v5290, %v5291
  %v5293 = vrot.slane %v5292, 1
  %v5294 = vadd.f32 %v5292, %v5293
  %v5295 = vadd.f32 %v4231, %v4235
  %v5296 = vadd.f32 %v5295, %v4239
  %v5297 = vadd.f32 %v5296, %v4243
  %v5298 = vadd.f32 %v5297, %v4247
  %v5299 = vadd.f32 %v5298, %v4251
  %v5300 = vadd.f32 %v5299, %v4255
  %v5301 = vadd.f32 %v5300, %v4259
  %v5302 = vadd.f32 %v5301, %v4263
  %v5303 = vadd.f32 %v5302, %v4267
  %v5304 = vadd.f32 %v5303, %v4271
  %v5305 = vadd.f32 %v5304, %v4275
  %v5306 = vadd.f32 %v5305, %v4279
  %v5307 = vadd.f32 %v5306, %v4283
  %v5308 = vadd.f32 %v5307, %v4287
  %v5309 = vadd.f32 %v5308, %v4291
  %v5310 = vadd.f32 %v5309, %v4295
  %v5311 = vadd.f32 %v5310, %v4299
  %v5312 = vadd.f32 %v5311, %v4303
  %v5313 = vadd.f32 %v5312, %v4307
  %v5314 = vadd.f32 %v5313, %v4311
  %v5315 = vadd.f32 %v5314, %v4315
  %v5316 = vadd.f32 %v5315, %v4319
  %v5317 = vadd.f32 %v5316, %v4323
  %v5318 = vadd.f32 %v5317, %v4327
  %v5319 = vadd.f32 %v5318, %v4331
  %v5320 = vadd.f32 %v5319, %v4335
  %v5321 = vadd.f32 %v5320, %v4339
  %v5322 = vadd.f32 %v5321, %v4343
  %v5323 = vadd.f32 %v5322, %v4347
  %v5324 = vadd.f32 %v5323, %v4351
  %v5325 = vadd.f32 %v5324, %v4355
  %v5326 = vrot.slane %v5325, 4
  %v5327 = vadd.f32 %v5325, %v5326
  %v5328 = vrot.slane %v5327, 2
  %v5329 = vadd.f32 %v5327, %v5328
  %v5330 = vrot.slane %v5329, 1
  %v5331 = vadd.f32 %v5329, %v5330
  %v5332 = vadd.f32 %v4232, %v4236
  %v5333 = vadd.f32 %v5332, %v4240
  %v5334 = vadd.f32 %v5333, %v4244
  %v5335 = vadd.f32 %v5334, %v4248
  %v5336 = vadd.f32 %v5335, %v4252
  %v5337 = vadd.f32 %v5336, %v4256
  %v5338 = vadd.f32 %v5337, %v4260
  %v5339 = vadd.f32 %v5338, %v4264
  %v5340 = vadd.f32 %v5339, %v4268
  %v5341 = vadd.f32 %v5340, %v4272
  %v5342 = vadd.f32 %v5341, %v4276
  %v5343 = vadd.f32 %v5342, %v4280
  %v5344 = vadd.f32 %v5343, %v4284
  %v5345 = vadd.f32 %v5344, %v4288
  %v5346 = vadd.f32 %v5345, %v4292
  %v5347 = vadd.f32 %v5346, %v4296
  %v5348 = vadd.f32 %v5347, %v4300
  %v5349 = vadd.f32 %v5348, %v4304
  %v5350 = vadd.f32 %v5349, %v4308
  %v5351 = vadd.f32 %v5350, %v4312
  %v5352 = vadd.f32 %v5351, %v4316
  %v5353 = vadd.f32 %v5352, %v4320
  %v5354 = vadd.f32 %v5353, %v4324
  %v5355 = vadd.f32 %v5354, %v4328
  %v5356 = vadd.f32 %v5355, %v4332
  %v5357 = vadd.f32 %v5356, %v4336
  %v5358 = vadd.f32 %v5357, %v4340
  %v5359 = vadd.f32 %v5358, %v4344
  %v5360 = vadd.f32 %v5359, %v4348
  %v5361 = vadd.f32 %v5360, %v4352
  %v5362 = vadd.f32 %v5361, %v4356
  %v5363 = vrot.slane %v5362, 4
  %v5364 = vadd.f32 %v5362, %v5363
  %v5365 = vrot.slane %v5364, 2
  %v5366 = vadd.f32 %v5364, %v5365
  %v5367 = vrot.slane %v5366, 1
  %v5368 = vadd.f32 %v5366, %v5367
  %v5369 = vadd.f32 %v4233, %v4237
  %v5370 = vadd.f32 %v5369, %v4241
  %v5371 = vadd.f32 %v5370, %v4245
  %v5372 = vadd.f32 %v5371, %v4249
  %v5373 = vadd.f32 %v5372, %v4253
  %v5374 = vadd.f32 %v5373, %v4257
  %v5375 = vadd.f32 %v5374, %v4261
  %v5376 = vadd.f32 %v5375, %v4265
  %v5377 = vadd.f32 %v5376, %v4269
  %v5378 = vadd.f32 %v5377, %v4273
  %v5379 = vadd.f32 %v5378, %v4277
  %v5380 = vadd.f32 %v5379, %v4281
  %v5381 = vadd.f32 %v5380, %v4285
  %v5382 = vadd.f32 %v5381, %v4289
  %v5383 = vadd.f32 %v5382, %v4293
  %v5384 = vadd.f32 %v5383, %v4297
  %v5385 = vadd.f32 %v5384, %v4301
  %v5386 = vadd.f32 %v5385, %v4305
  %v5387 = vadd.f32 %v5386, %v4309
  %v5388 = vadd.f32 %v5387, %v4313
  %v5389 = vadd.f32 %v5388, %v4317
  %v5390 = vadd.f32 %v5389, %v4321
  %v5391 = vadd.f32 %v5390, %v4325
  %v5392 = vadd.f32 %v5391, %v4329
  %v5393 = vadd.f32 %v5392, %v4333
  %v5394 = vadd.f32 %v5393, %v4337
  %v5395 = vadd.f32 %v5394, %v4341
  %v5396 = vadd.f32 %v5395, %v4345
  %v5397 = vadd.f32 %v5396, %v4349
  %v5398 = vadd.f32 %v5397, %v4353
  %v5399 = vadd.f32 %v5398, %v4357
  %v5400 = vrot.slane %v5399, 4
  %v5401 = vadd.f32 %v5399, %v5400
  %v5402 = vrot.slane %v5401, 2
  %v5403 = vadd.f32 %v5401, %v5402
  %v5404 = vrot.slane %v5403, 1
  %v5405 = vadd.f32 %v5403, %v5404
  %v5406 = vadd.f32 %v4234, %v4238
  %v5407 = vadd.f32 %v5406, %v4242
  %v5408 = vadd.f32 %v5407, %v4246
  %v5409 = vadd.f32 %v5408, %v4250
  %v5410 = vadd.f32 %v5409, %v4254
  %v5411 = vadd.f32 %v5410, %v4258
  %v5412 = vadd.f32 %v5411, %v4262
  %v5413 = vadd.f32 %v5412, %v4266
  %v5414 = vadd.f32 %v5413, %v4270
  %v5415 = vadd.f32 %v5414, %v4274
  %v5416 = vadd.f32 %v5415, %v4278
  %v5417 = vadd.f32 %v5416, %v4282
  %v5418 = vadd.f32 %v5417, %v4286
  %v5419 = vadd.f32 %v5418, %v4290
  %v5420 = vadd.f32 %v5419, %v4294
  %v5421 = vadd.f32 %v5420, %v4298
  %v5422 = vadd.f32 %v5421, %v4302
  %v5423 = vadd.f32 %v5422, %v4306
  %v5424 = vadd.f32 %v5423, %v4310
  %v5425 = vadd.f32 %v5424, %v4314
  %v5426 = vadd.f32 %v5425, %v4318
  %v5427 = vadd.f32 %v5426, %v4322
  %v5428 = vadd.f32 %v5427, %v4326
  %v5429 = vadd.f32 %v5428, %v4330
  %v5430 = vadd.f32 %v5429, %v4334
  %v5431 = vadd.f32 %v5430, %v4338
  %v5432 = vadd.f32 %v5431, %v4342
  %v5433 = vadd.f32 %v5432, %v4346
  %v5434 = vadd.f32 %v5433, %v4350
  %v5435 = vadd.f32 %v5434, %v4354
  %v5436 = vadd.f32 %v5435, %v4358
  %v5437 = vrot.slane %v5436, 4
  %v5438 = vadd.f32 %v5436, %v5437
  %v5439 = vrot.slane %v5438, 2
  %v5440 = vadd.f32 %v5438, %v5439
  %v5441 = vrot.slane %v5440, 1
  %v5442 = vadd.f32 %v5440, %v5441
  %v5443 = vadd.f32 %v4359, %v4363
  %v5444 = vadd.f32 %v5443, %v4367
  %v5445 = vadd.f32 %v5444, %v4371
  %v5446 = vadd.f32 %v5445, %v4375
  %v5447 = vadd.f32 %v5446, %v4379
  %v5448 = vadd.f32 %v5447, %v4383
  %v5449 = vadd.f32 %v5448, %v4387
  %v5450 = vadd.f32 %v5449, %v4391
  %v5451 = vadd.f32 %v5450, %v4395
  %v5452 = vadd.f32 %v5451, %v4399
  %v5453 = vadd.f32 %v5452, %v4403
  %v5454 = vadd.f32 %v5453, %v4407
  %v5455 = vadd.f32 %v5454, %v4411
  %v5456 = vadd.f32 %v5455, %v4415
  %v5457 = vadd.f32 %v5456, %v4419
  %v5458 = vadd.f32 %v5457, %v4423
  %v5459 = vadd.f32 %v5458, %v4427
  %v5460 = vadd.f32 %v5459, %v4431
  %v5461 = vadd.f32 %v5460, %v4435
  %v5462 = vadd.f32 %v5461, %v4439
  %v5463 = vadd.f32 %v5462, %v4443
  %v5464 = vadd.f32 %v5463, %v4447
  %v5465 = vadd.f32 %v5464, %v4451
  %v5466 = vadd.f32 %v5465, %v4455
  %v5467 = vadd.f32 %v5466, %v4459
  %v5468 = vadd.f32 %v5467, %v4463
  %v5469 = vadd.f32 %v5468, %v4467
  %v5470 = vadd.f32 %v5469, %v4471
  %v5471 = vadd.f32 %v5470, %v4475
  %v5472 = vadd.f32 %v5471, %v4479
  %v5473 = vadd.f32 %v5472, %v4483
  %v5474 = vrot.slane %v5473, 4
  %v5475 = vadd.f32 %v5473, %v5474
  %v5476 = vrot.slane %v5475, 2
  %v5477 = vadd.f32 %v5475, %v5476
  %v5478 = vrot.slane %v5477, 1
  %v5479 = vadd.f32 %v5477, %v5478
  %v5480 = vadd.f32 %v4360, %v4364
  %v5481 = vadd.f32 %v5480, %v4368
  %v5482 = vadd.f32 %v5481, %v4372
  %v5483 = vadd.f32 %v5482, %v4376
  %v5484 = vadd.f32 %v5483, %v4380
  %v5485 = vadd.f32 %v5484, %v4384
  %v5486 = vadd.f32 %v5485, %v4388
  %v5487 = vadd.f32 %v5486, %v4392
  %v5488 = vadd.f32 %v5487, %v4396
  %v5489 = vadd.f32 %v5488, %v4400
  %v5490 = vadd.f32 %v5489, %v4404
  %v5491 = vadd.f32 %v5490, %v4408
  %v5492 = vadd.f32 %v5491, %v4412
  %v5493 = vadd.f32 %v5492, %v4416
  %v5494 = vadd.f32 %v5493, %v4420
  %v5495 = vadd.f32 %v5494, %v4424
  %v5496 = vadd.f32 %v5495, %v4428
  %v5497 = vadd.f32 %v5496, %v4432
  %v5498 = vadd.f32 %v5497, %v4436
  %v5499 = vadd.f32 %v5498, %v4440
  %v5500 = vadd.f32 %v5499, %v4444
  %v5501 = vadd.f32 %v5500, %v4448
  %v5502 = vadd.f32 %v5501, %v4452
  %v5503 = vadd.f32 %v5502, %v4456
  %v5504 = vadd.f32 %v5503, %v4460
  %v5505 = vadd.f32 %v5504, %v4464
  %v5506 = vadd.f32 %v5505, %v4468
  %v5507 = vadd.f32 %v5506, %v4472
  %v5508 = vadd.f32 %v5507, %v4476
  %v5509 = vadd.f32 %v5508, %v4480
  %v5510 = vadd.f32 %v5509, %v4484
  %v5511 = vrot.slane %v5510, 4
  %v5512 = vadd.f32 %v5510, %v5511
  %v5513 = vrot.slane %v5512, 2
  %v5514 = vadd.f32 %v5512, %v5513
  %v5515 = vrot.slane %v5514, 1
  %v5516 = vadd.f32 %v5514, %v5515
  %v5517 = vadd.f32 %v4361, %v4365
  %v5518 = vadd.f32 %v5517, %v4369
  %v5519 = vadd.f32 %v5518, %v4373
  %v5520 = vadd.f32 %v5519, %v4377
  %v5521 = vadd.f32 %v5520, %v4381
  %v5522 = vadd.f32 %v5521, %v4385
  %v5523 = vadd.f32 %v5522, %v4389
  %v5524 = vadd.f32 %v5523, %v4393
  %v5525 = vadd.f32 %v5524, %v4397
  %v5526 = vadd.f32 %v5525, %v4401
  %v5527 = vadd.f32 %v5526, %v4405
  %v5528 = vadd.f32 %v5527, %v4409
  %v5529 = vadd.f32 %v5528, %v4413
  %v5530 = vadd.f32 %v5529, %v4417
  %v5531 = vadd.f32 %v5530, %v4421
  %v5532 = vadd.f32 %v5531, %v4425
  %v5533 = vadd.f32 %v5532, %v4429
  %v5534 = vadd.f32 %v5533, %v4433
  %v5535 = vadd.f32 %v5534, %v4437
  %v5536 = vadd.f32 %v5535, %v4441
  %v5537 = vadd.f32 %v5536, %v4445
  %v5538 = vadd.f32 %v5537, %v4449
  %v5539 = vadd.f32 %v5538, %v4453
  %v5540 = vadd.f32 %v5539, %v4457
  %v5541 = vadd.f32 %v5540, %v4461
  %v5542 = vadd.f32 %v5541, %v4465
  %v5543 = vadd.f32 %v5542, %v4469
  %v5544 = vadd.f32 %v5543, %v4473
  %v5545 = vadd.f32 %v5544, %v4477
  %v5546 = vadd.f32 %v5545, %v4481
  %v5547 = vadd.f32 %v5546, %v4485
  %v5548 = vrot.slane %v5547, 4
  %v5549 = vadd.f32 %v5547, %v5548
  %v5550 = vrot.slane %v5549, 2
  %v5551 = vadd.f32 %v5549, %v5550
  %v5552 = vrot.slane %v5551, 1
  %v5553 = vadd.f32 %v5551, %v5552
  %v5554 = vadd.f32 %v4362, %v4366
  %v5555 = vadd.f32 %v5554, %v4370
  %v5556 = vadd.f32 %v5555, %v4374
  %v5557 = vadd.f32 %v5556, %v4378
  %v5558 = vadd.f32 %v5557, %v4382
  %v5559 = vadd.f32 %v5558, %v4386
  %v5560 = vadd.f32 %v5559, %v4390
  %v5561 = vadd.f32 %v5560, %v4394
  %v5562 = vadd.f32 %v5561, %v4398
  %v5563 = vadd.f32 %v5562, %v4402
  %v5564 = vadd.f32 %v5563, %v4406
  %v5565 = vadd.f32 %v5564, %v4410
  %v5566 = vadd.f32 %v5565, %v4414
  %v5567 = vadd.f32 %v5566, %v4418
  %v5568 = vadd.f32 %v5567, %v4422
  %v5569 = vadd.f32 %v5568, %v4426
  %v5570 = vadd.f32 %v5569, %v4430
  %v5571 = vadd.f32 %v5570, %v4434
  %v5572 = vadd.f32 %v5571, %v4438
  %v5573 = vadd.f32 %v5572, %v4442
  %v5574 = vadd.f32 %v5573, %v4446
  %v5575 = vadd.f32 %v5574, %v4450
  %v5576 = vadd.f32 %v5575, %v4454
  %v5577 = vadd.f32 %v5576, %v4458
  %v5578 = vadd.f32 %v5577, %v4462
  %v5579 = vadd.f32 %v5578, %v4466
  %v5580 = vadd.f32 %v5579, %v4470
  %v5581 = vadd.f32 %v5580, %v4474
  %v5582 = vadd.f32 %v5581, %v4478
  %v5583 = vadd.f32 %v5582, %v4482
  %v5584 = vadd.f32 %v5583, %v4486
  %v5585 = vrot.slane %v5584, 4
  %v5586 = vadd.f32 %v5584, %v5585
  %v5587 = vrot.slane %v5586, 2
  %v5588 = vadd.f32 %v5586, %v5587
  %v5589 = vrot.slane %v5588, 1
  %v5590 = vadd.f32 %v5588, %v5589
  %v5591 = vadd.f32 %v4487, %v4491
  %v5592 = vadd.f32 %v5591, %v4495
  %v5593 = vadd.f32 %v5592, %v4499
  %v5594 = vadd.f32 %v5593, %v4503
  %v5595 = vadd.f32 %v5594, %v4507
  %v5596 = vadd.f32 %v5595, %v4511
  %v5597 = vadd.f32 %v5596, %v4515
  %v5598 = vadd.f32 %v5597, %v4519
  %v5599 = vadd.f32 %v5598, %v4523
  %v5600 = vadd.f32 %v5599, %v4527
  %v5601 = vadd.f32 %v5600, %v4531
  %v5602 = vadd.f32 %v5601, %v4535
  %v5603 = vadd.f32 %v5602, %v4539
  %v5604 = vadd.f32 %v5603, %v4543
  %v5605 = vadd.f32 %v5604, %v4547
  %v5606 = vadd.f32 %v5605, %v4551
  %v5607 = vadd.f32 %v5606, %v4555
  %v5608 = vadd.f32 %v5607, %v4559
  %v5609 = vadd.f32 %v5608, %v4563
  %v5610 = vadd.f32 %v5609, %v4567
  %v5611 = vadd.f32 %v5610, %v4571
  %v5612 = vadd.f32 %v5611, %v4575
  %v5613 = vadd.f32 %v5612, %v4579
  %v5614 = vadd.f32 %v5613, %v4583
  %v5615 = vadd.f32 %v5614, %v4587
  %v5616 = vadd.f32 %v5615, %v4591
  %v5617 = vadd.f32 %v5616, %v4595
  %v5618 = vadd.f32 %v5617, %v4599
  %v5619 = vadd.f32 %v5618, %v4603
  %v5620 = vadd.f32 %v5619, %v4607
  %v5621 = vadd.f32 %v5620, %v4611
  %v5622 = vrot.slane %v5621, 4
  %v5623 = vadd.f32 %v5621, %v5622
  %v5624 = vrot.slane %v5623, 2
  %v5625 = vadd.f32 %v5623, %v5624
  %v5626 = vrot.slane %v5625, 1
  %v5627 = vadd.f32 %v5625, %v5626
  %v5628 = vadd.f32 %v4488, %v4492
  %v5629 = vadd.f32 %v5628, %v4496
  %v5630 = vadd.f32 %v5629, %v4500
  %v5631 = vadd.f32 %v5630, %v4504
  %v5632 = vadd.f32 %v5631, %v4508
  %v5633 = vadd.f32 %v5632, %v4512
  %v5634 = vadd.f32 %v5633, %v4516
  %v5635 = vadd.f32 %v5634, %v4520
  %v5636 = vadd.f32 %v5635, %v4524
  %v5637 = vadd.f32 %v5636, %v4528
  %v5638 = vadd.f32 %v5637, %v4532
  %v5639 = vadd.f32 %v5638, %v4536
  %v5640 = vadd.f32 %v5639, %v4540
  %v5641 = vadd.f32 %v5640, %v4544
  %v5642 = vadd.f32 %v5641, %v4548
  %v5643 = vadd.f32 %v5642, %v4552
  %v5644 = vadd.f32 %v5643, %v4556
  %v5645 = vadd.f32 %v5644, %v4560
  %v5646 = vadd.f32 %v5645, %v4564
  %v5647 = vadd.f32 %v5646, %v4568
  %v5648 = vadd.f32 %v5647, %v4572
  %v5649 = vadd.f32 %v5648, %v4576
  %v5650 = vadd.f32 %v5649, %v4580
  %v5651 = vadd.f32 %v5650, %v4584
  %v5652 = vadd.f32 %v5651, %v4588
  %v5653 = vadd.f32 %v5652, %v4592
  %v5654 = vadd.f32 %v5653, %v4596
  %v5655 = vadd.f32 %v5654, %v4600
  %v5656 = vadd.f32 %v5655, %v4604
  %v5657 = vadd.f32 %v5656, %v4608
  %v5658 = vadd.f32 %v5657, %v4612
  %v5659 = vrot.slane %v5658, 4
  %v5660 = vadd.f32 %v5658, %v5659
  %v5661 = vrot.slane %v5660, 2
  %v5662 = vadd.f32 %v5660, %v5661
  %v5663 = vrot.slane %v5662, 1
  %v5664 = vadd.f32 %v5662, %v5663
  %v5665 = vadd.f32 %v4489, %v4493
  %v5666 = vadd.f32 %v5665, %v4497
  %v5667 = vadd.f32 %v5666, %v4501
  %v5668 = vadd.f32 %v5667, %v4505
  %v5669 = vadd.f32 %v5668, %v4509
  %v5670 = vadd.f32 %v5669, %v4513
  %v5671 = vadd.f32 %v5670, %v4517
  %v5672 = vadd.f32 %v5671, %v4521
  %v5673 = vadd.f32 %v5672, %v4525
  %v5674 = vadd.f32 %v5673, %v4529
  %v5675 = vadd.f32 %v5674, %v4533
  %v5676 = vadd.f32 %v5675, %v4537
  %v5677 = vadd.f32 %v5676, %v4541
  %v5678 = vadd.f32 %v5677, %v4545
  %v5679 = vadd.f32 %v5678, %v4549
  %v5680 = vadd.f32 %v5679, %v4553
  %v5681 = vadd.f32 %v5680, %v4557
  %v5682 = vadd.f32 %v5681, %v4561
  %v5683 = vadd.f32 %v5682, %v4565
  %v5684 = vadd.f32 %v5683, %v4569
  %v5685 = vadd.f32 %v5684, %v4573
  %v5686 = vadd.f32 %v5685, %v4577
  %v5687 = vadd.f32 %v5686, %v4581
  %v5688 = vadd.f32 %v5687, %v4585
  %v5689 = vadd.f32 %v5688, %v4589
  %v5690 = vadd.f32 %v5689, %v4593
  %v5691 = vadd.f32 %v5690, %v4597
  %v5692 = vadd.f32 %v5691, %v4601
  %v5693 = vadd.f32 %v5692, %v4605
  %v5694 = vadd.f32 %v5693, %v4609
  %v5695 = vadd.f32 %v5694, %v4613
  %v5696 = vrot.slane %v5695, 4
  %v5697 = vadd.f32 %v5695, %v5696
  %v5698 = vrot.slane %v5697, 2
  %v5699 = vadd.f32 %v5697, %v5698
  %v5700 = vrot.slane %v5699, 1
  %v5701 = vadd.f32 %v5699, %v5700
  %v5702 = vadd.f32 %v4490, %v4494
  %v5703 = vadd.f32 %v5702, %v4498
  %v5704 = vadd.f32 %v5703, %v4502
  %v5705 = vadd.f32 %v5704, %v4506
  %v5706 = vadd.f32 %v5705, %v4510
  %v5707 = vadd.f32 %v5706, %v4514
  %v5708 = vadd.f32 %v5707, %v4518
  %v5709 = vadd.f32 %v5708, %v4522
  %v5710 = vadd.f32 %v5709, %v4526
  %v5711 = vadd.f32 %v5710, %v4530
  %v5712 = vadd.f32 %v5711, %v4534
  %v5713 = vadd.f32 %v5712, %v4538
  %v5714 = vadd.f32 %v5713, %v4542
  %v5715 = vadd.f32 %v5714, %v4546
  %v5716 = vadd.f32 %v5715, %v4550
  %v5717 = vadd.f32 %v5716, %v4554
  %v5718 = vadd.f32 %v5717, %v4558
  %v5719 = vadd.f32 %v5718, %v4562
  %v5720 = vadd.f32 %v5719, %v4566
  %v5721 = vadd.f32 %v5720, %v4570
  %v5722 = vadd.f32 %v5721, %v4574
  %v5723 = vadd.f32 %v5722, %v4578
  %v5724 = vadd.f32 %v5723, %v4582
  %v5725 = vadd.f32 %v5724, %v4586
  %v5726 = vadd.f32 %v5725, %v4590
  %v5727 = vadd.f32 %v5726, %v4594
  %v5728 = vadd.f32 %v5727, %v4598
  %v5729 = vadd.f32 %v5728, %v4602
  %v5730 = vadd.f32 %v5729, %v4606
  %v5731 = vadd.f32 %v5730, %v4610
  %v5732 = vadd.f32 %v5731, %v4614
  %v5733 = vrot.slane %v5732, 4
  %v5734 = vadd.f32 %v5732, %v5733
  %v5735 = vrot.slane %v5734, 2
  %v5736 = vadd.f32 %v5734, %v5735
  %v5737 = vrot.slane %v5736, 1
  %v5738 = vadd.f32 %v5736, %v5737
  %v5739 = vadd.f32 %v4615, %v4619
  %v5740 = vadd.f32 %v5739, %v4623
  %v5741 = vadd.f32 %v5740, %v4627
  %v5742 = vadd.f32 %v5741, %v4631
  %v5743 = vadd.f32 %v5742, %v4635
  %v5744 = vadd.f32 %v5743, %v4639
  %v5745 = vadd.f32 %v5744, %v4643
  %v5746 = vadd.f32 %v5745, %v4647
  %v5747 = vadd.f32 %v5746, %v4651
  %v5748 = vadd.f32 %v5747, %v4655
  %v5749 = vadd.f32 %v5748, %v4659
  %v5750 = vadd.f32 %v5749, %v4663
  %v5751 = vadd.f32 %v5750, %v4667
  %v5752 = vadd.f32 %v5751, %v4671
  %v5753 = vadd.f32 %v5752, %v4675
  %v5754 = vadd.f32 %v5753, %v4679
  %v5755 = vadd.f32 %v5754, %v4683
  %v5756 = vadd.f32 %v5755, %v4687
  %v5757 = vadd.f32 %v5756, %v4691
  %v5758 = vadd.f32 %v5757, %v4695
  %v5759 = vadd.f32 %v5758, %v4699
  %v5760 = vadd.f32 %v5759, %v4703
  %v5761 = vadd.f32 %v5760, %v4707
  %v5762 = vadd.f32 %v5761, %v4711
  %v5763 = vadd.f32 %v5762, %v4715
  %v5764 = vadd.f32 %v5763, %v4719
  %v5765 = vadd.f32 %v5764, %v4723
  %v5766 = vadd.f32 %v5765, %v4727
  %v5767 = vadd.f32 %v5766, %v4731
  %v5768 = vadd.f32 %v5767, %v4735
  %v5769 = vadd.f32 %v5768, %v4739
  %v5770 = vrot.slane %v5769, 4
  %v5771 = vadd.f32 %v5769, %v5770
  %v5772 = vrot.slane %v5771, 2
  %v5773 = vadd.f32 %v5771, %v5772
  %v5774 = vrot.slane %v5773, 1
  %v5775 = vadd.f32 %v5773, %v5774
  %v5776 = vadd.f32 %v4616, %v4620
  %v5777 = vadd.f32 %v5776, %v4624
  %v5778 = vadd.f32 %v5777, %v4628
  %v5779 = vadd.f32 %v5778, %v4632
  %v5780 = vadd.f32 %v5779, %v4636
  %v5781 = vadd.f32 %v5780, %v4640
  %v5782 = vadd.f32 %v5781, %v4644
  %v5783 = vadd.f32 %v5782, %v4648
  %v5784 = vadd.f32 %v5783, %v4652
  %v5785 = vadd.f32 %v5784, %v4656
  %v5786 = vadd.f32 %v5785, %v4660
  %v5787 = vadd.f32 %v5786, %v4664
  %v5788 = vadd.f32 %v5787, %v4668
  %v5789 = vadd.f32 %v5788, %v4672
  %v5790 = vadd.f32 %v5789, %v4676
  %v5791 = vadd.f32 %v5790, %v4680
  %v5792 = vadd.f32 %v5791, %v4684
  %v5793 = vadd.f32 %v5792, %v4688
  %v5794 = vadd.f32 %v5793, %v4692
  %v5795 = vadd.f32 %v5794, %v4696
  %v5796 = vadd.f32 %v5795, %v4700
  %v5797 = vadd.f32 %v5796, %v4704
  %v5798 = vadd.f32 %v5797, %v4708
  %v5799 = vadd.f32 %v5798, %v4712
  %v5800 = vadd.f32 %v5799, %v4716
  %v5801 = vadd.f32 %v5800, %v4720
  %v5802 = vadd.f32 %v5801, %v4724
  %v5803 = vadd.f32 %v5802, %v4728
  %v5804 = vadd.f32 %v5803, %v4732
  %v5805 = vadd.f32 %v5804, %v4736
  %v5806 = vadd.f32 %v5805, %v4740
  %v5807 = vrot.slane %v5806, 4
  %v5808 = vadd.f32 %v5806, %v5807
  %v5809 = vrot.slane %v5808, 2
  %v5810 = vadd.f32 %v5808, %v5809
  %v5811 = vrot.slane %v5810, 1
  %v5812 = vadd.f32 %v5810, %v5811
  %v5813 = vadd.f32 %v4617, %v4621
  %v5814 = vadd.f32 %v5813, %v4625
  %v5815 = vadd.f32 %v5814, %v4629
  %v5816 = vadd.f32 %v5815, %v4633
  %v5817 = vadd.f32 %v5816, %v4637
  %v5818 = vadd.f32 %v5817, %v4641
  %v5819 = vadd.f32 %v5818, %v4645
  %v5820 = vadd.f32 %v5819, %v4649
  %v5821 = vadd.f32 %v5820, %v4653
  %v5822 = vadd.f32 %v5821, %v4657
  %v5823 = vadd.f32 %v5822, %v4661
  %v5824 = vadd.f32 %v5823, %v4665
  %v5825 = vadd.f32 %v5824, %v4669
  %v5826 = vadd.f32 %v5825, %v4673
  %v5827 = vadd.f32 %v5826, %v4677
  %v5828 = vadd.f32 %v5827, %v4681
  %v5829 = vadd.f32 %v5828, %v4685
  %v5830 = vadd.f32 %v5829, %v4689
  %v5831 = vadd.f32 %v5830, %v4693
  %v5832 = vadd.f32 %v5831, %v4697
  %v5833 = vadd.f32 %v5832, %v4701
  %v5834 = vadd.f32 %v5833, %v4705
  %v5835 = vadd.f32 %v5834, %v4709
  %v5836 = vadd.f32 %v5835, %v4713
  %v5837 = vadd.f32 %v5836, %v4717
  %v5838 = vadd.f32 %v5837, %v4721
  %v5839 = vadd.f32 %v5838, %v4725
  %v5840 = vadd.f32 %v5839, %v4729
  %v5841 = vadd.f32 %v5840, %v4733
  %v5842 = vadd.f32 %v5841, %v4737
  %v5843 = vadd.f32 %v5842, %v4741
  %v5844 = vrot.slane %v5843, 4
  %v5845 = vadd.f32 %v5843, %v5844
  %v5846 = vrot.slane %v5845, 2
  %v5847 = vadd.f32 %v5845, %v5846
  %v5848 = vrot.slane %v5847, 1
  %v5849 = vadd.f32 %v5847, %v5848
  %v5850 = vadd.f32 %v4618, %v4622
  %v5851 = vadd.f32 %v5850, %v4626
  %v5852 = vadd.f32 %v5851, %v4630
  %v5853 = vadd.f32 %v5852, %v4634
  %v5854 = vadd.f32 %v5853, %v4638
  %v5855 = vadd.f32 %v5854, %v4642
  %v5856 = vadd.f32 %v5855, %v4646
  %v5857 = vadd.f32 %v5856, %v4650
  %v5858 = vadd.f32 %v5857, %v4654
  %v5859 = vadd.f32 %v5858, %v4658
  %v5860 = vadd.f32 %v5859, %v4662
  %v5861 = vadd.f32 %v5860, %v4666
  %v5862 = vadd.f32 %v5861, %v4670
  %v5863 = vadd.f32 %v5862, %v4674
  %v5864 = vadd.f32 %v5863, %v4678
  %v5865 = vadd.f32 %v5864, %v4682
  %v5866 = vadd.f32 %v5865, %v4686
  %v5867 = vadd.f32 %v5866, %v4690
  %v5868 = vadd.f32 %v5867, %v4694
  %v5869 = vadd.f32 %v5868, %v4698
  %v5870 = vadd.f32 %v5869, %v4702
  %v5871 = vadd.f32 %v5870, %v4706
  %v5872 = vadd.f32 %v5871, %v4710
  %v5873 = vadd.f32 %v5872, %v4714
  %v5874 = vadd.f32 %v5873, %v4718
  %v5875 = vadd.f32 %v5874, %v4722
  %v5876 = vadd.f32 %v5875, %v4726
  %v5877 = vadd.f32 %v5876, %v4730
  %v5878 = vadd.f32 %v5877, %v4734
  %v5879 = vadd.f32 %v5878, %v4738
  %v5880 = vadd.f32 %v5879, %v4742
  %v5881 = vrot.slane %v5880, 4
  %v5882 = vadd.f32 %v5880, %v5881
  %v5883 = vrot.slane %v5882, 2
  %v5884 = vadd.f32 %v5882, %v5883
  %v5885 = vrot.slane %v5884, 1
  %v5886 = vadd.f32 %v5884, %v5885
  %v5887 = vadd.f32 %v4743, %v4747
  %v5888 = vadd.f32 %v5887, %v4751
  %v5889 = vadd.f32 %v5888, %v4755
  %v5890 = vadd.f32 %v5889, %v4759
  %v5891 = vadd.f32 %v5890, %v4763
  %v5892 = vadd.f32 %v5891, %v4767
  %v5893 = vadd.f32 %v5892, %v4771
  %v5894 = vadd.f32 %v5893, %v4775
  %v5895 = vadd.f32 %v5894, %v4779
  %v5896 = vadd.f32 %v5895, %v4783
  %v5897 = vadd.f32 %v5896, %v4787
  %v5898 = vadd.f32 %v5897, %v4791
  %v5899 = vadd.f32 %v5898, %v4795
  %v5900 = vadd.f32 %v5899, %v4799
  %v5901 = vadd.f32 %v5900, %v4803
  %v5902 = vadd.f32 %v5901, %v4807
  %v5903 = vadd.f32 %v5902, %v4811
  %v5904 = vadd.f32 %v5903, %v4815
  %v5905 = vadd.f32 %v5904, %v4819
  %v5906 = vadd.f32 %v5905, %v4823
  %v5907 = vadd.f32 %v5906, %v4827
  %v5908 = vadd.f32 %v5907, %v4831
  %v5909 = vadd.f32 %v5908, %v4835
  %v5910 = vadd.f32 %v5909, %v4839
  %v5911 = vadd.f32 %v5910, %v4843
  %v5912 = vadd.f32 %v5911, %v4847
  %v5913 = vadd.f32 %v5912, %v4851
  %v5914 = vadd.f32 %v5913, %v4855
  %v5915 = vadd.f32 %v5914, %v4859
  %v5916 = vadd.f32 %v5915, %v4863
  %v5917 = vadd.f32 %v5916, %v4867
  %v5918 = vrot.slane %v5917, 4
  %v5919 = vadd.f32 %v5917, %v5918
  %v5920 = vrot.slane %v5919, 2
  %v5921 = vadd.f32 %v5919, %v5920
  %v5922 = vrot.slane %v5921, 1
  %v5923 = vadd.f32 %v5921, %v5922
  %v5924 = vadd.f32 %v4744, %v4748
  %v5925 = vadd.f32 %v5924, %v4752
  %v5926 = vadd.f32 %v5925, %v4756
  %v5927 = vadd.f32 %v5926, %v4760
  %v5928 = vadd.f32 %v5927, %v4764
  %v5929 = vadd.f32 %v5928, %v4768
  %v5930 = vadd.f32 %v5929, %v4772
  %v5931 = vadd.f32 %v5930, %v4776
  %v5932 = vadd.f32 %v5931, %v4780
  %v5933 = vadd.f32 %v5932, %v4784
  %v5934 = vadd.f32 %v5933, %v4788
  %v5935 = vadd.f32 %v5934, %v4792
  %v5936 = vadd.f32 %v5935, %v4796
  %v5937 = vadd.f32 %v5936, %v4800
  %v5938 = vadd.f32 %v5937, %v4804
  %v5939 = vadd.f32 %v5938, %v4808
  %v5940 = vadd.f32 %v5939, %v4812
  %v5941 = vadd.f32 %v5940, %v4816
  %v5942 = vadd.f32 %v5941, %v4820
  %v5943 = vadd.f32 %v5942, %v4824
  %v5944 = vadd.f32 %v5943, %v4828
  %v5945 = vadd.f32 %v5944, %v4832
  %v5946 = vadd.f32 %v5945, %v4836
  %v5947 = vadd.f32 %v5946, %v4840
  %v5948 = vadd.f32 %v5947, %v4844
  %v5949 = vadd.f32 %v5948, %v4848
  %v5950 = vadd.f32 %v5949, %v4852
  %v5951 = vadd.f32 %v5950, %v4856
  %v5952 = vadd.f32 %v5951, %v4860
  %v5953 = vadd.f32 %v5952, %v4864
  %v5954 = vadd.f32 %v5953, %v4868
  %v5955 = vrot.slane %v5954, 4
  %v5956 = vadd.f32 %v5954, %v5955
  %v5957 = vrot.slane %v5956, 2
  %v5958 = vadd.f32 %v5956, %v5957
  %v5959 = vrot.slane %v5958, 1
  %v5960 = vadd.f32 %v5958, %v5959
  %v5961 = vadd.f32 %v4745, %v4749
  %v5962 = vadd.f32 %v5961, %v4753
  %v5963 = vadd.f32 %v5962, %v4757
  %v5964 = vadd.f32 %v5963, %v4761
  %v5965 = vadd.f32 %v5964, %v4765
  %v5966 = vadd.f32 %v5965, %v4769
  %v5967 = vadd.f32 %v5966, %v4773
  %v5968 = vadd.f32 %v5967, %v4777
  %v5969 = vadd.f32 %v5968, %v4781
  %v5970 = vadd.f32 %v5969, %v4785
  %v5971 = vadd.f32 %v5970, %v4789
  %v5972 = vadd.f32 %v5971, %v4793
  %v5973 = vadd.f32 %v5972, %v4797
  %v5974 = vadd.f32 %v5973, %v4801
  %v5975 = vadd.f32 %v5974, %v4805
  %v5976 = vadd.f32 %v5975, %v4809
  %v5977 = vadd.f32 %v5976, %v4813
  %v5978 = vadd.f32 %v5977, %v4817
  %v5979 = vadd.f32 %v5978, %v4821
  %v5980 = vadd.f32 %v5979, %v4825
  %v5981 = vadd.f32 %v5980, %v4829
  %v5982 = vadd.f32 %v5981, %v4833
  %v5983 = vadd.f32 %v5982, %v4837
  %v5984 = vadd.f32 %v5983, %v4841
  %v5985 = vadd.f32 %v5984, %v4845
  %v5986 = vadd.f32 %v5985, %v4849
  %v5987 = vadd.f32 %v5986, %v4853
  %v5988 = vadd.f32 %v5987, %v4857
  %v5989 = vadd.f32 %v5988, %v4861
  %v5990 = vadd.f32 %v5989, %v4865
  %v5991 = vadd.f32 %v5990, %v4869
  %v5992 = vrot.slane %v5991, 4
  %v5993 = vadd.f32 %v5991, %v5992
  %v5994 = vrot.slane %v5993, 2
  %v5995 = vadd.f32 %v5993, %v5994
  %v5996 = vrot.slane %v5995, 1
  %v5997 = vadd.f32 %v5995, %v5996
  %v5998 = vadd.f32 %v4746, %v4750
  %v5999 = vadd.f32 %v5998, %v4754
  %v6000 = vadd.f32 %v5999, %v4758
  %v6001 = vadd.f32 %v6000, %v4762
  %v6002 = vadd.f32 %v6001, %v4766
  %v6003 = vadd.f32 %v6002, %v4770
  %v6004 = vadd.f32 %v6003, %v4774
  %v6005 = vadd.f32 %v6004, %v4778
  %v6006 = vadd.f32 %v6005, %v4782
  %v6007 = vadd.f32 %v6006, %v4786
  %v6008 = vadd.f32 %v6007, %v4790
  %v6009 = vadd.f32 %v6008, %v4794
  %v6010 = vadd.f32 %v6009, %v4798
  %v6011 = vadd.f32 %v6010, %v4802
  %v6012 = vadd.f32 %v6011, %v4806
  %v6013 = vadd.f32 %v6012, %v4810
  %v6014 = vadd.f32 %v6013, %v4814
  %v6015 = vadd.f32 %v6014, %v4818
  %v6016 = vadd.f32 %v6015, %v4822
  %v6017 = vadd.f32 %v6016, %v4826
  %v6018 = vadd.f32 %v6017, %v4830
  %v6019 = vadd.f32 %v6018, %v4834
  %v6020 = vadd.f32 %v6019, %v4838
  %v6021 = vadd.f32 %v6020, %v4842
  %v6022 = vadd.f32 %v6021, %v4846
  %v6023 = vadd.f32 %v6022, %v4850
  %v6024 = vadd.f32 %v6023, %v4854
  %v6025 = vadd.f32 %v6024, %v4858
  %v6026 = vadd.f32 %v6025, %v4862
  %v6027 = vadd.f32 %v6026, %v4866
  %v6028 = vadd.f32 %v6027, %v4870
  %v6029 = vrot.slane %v6028, 4
  %v6030 = vadd.f32 %v6028, %v6029
  %v6031 = vrot.slane %v6030, 2
  %v6032 = vadd.f32 %v6030, %v6031
  %v6033 = vrot.slane %v6032, 1
  %v6034 = vadd.f32 %v6032, %v6033
  %v6035 = vadd.f32 %v4871, %v4875
  %v6036 = vadd.f32 %v6035, %v4879
  %v6037 = vadd.f32 %v6036, %v4883
  %v6038 = vadd.f32 %v6037, %v4887
  %v6039 = vadd.f32 %v6038, %v4891
  %v6040 = vadd.f32 %v6039, %v4895
  %v6041 = vadd.f32 %v6040, %v4899
  %v6042 = vadd.f32 %v6041, %v4903
  %v6043 = vadd.f32 %v6042, %v4907
  %v6044 = vadd.f32 %v6043, %v4911
  %v6045 = vadd.f32 %v6044, %v4915
  %v6046 = vadd.f32 %v6045, %v4919
  %v6047 = vadd.f32 %v6046, %v4923
  %v6048 = vadd.f32 %v6047, %v4927
  %v6049 = vadd.f32 %v6048, %v4931
  %v6050 = vadd.f32 %v6049, %v4935
  %v6051 = vadd.f32 %v6050, %v4939
  %v6052 = vadd.f32 %v6051, %v4943
  %v6053 = vadd.f32 %v6052, %v4947
  %v6054 = vadd.f32 %v6053, %v4951
  %v6055 = vadd.f32 %v6054, %v4955
  %v6056 = vadd.f32 %v6055, %v4959
  %v6057 = vadd.f32 %v6056, %v4963
  %v6058 = vadd.f32 %v6057, %v4967
  %v6059 = vadd.f32 %v6058, %v4971
  %v6060 = vadd.f32 %v6059, %v4975
  %v6061 = vadd.f32 %v6060, %v4979
  %v6062 = vadd.f32 %v6061, %v4983
  %v6063 = vadd.f32 %v6062, %v4987
  %v6064 = vadd.f32 %v6063, %v4991
  %v6065 = vadd.f32 %v6064, %v4995
  %v6066 = vrot.slane %v6065, 4
  %v6067 = vadd.f32 %v6065, %v6066
  %v6068 = vrot.slane %v6067, 2
  %v6069 = vadd.f32 %v6067, %v6068
  %v6070 = vrot.slane %v6069, 1
  %v6071 = vadd.f32 %v6069, %v6070
  %v6072 = vadd.f32 %v4872, %v4876
  %v6073 = vadd.f32 %v6072, %v4880
  %v6074 = vadd.f32 %v6073, %v4884
  %v6075 = vadd.f32 %v6074, %v4888
  %v6076 = vadd.f32 %v6075, %v4892
  %v6077 = vadd.f32 %v6076, %v4896
  %v6078 = vadd.f32 %v6077, %v4900
  %v6079 = vadd.f32 %v6078, %v4904
  %v6080 = vadd.f32 %v6079, %v4908
  %v6081 = vadd.f32 %v6080, %v4912
  %v6082 = vadd.f32 %v6081, %v4916
  %v6083 = vadd.f32 %v6082, %v4920
  %v6084 = vadd.f32 %v6083, %v4924
  %v6085 = vadd.f32 %v6084, %v4928
  %v6086 = vadd.f32 %v6085, %v4932
  %v6087 = vadd.f32 %v6086, %v4936
  %v6088 = vadd.f32 %v6087, %v4940
  %v6089 = vadd.f32 %v6088, %v4944
  %v6090 = vadd.f32 %v6089, %v4948
  %v6091 = vadd.f32 %v6090, %v4952
  %v6092 = vadd.f32 %v6091, %v4956
  %v6093 = vadd.f32 %v6092, %v4960
  %v6094 = vadd.f32 %v6093, %v4964
  %v6095 = vadd.f32 %v6094, %v4968
  %v6096 = vadd.f32 %v6095, %v4972
  %v6097 = vadd.f32 %v6096, %v4976
  %v6098 = vadd.f32 %v6097, %v4980
  %v6099 = vadd.f32 %v6098, %v4984
  %v6100 = vadd.f32 %v6099, %v4988
  %v6101 = vadd.f32 %v6100, %v4992
  %v6102 = vadd.f32 %v6101, %v4996
  %v6103 = vrot.slane %v6102, 4
  %v6104 = vadd.f32 %v6102, %v6103
  %v6105 = vrot.slane %v6104, 2
  %v6106 = vadd.f32 %v6104, %v6105
  %v6107 = vrot.slane %v6106, 1
  %v6108 = vadd.f32 %v6106, %v6107
  %v6109 = vadd.f32 %v4873, %v4877
  %v6110 = vadd.f32 %v6109, %v4881
  %v6111 = vadd.f32 %v6110, %v4885
  %v6112 = vadd.f32 %v6111, %v4889
  %v6113 = vadd.f32 %v6112, %v4893
  %v6114 = vadd.f32 %v6113, %v4897
  %v6115 = vadd.f32 %v6114, %v4901
  %v6116 = vadd.f32 %v6115, %v4905
  %v6117 = vadd.f32 %v6116, %v4909
  %v6118 = vadd.f32 %v6117, %v4913
  %v6119 = vadd.f32 %v6118, %v4917
  %v6120 = vadd.f32 %v6119, %v4921
  %v6121 = vadd.f32 %v6120, %v4925
  %v6122 = vadd.f32 %v6121, %v4929
  %v6123 = vadd.f32 %v6122, %v4933
  %v6124 = vadd.f32 %v6123, %v4937
  %v6125 = vadd.f32 %v6124, %v4941
  %v6126 = vadd.f32 %v6125, %v4945
  %v6127 = vadd.f32 %v6126, %v4949
  %v6128 = vadd.f32 %v6127, %v4953
  %v6129 = vadd.f32 %v6128, %v4957
  %v6130 = vadd.f32 %v6129, %v4961
  %v6131 = vadd.f32 %v6130, %v4965
  %v6132 = vadd.f32 %v6131, %v4969
  %v6133 = vadd.f32 %v6132, %v4973
  %v6134 = vadd.f32 %v6133, %v4977
  %v6135 = vadd.f32 %v6134, %v4981
  %v6136 = vadd.f32 %v6135, %v4985
  %v6137 = vadd.f32 %v6136, %v4989
  %v6138 = vadd.f32 %v6137, %v4993
  %v6139 = vadd.f32 %v6138, %v4997
  %v6140 = vrot.slane %v6139, 4
  %v6141 = vadd.f32 %v6139, %v6140
  %v6142 = vrot.slane %v6141, 2
  %v6143 = vadd.f32 %v6141, %v6142
  %v6144 = vrot.slane %v6143, 1
  %v6145 = vadd.f32 %v6143, %v6144
  %v6146 = vadd.f32 %v4874, %v4878
  %v6147 = vadd.f32 %v6146, %v4882
  %v6148 = vadd.f32 %v6147, %v4886
  %v6149 = vadd.f32 %v6148, %v4890
  %v6150 = vadd.f32 %v6149, %v4894
  %v6151 = vadd.f32 %v6150, %v4898
  %v6152 = vadd.f32 %v6151, %v4902
  %v6153 = vadd.f32 %v6152, %v4906
  %v6154 = vadd.f32 %v6153, %v4910
  %v6155 = vadd.f32 %v6154, %v4914
  %v6156 = vadd.f32 %v6155, %v4918
  %v6157 = vadd.f32 %v6156, %v4922
  %v6158 = vadd.f32 %v6157, %v4926
  %v6159 = vadd.f32 %v6158, %v4930
  %v6160 = vadd.f32 %v6159, %v4934
  %v6161 = vadd.f32 %v6160, %v4938
  %v6162 = vadd.f32 %v6161, %v4942
  %v6163 = vadd.f32 %v6162, %v4946
  %v6164 = vadd.f32 %v6163, %v4950
  %v6165 = vadd.f32 %v6164, %v4954
  %v6166 = vadd.f32 %v6165, %v4958
  %v6167 = vadd.f32 %v6166, %v4962
  %v6168 = vadd.f32 %v6167, %v4966
  %v6169 = vadd.f32 %v6168, %v4970
  %v6170 = vadd.f32 %v6169, %v4974
  %v6171 = vadd.f32 %v6170, %v4978
  %v6172 = vadd.f32 %v6171, %v4982
  %v6173 = vadd.f32 %v6172, %v4986
  %v6174 = vadd.f32 %v6173, %v4990
  %v6175 = vadd.f32 %v6174, %v4994
  %v6176 = vadd.f32 %v6175, %v4998
  %v6177 = vrot.slane %v6176, 4
  %v6178 = vadd.f32 %v6176, %v6177
  %v6179 = vrot.slane %v6178, 2
  %v6180 = vadd.f32 %v6178, %v6179
  %v6181 = vrot.slane %v6180, 1
  %v6182 = vadd.f32 %v6180, %v6181
  %v6183 = vmul.f32 %v5035, 0.00390625
  %v6184 = vmul.f32 %v5072, 0.00390625
  %v6185 = vmul.f32 %v5109, 0.00390625
  %v6186 = vmul.f32 %v5146, 0.00390625
  %v6187 = vmul.f32 %v5183, 0.00390625
  %v6188 = vmul.f32 %v5220, 0.00390625
  %v6189 = vmul.f32 %v5257, 0.00390625
  %v6190 = vmul.f32 %v5294, 0.00390625
  %v6191 = vmul.f32 %v5331, 0.00390625
  %v6192 = vmul.f32 %v5368, 0.00390625
  %v6193 = vmul.f32 %v5405, 0.00390625
  %v6194 = vmul.f32 %v5442, 0.00390625
  %v6195 = vmul.f32 %v5479, 0.00390625
  %v6196 = vmul.f32 %v5516, 0.00390625
  %v6197 = vmul.f32 %v5553, 0.00390625
  %v6198 = vmul.f32 %v5590, 0.00390625
  %v6199 = vmul.f32 %v5627, 0.00390625
  %v6200 = vmul.f32 %v5664, 0.00390625
  %v6201 = vmul.f32 %v5701, 0.00390625
  %v6202 = vmul.f32 %v5738, 0.00390625
  %v6203 = vmul.f32 %v5775, 0.00390625
  %v6204 = vmul.f32 %v5812, 0.00390625
  %v6205 = vmul.f32 %v5849, 0.00390625
  %v6206 = vmul.f32 %v5886, 0.00390625
  %v6207 = vmul.f32 %v5923, 0.00390625
  %v6208 = vmul.f32 %v5960, 0.00390625
  %v6209 = vmul.f32 %v5997, 0.00390625
  %v6210 = vmul.f32 %v6034, 0.00390625
  %v6211 = vmul.f32 %v6071, 0.00390625
  %v6212 = vmul.f32 %v6108, 0.00390625
  %v6213 = vmul.f32 %v6145, 0.00390625
  %v6214 = vmul.f32 %v6182, 0.00390625
  %vm6247 = vcmask 1041409
  %v6248 = vsel %vm6247, %v6187, %v6183
  %vm6249 = vcmask 1042434
  %v6250 = vsel %vm6249, %v6191, %v6248
  %vm6251 = vcmask 1043459
  %v6252 = vsel %vm6251, %v6195, %v6250
  %vm6253 = vcmask 1044484
  %v6254 = vsel %vm6253, %v6199, %v6252
  %vm6255 = vcmask 1045509
  %v6256 = vsel %vm6255, %v6203, %v6254
  %vm6257 = vcmask 1046534
  %v6258 = vsel %vm6257, %v6207, %v6256
  %vm6259 = vcmask 1047559
  %v6260 = vsel %vm6259, %v6211, %v6258
  %v6261 = vsel %vm6247, %v6188, %v6184
  %v6262 = vsel %vm6249, %v6192, %v6261
  %v6263 = vsel %vm6251, %v6196, %v6262
  %v6264 = vsel %vm6253, %v6200, %v6263
  %v6265 = vsel %vm6255, %v6204, %v6264
  %v6266 = vsel %vm6257, %v6208, %v6265
  %v6267 = vsel %vm6259, %v6212, %v6266
  %v6268 = vsel %vm6247, %v6189, %v6185
  %v6269 = vsel %vm6249, %v6193, %v6268
  %v6270 = vsel %vm6251, %v6197, %v6269
  %v6271 = vsel %vm6253, %v6201, %v6270
  %v6272 = vsel %vm6255, %v6205, %v6271
  %v6273 = vsel %vm6257, %v6209, %v6272
  %v6274 = vsel %vm6259, %v6213, %v6273
  %v6275 = vsel %vm6247, %v6190, %v6186
  %v6276 = vsel %vm6249, %v6194, %v6275
  %v6277 = vsel %vm6251, %v6198, %v6276
  %v6278 = vsel %vm6253, %v6202, %v6277
  %v6279 = vsel %vm6255, %v6206, %v6278
  %v6280 = vsel %vm6257, %v6210, %v6279
  %v6281 = vsel %vm6259, %v6214, %v6280
  %6286 = vst [vmem:[%s3] sm:$0xff] %v6260
  %6287 = vst [vmem:[%s3 + $0x8] sm:$0xff] %v6267
  %6288 = vst [vmem:[%s3 + $0x10] sm:$0xff] %v6274
  %6289 = vst [vmem:[%s3 + $0x18] sm:$0xff] %v6281
  // Predicated region
  $region14: #{representation_projection.2} parent=0 // pred_check
    _
  $region15: #{representation_projection.2} parent=0 // pred_check_branch
    %6291 = sbr.rel (0) target = $region17
  $region16: #{representation_projection.2} parent=0 // pred_region
    _
  $region17: #{representation_projection.2} parent=0 // pred_fallthru
    _
  // Predicated region
  $region18: #{representation_projection.2} parent=0 // pred_check
    _
  $region19: #{representation_projection.2} parent=0 // pred_check_branch
    %6293 = sbr.rel (0) target = $region21
  $region20: #{representation_projection.2} parent=0 // pred_region
    _
  $region21: #{representation_projection.2} parent=0 // pred_fallthru
    _

</llo_original>
